<compile_context>
chip_gen: v7x
topology: tpu7x:2x2x1
jax: 0.10.0
libtpu: 0.0.40
codegen_flags: <defaults>
</compile_context>

<pallas_src>
import functools

import jax
import jax.numpy as jnp
from jax import lax
from jax.experimental import pallas as pl
from jax.experimental.pallas import tpu as pltpu

EPS = 1e-5
LANES = 128
VMEM_LIMIT = 32 * 1024 * 1024  # raise / retile for realistic shapes


def _round_up(x, m):
    return ((x + m - 1) // m) * m


# ----------------------------------------------------------------------------
# In-kernel helpers
# ----------------------------------------------------------------------------
def _zero_pad_border(pad_ref):
    """Zero only the 1-px border of the padded-image scratch.

    The interior is fully overwritten every grid step, so a full zeros_like
    pass (rev2) is wasted store-slot work.
    """
    hp, wp, cin = pad_ref.shape
    h, w = hp - 2, wp - 2
    zrow = jnp.zeros((1, wp, cin), pad_ref.dtype)
    pad_ref[0:1, :, :] = zrow
    pad_ref[hp - 1:hp, :, :] = zrow
    zcol = jnp.zeros((h, 1, cin), pad_ref.dtype)
    pad_ref[1:h + 1, 0:1, :] = zcol
    pad_ref[1:h + 1, wp - 1:wp, :] = zcol


def _stage_im2col(pad_ref, col_ref, ho, wo, stride):
    """Scatter the 9 shifted taps of the padded image into the im2col buffer.

    col_ref is (Mp, Kp) bf16 with tap j=(3*ky+kx) occupying lanes
    [j*Cin, (j+1)*Cin).  Padded tail lanes / rows are zeroed every step so the
    single MXU dot never sees uninitialized VMEM (NaN/Inf-safe).
    """
    cin = pad_ref.shape[-1]
    mp, kp = col_ref.shape
    m = ho * wo
    k = 9 * cin
    if kp > k:
        col_ref[:, k:kp] = jnp.zeros((mp, kp - k), col_ref.dtype)
    if mp > m:
        col_ref[m:mp, :] = jnp.zeros((mp - m, kp), col_ref.dtype)
    for ky in range(3):
        for kx in range(3):
            j = 3 * ky + kx
            if stride == 1:
                tap = pad_ref[ky:ky + ho, kx:kx + wo, :]
            else:
                # Strided subsample happens once here (staging), off the
                # MXU-feed path.
                tap = pad_ref[pl.ds(ky, ho, stride), pl.ds(kx, wo, stride), :]
            col_ref[0:m, j * cin:(j + 1) * cin] = tap.reshape(m, cin)
    return m


def _partial_stats(y):
    """Per-tile partial sum / sum-of-squares (f32) for BN, shape (2, Cp)."""
    s = jnp.sum(y, axis=0, keepdims=True)
    q = jnp.sum(y * y, axis=0, keepdims=True)
    return jnp.concatenate([s, q], axis=0)


# ----------------------------------------------------------------------------
# Pallas kernels (grid axis = batch element, "parallel")
# ----------------------------------------------------------------------------
def _conv1_kernel(x_ref, w_ref, out_ref, st_ref, pad_ref, col_ref, *, stride):
    """conv1 (identity-shortcut case): single im2col matmul + BN1 partials."""
    h, w = x_ref.shape[1], x_ref.shape[2]
    _, ho, wo, cp = out_ref.shape
    _zero_pad_border(pad_ref)
    pad_ref[1:h + 1, 1:w + 1, :] = x_ref[0]
    m = _stage_im2col(pad_ref, col_ref, ho, wo, stride)
    y = jnp.dot(col_ref[...], w_ref[...], preferred_element_type=jnp.float32)[0:m]
    out_ref[...] = y.reshape(1, ho, wo, cp).astype(out_ref.dtype)
    st_ref[...] = _partial_stats(y).reshape(1, 2, cp)


def _conv1_shortcut_kernel(x_ref, w_ref, ws_ref, bs_ref,
                           out_ref, sc_ref, st_ref, pad_ref, col_ref, *, stride):
    """conv1 + fused shortcut conv (with bias): x read from HBM once, one
    shared im2col feeds both MXU dots."""
    h, w = x_ref.shape[1], x_ref.shape[2]
    _, ho, wo, cp = out_ref.shape
    _zero_pad_border(pad_ref)
    pad_ref[1:h + 1, 1:w + 1, :] = x_ref[0]
    m = _stage_im2col(pad_ref, col_ref, ho, wo, stride)
    col = col_ref[...]
    y = jnp.dot(col, w_ref[...], preferred_element_type=jnp.float32)[0:m]
    out_ref[...] = y.reshape(1, ho, wo, cp).astype(out_ref.dtype)
    st_ref[...] = _partial_stats(y).reshape(1, 2, cp)
    ys = jnp.dot(col, ws_ref[...], preferred_element_type=jnp.float32)[0:m]
    ys = ys + bs_ref[...]
    sc_ref[...] = ys.reshape(1, ho, wo, cp).astype(sc_ref.dtype)


def _conv2_kernel(c1_ref, scl_ref, sft_ref, w_ref, out_ref, st_ref,
                  pad_ref, col_ref):
    """BN1 affine + ReLU fused into conv2's input path; single im2col matmul;
    emits BN2 partial stats."""
    _, ho, wo, cp = c1_ref.shape
    act = jnp.maximum(
        c1_ref[0].astype(jnp.float32) * scl_ref[...] + sft_ref[...], 0.0)
    _zero_pad_border(pad_ref)
    pad_ref[1:ho + 1, 1:wo + 1, :] = act.astype(pad_ref.dtype)
    m = _stage_im2col(pad_ref, col_ref, ho, wo, 1)
    y = jnp.dot(col_ref[...], w_ref[...], preferred_element_type=jnp.float32)[0:m]
    out_ref[...] = y.reshape(1, ho, wo, out_ref.shape[-1]).astype(out_ref.dtype)
    st_ref[...] = _partial_stats(y).reshape(1, 2, out_ref.shape[-1])


def _bn_add_relu_kernel(c2_ref, sc_ref, scl_ref, sft_ref, o_ref):
    """BN2 affine + residual add (conv shortcut, lane-padded) + ReLU."""
    c = o_ref.shape[-1]
    y = c2_ref[0].astype(jnp.float32) * scl_ref[...] + sft_ref[...]
    y = y + sc_ref[0].astype(jnp.float32)
    o_ref[...] = jnp.maximum(y[:, :, :c], 0.0).reshape(o_ref.shape)


def _bn_add_relu_id_kernel(c2_ref, x_ref, scl_ref, sft_ref, o_ref):
    """BN2 affine + residual add (identity shortcut, true-C lanes) + ReLU."""
    c = o_ref.shape[-1]
    y = c2_ref[0].astype(jnp.float32) * scl_ref[...] + sft_ref[...]
    y = y[:, :, :c] + x_ref[0].astype(jnp.float32)
    o_ref[...] = jnp.maximum(y, 0.0).reshape(o_ref.shape)


# ----------------------------------------------------------------------------
# Pallas wrappers
# ----------------------------------------------------------------------------
def conv1_pass(x, w1, ws, bs, stride):
    """First 3x3 conv (+ fused shortcut conv if present) + BN1 partial stats."""
    n, h, w, cin = x.shape
    kp, cp = w1.shape
    ho = (h - 1) // stride + 1
    wo = (w - 1) // stride + 1
    mp = _round_up(ho * wo, 8)

    x_spec = pl.BlockSpec((1, h, w, cin), lambda i: (i, 0, 0, 0))
    w_spec = pl.BlockSpec((kp, cp), lambda i: (0, 0))
    y_spec = pl.BlockSpec((1, ho, wo, cp), lambda i: (i, 0, 0, 0))
    st_spec = pl.BlockSpec((1, 2, cp), lambda i: (i, 0, 0))
    scratch = [pltpu.VMEM((h + 2, w + 2, cin), jnp.bfloat16),   # padded image
               pltpu.VMEM((mp, kp), jnp.bfloat16)]              # im2col buffer
    cparams = pltpu.CompilerParams(dimension_semantics=("parallel",),
                                   vmem_limit_bytes=VMEM_LIMIT)

    if ws is None:
        c1, st = pl.pallas_call(
            functools.partial(_conv1_kernel, stride=stride),
            out_shape=(jax.ShapeDtypeStruct((n, ho, wo, cp), jnp.bfloat16),
                       jax.ShapeDtypeStruct((n, 2, cp), jnp.float32)),
            grid=(n,),
            in_specs=[x_spec, w_spec],
            out_specs=(y_spec, st_spec),
            scratch_shapes=scratch,
            compiler_params=cparams,
        )(x, w1)
        return c1, None, st

    c1, sc, st = pl.pallas_call(
        functools.partial(_conv1_shortcut_kernel, stride=stride),
        out_shape=(jax.ShapeDtypeStruct((n, ho, wo, cp), jnp.bfloat16),
                   jax.ShapeDtypeStruct((n, ho, wo, cp), jnp.bfloat16),
                   jax.ShapeDtypeStruct((n, 2, cp), jnp.float32)),
        grid=(n,),
        in_specs=[x_spec, w_spec,
                  pl.BlockSpec((kp, cp), lambda i: (0, 0)),
                  pl.BlockSpec((1, cp), lambda i: (0, 0))],
        out_specs=(y_spec, y_spec, st_spec),
        scratch_shapes=scratch,
        compiler_params=cparams,
    )(x, w1, ws, bs)
    return c1, sc, st


def conv2_pass(c1, scale1, shift1, w2):
    """Second 3x3 conv with BN1 affine+ReLU fused on its input; BN2 partials."""
    n, ho, wo, cp = c1.shape
    kp, cp2 = w2.shape
    mp = _round_up(ho * wo, 8)
    c2, st = pl.pallas_call(
        _conv2_kernel,
        out_shape=(jax.ShapeDtypeStruct((n, ho, wo, cp2), jnp.bfloat16),
                   jax.ShapeDtypeStruct((n, 2, cp2), jnp.float32)),
        grid=(n,),
        in_specs=[pl.BlockSpec((1, ho, wo, cp), lambda i: (i, 0, 0, 0)),
                  pl.BlockSpec((1, cp), lambda i: (0, 0)),
                  pl.BlockSpec((1, cp), lambda i: (0, 0)),
                  pl.BlockSpec((kp, cp2), lambda i: (0, 0))],
        out_specs=(pl.BlockSpec((1, ho, wo, cp2), lambda i: (i, 0, 0, 0)),
                   pl.BlockSpec((1, 2, cp2), lambda i: (i, 0, 0))),
        scratch_shapes=[pltpu.VMEM((ho + 2, wo + 2, cp), jnp.bfloat16),
                        pltpu.VMEM((mp, kp), jnp.bfloat16)],
        compiler_params=pltpu.CompilerParams(dimension_semantics=("parallel",),
                                             vmem_limit_bytes=VMEM_LIMIT),
    )(c1, scale1, shift1, w2)
    return c2, st


def bn_add_relu_pass(c2, res, scale, shift, cout, identity):
    """Final BN2 affine + residual add + ReLU, tiled directly over NHWC blocks
    (no wrapper-side pad/reshape staging copies)."""
    n, ho, wo, cp = c2.shape
    # ~1-2K output rows per tile, lanes stay dense (cp = multiple of 128).
    ht = max(1, min(ho, max(1, 2048 // max(wo, 1))))
    grid = (n, pl.cdiv(ho, ht))
    res_c = res.shape[-1]
    kernel = _bn_add_relu_id_kernel if identity else _bn_add_relu_kernel
    out = pl.pallas_call(
        kernel,
        out_shape=jax.ShapeDtypeStruct((n, ho, wo, cout), jnp.float32),
        grid=grid,
        in_specs=[pl.BlockSpec((1, ht, wo, cp), lambda i, j: (i, j, 0, 0)),
                  pl.BlockSpec((1, ht, wo, res_c), lambda i, j: (i, j, 0, 0)),
                  pl.BlockSpec((1, cp), lambda i, j: (0, 0)),
                  pl.BlockSpec((1, cp), lambda i, j: (0, 0))],
        out_specs=pl.BlockSpec((1, ht, wo, cout), lambda i, j: (i, j, 0, 0)),
        compiler_params=pltpu.CompilerParams(
            dimension_semantics=("parallel", "parallel"),
            vmem_limit_bytes=VMEM_LIMIT),
    )(c2, res, scale, shift)
    return out


# ----------------------------------------------------------------------------
# JAX glue (parameter packing / BN scale-shift from partial stats)
# ----------------------------------------------------------------------------
def pack_weight(w_oihw, cin_pad, cout_pad):
    """OIHW (Cout,Cin,3,3) -> (round_up(9*cin_pad, 128), cout_pad) bf16.

    Row order (ky, kx, cin) matches the in-kernel im2col lane layout; padded
    rows / columns are zero.
    """
    cout, cin = w_oihw.shape[0], w_oihw.shape[1]
    w = jnp.transpose(w_oihw, (2, 3, 1, 0))                        # (3,3,Cin,Cout)
    w = jnp.pad(w, ((0, 0), (0, 0), (0, cin_pad - cin), (0, cout_pad - cout)))
    w = w.reshape(9 * cin_pad, cout_pad)
    kp = _round_up(9 * cin_pad, LANES)
    w = jnp.pad(w, ((0, kp - 9 * cin_pad), (0, 0)))
    return w.astype(jnp.bfloat16)


def pack_bias(b, cout_pad):
    return jnp.pad(b, (0, cout_pad - b.shape[0])).astype(jnp.float32).reshape(1, cout_pad)


def _bn_scale_shift(stats, count, gamma, beta, cp, eps=EPS):
    """Reduce per-image (N, 2, Cp) partials -> precomputed affine scale/shift."""
    g = jnp.pad(gamma, (0, cp - gamma.shape[0]))
    b = jnp.pad(beta, (0, cp - beta.shape[0]))
    s = jnp.sum(stats[:, 0, :], axis=0)
    q = jnp.sum(stats[:, 1, :], axis=0)
    mean = s / count
    # E[x^2]-E[x]^2 in f32 with clamp; conv outputs here are ~zero-mean.
    # TODO(synk): shifted / Welford partials for large-|mean| regimes.
    var = jnp.maximum(q / count - mean * mean, 0.0)
    scale = g * lax.rsqrt(var + eps)
    shift = b - mean * scale
    return scale.reshape(1, cp), shift.reshape(1, cp)


@functools.partial(jax.jit, static_argnames=("stride",))
def residual_block_forward(x_nchw, params, stride=1):
    x = jnp.transpose(x_nchw, (0, 2, 3, 1)).astype(jnp.bfloat16)   # NCHW -> NHWC bf16
    n, h, w, cin = x.shape
    cout = params["g1"].shape[0]
    cp = params["w1"].shape[1]

    identity = params["ws"] is None
    if identity:
        # guard: identity shortcut is only shape-valid here
        assert stride == 1 and cin == cout, \
            "identity shortcut requires stride == 1 and in_channel == out_channel"

    # conv1 (+ fused shortcut conv) + BN1 partial stats
    c1, sc, st1 = conv1_pass(x, params["w1"], params["ws"], params["bs"], stride)
    nb, ho, wo, _ = c1.shape
    count = nb * ho * wo
    scale1, shift1 = _bn_scale_shift(st1, count, params["g1"], params["b1"], cp)

    # conv2 with BN1 affine + ReLU fused on its input + BN2 partial stats
    c2, st2 = conv2_pass(c1, scale1, shift1, params["w2"])
    scale2, shift2 = _bn_scale_shift(st2, count, params["g2"], params["b2"], cp)

    res = x if identity else sc
    out = bn_add_relu_pass(c2, res, scale2, shift2, cout, identity)  # (N,Ho,Wo,Cout) f32
    return jnp.transpose(out, (0, 3, 1, 2))                          # NHWC -> NCHW


# ----------------------------------------------------------------------------
# Pure-JAX reference (sanity check only)
# ----------------------------------------------------------------------------
def reference_forward(x, params, stride=1, eps=EPS):
    def conv(x, w, b=None, s=1):
        y = lax.conv_general_dilated(
            x, w, (s, s), ((1, 1), (1, 1)),
            dimension_numbers=("NCHW", "OIHW", "NCHW"),
            precision=lax.Precision.HIGHEST,
        )
        if b is not None:
            y = y + b[None, :, None, None]
        return y

    def bn(x, g, b):
        m = x.mean(axis=(0, 2, 3), keepdims=True)
        v = x.var(axis=(0, 2, 3), keepdims=True)  # biased, like PyTorch training BN
        return g[None, :, None, None] * (x - m) / jnp.sqrt(v + eps) + b[None, :, None, None]

    h = jax.nn.relu(bn(conv(x, params["w1_oihw"], s=stride), params["g1"], params["b1"]))
    h = bn(conv(h, params["w2_oihw"]), params["g2"], params["b2"])
    if params["ws_oihw"] is None:
        sc = x
    else:
        sc = conv(x, params["ws_oihw"], params["bs_raw"], s=stride)
    return jax.nn.relu(h + sc)


# ----------------------------------------------------------------------------
if __name__ == "__main__":
    N, Cin, Cout, H, W, stride = 2, 4, 8, 16, 16, 1

    key = jax.random.PRNGKey(0)
    k = jax.random.split(key, 9)
    x = jax.random.normal(k[0], (N, Cin, H, W), jnp.float32)

    w1 = 0.1 * jax.random.normal(k[1], (Cout, Cin, 3, 3), jnp.float32)
    w2 = 0.1 * jax.random.normal(k[2], (Cout, Cout, 3, 3), jnp.float32)
    # stride==1 and Cout != Cin -> shortcut is a 3x3 conv WITH bias (PyTorch default)
    ws = 0.1 * jax.random.normal(k[3], (Cout, Cin, 3, 3), jnp.float32)
    bs = 0.1 * jax.random.normal(k[4], (Cout,), jnp.float32)

    g1 = 1.0 + 0.1 * jax.random.normal(k[5], (Cout,), jnp.float32)
    b1 = 0.1 * jax.random.normal(k[6], (Cout,), jnp.float32)
    g2 = 1.0 + 0.1 * jax.random.normal(k[7], (Cout,), jnp.float32)
    b2 = 0.1 * jax.random.normal(k[8], (Cout,), jnp.float32)

    Cp = _round_up(Cout, LANES)
    params = {
        "w1": pack_weight(w1, Cin, Cp),
        "w2": pack_weight(w2, Cp, Cp),
        "ws": pack_weight(ws, Cin, Cp),
        "bs": pack_bias(bs, Cp),
        "g1": g1, "b1": b1, "g2": g2, "b2": b2,
        # f32 OIHW copies only for the pure-JAX reference check
        "w1_oihw": w1, "w2_oihw": w2, "ws_oihw": ws, "bs_raw": bs,
    }

    out = residual_block_forward(x, params, stride=stride)
    out = jax.block_until_ready(out)
    assert out.shape == (N, Cout, H, W), out.shape

    ref = reference_forward(x, params, stride=stride)
    max_err = float(jnp.max(jnp.abs(out - ref)))
    # Deliberate precision choice: bf16 MXU operands AND bf16 intermediate
    # storage (c1/sc/c2), so the tolerance is looser than an f32 pipeline.
    assert max_err < 1e-1, f"mismatch vs reference: {max_err}"

    # Identity-shortcut path (stride=1, Cin == Cout)
    Ci = 8
    x2 = jax.random.normal(k[0], (N, Ci, H, W), jnp.float32)
    w1b = 0.1 * jax.random.normal(k[1], (Ci, Ci, 3, 3), jnp.float32)
    w2b = 0.1 * jax.random.normal(k[2], (Ci, Ci, 3, 3), jnp.float32)
    Cp2 = _round_up(Ci, LANES)
    params_id = {
        "w1": pack_weight(w1b, Ci, Cp2),
        "w2": pack_weight(w2b, Cp2, Cp2),
        "ws": None, "bs": None,
        "g1": g1, "b1": b1, "g2": g2, "b2": b2,
        "w1_oihw": w1b, "w2_oihw": w2b, "ws_oihw": None, "bs_raw": None,
    }
    out2 = jax.block_until_ready(residual_block_forward(x2, params_id, stride=1))
    assert out2.shape == (N, Ci, H, W), out2.shape
    ref2 = reference_forward(x2, params_id, stride=1)
    err2 = float(jnp.max(jnp.abs(out2 - ref2)))
    assert err2 < 1e-1, f"identity-path mismatch vs reference: {err2}"

    print("KERNEL_OK")
</pallas_src>

<mosaic_0001>
module attributes {stable_mosaic.version = 11 : i64} {
  func.func @_conv1_shortcut_kernel(%arg0: i32, %arg1: memref<1x16x16x4xbf16, #tpu.memory_space<vmem>>, %arg2: memref<128x128xbf16, #tpu.memory_space<vmem>>, %arg3: memref<128x128xbf16, #tpu.memory_space<vmem>>, %arg4: memref<1x128xf32, #tpu.memory_space<vmem>>, %arg5: memref<1x16x16x128xbf16, #tpu.memory_space<vmem>>, %arg6: memref<1x16x16x128xbf16, #tpu.memory_space<vmem>>, %arg7: memref<1x2x128xf32, #tpu.memory_space<vmem>>, %arg8: memref<18x18x4xbf16, #tpu.memory_space<vmem>>, %arg9: memref<256x128xbf16, #tpu.memory_space<vmem>>) attributes {dimension_semantics = [#tpu.dimension_semantics<parallel>], iteration_bounds = array<i64: 2>, scalar_prefetch = 0 : i64, scratch_operands = 2 : i64, tpu.core_type = #tpu.core_type<tc>, window_params = [{transform_indices = @transform_0, window_bounds = array<i64: 1, 16, 16, 4>}, {pipeline_mode = #tpu.pipeline_mode<synchronous>, transform_indices = @transform_1, window_bounds = array<i64: 128, 128>}, {pipeline_mode = #tpu.pipeline_mode<synchronous>, transform_indices = @transform_2, window_bounds = array<i64: 128, 128>}, {pipeline_mode = #tpu.pipeline_mode<synchronous>, transform_indices = @transform_3, window_bounds = array<i64: 1, 128>}, {transform_indices = @transform_4, window_bounds = array<i64: 1, 16, 16, 128>}, {transform_indices = @transform_5, window_bounds = array<i64: 1, 16, 16, 128>}, {transform_indices = @transform_6, window_bounds = array<i64: 1, 2, 128>}]} {
    %cst = arith.constant 0.000000e+00 : bf16
    %0 = vector.broadcast %cst : bf16 to vector<1x18x4xbf16>
    %c0 = arith.constant 0 : index
    %c0_0 = arith.constant 0 : index
    %c0_1 = arith.constant 0 : index
    %1 = vector.load %arg8[%c0, %c0_0, %c0_1] : memref<18x18x4xbf16, #tpu.memory_space<vmem>>, vector<1x18x4xbf16>
    tpu.vector_store %arg8[%c0, %c0_0, %c0_1], %0 {strides = array<i32>} : memref<18x18x4xbf16, #tpu.memory_space<vmem>>, vector<1x18x4xbf16>,
    %c17 = arith.constant 17 : index
    %c0_2 = arith.constant 0 : index
    %c0_3 = arith.constant 0 : index
    %2 = vector.load %arg8[%c17, %c0_2, %c0_3] : memref<18x18x4xbf16, #tpu.memory_space<vmem>>, vector<1x18x4xbf16>
    tpu.vector_store %arg8[%c17, %c0_2, %c0_3], %0 {strides = array<i32>} : memref<18x18x4xbf16, #tpu.memory_space<vmem>>, vector<1x18x4xbf16>,
    %cst_4 = arith.constant 0.000000e+00 : bf16
    %3 = vector.broadcast %cst_4 : bf16 to vector<16x1x4xbf16>
    %c1 = arith.constant 1 : index
    %c0_5 = arith.constant 0 : index
    %c0_6 = arith.constant 0 : index
    %4 = vector.load %arg8[%c1, %c0_5, %c0_6] : memref<18x18x4xbf16, #tpu.memory_space<vmem>>, vector<16x1x4xbf16>
    tpu.vector_store %arg8[%c1, %c0_5, %c0_6], %3 {strides = array<i32>} : memref<18x18x4xbf16, #tpu.memory_space<vmem>>, vector<16x1x4xbf16>,
    %c1_7 = arith.constant 1 : index
    %c17_8 = arith.constant 17 : index
    %c0_9 = arith.constant 0 : index
    %5 = vector.load %arg8[%c1_7, %c17_8, %c0_9] : memref<18x18x4xbf16, #tpu.memory_space<vmem>>, vector<16x1x4xbf16>
    tpu.vector_store %arg8[%c1_7, %c17_8, %c0_9], %3 {strides = array<i32>} : memref<18x18x4xbf16, #tpu.memory_space<vmem>>, vector<16x1x4xbf16>,
    %c0_10 = arith.constant 0 : index
    %c0_11 = arith.constant 0 : index
    %c0_12 = arith.constant 0 : index
    %c0_13 = arith.constant 0 : index
    %6 = vector.load %arg1[%c0_10, %c0_11, %c0_12, %c0_13] : memref<1x16x16x4xbf16, #tpu.memory_space<vmem>>, vector<1x16x16x4xbf16>
    %7 = vector.shape_cast %6 : vector<1x16x16x4xbf16> to vector<16x16x4xbf16>
    %c1_14 = arith.constant 1 : index
    %c1_15 = arith.constant 1 : index
    %c0_16 = arith.constant 0 : index
    %8 = vector.load %arg8[%c1_14, %c1_15, %c0_16] : memref<18x18x4xbf16, #tpu.memory_space<vmem>>, vector<16x16x4xbf16>
    tpu.vector_store %arg8[%c1_14, %c1_15, %c0_16], %7 {strides = array<i32>} : memref<18x18x4xbf16, #tpu.memory_space<vmem>>, vector<16x16x4xbf16>,
    %cst_17 = arith.constant 0.000000e+00 : bf16
    %9 = vector.broadcast %cst_17 : bf16 to vector<256x92xbf16>
    %c0_18 = arith.constant 0 : index
    %c36 = arith.constant 36 : index
    %10 = vector.load %arg9[%c0_18, %c36] : memref<256x128xbf16, #tpu.memory_space<vmem>>, vector<256x92xbf16>
    tpu.vector_store %arg9[%c0_18, %c36], %9 {strides = array<i32>} : memref<256x128xbf16, #tpu.memory_space<vmem>>, vector<256x92xbf16>,
    %c0_19 = arith.constant 0 : index
    %c0_20 = arith.constant 0 : index
    %c0_21 = arith.constant 0 : index
    %11 = vector.load %arg8[%c0_19, %c0_20, %c0_21] : memref<18x18x4xbf16, #tpu.memory_space<vmem>>, vector<16x16x4xbf16>
    %12 = vector.shape_cast %11 : vector<16x16x4xbf16> to vector<256x4xbf16>
    %c0_22 = arith.constant 0 : index
    %c0_23 = arith.constant 0 : index
    %13 = vector.load %arg9[%c0_22, %c0_23] : memref<256x128xbf16, #tpu.memory_space<vmem>>, vector<256x4xbf16>
    tpu.vector_store %arg9[%c0_22, %c0_23], %12 {strides = array<i32>} : memref<256x128xbf16, #tpu.memory_space<vmem>>, vector<256x4xbf16>,
    %c0_24 = arith.constant 0 : index
    %c1_25 = arith.constant 1 : index
    %c0_26 = arith.constant 0 : index
    %14 = vector.load %arg8[%c0_24, %c1_25, %c0_26] : memref<18x18x4xbf16, #tpu.memory_space<vmem>>, vector<16x16x4xbf16>
    %15 = vector.shape_cast %14 : vector<16x16x4xbf16> to vector<256x4xbf16>
    %c0_27 = arith.constant 0 : index
    %c4 = arith.constant 4 : index
    %16 = vector.load %arg9[%c0_27, %c4] : memref<256x128xbf16, #tpu.memory_space<vmem>>, vector<256x4xbf16>
    tpu.vector_store %arg9[%c0_27, %c4], %15 {strides = array<i32>} : memref<256x128xbf16, #tpu.memory_space<vmem>>, vector<256x4xbf16>,
    %c0_28 = arith.constant 0 : index
    %c2 = arith.constant 2 : index
    %c0_29 = arith.constant 0 : index
    %17 = vector.load %arg8[%c0_28, %c2, %c0_29] : memref<18x18x4xbf16, #tpu.memory_space<vmem>>, vector<16x16x4xbf16>
    %18 = vector.shape_cast %17 : vector<16x16x4xbf16> to vector<256x4xbf16>
    %c0_30 = arith.constant 0 : index
    %c8 = arith.constant 8 : index
    %19 = vector.load %arg9[%c0_30, %c8] : memref<256x128xbf16, #tpu.memory_space<vmem>>, vector<256x4xbf16>
    tpu.vector_store %arg9[%c0_30, %c8], %18 {strides = array<i32>} : memref<256x128xbf16, #tpu.memory_space<vmem>>, vector<256x4xbf16>,
    %c1_31 = arith.constant 1 : index
    %c0_32 = arith.constant 0 : index
    %c0_33 = arith.constant 0 : index
    %20 = vector.load %arg8[%c1_31, %c0_32, %c0_33] : memref<18x18x4xbf16, #tpu.memory_space<vmem>>, vector<16x16x4xbf16>
    %21 = vector.shape_cast %20 : vector<16x16x4xbf16> to vector<256x4xbf16>
    %c0_34 = arith.constant 0 : index
    %c12 = arith.constant 12 : index
    %22 = vector.load %arg9[%c0_34, %c12] : memref<256x128xbf16, #tpu.memory_space<vmem>>, vector<256x4xbf16>
    tpu.vector_store %arg9[%c0_34, %c12], %21 {strides = array<i32>} : memref<256x128xbf16, #tpu.memory_space<vmem>>, vector<256x4xbf16>,
    %c1_35 = arith.constant 1 : index
    %c1_36 = arith.constant 1 : index
    %c0_37 = arith.constant 0 : index
    %23 = vector.load %arg8[%c1_35, %c1_36, %c0_37] : memref<18x18x4xbf16, #tpu.memory_space<vmem>>, vector<16x16x4xbf16>
    %24 = vector.shape_cast %23 : vector<16x16x4xbf16> to vector<256x4xbf16>
    %c0_38 = arith.constant 0 : index
    %c16 = arith.constant 16 : index
    %25 = vector.load %arg9[%c0_38, %c16] : memref<256x128xbf16, #tpu.memory_space<vmem>>, vector<256x4xbf16>
    tpu.vector_store %arg9[%c0_38, %c16], %24 {strides = array<i32>} : memref<256x128xbf16, #tpu.memory_space<vmem>>, vector<256x4xbf16>,
    %c1_39 = arith.constant 1 : index
    %c2_40 = arith.constant 2 : index
    %c0_41 = arith.constant 0 : index
    %26 = vector.load %arg8[%c1_39, %c2_40, %c0_41] : memref<18x18x4xbf16, #tpu.memory_space<vmem>>, vector<16x16x4xbf16>
    %27 = vector.shape_cast %26 : vector<16x16x4xbf16> to vector<256x4xbf16>
    %c0_42 = arith.constant 0 : index
    %c20 = arith.constant 20 : index
    %28 = vector.load %arg9[%c0_42, %c20] : memref<256x128xbf16, #tpu.memory_space<vmem>>, vector<256x4xbf16>
    tpu.vector_store %arg9[%c0_42, %c20], %27 {strides = array<i32>} : memref<256x128xbf16, #tpu.memory_space<vmem>>, vector<256x4xbf16>,
    %c2_43 = arith.constant 2 : index
    %c0_44 = arith.constant 0 : index
    %c0_45 = arith.constant 0 : index
    %29 = vector.load %arg8[%c2_43, %c0_44, %c0_45] : memref<18x18x4xbf16, #tpu.memory_space<vmem>>, vector<16x16x4xbf16>
    %30 = vector.shape_cast %29 : vector<16x16x4xbf16> to vector<256x4xbf16>
    %c0_46 = arith.constant 0 : index
    %c24 = arith.constant 24 : index
    %31 = vector.load %arg9[%c0_46, %c24] : memref<256x128xbf16, #tpu.memory_space<vmem>>, vector<256x4xbf16>
    tpu.vector_store %arg9[%c0_46, %c24], %30 {strides = array<i32>} : memref<256x128xbf16, #tpu.memory_space<vmem>>, vector<256x4xbf16>,
    %c2_47 = arith.constant 2 : index
    %c1_48 = arith.constant 1 : index
    %c0_49 = arith.constant 0 : index
    %32 = vector.load %arg8[%c2_47, %c1_48, %c0_49] : memref<18x18x4xbf16, #tpu.memory_space<vmem>>, vector<16x16x4xbf16>
    %33 = vector.shape_cast %32 : vector<16x16x4xbf16> to vector<256x4xbf16>
    %c0_50 = arith.constant 0 : index
    %c28 = arith.constant 28 : index
    %34 = vector.load %arg9[%c0_50, %c28] : memref<256x128xbf16, #tpu.memory_space<vmem>>, vector<256x4xbf16>
    tpu.vector_store %arg9[%c0_50, %c28], %33 {strides = array<i32>} : memref<256x128xbf16, #tpu.memory_space<vmem>>, vector<256x4xbf16>,
    %c2_51 = arith.constant 2 : index
    %c2_52 = arith.constant 2 : index
    %c0_53 = arith.constant 0 : index
    %35 = vector.load %arg8[%c2_51, %c2_52, %c0_53] : memref<18x18x4xbf16, #tpu.memory_space<vmem>>, vector<16x16x4xbf16>
    %36 = vector.shape_cast %35 : vector<16x16x4xbf16> to vector<256x4xbf16>
    %c0_54 = arith.constant 0 : index
    %c32 = arith.constant 32 : index
    %37 = vector.load %arg9[%c0_54, %c32] : memref<256x128xbf16, #tpu.memory_space<vmem>>, vector<256x4xbf16>
    tpu.vector_store %arg9[%c0_54, %c32], %36 {strides = array<i32>} : memref<256x128xbf16, #tpu.memory_space<vmem>>, vector<256x4xbf16>,
    %c0_55 = arith.constant 0 : index
    %c0_56 = arith.constant 0 : index
    %38 = vector.load %arg9[%c0_55, %c0_56] : memref<256x128xbf16, #tpu.memory_space<vmem>>, vector<256x128xbf16>
    %c0_57 = arith.constant 0 : index
    %c0_58 = arith.constant 0 : index
    %39 = vector.load %arg2[%c0_57, %c0_58] : memref<128x128xbf16, #tpu.memory_space<vmem>>, vector<128x128xbf16>
    %cst_59 = arith.constant dense<0.000000e+00> : vector<256x128xf32>
    %40 = tpu.matmul %38, %39, %cst_59 {dimension_numbers = #tpu.dot_dimension_numbers<[1], [0], [0], [1], [0, 0, 1, 1], [], []>} : vector<256x128xbf16>, vector<128x128xbf16>, vector<256x128xf32> -> vector<256x128xf32>
    %41 = vector.shape_cast %40 : vector<256x128xf32> to vector<1x16x16x128xf32>
    %42 = arith.truncf %41 : vector<1x16x16x128xf32> to vector<1x16x16x128xbf16>
    %c0_60 = arith.constant 0 : index
    %c0_61 = arith.constant 0 : index
    %c0_62 = arith.constant 0 : index
    %c0_63 = arith.constant 0 : index
    %43 = vector.load %arg5[%c0_60, %c0_61, %c0_62, %c0_63] : memref<1x16x16x128xbf16, #tpu.memory_space<vmem>>, vector<1x16x16x128xbf16>
    tpu.vector_store %arg5[%c0_60, %c0_61, %c0_62, %c0_63], %42 {strides = array<i32>} : memref<1x16x16x128xbf16, #tpu.memory_space<vmem>>, vector<1x16x16x128xbf16>,
    %cst_64 = arith.constant dense<0.000000e+00> : vector<128xf32>
    %44 = vector.multi_reduction <add>, %40, %cst_64 [0] : vector<256x128xf32> to vector<128xf32>
    %45 = vector.shape_cast %44 : vector<128xf32> to vector<1x128xf32>
    %46 = arith.mulf %40, %40 : vector<256x128xf32>
    %cst_65 = arith.constant dense<0.000000e+00> : vector<128xf32>
    %47 = vector.multi_reduction <add>, %46, %cst_65 [0] : vector<256x128xf32> to vector<128xf32>
    %48 = vector.shape_cast %47 : vector<128xf32> to vector<1x128xf32>
    %49 = tpu.concatenate %45, %48 in 0 : vector<1x128xf32>, vector<1x128xf32> -> vector<2x128xf32>
    %50 = vector.shape_cast %49 : vector<2x128xf32> to vector<1x2x128xf32>
    %c0_66 = arith.constant 0 : index
    %c0_67 = arith.constant 0 : index
    %c0_68 = arith.constant 0 : index
    %51 = vector.load %arg7[%c0_66, %c0_67, %c0_68] : memref<1x2x128xf32, #tpu.memory_space<vmem>>, vector<1x2x128xf32>
    tpu.vector_store %arg7[%c0_66, %c0_67, %c0_68], %50 {strides = array<i32>} : memref<1x2x128xf32, #tpu.memory_space<vmem>>, vector<1x2x128xf32>,
    %c0_69 = arith.constant 0 : index
    %c0_70 = arith.constant 0 : index
    %52 = vector.load %arg3[%c0_69, %c0_70] : memref<128x128xbf16, #tpu.memory_space<vmem>>, vector<128x128xbf16>
    %cst_71 = arith.constant dense<0.000000e+00> : vector<256x128xf32>
    %53 = tpu.matmul %38, %52, %cst_71 {dimension_numbers = #tpu.dot_dimension_numbers<[1], [0], [0], [1], [0, 0, 1, 1], [], []>} : vector<256x128xbf16>, vector<128x128xbf16>, vector<256x128xf32> -> vector<256x128xf32>
    %c0_72 = arith.constant 0 : index
    %c0_73 = arith.constant 0 : index
    %54 = vector.load %arg4[%c0_72, %c0_73] : memref<1x128xf32, #tpu.memory_space<vmem>>, vector<1x128xf32>
    %55 = vector.broadcast %54 : vector<1x128xf32> to vector<256x128xf32>
    %56 = arith.addf %53, %55 : vector<256x128xf32>
    %57 = vector.shape_cast %56 : vector<256x128xf32> to vector<1x16x16x128xf32>
    %58 = arith.truncf %57 : vector<1x16x16x128xf32> to vector<1x16x16x128xbf16>
    %c0_74 = arith.constant 0 : index
    %c0_75 = arith.constant 0 : index
    %c0_76 = arith.constant 0 : index
    %c0_77 = arith.constant 0 : index
    %59 = vector.load %arg6[%c0_74, %c0_75, %c0_76, %c0_77] : memref<1x16x16x128xbf16, #tpu.memory_space<vmem>>, vector<1x16x16x128xbf16>
    tpu.vector_store %arg6[%c0_74, %c0_75, %c0_76, %c0_77], %58 {strides = array<i32>} : memref<1x16x16x128xbf16, #tpu.memory_space<vmem>>, vector<1x16x16x128xbf16>,
    return
  }
  func.func @transform_0(%arg0: i32) -> (i32, i32, i32, i32) {
    %c0_i32 = arith.constant 0 : i32
    %c0_i32_0 = arith.constant 0 : i32
    %c0_i32_1 = arith.constant 0 : i32
    %c0_i32_2 = arith.constant 0 : i32
    return %arg0, %c0_i32, %c0_i32_0, %c0_i32_1 : i32, i32, i32, i32
  }
  func.func @transform_1(%arg0: i32) -> (i32, i32) {
    %c0_i32 = arith.constant 0 : i32
    %c0_i32_0 = arith.constant 0 : i32
    %c0_i32_1 = arith.constant 0 : i32
    return %c0_i32, %c0_i32_0 : i32, i32
  }
  func.func @transform_2(%arg0: i32) -> (i32, i32) {
    %c0_i32 = arith.constant 0 : i32
    %c0_i32_0 = arith.constant 0 : i32
    %c0_i32_1 = arith.constant 0 : i32
    return %c0_i32, %c0_i32_0 : i32, i32
  }
  func.func @transform_3(%arg0: i32) -> (i32, i32) {
    %c0_i32 = arith.constant 0 : i32
    %c0_i32_0 = arith.constant 0 : i32
    %c0_i32_1 = arith.constant 0 : i32
    return %c0_i32, %c0_i32_0 : i32, i32
  }
  func.func @transform_4(%arg0: i32) -> (i32, i32, i32, i32) {
    %c0_i32 = arith.constant 0 : i32
    %c0_i32_0 = arith.constant 0 : i32
    %c0_i32_1 = arith.constant 0 : i32
    %c0_i32_2 = arith.constant 0 : i32
    return %arg0, %c0_i32, %c0_i32_0, %c0_i32_1 : i32, i32, i32, i32
  }
  func.func @transform_5(%arg0: i32) -> (i32, i32, i32, i32) {
    %c0_i32 = arith.constant 0 : i32
    %c0_i32_0 = arith.constant 0 : i32
    %c0_i32_1 = arith.constant 0 : i32
    %c0_i32_2 = arith.constant 0 : i32
    return %arg0, %c0_i32, %c0_i32_0, %c0_i32_1 : i32, i32, i32, i32
  }
  func.func @transform_6(%arg0: i32) -> (i32, i32, i32) {
    %c0_i32 = arith.constant 0 : i32
    %c0_i32_0 = arith.constant 0 : i32
    %c0_i32_1 = arith.constant 0 : i32
    return %arg0, %c0_i32, %c0_i32_0 : i32, i32, i32
  }
}

module attributes {stable_mosaic.version = 11 : i64} {
  func.func @_conv2_kernel(%arg0: i32, %arg1: memref<1x16x16x128xbf16, #tpu.memory_space<vmem>>, %arg2: memref<1x128xf32, #tpu.memory_space<vmem>>, %arg3: memref<1x128xf32, #tpu.memory_space<vmem>>, %arg4: memref<1152x128xbf16, #tpu.memory_space<vmem>>, %arg5: memref<1x16x16x128xbf16, #tpu.memory_space<vmem>>, %arg6: memref<1x2x128xf32, #tpu.memory_space<vmem>>, %arg7: memref<18x18x128xbf16, #tpu.memory_space<vmem>>, %arg8: memref<256x1152xbf16, #tpu.memory_space<vmem>>) attributes {dimension_semantics = [#tpu.dimension_semantics<parallel>], iteration_bounds = array<i64: 2>, scalar_prefetch = 0 : i64, scratch_operands = 2 : i64, tpu.core_type = #tpu.core_type<tc>, window_params = [{transform_indices = @transform_0, window_bounds = array<i64: 1, 16, 16, 128>}, {pipeline_mode = #tpu.pipeline_mode<synchronous>, transform_indices = @transform_1, window_bounds = array<i64: 1, 128>}, {pipeline_mode = #tpu.pipeline_mode<synchronous>, transform_indices = @transform_2, window_bounds = array<i64: 1, 128>}, {pipeline_mode = #tpu.pipeline_mode<synchronous>, transform_indices = @transform_3, window_bounds = array<i64: 1152, 128>}, {transform_indices = @transform_4, window_bounds = array<i64: 1, 16, 16, 128>}, {transform_indices = @transform_5, window_bounds = array<i64: 1, 2, 128>}]} {
    %c0 = arith.constant 0 : index
    %c0_0 = arith.constant 0 : index
    %c0_1 = arith.constant 0 : index
    %c0_2 = arith.constant 0 : index
    %0 = vector.load %arg1[%c0, %c0_0, %c0_1, %c0_2] : memref<1x16x16x128xbf16, #tpu.memory_space<vmem>>, vector<1x16x16x128xbf16>
    %1 = vector.shape_cast %0 : vector<1x16x16x128xbf16> to vector<16x16x128xbf16>
    %2 = arith.extf %1 : vector<16x16x128xbf16> to vector<16x16x128xf32>
    %c0_3 = arith.constant 0 : index
    %c0_4 = arith.constant 0 : index
    %3 = vector.load %arg2[%c0_3, %c0_4] : memref<1x128xf32, #tpu.memory_space<vmem>>, vector<1x128xf32>
    %4 = vector.shape_cast %3 : vector<1x128xf32> to vector<1x1x128xf32>
    %5 = vector.broadcast %4 : vector<1x1x128xf32> to vector<16x16x128xf32>
    %6 = arith.mulf %2, %5 : vector<16x16x128xf32>
    %c0_5 = arith.constant 0 : index
    %c0_6 = arith.constant 0 : index
    %7 = vector.load %arg3[%c0_5, %c0_6] : memref<1x128xf32, #tpu.memory_space<vmem>>, vector<1x128xf32>
    %8 = vector.shape_cast %7 : vector<1x128xf32> to vector<1x1x128xf32>
    %9 = vector.broadcast %8 : vector<1x1x128xf32> to vector<16x16x128xf32>
    %10 = arith.addf %6, %9 : vector<16x16x128xf32>
    %cst = arith.constant 0.000000e+00 : f32
    %11 = vector.broadcast %cst : f32 to vector<16x16x128xf32>
    %12 = arith.maximumf %10, %11 : vector<16x16x128xf32>
    %cst_7 = arith.constant 0.000000e+00 : bf16
    %13 = vector.broadcast %cst_7 : bf16 to vector<1x18x128xbf16>
    %c0_8 = arith.constant 0 : index
    %c0_9 = arith.constant 0 : index
    %c0_10 = arith.constant 0 : index
    %14 = vector.load %arg7[%c0_8, %c0_9, %c0_10] : memref<18x18x128xbf16, #tpu.memory_space<vmem>>, vector<1x18x128xbf16>
    tpu.vector_store %arg7[%c0_8, %c0_9, %c0_10], %13 {strides = array<i32>} : memref<18x18x128xbf16, #tpu.memory_space<vmem>>, vector<1x18x128xbf16>,
    %c17 = arith.constant 17 : index
    %c0_11 = arith.constant 0 : index
    %c0_12 = arith.constant 0 : index
    %15 = vector.load %arg7[%c17, %c0_11, %c0_12] : memref<18x18x128xbf16, #tpu.memory_space<vmem>>, vector<1x18x128xbf16>
    tpu.vector_store %arg7[%c17, %c0_11, %c0_12], %13 {strides = array<i32>} : memref<18x18x128xbf16, #tpu.memory_space<vmem>>, vector<1x18x128xbf16>,
    %cst_13 = arith.constant 0.000000e+00 : bf16
    %16 = vector.broadcast %cst_13 : bf16 to vector<16x1x128xbf16>
    %c1 = arith.constant 1 : index
    %c0_14 = arith.constant 0 : index
    %c0_15 = arith.constant 0 : index
    %17 = vector.load %arg7[%c1, %c0_14, %c0_15] : memref<18x18x128xbf16, #tpu.memory_space<vmem>>, vector<16x1x128xbf16>
    tpu.vector_store %arg7[%c1, %c0_14, %c0_15], %16 {strides = array<i32>} : memref<18x18x128xbf16, #tpu.memory_space<vmem>>, vector<16x1x128xbf16>,
    %c1_16 = arith.constant 1 : index
    %c17_17 = arith.constant 17 : index
    %c0_18 = arith.constant 0 : index
    %18 = vector.load %arg7[%c1_16, %c17_17, %c0_18] : memref<18x18x128xbf16, #tpu.memory_space<vmem>>, vector<16x1x128xbf16>
    tpu.vector_store %arg7[%c1_16, %c17_17, %c0_18], %16 {strides = array<i32>} : memref<18x18x128xbf16, #tpu.memory_space<vmem>>, vector<16x1x128xbf16>,
    %19 = arith.truncf %12 : vector<16x16x128xf32> to vector<16x16x128xbf16>
    %c1_19 = arith.constant 1 : index
    %c1_20 = arith.constant 1 : index
    %c0_21 = arith.constant 0 : index
    %20 = vector.load %arg7[%c1_19, %c1_20, %c0_21] : memref<18x18x128xbf16, #tpu.memory_space<vmem>>, vector<16x16x128xbf16>
    tpu.vector_store %arg7[%c1_19, %c1_20, %c0_21], %19 {strides = array<i32>} : memref<18x18x128xbf16, #tpu.memory_space<vmem>>, vector<16x16x128xbf16>,
    %c0_22 = arith.constant 0 : index
    %c0_23 = arith.constant 0 : index
    %c0_24 = arith.constant 0 : index
    %21 = vector.load %arg7[%c0_22, %c0_23, %c0_24] : memref<18x18x128xbf16, #tpu.memory_space<vmem>>, vector<16x16x128xbf16>
    %22 = vector.shape_cast %21 : vector<16x16x128xbf16> to vector<256x128xbf16>
    %c0_25 = arith.constant 0 : index
    %c0_26 = arith.constant 0 : index
    %23 = vector.load %arg8[%c0_25, %c0_26] : memref<256x1152xbf16, #tpu.memory_space<vmem>>, vector<256x128xbf16>
    tpu.vector_store %arg8[%c0_25, %c0_26], %22 {strides = array<i32>} : memref<256x1152xbf16, #tpu.memory_space<vmem>>, vector<256x128xbf16>,
    %c0_27 = arith.constant 0 : index
    %c1_28 = arith.constant 1 : index
    %c0_29 = arith.constant 0 : index
    %24 = vector.load %arg7[%c0_27, %c1_28, %c0_29] : memref<18x18x128xbf16, #tpu.memory_space<vmem>>, vector<16x16x128xbf16>
    %25 = vector.shape_cast %24 : vector<16x16x128xbf16> to vector<256x128xbf16>
    %c0_30 = arith.constant 0 : index
    %c128 = arith.constant 128 : index
    %26 = vector.load %arg8[%c0_30, %c128] : memref<256x1152xbf16, #tpu.memory_space<vmem>>, vector<256x128xbf16>
    tpu.vector_store %arg8[%c0_30, %c128], %25 {strides = array<i32>} : memref<256x1152xbf16, #tpu.memory_space<vmem>>, vector<256x128xbf16>,
    %c0_31 = arith.constant 0 : index
    %c2 = arith.constant 2 : index
    %c0_32 = arith.constant 0 : index
    %27 = vector.load %arg7[%c0_31, %c2, %c0_32] : memref<18x18x128xbf16, #tpu.memory_space<vmem>>, vector<16x16x128xbf16>
    %28 = vector.shape_cast %27 : vector<16x16x128xbf16> to vector<256x128xbf16>
    %c0_33 = arith.constant 0 : index
    %c256 = arith.constant 256 : index
    %29 = vector.load %arg8[%c0_33, %c256] : memref<256x1152xbf16, #tpu.memory_space<vmem>>, vector<256x128xbf16>
    tpu.vector_store %arg8[%c0_33, %c256], %28 {strides = array<i32>} : memref<256x1152xbf16, #tpu.memory_space<vmem>>, vector<256x128xbf16>,
    %c1_34 = arith.constant 1 : index
    %c0_35 = arith.constant 0 : index
    %c0_36 = arith.constant 0 : index
    %30 = vector.load %arg7[%c1_34, %c0_35, %c0_36] : memref<18x18x128xbf16, #tpu.memory_space<vmem>>, vector<16x16x128xbf16>
    %31 = vector.shape_cast %30 : vector<16x16x128xbf16> to vector<256x128xbf16>
    %c0_37 = arith.constant 0 : index
    %c384 = arith.constant 384 : index
    %32 = vector.load %arg8[%c0_37, %c384] : memref<256x1152xbf16, #tpu.memory_space<vmem>>, vector<256x128xbf16>
    tpu.vector_store %arg8[%c0_37, %c384], %31 {strides = array<i32>} : memref<256x1152xbf16, #tpu.memory_space<vmem>>, vector<256x128xbf16>,
    %c1_38 = arith.constant 1 : index
    %c1_39 = arith.constant 1 : index
    %c0_40 = arith.constant 0 : index
    %33 = vector.load %arg7[%c1_38, %c1_39, %c0_40] : memref<18x18x128xbf16, #tpu.memory_space<vmem>>, vector<16x16x128xbf16>
    %34 = vector.shape_cast %33 : vector<16x16x128xbf16> to vector<256x128xbf16>
    %c0_41 = arith.constant 0 : index
    %c512 = arith.constant 512 : index
    %35 = vector.load %arg8[%c0_41, %c512] : memref<256x1152xbf16, #tpu.memory_space<vmem>>, vector<256x128xbf16>
    tpu.vector_store %arg8[%c0_41, %c512], %34 {strides = array<i32>} : memref<256x1152xbf16, #tpu.memory_space<vmem>>, vector<256x128xbf16>,
    %c1_42 = arith.constant 1 : index
    %c2_43 = arith.constant 2 : index
    %c0_44 = arith.constant 0 : index
    %36 = vector.load %arg7[%c1_42, %c2_43, %c0_44] : memref<18x18x128xbf16, #tpu.memory_space<vmem>>, vector<16x16x128xbf16>
    %37 = vector.shape_cast %36 : vector<16x16x128xbf16> to vector<256x128xbf16>
    %c0_45 = arith.constant 0 : index
    %c640 = arith.constant 640 : index
    %38 = vector.load %arg8[%c0_45, %c640] : memref<256x1152xbf16, #tpu.memory_space<vmem>>, vector<256x128xbf16>
    tpu.vector_store %arg8[%c0_45, %c640], %37 {strides = array<i32>} : memref<256x1152xbf16, #tpu.memory_space<vmem>>, vector<256x128xbf16>,
    %c2_46 = arith.constant 2 : index
    %c0_47 = arith.constant 0 : index
    %c0_48 = arith.constant 0 : index
    %39 = vector.load %arg7[%c2_46, %c0_47, %c0_48] : memref<18x18x128xbf16, #tpu.memory_space<vmem>>, vector<16x16x128xbf16>
    %40 = vector.shape_cast %39 : vector<16x16x128xbf16> to vector<256x128xbf16>
    %c0_49 = arith.constant 0 : index
    %c768 = arith.constant 768 : index
    %41 = vector.load %arg8[%c0_49, %c768] : memref<256x1152xbf16, #tpu.memory_space<vmem>>, vector<256x128xbf16>
    tpu.vector_store %arg8[%c0_49, %c768], %40 {strides = array<i32>} : memref<256x1152xbf16, #tpu.memory_space<vmem>>, vector<256x128xbf16>,
    %c2_50 = arith.constant 2 : index
    %c1_51 = arith.constant 1 : index
    %c0_52 = arith.constant 0 : index
    %42 = vector.load %arg7[%c2_50, %c1_51, %c0_52] : memref<18x18x128xbf16, #tpu.memory_space<vmem>>, vector<16x16x128xbf16>
    %43 = vector.shape_cast %42 : vector<16x16x128xbf16> to vector<256x128xbf16>
    %c0_53 = arith.constant 0 : index
    %c896 = arith.constant 896 : index
    %44 = vector.load %arg8[%c0_53, %c896] : memref<256x1152xbf16, #tpu.memory_space<vmem>>, vector<256x128xbf16>
    tpu.vector_store %arg8[%c0_53, %c896], %43 {strides = array<i32>} : memref<256x1152xbf16, #tpu.memory_space<vmem>>, vector<256x128xbf16>,
    %c2_54 = arith.constant 2 : index
    %c2_55 = arith.constant 2 : index
    %c0_56 = arith.constant 0 : index
    %45 = vector.load %arg7[%c2_54, %c2_55, %c0_56] : memref<18x18x128xbf16, #tpu.memory_space<vmem>>, vector<16x16x128xbf16>
    %46 = vector.shape_cast %45 : vector<16x16x128xbf16> to vector<256x128xbf16>
    %c0_57 = arith.constant 0 : index
    %c1024 = arith.constant 1024 : index
    %47 = vector.load %arg8[%c0_57, %c1024] : memref<256x1152xbf16, #tpu.memory_space<vmem>>, vector<256x128xbf16>
    tpu.vector_store %arg8[%c0_57, %c1024], %46 {strides = array<i32>} : memref<256x1152xbf16, #tpu.memory_space<vmem>>, vector<256x128xbf16>,
    %c0_58 = arith.constant 0 : index
    %c0_59 = arith.constant 0 : index
    %48 = vector.load %arg8[%c0_58, %c0_59] : memref<256x1152xbf16, #tpu.memory_space<vmem>>, vector<256x1152xbf16>
    %c0_60 = arith.constant 0 : index
    %c0_61 = arith.constant 0 : index
    %49 = vector.load %arg4[%c0_60, %c0_61] : memref<1152x128xbf16, #tpu.memory_space<vmem>>, vector<1152x128xbf16>
    %cst_62 = arith.constant dense<0.000000e+00> : vector<256x128xf32>
    %50 = tpu.matmul %48, %49, %cst_62 {dimension_numbers = #tpu.dot_dimension_numbers<[1], [0], [0], [1], [0, 0, 1, 1], [], []>} : vector<256x1152xbf16>, vector<1152x128xbf16>, vector<256x128xf32> -> vector<256x128xf32>
    %51 = vector.shape_cast %50 : vector<256x128xf32> to vector<1x16x16x128xf32>
    %52 = arith.truncf %51 : vector<1x16x16x128xf32> to vector<1x16x16x128xbf16>
    %c0_63 = arith.constant 0 : index
    %c0_64 = arith.constant 0 : index
    %c0_65 = arith.constant 0 : index
    %c0_66 = arith.constant 0 : index
    %53 = vector.load %arg5[%c0_63, %c0_64, %c0_65, %c0_66] : memref<1x16x16x128xbf16, #tpu.memory_space<vmem>>, vector<1x16x16x128xbf16>
    tpu.vector_store %arg5[%c0_63, %c0_64, %c0_65, %c0_66], %52 {strides = array<i32>} : memref<1x16x16x128xbf16, #tpu.memory_space<vmem>>, vector<1x16x16x128xbf16>,
    %cst_67 = arith.constant dense<0.000000e+00> : vector<128xf32>
    %54 = vector.multi_reduction <add>, %50, %cst_67 [0] : vector<256x128xf32> to vector<128xf32>
    %55 = vector.shape_cast %54 : vector<128xf32> to vector<1x128xf32>
    %56 = arith.mulf %50, %50 : vector<256x128xf32>
    %cst_68 = arith.constant dense<0.000000e+00> : vector<128xf32>
    %57 = vector.multi_reduction <add>, %56, %cst_68 [0] : vector<256x128xf32> to vector<128xf32>
    %58 = vector.shape_cast %57 : vector<128xf32> to vector<1x128xf32>
    %59 = tpu.concatenate %55, %58 in 0 : vector<1x128xf32>, vector<1x128xf32> -> vector<2x128xf32>
    %60 = vector.shape_cast %59 : vector<2x128xf32> to vector<1x2x128xf32>
    %c0_69 = arith.constant 0 : index
    %c0_70 = arith.constant 0 : index
    %c0_71 = arith.constant 0 : index
    %61 = vector.load %arg6[%c0_69, %c0_70, %c0_71] : memref<1x2x128xf32, #tpu.memory_space<vmem>>, vector<1x2x128xf32>
    tpu.vector_store %arg6[%c0_69, %c0_70, %c0_71], %60 {strides = array<i32>} : memref<1x2x128xf32, #tpu.memory_space<vmem>>, vector<1x2x128xf32>,
    return
  }
  func.func @transform_0(%arg0: i32) -> (i32, i32, i32, i32) {
    %c0_i32 = arith.constant 0 : i32
    %c0_i32_0 = arith.constant 0 : i32
    %c0_i32_1 = arith.constant 0 : i32
    %c0_i32_2 = arith.constant 0 : i32
    return %arg0, %c0_i32, %c0_i32_0, %c0_i32_1 : i32, i32, i32, i32
  }
  func.func @transform_1(%arg0: i32) -> (i32, i32) {
    %c0_i32 = arith.constant 0 : i32
    %c0_i32_0 = arith.constant 0 : i32
    %c0_i32_1 = arith.constant 0 : i32
    return %c0_i32, %c0_i32_0 : i32, i32
  }
  func.func @transform_2(%arg0: i32) -> (i32, i32) {
    %c0_i32 = arith.constant 0 : i32
    %c0_i32_0 = arith.constant 0 : i32
    %c0_i32_1 = arith.constant 0 : i32
    return %c0_i32, %c0_i32_0 : i32, i32
  }
  func.func @transform_3(%arg0: i32) -> (i32, i32) {
    %c0_i32 = arith.constant 0 : i32
    %c0_i32_0 = arith.constant 0 : i32
    %c0_i32_1 = arith.constant 0 : i32
    return %c0_i32, %c0_i32_0 : i32, i32
  }
  func.func @transform_4(%arg0: i32) -> (i32, i32, i32, i32) {
    %c0_i32 = arith.constant 0 : i32
    %c0_i32_0 = arith.constant 0 : i32
    %c0_i32_1 = arith.constant 0 : i32
    %c0_i32_2 = arith.constant 0 : i32
    return %arg0, %c0_i32, %c0_i32_0, %c0_i32_1 : i32, i32, i32, i32
  }
  func.func @transform_5(%arg0: i32) -> (i32, i32, i32) {
    %c0_i32 = arith.constant 0 : i32
    %c0_i32_0 = arith.constant 0 : i32
    %c0_i32_1 = arith.constant 0 : i32
    return %arg0, %c0_i32, %c0_i32_0 : i32, i32, i32
  }
}

module attributes {stable_mosaic.version = 11 : i64} {
  func.func @_bn_add_relu_kernel(%arg0: i32, %arg1: i32, %arg2: memref<1x16x16x128xbf16, #tpu.memory_space<vmem>>, %arg3: memref<1x16x16x128xbf16, #tpu.memory_space<vmem>>, %arg4: memref<1x128xf32, #tpu.memory_space<vmem>>, %arg5: memref<1x128xf32, #tpu.memory_space<vmem>>, %arg6: memref<1x16x16x8xf32, #tpu.memory_space<vmem>>) attributes {dimension_semantics = [#tpu.dimension_semantics<parallel>, #tpu.dimension_semantics<parallel>], iteration_bounds = array<i64: 2, 1>, scalar_prefetch = 0 : i64, scratch_operands = 0 : i64, tpu.core_type = #tpu.core_type<tc>, window_params = [{transform_indices = @transform_0, window_bounds = array<i64: 1, 16, 16, 128>}, {transform_indices = @transform_1, window_bounds = array<i64: 1, 16, 16, 128>}, {pipeline_mode = #tpu.pipeline_mode<synchronous>, transform_indices = @transform_2, window_bounds = array<i64: 1, 128>}, {pipeline_mode = #tpu.pipeline_mode<synchronous>, transform_indices = @transform_3, window_bounds = array<i64: 1, 128>}, {transform_indices = @transform_4, window_bounds = array<i64: 1, 16, 16, 8>}]} {
    %c0 = arith.constant 0 : index
    %c0_0 = arith.constant 0 : index
    %c0_1 = arith.constant 0 : index
    %c0_2 = arith.constant 0 : index
    %0 = vector.load %arg2[%c0, %c0_0, %c0_1, %c0_2] : memref<1x16x16x128xbf16, #tpu.memory_space<vmem>>, vector<1x16x16x128xbf16>
    %1 = vector.shape_cast %0 : vector<1x16x16x128xbf16> to vector<16x16x128xbf16>
    %2 = arith.extf %1 : vector<16x16x128xbf16> to vector<16x16x128xf32>
    %c0_3 = arith.constant 0 : index
    %c0_4 = arith.constant 0 : index
    %3 = vector.load %arg4[%c0_3, %c0_4] : memref<1x128xf32, #tpu.memory_space<vmem>>, vector<1x128xf32>
    %4 = vector.shape_cast %3 : vector<1x128xf32> to vector<1x1x128xf32>
    %5 = vector.broadcast %4 : vector<1x1x128xf32> to vector<16x16x128xf32>
    %6 = arith.mulf %2, %5 : vector<16x16x128xf32>
    %c0_5 = arith.constant 0 : index
    %c0_6 = arith.constant 0 : index
    %7 = vector.load %arg5[%c0_5, %c0_6] : memref<1x128xf32, #tpu.memory_space<vmem>>, vector<1x128xf32>
    %8 = vector.shape_cast %7 : vector<1x128xf32> to vector<1x1x128xf32>
    %9 = vector.broadcast %8 : vector<1x1x128xf32> to vector<16x16x128xf32>
    %10 = arith.addf %6, %9 : vector<16x16x128xf32>
    %c0_7 = arith.constant 0 : index
    %c0_8 = arith.constant 0 : index
    %c0_9 = arith.constant 0 : index
    %c0_10 = arith.constant 0 : index
    %11 = vector.load %arg3[%c0_7, %c0_8, %c0_9, %c0_10] : memref<1x16x16x128xbf16, #tpu.memory_space<vmem>>, vector<1x16x16x128xbf16>
    %12 = vector.shape_cast %11 : vector<1x16x16x128xbf16> to vector<16x16x128xbf16>
    %13 = arith.extf %12 : vector<16x16x128xbf16> to vector<16x16x128xf32>
    %14 = arith.addf %10, %13 : vector<16x16x128xf32>
    %15 = vector.extract_strided_slice %14 {offsets = [0, 0, 0], sizes = [16, 16, 8], strides = [1, 1, 1]} : vector<16x16x128xf32> to vector<16x16x8xf32>
    %cst = arith.constant 0.000000e+00 : f32
    %16 = vector.broadcast %cst : f32 to vector<16x16x8xf32>
    %17 = arith.maximumf %15, %16 : vector<16x16x8xf32>
    %18 = vector.shape_cast %17 : vector<16x16x8xf32> to vector<1x16x16x8xf32>
    %c0_11 = arith.constant 0 : index
    %c0_12 = arith.constant 0 : index
    %c0_13 = arith.constant 0 : index
    %c0_14 = arith.constant 0 : index
    %19 = vector.load %arg6[%c0_11, %c0_12, %c0_13, %c0_14] : memref<1x16x16x8xf32, #tpu.memory_space<vmem>>, vector<1x16x16x8xf32>
    tpu.vector_store %arg6[%c0_11, %c0_12, %c0_13, %c0_14], %18 {strides = array<i32>} : memref<1x16x16x8xf32, #tpu.memory_space<vmem>>, vector<1x16x16x8xf32>,
    return
  }
  func.func @transform_0(%arg0: i32, %arg1: i32) -> (i32, i32, i32, i32) {
    %c0_i32 = arith.constant 0 : i32
    %c0_i32_0 = arith.constant 0 : i32
    %c0_i32_1 = arith.constant 0 : i32
    return %arg0, %arg1, %c0_i32, %c0_i32_0 : i32, i32, i32, i32
  }
  func.func @transform_1(%arg0: i32, %arg1: i32) -> (i32, i32, i32, i32) {
    %c0_i32 = arith.constant 0 : i32
    %c0_i32_0 = arith.constant 0 : i32
    %c0_i32_1 = arith.constant 0 : i32
    return %arg0, %arg1, %c0_i32, %c0_i32_0 : i32, i32, i32, i32
  }
  func.func @transform_2(%arg0: i32, %arg1: i32) -> (i32, i32) {
    %c0_i32 = arith.constant 0 : i32
    %c0_i32_0 = arith.constant 0 : i32
    %c0_i32_1 = arith.constant 0 : i32
    return %c0_i32, %c0_i32_0 : i32, i32
  }
  func.func @transform_3(%arg0: i32, %arg1: i32) -> (i32, i32) {
    %c0_i32 = arith.constant 0 : i32
    %c0_i32_0 = arith.constant 0 : i32
    %c0_i32_1 = arith.constant 0 : i32
    return %c0_i32, %c0_i32_0 : i32, i32
  }
  func.func @transform_4(%arg0: i32, %arg1: i32) -> (i32, i32, i32, i32) {
    %c0_i32 = arith.constant 0 : i32
    %c0_i32_0 = arith.constant 0 : i32
    %c0_i32_1 = arith.constant 0 : i32
    return %arg0, %arg1, %c0_i32, %c0_i32_0 : i32, i32, i32, i32
  }
}

</mosaic_0001>

<llo_original>
// kernel: residual_block_forward.5
$region0: #{residual_block_forward.5}
  #allocation0 [shape = 'u32[]', space=smem, size = 0x4, offset = 0x4, fixed_abs, tag = 'smem constant byte address 0x4 - core index']
  #allocation1 [shape = 'u32[144,128]{1,0:T(1,128)}', space=vmem, size = 0x12000, scoped, tag = 'internal scratch']
  %s0 = inlined_call_operand.vmem [shape: bf16[2,16,16,128], index: 0, kind: input, shape index: {}]
  %s1 = inlined_call_operand.vmem [shape: bf16[2,16,16,128], index: 1, kind: input, shape index: {}]
  %s2 = inlined_call_operand.vmem [shape: f32[1,128], index: 2, kind: input, shape index: {}]
  %s3 = inlined_call_operand.vmem [shape: f32[1,128], index: 3, kind: input, shape index: {}]
  %s4 = inlined_call_operand.vmem [shape: f32[2,16,16,8], index: 4, kind: output, shape index: {}]
  %s5 = sld [smem:[#allocation0]]
  $region49: #{residual_block_forward.5} parent=0
    _
  %s7 = ssub.s32 1, %s5
  %s8 = scalar_select 0, %s7, %s5
  loop: start=0, step=1, limit=4
  $region2: #{residual_block_forward.5} parent=0 // loop_pre_header
    _
  $region3: #{residual_block_forward.5} parent=0 // loop_header
    %s10 = sphi 0, %s14
    %p11 = scmp.ge.s32.totalorder %s10, 4
    %s17 = sphi 0, %s29
    %s18 = sphi 0, %s25
    %s19 = sphi 0, %s17
    %s20 = sphi 0, %s18
    %s21 = sphi 0, %s19
    %s22 = sphi 0, %s20
    %s34 = sphi 0, %s36
    %s37 = sphi 0, %s34
    %s38 = sphi 0, %s37
    %s54 = sphi 0, %s38
    %s62 = sphi 0, %s64
    %s65 = sphi 0, %s62
    %s66 = sphi 0, %s65
    %s82 = sphi 0, %s66
    %s86 = sphi 0, %s86
    %s88 = sphi 0, %s86
    %s89 = sphi 0, %s88
    %s103 = sphi 0, %s89
    %s107 = sphi 0, %s107
    %s109 = sphi 0, %s107
    %s110 = sphi 0, %s109
    %s124 = sphi 0, %s110
    %s132 = sphi 0, %s134
    %s135 = sphi 0, %s132
    %s136 = sphi 0, %s135
    %s152 = sphi 0, %s136
  $region4: #{residual_block_forward.5} parent=0 // loop_header_branch
    %13 = sbr.rel (%p11) target = $region8
  $region5: #{residual_block_forward.5} parent=0 // loop_body
    %s15 = ssub.s32 %s10, 1
    %s16 = ssub.s32 %s10, 2
    %s23 = sadd.s32 1, %s18
    %p24 = scmp.ge.s32.totalorder %s23, 1
    %s25 = scalar_select %p24, 0, %s23
    %s26 = sadd.s32 1, %s17
    %s27 = scalar_select %p24, %s26, %s17
    %p28 = scmp.ge.s32.totalorder %s27, 2
    %s29 = scalar_select %p28, 0, %s27
    %s30 = ssub.s32 %s17, %s29
    %s31 = ssub.s32 %s18, %s25
    %s32 = sor.u32 %s30, %s31
    %p33 = scmp.eq.s32.totalorder %s32, 0
    %s35 = sadd.s32 %s34, 1
    %s36 = scalar_select %p33, %s34, %s35
    %p39 = pneg %p33
    %p40 = scmp.eq.s32.totalorder %s10, 1
    %p41 = por %p39, %p40
    %p42 = scmp.ne.s32.totalorder %s34, %s37
    %p43 = scmp.eq.s32.totalorder %s10, 0
    %p44 = por %p42, %p43
    %p45 = scmp.ne.s32.totalorder %s34, %s37
    %p46 = scmp.eq.s32.totalorder %s15, 1
    %p47 = por %p45, %p46
    %p48 = scmp.ne.s32.totalorder %s37, %s38
    %p49 = scmp.eq.s32.totalorder %s15, 0
    %p50 = por %p48, %p49
    %p51 = scmp.ne.s32.totalorder %s37, %s38
    %p52 = scmp.eq.s32.totalorder %s16, 1
    %p53 = por %p51, %p52
    %p55 = scmp.ne.s32.totalorder %s38, %s54
    %p56 = scmp.eq.s32.totalorder %s16, 0
    %p57 = por %p55, %p56
    %s58 = ssub.s32 %s17, %s29
    %s59 = ssub.s32 %s18, %s25
    %s60 = sor.u32 %s58, %s59
    %p61 = scmp.eq.s32.totalorder %s60, 0
    %s63 = sadd.s32 %s62, 1
    %s64 = scalar_select %p61, %s62, %s63
    %p67 = pneg %p61
    %p68 = scmp.eq.s32.totalorder %s10, 1
    %p69 = por %p67, %p68
    %p70 = scmp.ne.s32.totalorder %s62, %s65
    %p71 = scmp.eq.s32.totalorder %s10, 0
    %p72 = por %p70, %p71
    %p73 = scmp.ne.s32.totalorder %s62, %s65
    %p74 = scmp.eq.s32.totalorder %s15, 1
    %p75 = por %p73, %p74
    %p76 = scmp.ne.s32.totalorder %s65, %s66
    %p77 = scmp.eq.s32.totalorder %s15, 0
    %p78 = por %p76, %p77
    %p79 = scmp.ne.s32.totalorder %s65, %s66
    %p80 = scmp.eq.s32.totalorder %s16, 1
    %p81 = por %p79, %p80
    %p83 = scmp.ne.s32.totalorder %s66, %s82
    %p84 = scmp.eq.s32.totalorder %s16, 0
    %p85 = por %p83, %p84
    %s87 = sadd.s32 %s86, 1
    %p90 = scmp.eq.s32.totalorder %s10, 1
    %p91 = scmp.ne.s32.totalorder %s86, %s88
    %p92 = scmp.eq.s32.totalorder %s10, 0
    %p93 = por %p91, %p92
    %p94 = scmp.ne.s32.totalorder %s86, %s88
    %p95 = scmp.eq.s32.totalorder %s15, 1
    %p96 = por %p94, %p95
    %p97 = scmp.ne.s32.totalorder %s88, %s89
    %p98 = scmp.eq.s32.totalorder %s15, 0
    %p99 = por %p97, %p98
    %p100 = scmp.ne.s32.totalorder %s88, %s89
    %p101 = scmp.eq.s32.totalorder %s16, 1
    %p102 = por %p100, %p101
    %p104 = scmp.ne.s32.totalorder %s89, %s103
    %p105 = scmp.eq.s32.totalorder %s16, 0
    %p106 = por %p104, %p105
    %s108 = sadd.s32 %s107, 1
    %p111 = scmp.eq.s32.totalorder %s10, 1
    %p112 = scmp.ne.s32.totalorder %s107, %s109
    %p113 = scmp.eq.s32.totalorder %s10, 0
    %p114 = por %p112, %p113
    %p115 = scmp.ne.s32.totalorder %s107, %s109
    %p116 = scmp.eq.s32.totalorder %s15, 1
    %p117 = por %p115, %p116
    %p118 = scmp.ne.s32.totalorder %s109, %s110
    %p119 = scmp.eq.s32.totalorder %s15, 0
    %p120 = por %p118, %p119
    %p121 = scmp.ne.s32.totalorder %s109, %s110
    %p122 = scmp.eq.s32.totalorder %s16, 1
    %p123 = por %p121, %p122
    %p125 = scmp.ne.s32.totalorder %s110, %s124
    %p126 = scmp.eq.s32.totalorder %s16, 0
    %p127 = por %p125, %p126
    %s128 = ssub.s32 %s17, %s29
    %s129 = ssub.s32 %s18, %s25
    %s130 = sor.u32 %s128, %s129
    %p131 = scmp.eq.s32.totalorder %s130, 0
    %s133 = sadd.s32 %s132, 1
    %s134 = scalar_select %p131, %s132, %s133
    %p137 = pneg %p131
    %p138 = scmp.eq.s32.totalorder %s10, 1
    %p139 = por %p137, %p138
    %p140 = scmp.ne.s32.totalorder %s132, %s135
    %p141 = scmp.eq.s32.totalorder %s10, 0
    %p142 = por %p140, %p141
    %p143 = scmp.ne.s32.totalorder %s132, %s135
    %p144 = scmp.eq.s32.totalorder %s15, 1
    %p145 = por %p143, %p144
    %p146 = scmp.ne.s32.totalorder %s135, %s136
    %p147 = scmp.eq.s32.totalorder %s15, 0
    %p148 = por %p146, %p147
    %p149 = scmp.ne.s32.totalorder %s135, %s136
    %p150 = scmp.eq.s32.totalorder %s16, 1
    %p151 = por %p149, %p150
    %p153 = scmp.ne.s32.totalorder %s136, %s152
    %p154 = scmp.eq.s32.totalorder %s16, 0
    %p155 = por %p153, %p154
    %p156 = scmp.le.s32.totalorder 1, %s10
    %p157 = scmp.lt.s32.totalorder %s10, 3
    %p158 = pnand %p156, %p157
    %p159 = pneg %p158
    // Predicated region
    $region9: #{residual_block_forward.5} parent=5 // pred_check
      _
    $region10: #{residual_block_forward.5} parent=5 // pred_check_branch
      %161 = sbr.rel (%p158) target = $region12
    $region11: #{residual_block_forward.5} parent=5 // pred_region
      %s162 = ssub.s32 %s10, 1
      // Predicated region
      $region13: #{residual_block_forward.5} parent=11 // pred_check
        %p163 = pneg %p99
      $region14: #{residual_block_forward.5} parent=11 // pred_check_branch
        %165 = sbr.rel (%p163) target = $region16
      $region15: #{residual_block_forward.5} parent=11 // pred_region
        _
      $region16: #{residual_block_forward.5} parent=11 // pred_fallthru
        _
      // Predicated region
      $region17: #{residual_block_forward.5} parent=11 // pred_check
        %p166 = pneg %p120
      $region18: #{residual_block_forward.5} parent=11 // pred_check_branch
        %168 = sbr.rel (%p166) target = $region20
      $region19: #{residual_block_forward.5} parent=11 // pred_region
        _
      $region20: #{residual_block_forward.5} parent=11 // pred_fallthru
        _
    $region12: #{residual_block_forward.5} parent=5 // pred_fallthru
      _
    %p169 = scmp.lt.s32.totalorder %s10, 2
    // Predicated region
    $region21: #{residual_block_forward.5} parent=5 // pred_check
      %p170 = pneg %p169
    $region22: #{residual_block_forward.5} parent=5 // pred_check_branch
      %172 = sbr.rel (%p170) target = $region24
    $region23: #{residual_block_forward.5} parent=5 // pred_region
      // Predicated region
      $region25: #{residual_block_forward.5} parent=23 // pred_check
        %p173 = pneg %p44
      $region26: #{residual_block_forward.5} parent=23 // pred_check_branch
        %175 = sbr.rel (%p173) target = $region28
      $region27: #{residual_block_forward.5} parent=23 // pred_region
        %s176 = smul.u32 16, %s18
        %p177 = scmp.lt.s32.totalorder %s17, 1
        %s178 = scalar_select %p177, %s17, 1
        %p179 = scmp.lt.s32.totalorder %s176, 15
        %s180 = scalar_select %p179, %s176, 15
        %s181 = smul.addr %s180, 2
        %s182 = smul.addr %s178, 32
        %s183 = sadd.s32 %s181, %s182
        %s184 = smul.addr %s183, 4
        %s185 = scalar_lea.vmem %s0, %s184
        %s186 = smul.u32 16, %s18
      $region28: #{residual_block_forward.5} parent=23 // pred_fallthru
        _
      // Predicated region
      $region29: #{residual_block_forward.5} parent=23 // pred_check
        %p187 = pneg %p72
      $region30: #{residual_block_forward.5} parent=23 // pred_check_branch
        %189 = sbr.rel (%p187) target = $region32
      $region31: #{residual_block_forward.5} parent=23 // pred_region
        %s190 = smul.u32 16, %s18
        %p191 = scmp.lt.s32.totalorder %s17, 1
        %s192 = scalar_select %p191, %s17, 1
        %p193 = scmp.lt.s32.totalorder %s190, 15
        %s194 = scalar_select %p193, %s190, 15
        %s195 = smul.addr %s194, 2
        %s196 = smul.addr %s192, 32
        %s197 = sadd.s32 %s195, %s196
        %s198 = smul.addr %s197, 4
        %s199 = scalar_lea.vmem %s1, %s198
        %s200 = smul.u32 16, %s18
      $region32: #{residual_block_forward.5} parent=23 // pred_fallthru
        _
    $region24: #{residual_block_forward.5} parent=5 // pred_fallthru
      _
    %p201 = scmp.le.s32.totalorder 1, %s10
    %p202 = scmp.lt.s32.totalorder %s10, 3
    %p203 = pnand %p201, %p202
    %p204 = pneg %p203
    // Predicated region
    $region33: #{residual_block_forward.5} parent=5 // pred_check
      _
    $region34: #{residual_block_forward.5} parent=5 // pred_check_branch
      %206 = sbr.rel (%p203) target = $region36
    $region35: #{residual_block_forward.5} parent=5 // pred_region
      %s207 = ssub.s32 %s10, 1
      %s208 = smul.u32 16, %s20
      %p209 = scmp.lt.s32.totalorder %s19, 1
      %s210 = scalar_select %p209, %s19, 1
      %p211 = scmp.lt.s32.totalorder %s208, 15
      %s212 = scalar_select %p211, %s208, 15
      %s213 = smul.addr %s212, 2
      %s214 = smul.addr %s210, 32
      %s215 = sadd.s32 %s213, %s214
      %s216 = smul.addr %s215, 4
      %s217 = scalar_lea.vmem %s0, %s216
      %p218 = pneg %p50
      %p219 = pneg %p47
      %s220 = smul.u32 16, %s20
      %p221 = scmp.lt.s32.totalorder %s19, 1
      %s222 = scalar_select %p221, %s19, 1
      %p223 = scmp.lt.s32.totalorder %s220, 15
      %s224 = scalar_select %p223, %s220, 15
      %s225 = smul.addr %s224, 2
      %s226 = smul.addr %s222, 32
      %s227 = sadd.s32 %s225, %s226
      %s228 = smul.addr %s227, 4
      %s229 = scalar_lea.vmem %s1, %s228
      %p230 = pneg %p78
      %p231 = pneg %p75
      %p232 = pneg %p99
      %p233 = pneg %p96
      %p234 = pneg %p120
      %p235 = pneg %p117
      %p236 = pneg %p148
      %p237 = pneg %p145
      %s238 = smul.u32 16, %s20
      %p239 = scmp.lt.s32.totalorder %s19, 1
      %s240 = scalar_select %p239, %s19, 1
      %p241 = scmp.lt.s32.totalorder %s238, 15
      %s242 = scalar_select %p241, %s238, 15
      %s243 = smul.addr %s242, 2
      %s244 = smul.addr %s240, 32
      %s245 = sadd.s32 %s243, %s244
      %s246 = smul.addr %s245, 8
      %s247 = scalar_lea.vmem %s4, %s246
      %s248 = smul.u32 16, %s20
      %p249 = scmp.lt.s32.totalorder %s19, 1
      %s250 = scalar_select %p249, %s19, 1
      %p251 = scmp.lt.s32.totalorder %s248, 15
      %s252 = scalar_select %p251, %s248, 15
      %s253 = smul.addr %s252, 2
      %s254 = smul.addr %s250, 32
      %s255 = sadd.s32 %s253, %s254
      %s256 = smul.addr %s255, 4
      %s257 = scalar_lea.vmem %s0, %s256
      %s258 = smul.u32 16, %s20
      %s259 = smul.u32 16, %s20
      %p260 = scmp.lt.s32.totalorder %s19, 1
      %s261 = scalar_select %p260, %s19, 1
      %p262 = scmp.lt.s32.totalorder %s259, 15
      %s263 = scalar_select %p262, %s259, 15
      %s264 = smul.addr %s263, 2
      %s265 = smul.addr %s261, 32
      %s266 = sadd.s32 %s264, %s265
      %s267 = smul.addr %s266, 4
      %s268 = scalar_lea.vmem %s1, %s267
      %s269 = smul.u32 16, %s20
      %s270 = smul.u32 16, %s20
      %p271 = scmp.lt.s32.totalorder %s19, 1
      %s272 = scalar_select %p271, %s19, 1
      %p273 = scmp.lt.s32.totalorder %s270, 15
      %s274 = scalar_select %p273, %s270, 15
      %s275 = smul.addr %s274, 2
      %s276 = smul.addr %s272, 32
      %s277 = sadd.s32 %s275, %s276
      %s278 = smul.addr %s277, 8
      %s279 = scalar_lea.vmem %s4, %s278
      %s280 = smul.u32 16, %s20
      %v281 = vld [vmem:[%s257] sm:$0xf]
      %v282 = vld [vmem:[%s257 + $0x4] sm:$0xf]
      %v283 = vld [vmem:[%s257 + $0x8] sm:$0xf]
      %v284 = vld [vmem:[%s257 + $0xc] sm:$0xf]
      %v285 = vld [vmem:[%s257 + $0x10] sm:$0xf]
      %v286 = vld [vmem:[%s257 + $0x14] sm:$0xf]
      %v287 = vld [vmem:[%s257 + $0x18] sm:$0xf]
      %v288 = vld [vmem:[%s257 + $0x1c] sm:$0xf]
      %v289 = vld [vmem:[%s257 + $0x20] sm:$0xf]
      %v290 = vld [vmem:[%s257 + $0x24] sm:$0xf]
      %v291 = vld [vmem:[%s257 + $0x28] sm:$0xf]
      %v292 = vld [vmem:[%s257 + $0x2c] sm:$0xf]
      %v293 = vld [vmem:[%s257 + $0x30] sm:$0xf]
      %v294 = vld [vmem:[%s257 + $0x34] sm:$0xf]
      %v295 = vld [vmem:[%s257 + $0x38] sm:$0xf]
      %v296 = vld [vmem:[%s257 + $0x3c] sm:$0xf]
      %v297 = vld [vmem:[%s257 + $0x40] sm:$0xf]
      %v298 = vld [vmem:[%s257 + $0x44] sm:$0xf]
      %v299 = vld [vmem:[%s257 + $0x48] sm:$0xf]
      %v300 = vld [vmem:[%s257 + $0x4c] sm:$0xf]
      %v301 = vld [vmem:[%s257 + $0x50] sm:$0xf]
      %v302 = vld [vmem:[%s257 + $0x54] sm:$0xf]
      %v303 = vld [vmem:[%s257 + $0x58] sm:$0xf]
      %v304 = vld [vmem:[%s257 + $0x5c] sm:$0xf]
      %v305 = vld [vmem:[%s257 + $0x60] sm:$0xf]
      %v306 = vld [vmem:[%s257 + $0x64] sm:$0xf]
      %v307 = vld [vmem:[%s257 + $0x68] sm:$0xf]
      %v308 = vld [vmem:[%s257 + $0x6c] sm:$0xf]
      %v309 = vld [vmem:[%s257 + $0x70] sm:$0xf]
      %v310 = vld [vmem:[%s257 + $0x74] sm:$0xf]
      %v311 = vld [vmem:[%s257 + $0x78] sm:$0xf]
      %v312 = vld [vmem:[%s257 + $0x7c] sm:$0xf]
      %v313 = vunpack.c.l.bf16 %v281
      %v314 = vunpack.c.l.bf16 %v282
      %v315 = vunpack.c.l.bf16 %v283
      %v316 = vunpack.c.l.bf16 %v284
      %v317 = vunpack.c.l.bf16 %v285
      %v318 = vunpack.c.l.bf16 %v286
      %v319 = vunpack.c.l.bf16 %v287
      %v320 = vunpack.c.l.bf16 %v288
      %v321 = vunpack.c.l.bf16 %v289
      %v322 = vunpack.c.l.bf16 %v290
      %v323 = vunpack.c.l.bf16 %v291
      %v324 = vunpack.c.l.bf16 %v292
      %v325 = vunpack.c.l.bf16 %v293
      %v326 = vunpack.c.l.bf16 %v294
      %v327 = vunpack.c.l.bf16 %v295
      %v328 = vunpack.c.l.bf16 %v296
      %v329 = vunpack.c.l.bf16 %v297
      %v330 = vunpack.c.l.bf16 %v298
      %v331 = vunpack.c.l.bf16 %v299
      %v332 = vunpack.c.l.bf16 %v300
      %v333 = vunpack.c.l.bf16 %v301
      %v334 = vunpack.c.l.bf16 %v302
      %v335 = vunpack.c.l.bf16 %v303
      %v336 = vunpack.c.l.bf16 %v304
      %v337 = vunpack.c.l.bf16 %v305
      %v338 = vunpack.c.l.bf16 %v306
      %v339 = vunpack.c.l.bf16 %v307
      %v340 = vunpack.c.l.bf16 %v308
      %v341 = vunpack.c.l.bf16 %v309
      %v342 = vunpack.c.l.bf16 %v310
      %v343 = vunpack.c.l.bf16 %v311
      %v344 = vunpack.c.l.bf16 %v312
      %v345 = vld [vmem:[%s2] sm:$0x1]
      %v347 = vlaneseq
      %v348 = vshrl.u32 %v347, 7
      %v349 = vsub.s32 0, %v348
      %v350 = vrot.slane %v345, %v349
      %v352 = vmul.f32 %v313, %v350
      %v353 = vmul.f32 %v314, %v350
      %v354 = vmul.f32 %v315, %v350
      %v355 = vmul.f32 %v316, %v350
      %v356 = vmul.f32 %v317, %v350
      %v357 = vmul.f32 %v318, %v350
      %v358 = vmul.f32 %v319, %v350
      %v359 = vmul.f32 %v320, %v350
      %v360 = vmul.f32 %v321, %v350
      %v361 = vmul.f32 %v322, %v350
      %v362 = vmul.f32 %v323, %v350
      %v363 = vmul.f32 %v324, %v350
      %v364 = vmul.f32 %v325, %v350
      %v365 = vmul.f32 %v326, %v350
      %v366 = vmul.f32 %v327, %v350
      %v367 = vmul.f32 %v328, %v350
      %v368 = vmul.f32 %v329, %v350
      %v369 = vmul.f32 %v330, %v350
      %v370 = vmul.f32 %v331, %v350
      %v371 = vmul.f32 %v332, %v350
      %v372 = vmul.f32 %v333, %v350
      %v373 = vmul.f32 %v334, %v350
      %v374 = vmul.f32 %v335, %v350
      %v375 = vmul.f32 %v336, %v350
      %v376 = vmul.f32 %v337, %v350
      %v377 = vmul.f32 %v338, %v350
      %v378 = vmul.f32 %v339, %v350
      %v379 = vmul.f32 %v340, %v350
      %v380 = vmul.f32 %v341, %v350
      %v381 = vmul.f32 %v342, %v350
      %v382 = vmul.f32 %v343, %v350
      %v383 = vmul.f32 %v344, %v350
      %v384 = vld [vmem:[%s3] sm:$0x1]
      %v386 = vlaneseq
      %v387 = vshrl.u32 %v386, 7
      %v388 = vsub.s32 0, %v387
      %v389 = vrot.slane %v384, %v388
      %v391 = vadd.f32 %v352, %v389
      %v392 = vadd.f32 %v353, %v389
      %v393 = vadd.f32 %v354, %v389
      %v394 = vadd.f32 %v355, %v389
      %v395 = vadd.f32 %v356, %v389
      %v396 = vadd.f32 %v357, %v389
      %v397 = vadd.f32 %v358, %v389
      %v398 = vadd.f32 %v359, %v389
      %v399 = vadd.f32 %v360, %v389
      %v400 = vadd.f32 %v361, %v389
      %v401 = vadd.f32 %v362, %v389
      %v402 = vadd.f32 %v363, %v389
      %v403 = vadd.f32 %v364, %v389
      %v404 = vadd.f32 %v365, %v389
      %v405 = vadd.f32 %v366, %v389
      %v406 = vadd.f32 %v367, %v389
      %v407 = vadd.f32 %v368, %v389
      %v408 = vadd.f32 %v369, %v389
      %v409 = vadd.f32 %v370, %v389
      %v410 = vadd.f32 %v371, %v389
      %v411 = vadd.f32 %v372, %v389
      %v412 = vadd.f32 %v373, %v389
      %v413 = vadd.f32 %v374, %v389
      %v414 = vadd.f32 %v375, %v389
      %v415 = vadd.f32 %v376, %v389
      %v416 = vadd.f32 %v377, %v389
      %v417 = vadd.f32 %v378, %v389
      %v418 = vadd.f32 %v379, %v389
      %v419 = vadd.f32 %v380, %v389
      %v420 = vadd.f32 %v381, %v389
      %v421 = vadd.f32 %v382, %v389
      %v422 = vadd.f32 %v383, %v389
      %v423 = vld [vmem:[%s268] sm:$0xf]
      %v424 = vld [vmem:[%s268 + $0x4] sm:$0xf]
      %v425 = vld [vmem:[%s268 + $0x8] sm:$0xf]
      %v426 = vld [vmem:[%s268 + $0xc] sm:$0xf]
      %v427 = vld [vmem:[%s268 + $0x10] sm:$0xf]
      %v428 = vld [vmem:[%s268 + $0x14] sm:$0xf]
      %v429 = vld [vmem:[%s268 + $0x18] sm:$0xf]
      %v430 = vld [vmem:[%s268 + $0x1c] sm:$0xf]
      %v431 = vld [vmem:[%s268 + $0x20] sm:$0xf]
      %v432 = vld [vmem:[%s268 + $0x24] sm:$0xf]
      %v433 = vld [vmem:[%s268 + $0x28] sm:$0xf]
      %v434 = vld [vmem:[%s268 + $0x2c] sm:$0xf]
      %v435 = vld [vmem:[%s268 + $0x30] sm:$0xf]
      %v436 = vld [vmem:[%s268 + $0x34] sm:$0xf]
      %v437 = vld [vmem:[%s268 + $0x38] sm:$0xf]
      %v438 = vld [vmem:[%s268 + $0x3c] sm:$0xf]
      %v439 = vld [vmem:[%s268 + $0x40] sm:$0xf]
      %v440 = vld [vmem:[%s268 + $0x44] sm:$0xf]
      %v441 = vld [vmem:[%s268 + $0x48] sm:$0xf]
      %v442 = vld [vmem:[%s268 + $0x4c] sm:$0xf]
      %v443 = vld [vmem:[%s268 + $0x50] sm:$0xf]
      %v444 = vld [vmem:[%s268 + $0x54] sm:$0xf]
      %v445 = vld [vmem:[%s268 + $0x58] sm:$0xf]
      %v446 = vld [vmem:[%s268 + $0x5c] sm:$0xf]
      %v447 = vld [vmem:[%s268 + $0x60] sm:$0xf]
      %v448 = vld [vmem:[%s268 + $0x64] sm:$0xf]
      %v449 = vld [vmem:[%s268 + $0x68] sm:$0xf]
      %v450 = vld [vmem:[%s268 + $0x6c] sm:$0xf]
      %v451 = vld [vmem:[%s268 + $0x70] sm:$0xf]
      %v452 = vld [vmem:[%s268 + $0x74] sm:$0xf]
      %v453 = vld [vmem:[%s268 + $0x78] sm:$0xf]
      %v454 = vld [vmem:[%s268 + $0x7c] sm:$0xf]
      %v455 = vunpack.c.l.bf16 %v423
      %v456 = vunpack.c.l.bf16 %v424
      %v457 = vunpack.c.l.bf16 %v425
      %v458 = vunpack.c.l.bf16 %v426
      %v459 = vunpack.c.l.bf16 %v427
      %v460 = vunpack.c.l.bf16 %v428
      %v461 = vunpack.c.l.bf16 %v429
      %v462 = vunpack.c.l.bf16 %v430
      %v463 = vunpack.c.l.bf16 %v431
      %v464 = vunpack.c.l.bf16 %v432
      %v465 = vunpack.c.l.bf16 %v433
      %v466 = vunpack.c.l.bf16 %v434
      %v467 = vunpack.c.l.bf16 %v435
      %v468 = vunpack.c.l.bf16 %v436
      %v469 = vunpack.c.l.bf16 %v437
      %v470 = vunpack.c.l.bf16 %v438
      %v471 = vunpack.c.l.bf16 %v439
      %v472 = vunpack.c.l.bf16 %v440
      %v473 = vunpack.c.l.bf16 %v441
      %v474 = vunpack.c.l.bf16 %v442
      %v475 = vunpack.c.l.bf16 %v443
      %v476 = vunpack.c.l.bf16 %v444
      %v477 = vunpack.c.l.bf16 %v445
      %v478 = vunpack.c.l.bf16 %v446
      %v479 = vunpack.c.l.bf16 %v447
      %v480 = vunpack.c.l.bf16 %v448
      %v481 = vunpack.c.l.bf16 %v449
      %v482 = vunpack.c.l.bf16 %v450
      %v483 = vunpack.c.l.bf16 %v451
      %v484 = vunpack.c.l.bf16 %v452
      %v485 = vunpack.c.l.bf16 %v453
      %v486 = vunpack.c.l.bf16 %v454
      %v487 = vadd.f32 %v391, %v455
      %v488 = vadd.f32 %v392, %v456
      %v489 = vadd.f32 %v393, %v457
      %v490 = vadd.f32 %v394, %v458
      %v491 = vadd.f32 %v395, %v459
      %v492 = vadd.f32 %v396, %v460
      %v493 = vadd.f32 %v397, %v461
      %v494 = vadd.f32 %v398, %v462
      %v495 = vadd.f32 %v399, %v463
      %v496 = vadd.f32 %v400, %v464
      %v497 = vadd.f32 %v401, %v465
      %v498 = vadd.f32 %v402, %v466
      %v499 = vadd.f32 %v403, %v467
      %v500 = vadd.f32 %v404, %v468
      %v501 = vadd.f32 %v405, %v469
      %v502 = vadd.f32 %v406, %v470
      %v503 = vadd.f32 %v407, %v471
      %v504 = vadd.f32 %v408, %v472
      %v505 = vadd.f32 %v409, %v473
      %v506 = vadd.f32 %v410, %v474
      %v507 = vadd.f32 %v411, %v475
      %v508 = vadd.f32 %v412, %v476
      %v509 = vadd.f32 %v413, %v477
      %v510 = vadd.f32 %v414, %v478
      %v511 = vadd.f32 %v415, %v479
      %v512 = vadd.f32 %v416, %v480
      %v513 = vadd.f32 %v417, %v481
      %v514 = vadd.f32 %v418, %v482
      %v515 = vadd.f32 %v419, %v483
      %v516 = vadd.f32 %v420, %v484
      %v517 = vadd.f32 %v421, %v485
      %v518 = vadd.f32 %v422, %v486
      %v519 = vmax.f32 %v487, 0.0
      %v520 = vmax.f32 %v488, 0.0
      %v521 = vmax.f32 %v489, 0.0
      %v522 = vmax.f32 %v490, 0.0
      %v523 = vmax.f32 %v491, 0.0
      %v524 = vmax.f32 %v492, 0.0
      %v525 = vmax.f32 %v493, 0.0
      %v526 = vmax.f32 %v494, 0.0
      %v527 = vmax.f32 %v495, 0.0
      %v528 = vmax.f32 %v496, 0.0
      %v529 = vmax.f32 %v497, 0.0
      %v530 = vmax.f32 %v498, 0.0
      %v531 = vmax.f32 %v499, 0.0
      %v532 = vmax.f32 %v500, 0.0
      %v533 = vmax.f32 %v501, 0.0
      %v534 = vmax.f32 %v502, 0.0
      %v535 = vmax.f32 %v503, 0.0
      %v536 = vmax.f32 %v504, 0.0
      %v537 = vmax.f32 %v505, 0.0
      %v538 = vmax.f32 %v506, 0.0
      %v539 = vmax.f32 %v507, 0.0
      %v540 = vmax.f32 %v508, 0.0
      %v541 = vmax.f32 %v509, 0.0
      %v542 = vmax.f32 %v510, 0.0
      %v543 = vmax.f32 %v511, 0.0
      %v544 = vmax.f32 %v512, 0.0
      %v545 = vmax.f32 %v513, 0.0
      %v546 = vmax.f32 %v514, 0.0
      %v547 = vmax.f32 %v515, 0.0
      %v548 = vmax.f32 %v516, 0.0
      %v549 = vmax.f32 %v517, 0.0
      %v550 = vmax.f32 %v518, 0.0
      %vm551 = vcmask 64512
      %552 = vst.msk [vmem:[%s279] sm:$0xff] %vm551, %v519
      %553 = vst.msk [vmem:[%s279 + $0x8] sm:$0xff] %vm551, %v520
      %554 = vst.msk [vmem:[%s279 + $0x10] sm:$0xff] %vm551, %v521
      %555 = vst.msk [vmem:[%s279 + $0x18] sm:$0xff] %vm551, %v522
      %556 = vst.msk [vmem:[%s279 + $0x20] sm:$0xff] %vm551, %v523
      %557 = vst.msk [vmem:[%s279 + $0x28] sm:$0xff] %vm551, %v524
      %558 = vst.msk [vmem:[%s279 + $0x30] sm:$0xff] %vm551, %v525
      %559 = vst.msk [vmem:[%s279 + $0x38] sm:$0xff] %vm551, %v526
      %560 = vst.msk [vmem:[%s279 + $0x40] sm:$0xff] %vm551, %v527
      %561 = vst.msk [vmem:[%s279 + $0x48] sm:$0xff] %vm551, %v528
      %562 = vst.msk [vmem:[%s279 + $0x50] sm:$0xff] %vm551, %v529
      %563 = vst.msk [vmem:[%s279 + $0x58] sm:$0xff] %vm551, %v530
      %564 = vst.msk [vmem:[%s279 + $0x60] sm:$0xff] %vm551, %v531
      %565 = vst.msk [vmem:[%s279 + $0x68] sm:$0xff] %vm551, %v532
      %566 = vst.msk [vmem:[%s279 + $0x70] sm:$0xff] %vm551, %v533
      %567 = vst.msk [vmem:[%s279 + $0x78] sm:$0xff] %vm551, %v534
      %568 = vst.msk [vmem:[%s279 + $0x80] sm:$0xff] %vm551, %v535
      %569 = vst.msk [vmem:[%s279 + $0x88] sm:$0xff] %vm551, %v536
      %570 = vst.msk [vmem:[%s279 + $0x90] sm:$0xff] %vm551, %v537
      %571 = vst.msk [vmem:[%s279 + $0x98] sm:$0xff] %vm551, %v538
      %572 = vst.msk [vmem:[%s279 + $0xa0] sm:$0xff] %vm551, %v539
      %573 = vst.msk [vmem:[%s279 + $0xa8] sm:$0xff] %vm551, %v540
      %574 = vst.msk [vmem:[%s279 + $0xb0] sm:$0xff] %vm551, %v541
      %575 = vst.msk [vmem:[%s279 + $0xb8] sm:$0xff] %vm551, %v542
      %576 = vst.msk [vmem:[%s279 + $0xc0] sm:$0xff] %vm551, %v543
      %577 = vst.msk [vmem:[%s279 + $0xc8] sm:$0xff] %vm551, %v544
      %578 = vst.msk [vmem:[%s279 + $0xd0] sm:$0xff] %vm551, %v545
      %579 = vst.msk [vmem:[%s279 + $0xd8] sm:$0xff] %vm551, %v546
      %580 = vst.msk [vmem:[%s279 + $0xe0] sm:$0xff] %vm551, %v547
      %581 = vst.msk [vmem:[%s279 + $0xe8] sm:$0xff] %vm551, %v548
      %582 = vst.msk [vmem:[%s279 + $0xf0] sm:$0xff] %vm551, %v549
      %583 = vst.msk [vmem:[%s279 + $0xf8] sm:$0xff] %vm551, %v550
      %s584 = smul.u32 16, %s20
      %p585 = scmp.lt.s32.totalorder %s19, 1
      %s586 = scalar_select %p585, %s19, 1
      %p587 = scmp.lt.s32.totalorder %s584, 15
      %s588 = scalar_select %p587, %s584, 15
      %s589 = smul.addr %s588, 2
      %s590 = smul.addr %s586, 32
      %s591 = sadd.s32 %s589, %s590
      %s592 = smul.addr %s591, 8
      %s593 = scalar_lea.vmem %s4, %s592
      // Predicated region
      $region37: #{residual_block_forward.5} parent=35 // pred_check
        %p594 = pneg %p145
      $region38: #{residual_block_forward.5} parent=35 // pred_check_branch
        %596 = sbr.rel (%p594) target = $region40
      $region39: #{residual_block_forward.5} parent=35 // pred_region
        %s597 = smul.u32 16, %s20
      $region40: #{residual_block_forward.5} parent=35 // pred_fallthru
        _
    $region36: #{residual_block_forward.5} parent=5 // pred_fallthru
      _
    %p598 = scmp.le.s32.totalorder 2, %s10
    // Predicated region
    $region41: #{residual_block_forward.5} parent=5 // pred_check
      %p599 = pneg %p598
    $region42: #{residual_block_forward.5} parent=5 // pred_check_branch
      %601 = sbr.rel (%p599) target = $region44
    $region43: #{residual_block_forward.5} parent=5 // pred_region
      %s602 = ssub.s32 %s10, 2
      // Predicated region
      $region45: #{residual_block_forward.5} parent=43 // pred_check
        %p603 = pneg %p151
      $region46: #{residual_block_forward.5} parent=43 // pred_check_branch
        %605 = sbr.rel (%p603) target = $region48
      $region47: #{residual_block_forward.5} parent=43 // pred_region
        %s606 = smul.u32 16, %s22
        %p607 = scmp.lt.s32.totalorder %s21, 1
        %s608 = scalar_select %p607, %s21, 1
        %p609 = scmp.lt.s32.totalorder %s606, 15
        %s610 = scalar_select %p609, %s606, 15
        %s611 = smul.addr %s610, 2
        %s612 = smul.addr %s608, 32
        %s613 = sadd.s32 %s611, %s612
        %s614 = smul.addr %s613, 8
        %s615 = scalar_lea.vmem %s4, %s614
      $region48: #{residual_block_forward.5} parent=43 // pred_fallthru
        _
    $region44: #{residual_block_forward.5} parent=5 // pred_fallthru
      _
  $region6: #{residual_block_forward.5} parent=0 // loop_footer
    %s14 = sadd.s32 1, %s10
  $region7: #{residual_block_forward.5} parent=0 // loop_footer_branch
    %9 = sbr.rel target = $region3
  $region8: #{residual_block_forward.5} parent=0 // loop_exit
    _

// kernel: residual_block_forward.3
$region0: #{residual_block_forward.3}
  #allocation0 [shape = 'u32[]', space=smem, size = 0x4, offset = 0x4, fixed_abs, tag = 'smem constant byte address 0x4 - core index']
  #allocation1 [shape = 'u32[144,128]{1,0:T(1,128)}', space=vmem, size = 0x12000, scoped, tag = 'internal scratch']
  #allocation2 [shape = 'bf16[18,18,4]{2,1,0:T(8,128)(2,1)}', space=vmem, size = 0x1b000, scoped, tag = 'scratch operand']
  #allocation3 [shape = 'bf16[256,128]{1,0:T(16,128)(2,1)}', space=vmem, size = 0x10000, scoped, tag = 'scratch operand']
  %s0 = inlined_call_operand.vmem [shape: bf16[2,16,16,4], index: 0, kind: input, shape index: {}]
  %s1 = inlined_call_operand.hbm [shape: bf16[128,128], index: 1, kind: input, shape index: {}]
  %s2 = inlined_call_operand.vmem [shape: bf16[128,128], index: 2, kind: input, shape index: {}]
  %s3 = inlined_call_operand.hbm [shape: f32[1,128], index: 3, kind: input, shape index: {}]
  %s4 = inlined_call_operand.vmem [shape: bf16[2,16,16,128], index: 4, kind: output, shape index: {0}]
  %s5 = inlined_call_operand.vmem [shape: bf16[2,16,16,128], index: 5, kind: output, shape index: {1}]
  %s6 = inlined_call_operand.vmem [shape: f32[2,2,128], index: 6, kind: output, shape index: {2}]
  %7 = xla_tuple %s4, %s5, %s6
  %s8 = sld [smem:[#allocation0]]
  $region73: #{residual_block_forward.3} parent=0
    _
  %s10 = ssub.s32 1, %s8
  %s11 = scalar_select 0, %s10, %s8
  $region1: #{residual_block_forward.3} parent=0
    #allocation4 [shape = 'u8[32768]{0}', space=vmem, size = 0x8000, scoped, tag = 'input window, operand 1, single buffered']
    #allocation5 [shape = 's32[2]{0}', space=sflag, size = 0x8, scoped, tag = 'scoped memory for residual_block_forward.3']
    #allocation6 [shape = 'u8[512]{0}', space=vmem, size = 0x400, scoped, tag = 'input window, operand 3, single buffered']
    #allocation7 [shape = 's32[1]{0}', space=sflag, size = 0x4, scoped, tag = 'scoped memory for residual_block_forward.3']
    %12 = vsyncpa [#allocation5], 0
    %13 = vsyncpa [#allocation7], 0
    loop: start=0, step=1, limit=4
    $region2: #{residual_block_forward.3} parent=1 // loop_pre_header
      _
    $region3: #{residual_block_forward.3} parent=1 // loop_header
      %s15 = sphi 0, %s19
      %p16 = scmp.ge.s32.totalorder %s15, 4
      %s25 = sphi 0, %s27
      %s28 = sphi 0, %s25
      %s29 = sphi 0, %s28
      %s45 = sphi 0, %s29
      %s49 = sphi 0, %s49
      %s51 = sphi 0, %s49
      %s52 = sphi 0, %s51
      %s66 = sphi 0, %s52
      %s70 = sphi 0, %s70
      %s72 = sphi 0, %s70
      %s73 = sphi 0, %s72
      %s87 = sphi 0, %s73
      %s91 = sphi 0, %s91
      %s93 = sphi 0, %s91
      %s94 = sphi 0, %s93
      %s108 = sphi 0, %s94
      %s114 = sphi 0, %s116
      %s117 = sphi 0, %s114
      %s118 = sphi 0, %s117
      %s134 = sphi 0, %s118
      %s140 = sphi 0, %s142
      %s143 = sphi 0, %s140
      %s144 = sphi 0, %s143
      %s160 = sphi 0, %s144
      %s166 = sphi 0, %s168
      %s169 = sphi 0, %s166
      %s170 = sphi 0, %s169
      %s186 = sphi 0, %s170
    $region4: #{residual_block_forward.3} parent=1 // loop_header_branch
      %18 = sbr.rel (%p16) target = $region8
    $region5: #{residual_block_forward.3} parent=1 // loop_body
      %s20 = ssub.s32 %s15, 1
      %s21 = ssub.s32 %s15, 2
      %s22 = sadd.s32 %s15, 1
      %s23 = ssub.s32 %s15, %s22
      %p24 = scmp.eq.s32.totalorder %s23, 0
      %s26 = sadd.s32 %s25, 1
      %s27 = scalar_select %p24, %s25, %s26
      %p30 = pneg %p24
      %p31 = scmp.eq.s32.totalorder %s15, 1
      %p32 = por %p30, %p31
      %p33 = scmp.ne.s32.totalorder %s25, %s28
      %p34 = scmp.eq.s32.totalorder %s15, 0
      %p35 = por %p33, %p34
      %p36 = scmp.ne.s32.totalorder %s25, %s28
      %p37 = scmp.eq.s32.totalorder %s20, 1
      %p38 = por %p36, %p37
      %p39 = scmp.ne.s32.totalorder %s28, %s29
      %p40 = scmp.eq.s32.totalorder %s20, 0
      %p41 = por %p39, %p40
      %p42 = scmp.ne.s32.totalorder %s28, %s29
      %p43 = scmp.eq.s32.totalorder %s21, 1
      %p44 = por %p42, %p43
      %p46 = scmp.ne.s32.totalorder %s29, %s45
      %p47 = scmp.eq.s32.totalorder %s21, 0
      %p48 = por %p46, %p47
      %s50 = sadd.s32 %s49, 1
      %p53 = scmp.eq.s32.totalorder %s15, 1
      %p54 = scmp.ne.s32.totalorder %s49, %s51
      %p55 = scmp.eq.s32.totalorder %s15, 0
      %p56 = por %p54, %p55
      %p57 = scmp.ne.s32.totalorder %s49, %s51
      %p58 = scmp.eq.s32.totalorder %s20, 1
      %p59 = por %p57, %p58
      %p60 = scmp.ne.s32.totalorder %s51, %s52
      %p61 = scmp.eq.s32.totalorder %s20, 0
      %p62 = por %p60, %p61
      %p63 = scmp.ne.s32.totalorder %s51, %s52
      %p64 = scmp.eq.s32.totalorder %s21, 1
      %p65 = por %p63, %p64
      %p67 = scmp.ne.s32.totalorder %s52, %s66
      %p68 = scmp.eq.s32.totalorder %s21, 0
      %p69 = por %p67, %p68
      %s71 = sadd.s32 %s70, 1
      %p74 = scmp.eq.s32.totalorder %s15, 1
      %p75 = scmp.ne.s32.totalorder %s70, %s72
      %p76 = scmp.eq.s32.totalorder %s15, 0
      %p77 = por %p75, %p76
      %p78 = scmp.ne.s32.totalorder %s70, %s72
      %p79 = scmp.eq.s32.totalorder %s20, 1
      %p80 = por %p78, %p79
      %p81 = scmp.ne.s32.totalorder %s72, %s73
      %p82 = scmp.eq.s32.totalorder %s20, 0
      %p83 = por %p81, %p82
      %p84 = scmp.ne.s32.totalorder %s72, %s73
      %p85 = scmp.eq.s32.totalorder %s21, 1
      %p86 = por %p84, %p85
      %p88 = scmp.ne.s32.totalorder %s73, %s87
      %p89 = scmp.eq.s32.totalorder %s21, 0
      %p90 = por %p88, %p89
      %s92 = sadd.s32 %s91, 1
      %p95 = scmp.eq.s32.totalorder %s15, 1
      %p96 = scmp.ne.s32.totalorder %s91, %s93
      %p97 = scmp.eq.s32.totalorder %s15, 0
      %p98 = por %p96, %p97
      %p99 = scmp.ne.s32.totalorder %s91, %s93
      %p100 = scmp.eq.s32.totalorder %s20, 1
      %p101 = por %p99, %p100
      %p102 = scmp.ne.s32.totalorder %s93, %s94
      %p103 = scmp.eq.s32.totalorder %s20, 0
      %p104 = por %p102, %p103
      %p105 = scmp.ne.s32.totalorder %s93, %s94
      %p106 = scmp.eq.s32.totalorder %s21, 1
      %p107 = por %p105, %p106
      %p109 = scmp.ne.s32.totalorder %s94, %s108
      %p110 = scmp.eq.s32.totalorder %s21, 0
      %p111 = por %p109, %p110
      %s112 = ssub.s32 %s15, %s22
      %p113 = scmp.eq.s32.totalorder %s112, 0
      %s115 = sadd.s32 %s114, 1
      %s116 = scalar_select %p113, %s114, %s115
      %p119 = pneg %p113
      %p120 = scmp.eq.s32.totalorder %s15, 1
      %p121 = por %p119, %p120
      %p122 = scmp.ne.s32.totalorder %s114, %s117
      %p123 = scmp.eq.s32.totalorder %s15, 0
      %p124 = por %p122, %p123
      %p125 = scmp.ne.s32.totalorder %s114, %s117
      %p126 = scmp.eq.s32.totalorder %s20, 1
      %p127 = por %p125, %p126
      %p128 = scmp.ne.s32.totalorder %s117, %s118
      %p129 = scmp.eq.s32.totalorder %s20, 0
      %p130 = por %p128, %p129
      %p131 = scmp.ne.s32.totalorder %s117, %s118
      %p132 = scmp.eq.s32.totalorder %s21, 1
      %p133 = por %p131, %p132
      %p135 = scmp.ne.s32.totalorder %s118, %s134
      %p136 = scmp.eq.s32.totalorder %s21, 0
      %p137 = por %p135, %p136
      %s138 = ssub.s32 %s15, %s22
      %p139 = scmp.eq.s32.totalorder %s138, 0
      %s141 = sadd.s32 %s140, 1
      %s142 = scalar_select %p139, %s140, %s141
      %p145 = pneg %p139
      %p146 = scmp.eq.s32.totalorder %s15, 1
      %p147 = por %p145, %p146
      %p148 = scmp.ne.s32.totalorder %s140, %s143
      %p149 = scmp.eq.s32.totalorder %s15, 0
      %p150 = por %p148, %p149
      %p151 = scmp.ne.s32.totalorder %s140, %s143
      %p152 = scmp.eq.s32.totalorder %s20, 1
      %p153 = por %p151, %p152
      %p154 = scmp.ne.s32.totalorder %s143, %s144
      %p155 = scmp.eq.s32.totalorder %s20, 0
      %p156 = por %p154, %p155
      %p157 = scmp.ne.s32.totalorder %s143, %s144
      %p158 = scmp.eq.s32.totalorder %s21, 1
      %p159 = por %p157, %p158
      %p161 = scmp.ne.s32.totalorder %s144, %s160
      %p162 = scmp.eq.s32.totalorder %s21, 0
      %p163 = por %p161, %p162
      %s164 = ssub.s32 %s15, %s22
      %p165 = scmp.eq.s32.totalorder %s164, 0
      %s167 = sadd.s32 %s166, 1
      %s168 = scalar_select %p165, %s166, %s167
      %p171 = pneg %p165
      %p172 = scmp.eq.s32.totalorder %s15, 1
      %p173 = por %p171, %p172
      %p174 = scmp.ne.s32.totalorder %s166, %s169
      %p175 = scmp.eq.s32.totalorder %s15, 0
      %p176 = por %p174, %p175
      %p177 = scmp.ne.s32.totalorder %s166, %s169
      %p178 = scmp.eq.s32.totalorder %s20, 1
      %p179 = por %p177, %p178
      %p180 = scmp.ne.s32.totalorder %s169, %s170
      %p181 = scmp.eq.s32.totalorder %s20, 0
      %p182 = por %p180, %p181
      %p183 = scmp.ne.s32.totalorder %s169, %s170
      %p184 = scmp.eq.s32.totalorder %s21, 1
      %p185 = por %p183, %p184
      %p187 = scmp.ne.s32.totalorder %s170, %s186
      %p188 = scmp.eq.s32.totalorder %s21, 0
      %p189 = por %p187, %p188
      %p190 = scmp.le.s32.totalorder 1, %s15
      %p191 = scmp.lt.s32.totalorder %s15, 3
      %p192 = pnand %p190, %p191
      %p193 = pneg %p192
      // Predicated region
      $region9: #{residual_block_forward.3} parent=5 // pred_check
        _
      $region10: #{residual_block_forward.3} parent=5 // pred_check_branch
        %195 = sbr.rel (%p192) target = $region12
      $region11: #{residual_block_forward.3} parent=5 // pred_region
        %s196 = ssub.s32 %s15, 1
        // Predicated region
        $region13: #{residual_block_forward.3} parent=11 // pred_check
          %p197 = pneg %p62
        $region14: #{residual_block_forward.3} parent=11 // pred_check_branch
          %199 = sbr.rel (%p197) target = $region16
        $region15: #{residual_block_forward.3} parent=11 // pred_region
          %s201 = ssub.s32 1024, 1024
          %202 = vsyncadd [#allocation5], %s201
          %s203 = sshll.u32 [#allocation4], 4
          %s204 = int_to_ptr.vmem [resolvable:$true] %s203
          %209 = dma.hbm_to_vmem [thread:$0]  %s1, 1024, %s204, [#allocation5], 64, 64, 4
        $region16: #{residual_block_forward.3} parent=11 // pred_fallthru
          _
        // Predicated region
        $region17: #{residual_block_forward.3} parent=11 // pred_check
          %p210 = pneg %p83
        $region18: #{residual_block_forward.3} parent=11 // pred_check_branch
          %212 = sbr.rel (%p210) target = $region20
        $region19: #{residual_block_forward.3} parent=11 // pred_region
          _
        $region20: #{residual_block_forward.3} parent=11 // pred_fallthru
          _
        // Predicated region
        $region21: #{residual_block_forward.3} parent=11 // pred_check
          %p213 = pneg %p104
        $region22: #{residual_block_forward.3} parent=11 // pred_check_branch
          %215 = sbr.rel (%p213) target = $region24
        $region23: #{residual_block_forward.3} parent=11 // pred_region
          %s217 = ssub.s32 16, 16
          %218 = vsyncadd [#allocation7], %s217
          %s220 = sshll.u32 [#allocation6], 4
          %s221 = int_to_ptr.vmem [resolvable:$true] %s220
          %223 = dma.hbm_to_vmem [thread:$0]  %s3, 16, %s221, [#allocation7]
        $region24: #{residual_block_forward.3} parent=11 // pred_fallthru
          _
      $region12: #{residual_block_forward.3} parent=5 // pred_fallthru
        _
      %p224 = scmp.lt.s32.totalorder %s15, 2
      // Predicated region
      $region25: #{residual_block_forward.3} parent=5 // pred_check
        %p225 = pneg %p224
      $region26: #{residual_block_forward.3} parent=5 // pred_check_branch
        %227 = sbr.rel (%p225) target = $region28
      $region27: #{residual_block_forward.3} parent=5 // pred_region
        // Predicated region
        $region29: #{residual_block_forward.3} parent=27 // pred_check
          %p228 = pneg %p35
        $region30: #{residual_block_forward.3} parent=27 // pred_check_branch
          %230 = sbr.rel (%p228) target = $region32
        $region31: #{residual_block_forward.3} parent=27 // pred_region
          %p231 = scmp.lt.s32.totalorder %s15, 1
          %s232 = scalar_select %p231, %s15, 1
          %s233 = smul.addr %s232, 32
          %s234 = smul.addr %s233, 4
          %s235 = scalar_lea.vmem %s0, %s234
        $region32: #{residual_block_forward.3} parent=27 // pred_fallthru
          _
      $region28: #{residual_block_forward.3} parent=5 // pred_fallthru
        _
      %p236 = scmp.le.s32.totalorder 1, %s15
      %p237 = scmp.lt.s32.totalorder %s15, 3
      %p238 = pnand %p236, %p237
      %p239 = pneg %p238
      // Predicated region
      $region33: #{residual_block_forward.3} parent=5 // pred_check
        _
      $region34: #{residual_block_forward.3} parent=5 // pred_check_branch
        %241 = sbr.rel (%p238) target = $region36
      $region35: #{residual_block_forward.3} parent=5 // pred_region
        %s242 = ssub.s32 %s15, 1
        // Predicated region
        $region37: #{residual_block_forward.3} parent=35 // pred_check
          %p243 = pneg %p62
        $region38: #{residual_block_forward.3} parent=35 // pred_check_branch
          %245 = sbr.rel (%p243) target = $region40
        $region39: #{residual_block_forward.3} parent=35 // pred_region
          %246 = dma.done [#allocation5], 1024
        $region40: #{residual_block_forward.3} parent=35 // pred_fallthru
          _
        // Predicated region
        $region41: #{residual_block_forward.3} parent=35 // pred_check
          %p247 = pneg %p104
        $region42: #{residual_block_forward.3} parent=35 // pred_check_branch
          %249 = sbr.rel (%p247) target = $region44
        $region43: #{residual_block_forward.3} parent=35 // pred_region
          %250 = dma.done [#allocation7], 16
        $region44: #{residual_block_forward.3} parent=35 // pred_fallthru
          _
        %p251 = scmp.lt.s32.totalorder %s20, 1
        %s252 = scalar_select %p251, %s20, 1
        %s253 = smul.addr %s252, 32
        %s254 = smul.addr %s253, 4
        %s255 = scalar_lea.vmem %s0, %s254
        %p256 = pneg %p41
        %p257 = pneg %p38
        %p258 = pneg %p62
        %p259 = pneg %p59
        %p260 = pneg %p83
        %p261 = pneg %p80
        %p262 = pneg %p104
        %p263 = pneg %p101
        %p264 = pneg %p130
        %p265 = pneg %p127
        %p266 = scmp.lt.s32.totalorder %s20, 1
        %s267 = scalar_select %p266, %s20, 1
        %s268 = smul.addr %s267, 32
        %s269 = smul.addr %s268, 4
        %s270 = scalar_lea.vmem %s4, %s269
        %p271 = pneg %p156
        %p272 = pneg %p153
        %p273 = scmp.lt.s32.totalorder %s20, 1
        %s274 = scalar_select %p273, %s20, 1
        %s275 = smul.addr %s274, 32
        %s276 = smul.addr %s275, 4
        %s277 = scalar_lea.vmem %s5, %s276
        %p278 = pneg %p182
        %p279 = pneg %p179
        %p280 = scmp.lt.s32.totalorder %s20, 1
        %s281 = scalar_select %p280, %s20, 1
        %s282 = smul.addr %s281, 2
        %s283 = scalar_lea.vmem %s6, %s282
        %p284 = scmp.lt.s32.totalorder %s20, 1
        %s285 = scalar_select %p284, %s20, 1
        %s286 = smul.addr %s285, 32
        %s287 = smul.addr %s286, 4
        %s288 = scalar_lea.vmem %s0, %s287
        %p289 = scmp.lt.s32.totalorder %s20, 1
        %s290 = scalar_select %p289, %s20, 1
        %s291 = smul.addr %s290, 32
        %s292 = smul.addr %s291, 4
        %s293 = scalar_lea.vmem %s4, %s292
        %p294 = scmp.lt.s32.totalorder %s20, 1
        %s295 = scalar_select %p294, %s20, 1
        %s296 = smul.addr %s295, 32
        %s297 = smul.addr %s296, 4
        %s298 = scalar_lea.vmem %s5, %s297
        %p299 = scmp.lt.s32.totalorder %s20, 1
        %s300 = scalar_select %p299, %s20, 1
        %s301 = smul.addr %s300, 2
        %s302 = scalar_lea.vmem %s6, %s301
        %vm304 = vcmask 27648
        %305 = vst.msk [vmem:[#allocation2] sm:$0xf] %vm304, 0
        %306 = vst.msk [vmem:[#allocation2 + $0x4] sm:$0xf] %vm304, 0
        %vm307 = vcmask 24576
        %308 = vst.msk [vmem:[#allocation2 + $0x8] sm:$0x1] %vm307, 0
        %s309 = scalar_lea.vmem [#allocation2], 204
        %310 = vst.msk [vmem:[%s309] sm:$0xf] %vm304, 0
        %311 = vst.msk [vmem:[%s309 + $0x4] sm:$0xf] %vm304, 0
        %312 = vst.msk [vmem:[%s309 + $0x8] sm:$0x1] %vm307, 0
        %s313 = scalar_lea.vmem [#allocation2], 12
        %vm314 = vcmask 24576
        %vm315 = vsmask.f32 256
        %vm316 = vmand %vm314, %vm315
        %v317 = vld [vmem:[%s313] sm:$0x1]
        %v318 = vsel %vm316, 0, %v317
        %319 = vst [vmem:[%s313] sm:$0x1] %v318
        %v320 = vld [vmem:[%s313 + $0xc] sm:$0x1]
        %v321 = vsel %vm316, 0, %v320
        %322 = vst [vmem:[%s313 + $0xc] sm:$0x1] %v321
        %v323 = vld [vmem:[%s313 + $0x18] sm:$0x1]
        %v324 = vsel %vm316, 0, %v323
        %325 = vst [vmem:[%s313 + $0x18] sm:$0x1] %v324
        %v326 = vld [vmem:[%s313 + $0x24] sm:$0x1]
        %v327 = vsel %vm316, 0, %v326
        %328 = vst [vmem:[%s313 + $0x24] sm:$0x1] %v327
        %v329 = vld [vmem:[%s313 + $0x30] sm:$0x1]
        %v330 = vsel %vm316, 0, %v329
        %331 = vst [vmem:[%s313 + $0x30] sm:$0x1] %v330
        %v332 = vld [vmem:[%s313 + $0x3c] sm:$0x1]
        %v333 = vsel %vm316, 0, %v332
        %334 = vst [vmem:[%s313 + $0x3c] sm:$0x1] %v333
        %v335 = vld [vmem:[%s313 + $0x48] sm:$0x1]
        %v336 = vsel %vm316, 0, %v335
        %337 = vst [vmem:[%s313 + $0x48] sm:$0x1] %v336
        %v338 = vld [vmem:[%s313 + $0x54] sm:$0x1]
        %v339 = vsel %vm316, 0, %v338
        %340 = vst [vmem:[%s313 + $0x54] sm:$0x1] %v339
        %v341 = vld [vmem:[%s313 + $0x60] sm:$0x1]
        %v342 = vsel %vm316, 0, %v341
        %343 = vst [vmem:[%s313 + $0x60] sm:$0x1] %v342
        %v344 = vld [vmem:[%s313 + $0x6c] sm:$0x1]
        %v345 = vsel %vm316, 0, %v344
        %346 = vst [vmem:[%s313 + $0x6c] sm:$0x1] %v345
        %v347 = vld [vmem:[%s313 + $0x78] sm:$0x1]
        %v348 = vsel %vm316, 0, %v347
        %349 = vst [vmem:[%s313 + $0x78] sm:$0x1] %v348
        %v350 = vld [vmem:[%s313 + $0x84] sm:$0x1]
        %v351 = vsel %vm316, 0, %v350
        %352 = vst [vmem:[%s313 + $0x84] sm:$0x1] %v351
        %v353 = vld [vmem:[%s313 + $0x90] sm:$0x1]
        %v354 = vsel %vm316, 0, %v353
        %355 = vst [vmem:[%s313 + $0x90] sm:$0x1] %v354
        %v356 = vld [vmem:[%s313 + $0x9c] sm:$0x1]
        %v357 = vsel %vm316, 0, %v356
        %358 = vst [vmem:[%s313 + $0x9c] sm:$0x1] %v357
        %v359 = vld [vmem:[%s313 + $0xa8] sm:$0x1]
        %v360 = vsel %vm316, 0, %v359
        %361 = vst [vmem:[%s313 + $0xa8] sm:$0x1] %v360
        %v362 = vld [vmem:[%s313 + $0xb4] sm:$0x1]
        %v363 = vsel %vm316, 0, %v362
        %364 = vst [vmem:[%s313 + $0xb4] sm:$0x1] %v363
        %vm365 = vsmask.f32 7938
        %vm366 = vmand %vm314, %vm365
        %v367 = vld [vmem:[%s313 + $0x8] sm:$0x1]
        %v368 = vsel %vm366, 0, %v367
        %369 = vst [vmem:[%s313 + $0x8] sm:$0x1] %v368
        %v370 = vld [vmem:[%s313 + $0x14] sm:$0x1]
        %v371 = vsel %vm366, 0, %v370
        %372 = vst [vmem:[%s313 + $0x14] sm:$0x1] %v371
        %v373 = vld [vmem:[%s313 + $0x20] sm:$0x1]
        %v374 = vsel %vm366, 0, %v373
        %375 = vst [vmem:[%s313 + $0x20] sm:$0x1] %v374
        %v376 = vld [vmem:[%s313 + $0x2c] sm:$0x1]
        %v377 = vsel %vm366, 0, %v376
        %378 = vst [vmem:[%s313 + $0x2c] sm:$0x1] %v377
        %v379 = vld [vmem:[%s313 + $0x38] sm:$0x1]
        %v380 = vsel %vm366, 0, %v379
        %381 = vst [vmem:[%s313 + $0x38] sm:$0x1] %v380
        %v382 = vld [vmem:[%s313 + $0x44] sm:$0x1]
        %v383 = vsel %vm366, 0, %v382
        %384 = vst [vmem:[%s313 + $0x44] sm:$0x1] %v383
        %v385 = vld [vmem:[%s313 + $0x50] sm:$0x1]
        %v386 = vsel %vm366, 0, %v385
        %387 = vst [vmem:[%s313 + $0x50] sm:$0x1] %v386
        %v388 = vld [vmem:[%s313 + $0x5c] sm:$0x1]
        %v389 = vsel %vm366, 0, %v388
        %390 = vst [vmem:[%s313 + $0x5c] sm:$0x1] %v389
        %v391 = vld [vmem:[%s313 + $0x68] sm:$0x1]
        %v392 = vsel %vm366, 0, %v391
        %393 = vst [vmem:[%s313 + $0x68] sm:$0x1] %v392
        %v394 = vld [vmem:[%s313 + $0x74] sm:$0x1]
        %v395 = vsel %vm366, 0, %v394
        %396 = vst [vmem:[%s313 + $0x74] sm:$0x1] %v395
        %v397 = vld [vmem:[%s313 + $0x80] sm:$0x1]
        %v398 = vsel %vm366, 0, %v397
        %399 = vst [vmem:[%s313 + $0x80] sm:$0x1] %v398
        %v400 = vld [vmem:[%s313 + $0x8c] sm:$0x1]
        %v401 = vsel %vm366, 0, %v400
        %402 = vst [vmem:[%s313 + $0x8c] sm:$0x1] %v401
        %v403 = vld [vmem:[%s313 + $0x98] sm:$0x1]
        %v404 = vsel %vm366, 0, %v403
        %405 = vst [vmem:[%s313 + $0x98] sm:$0x1] %v404
        %v406 = vld [vmem:[%s313 + $0xa4] sm:$0x1]
        %v407 = vsel %vm366, 0, %v406
        %408 = vst [vmem:[%s313 + $0xa4] sm:$0x1] %v407
        %v409 = vld [vmem:[%s313 + $0xb0] sm:$0x1]
        %v410 = vsel %vm366, 0, %v409
        %411 = vst [vmem:[%s313 + $0xb0] sm:$0x1] %v410
        %v412 = vld [vmem:[%s313 + $0xbc] sm:$0x1]
        %v413 = vsel %vm366, 0, %v412
        %414 = vst [vmem:[%s313 + $0xbc] sm:$0x1] %v413
        %v415 = vld [vmem:[%s288] sm:$0xf]
        %v416 = vld [vmem:[%s288 + $0x4] sm:$0xf]
        %v417 = vld [vmem:[%s288 + $0x8] sm:$0xf]
        %v418 = vld [vmem:[%s288 + $0xc] sm:$0xf]
        %v419 = vld [vmem:[%s288 + $0x10] sm:$0xf]
        %v420 = vld [vmem:[%s288 + $0x14] sm:$0xf]
        %v421 = vld [vmem:[%s288 + $0x18] sm:$0xf]
        %v422 = vld [vmem:[%s288 + $0x1c] sm:$0xf]
        %v423 = vld [vmem:[%s288 + $0x20] sm:$0xf]
        %v424 = vld [vmem:[%s288 + $0x24] sm:$0xf]
        %v425 = vld [vmem:[%s288 + $0x28] sm:$0xf]
        %v426 = vld [vmem:[%s288 + $0x2c] sm:$0xf]
        %v427 = vld [vmem:[%s288 + $0x30] sm:$0xf]
        %v428 = vld [vmem:[%s288 + $0x34] sm:$0xf]
        %v429 = vld [vmem:[%s288 + $0x38] sm:$0xf]
        %v430 = vld [vmem:[%s288 + $0x3c] sm:$0xf]
        %v431 = vld [vmem:[%s288 + $0x40] sm:$0xf]
        %v432 = vld [vmem:[%s288 + $0x44] sm:$0xf]
        %v433 = vld [vmem:[%s288 + $0x48] sm:$0xf]
        %v434 = vld [vmem:[%s288 + $0x4c] sm:$0xf]
        %v435 = vld [vmem:[%s288 + $0x50] sm:$0xf]
        %v436 = vld [vmem:[%s288 + $0x54] sm:$0xf]
        %v437 = vld [vmem:[%s288 + $0x58] sm:$0xf]
        %v438 = vld [vmem:[%s288 + $0x5c] sm:$0xf]
        %v439 = vld [vmem:[%s288 + $0x60] sm:$0xf]
        %v440 = vld [vmem:[%s288 + $0x64] sm:$0xf]
        %v441 = vld [vmem:[%s288 + $0x68] sm:$0xf]
        %v442 = vld [vmem:[%s288 + $0x6c] sm:$0xf]
        %v443 = vld [vmem:[%s288 + $0x70] sm:$0xf]
        %v444 = vld [vmem:[%s288 + $0x74] sm:$0xf]
        %v445 = vld [vmem:[%s288 + $0x78] sm:$0xf]
        %v446 = vld [vmem:[%s288 + $0x7c] sm:$0xf]
        %vm447 = vsmask.f32 4368
        %vm448 = vmor %vm315, %vm447
        %v450 = vshrl.u32 %v415, 16
        %v452 = vrot.slane %v450, 7
        %v453 = vshll.u32 %v415, 16
        %v455 = vor.u32 %v452, %v453
        %v456 = vrot.slane %v452, 4
        %v458 = vshrl.u32 %v416, 16
        %v460 = vrot.slane %v458, 7
        %v461 = vshll.u32 %v416, 16
        %v463 = vor.u32 %v460, %v461
        %v464 = vsel %vm448, %v456, %v463
        %v465 = vrot.slane %v460, 4
        %v467 = vshrl.u32 %v417, 16
        %v469 = vrot.slane %v467, 7
        %v470 = vshll.u32 %v417, 16
        %v472 = vor.u32 %v469, %v470
        %v473 = vrot.slane %v469, 4
        %v475 = vshrl.u32 %v418, 16
        %v477 = vrot.slane %v475, 7
        %v478 = vshll.u32 %v418, 16
        %v480 = vor.u32 %v477, %v478
        %v481 = vsel %vm448, %v473, %v480
        %v482 = vrot.slane %v477, 4
        %v484 = vshrl.u32 %v419, 16
        %v486 = vrot.slane %v484, 7
        %v487 = vshll.u32 %v419, 16
        %v489 = vor.u32 %v486, %v487
        %v490 = vrot.slane %v486, 4
        %v492 = vshrl.u32 %v420, 16
        %v494 = vrot.slane %v492, 7
        %v495 = vshll.u32 %v420, 16
        %v497 = vor.u32 %v494, %v495
        %v498 = vsel %vm448, %v490, %v497
        %v499 = vrot.slane %v494, 4
        %v501 = vshrl.u32 %v421, 16
        %v503 = vrot.slane %v501, 7
        %v504 = vshll.u32 %v421, 16
        %v506 = vor.u32 %v503, %v504
        %v507 = vrot.slane %v503, 4
        %v509 = vshrl.u32 %v422, 16
        %v511 = vrot.slane %v509, 7
        %v512 = vshll.u32 %v422, 16
        %v514 = vor.u32 %v511, %v512
        %v515 = vsel %vm448, %v507, %v514
        %v516 = vrot.slane %v511, 4
        %v518 = vshrl.u32 %v423, 16
        %v520 = vrot.slane %v518, 7
        %v521 = vshll.u32 %v423, 16
        %v523 = vor.u32 %v520, %v521
        %v524 = vrot.slane %v520, 4
        %v526 = vshrl.u32 %v424, 16
        %v528 = vrot.slane %v526, 7
        %v529 = vshll.u32 %v424, 16
        %v531 = vor.u32 %v528, %v529
        %v532 = vsel %vm448, %v524, %v531
        %v533 = vrot.slane %v528, 4
        %v535 = vshrl.u32 %v425, 16
        %v537 = vrot.slane %v535, 7
        %v538 = vshll.u32 %v425, 16
        %v540 = vor.u32 %v537, %v538
        %v541 = vrot.slane %v537, 4
        %v543 = vshrl.u32 %v426, 16
        %v545 = vrot.slane %v543, 7
        %v546 = vshll.u32 %v426, 16
        %v548 = vor.u32 %v545, %v546
        %v549 = vsel %vm448, %v541, %v548
        %v550 = vrot.slane %v545, 4
        %v552 = vshrl.u32 %v427, 16
        %v554 = vrot.slane %v552, 7
        %v555 = vshll.u32 %v427, 16
        %v557 = vor.u32 %v554, %v555
        %v558 = vrot.slane %v554, 4
        %v560 = vshrl.u32 %v428, 16
        %v562 = vrot.slane %v560, 7
        %v563 = vshll.u32 %v428, 16
        %v565 = vor.u32 %v562, %v563
        %v566 = vsel %vm448, %v558, %v565
        %v567 = vrot.slane %v562, 4
        %v569 = vshrl.u32 %v429, 16
        %v571 = vrot.slane %v569, 7
        %v572 = vshll.u32 %v429, 16
        %v574 = vor.u32 %v571, %v572
        %v575 = vrot.slane %v571, 4
        %v577 = vshrl.u32 %v430, 16
        %v579 = vrot.slane %v577, 7
        %v580 = vshll.u32 %v430, 16
        %v582 = vor.u32 %v579, %v580
        %v583 = vsel %vm448, %v575, %v582
        %v584 = vrot.slane %v579, 4
        %v586 = vshrl.u32 %v431, 16
        %v588 = vrot.slane %v586, 7
        %v589 = vshll.u32 %v431, 16
        %v591 = vor.u32 %v588, %v589
        %v592 = vrot.slane %v588, 4
        %v594 = vshrl.u32 %v432, 16
        %v596 = vrot.slane %v594, 7
        %v597 = vshll.u32 %v432, 16
        %v599 = vor.u32 %v596, %v597
        %v600 = vsel %vm448, %v592, %v599
        %v601 = vrot.slane %v596, 4
        %v603 = vshrl.u32 %v433, 16
        %v605 = vrot.slane %v603, 7
        %v606 = vshll.u32 %v433, 16
        %v608 = vor.u32 %v605, %v606
        %v609 = vrot.slane %v605, 4
        %v611 = vshrl.u32 %v434, 16
        %v613 = vrot.slane %v611, 7
        %v614 = vshll.u32 %v434, 16
        %v616 = vor.u32 %v613, %v614
        %v617 = vsel %vm448, %v609, %v616
        %v618 = vrot.slane %v613, 4
        %v620 = vshrl.u32 %v435, 16
        %v622 = vrot.slane %v620, 7
        %v623 = vshll.u32 %v435, 16
        %v625 = vor.u32 %v622, %v623
        %v626 = vrot.slane %v622, 4
        %v628 = vshrl.u32 %v436, 16
        %v630 = vrot.slane %v628, 7
        %v631 = vshll.u32 %v436, 16
        %v633 = vor.u32 %v630, %v631
        %v634 = vsel %vm448, %v626, %v633
        %v635 = vrot.slane %v630, 4
        %v637 = vshrl.u32 %v437, 16
        %v639 = vrot.slane %v637, 7
        %v640 = vshll.u32 %v437, 16
        %v642 = vor.u32 %v639, %v640
        %v643 = vrot.slane %v639, 4
        %v645 = vshrl.u32 %v438, 16
        %v647 = vrot.slane %v645, 7
        %v648 = vshll.u32 %v438, 16
        %v650 = vor.u32 %v647, %v648
        %v651 = vsel %vm448, %v643, %v650
        %v652 = vrot.slane %v647, 4
        %v654 = vshrl.u32 %v439, 16
        %v656 = vrot.slane %v654, 7
        %v657 = vshll.u32 %v439, 16
        %v659 = vor.u32 %v656, %v657
        %v660 = vrot.slane %v656, 4
        %v662 = vshrl.u32 %v440, 16
        %v664 = vrot.slane %v662, 7
        %v665 = vshll.u32 %v440, 16
        %v667 = vor.u32 %v664, %v665
        %v668 = vsel %vm448, %v660, %v667
        %v669 = vrot.slane %v664, 4
        %v671 = vshrl.u32 %v441, 16
        %v673 = vrot.slane %v671, 7
        %v674 = vshll.u32 %v441, 16
        %v676 = vor.u32 %v673, %v674
        %v677 = vrot.slane %v673, 4
        %v679 = vshrl.u32 %v442, 16
        %v681 = vrot.slane %v679, 7
        %v682 = vshll.u32 %v442, 16
        %v684 = vor.u32 %v681, %v682
        %v685 = vsel %vm448, %v677, %v684
        %v686 = vrot.slane %v681, 4
        %v688 = vshrl.u32 %v443, 16
        %v690 = vrot.slane %v688, 7
        %v691 = vshll.u32 %v443, 16
        %v693 = vor.u32 %v690, %v691
        %v694 = vrot.slane %v690, 4
        %v696 = vshrl.u32 %v444, 16
        %v698 = vrot.slane %v696, 7
        %v699 = vshll.u32 %v444, 16
        %v701 = vor.u32 %v698, %v699
        %v702 = vsel %vm448, %v694, %v701
        %v703 = vrot.slane %v698, 4
        %v705 = vshrl.u32 %v445, 16
        %v707 = vrot.slane %v705, 7
        %v708 = vshll.u32 %v445, 16
        %v710 = vor.u32 %v707, %v708
        %v711 = vrot.slane %v707, 4
        %v713 = vshrl.u32 %v446, 16
        %v715 = vrot.slane %v713, 7
        %v716 = vshll.u32 %v446, 16
        %v718 = vor.u32 %v715, %v716
        %v719 = vsel %vm448, %v711, %v718
        %v720 = vrot.slane %v715, 4
        %vm769 = vcmask 27648
        %vm770 = vmand %vm769, %vm365
        %v771 = vld [vmem:[%s313] sm:$0xf]
        %v772 = vsel %vm770, %v455, %v771
        %773 = vst [vmem:[%s313] sm:$0xf] %v772
        %774 = vst.msk [vmem:[%s313 + $0x4] sm:$0xf] %vm304, %v464
        %v775 = vld [vmem:[%s313 + $0x8] sm:$0x1]
        %v776 = vsel %vm316, %v465, %v775
        %777 = vst [vmem:[%s313 + $0x8] sm:$0x1] %v776
        %v778 = vld [vmem:[%s313 + $0xc] sm:$0xf]
        %v779 = vsel %vm770, %v472, %v778
        %780 = vst [vmem:[%s313 + $0xc] sm:$0xf] %v779
        %781 = vst.msk [vmem:[%s313 + $0x10] sm:$0xf] %vm304, %v481
        %v782 = vld [vmem:[%s313 + $0x14] sm:$0x1]
        %v783 = vsel %vm316, %v482, %v782
        %784 = vst [vmem:[%s313 + $0x14] sm:$0x1] %v783
        %v785 = vld [vmem:[%s313 + $0x18] sm:$0xf]
        %v786 = vsel %vm770, %v489, %v785
        %787 = vst [vmem:[%s313 + $0x18] sm:$0xf] %v786
        %788 = vst.msk [vmem:[%s313 + $0x1c] sm:$0xf] %vm304, %v498
        %v789 = vld [vmem:[%s313 + $0x20] sm:$0x1]
        %v790 = vsel %vm316, %v499, %v789
        %791 = vst [vmem:[%s313 + $0x20] sm:$0x1] %v790
        %v792 = vld [vmem:[%s313 + $0x24] sm:$0xf]
        %v793 = vsel %vm770, %v506, %v792
        %794 = vst [vmem:[%s313 + $0x24] sm:$0xf] %v793
        %795 = vst.msk [vmem:[%s313 + $0x28] sm:$0xf] %vm304, %v515
        %v796 = vld [vmem:[%s313 + $0x2c] sm:$0x1]
        %v797 = vsel %vm316, %v516, %v796
        %798 = vst [vmem:[%s313 + $0x2c] sm:$0x1] %v797
        %v799 = vld [vmem:[%s313 + $0x30] sm:$0xf]
        %v800 = vsel %vm770, %v523, %v799
        %801 = vst [vmem:[%s313 + $0x30] sm:$0xf] %v800
        %802 = vst.msk [vmem:[%s313 + $0x34] sm:$0xf] %vm304, %v532
        %v803 = vld [vmem:[%s313 + $0x38] sm:$0x1]
        %v804 = vsel %vm316, %v533, %v803
        %805 = vst [vmem:[%s313 + $0x38] sm:$0x1] %v804
        %v806 = vld [vmem:[%s313 + $0x3c] sm:$0xf]
        %v807 = vsel %vm770, %v540, %v806
        %808 = vst [vmem:[%s313 + $0x3c] sm:$0xf] %v807
        %809 = vst.msk [vmem:[%s313 + $0x40] sm:$0xf] %vm304, %v549
        %v810 = vld [vmem:[%s313 + $0x44] sm:$0x1]
        %v811 = vsel %vm316, %v550, %v810
        %812 = vst [vmem:[%s313 + $0x44] sm:$0x1] %v811
        %v813 = vld [vmem:[%s313 + $0x48] sm:$0xf]
        %v814 = vsel %vm770, %v557, %v813
        %815 = vst [vmem:[%s313 + $0x48] sm:$0xf] %v814
        %816 = vst.msk [vmem:[%s313 + $0x4c] sm:$0xf] %vm304, %v566
        %v817 = vld [vmem:[%s313 + $0x50] sm:$0x1]
        %v818 = vsel %vm316, %v567, %v817
        %819 = vst [vmem:[%s313 + $0x50] sm:$0x1] %v818
        %v820 = vld [vmem:[%s313 + $0x54] sm:$0xf]
        %v821 = vsel %vm770, %v574, %v820
        %822 = vst [vmem:[%s313 + $0x54] sm:$0xf] %v821
        %823 = vst.msk [vmem:[%s313 + $0x58] sm:$0xf] %vm304, %v583
        %v824 = vld [vmem:[%s313 + $0x5c] sm:$0x1]
        %v825 = vsel %vm316, %v584, %v824
        %826 = vst [vmem:[%s313 + $0x5c] sm:$0x1] %v825
        %v827 = vld [vmem:[%s313 + $0x60] sm:$0xf]
        %v828 = vsel %vm770, %v591, %v827
        %829 = vst [vmem:[%s313 + $0x60] sm:$0xf] %v828
        %830 = vst.msk [vmem:[%s313 + $0x64] sm:$0xf] %vm304, %v600
        %v831 = vld [vmem:[%s313 + $0x68] sm:$0x1]
        %v832 = vsel %vm316, %v601, %v831
        %833 = vst [vmem:[%s313 + $0x68] sm:$0x1] %v832
        %v834 = vld [vmem:[%s313 + $0x6c] sm:$0xf]
        %v835 = vsel %vm770, %v608, %v834
        %836 = vst [vmem:[%s313 + $0x6c] sm:$0xf] %v835
        %837 = vst.msk [vmem:[%s313 + $0x70] sm:$0xf] %vm304, %v617
        %v838 = vld [vmem:[%s313 + $0x74] sm:$0x1]
        %v839 = vsel %vm316, %v618, %v838
        %840 = vst [vmem:[%s313 + $0x74] sm:$0x1] %v839
        %v841 = vld [vmem:[%s313 + $0x78] sm:$0xf]
        %v842 = vsel %vm770, %v625, %v841
        %843 = vst [vmem:[%s313 + $0x78] sm:$0xf] %v842
        %844 = vst.msk [vmem:[%s313 + $0x7c] sm:$0xf] %vm304, %v634
        %v845 = vld [vmem:[%s313 + $0x80] sm:$0x1]
        %v846 = vsel %vm316, %v635, %v845
        %847 = vst [vmem:[%s313 + $0x80] sm:$0x1] %v846
        %v848 = vld [vmem:[%s313 + $0x84] sm:$0xf]
        %v849 = vsel %vm770, %v642, %v848
        %850 = vst [vmem:[%s313 + $0x84] sm:$0xf] %v849
        %851 = vst.msk [vmem:[%s313 + $0x88] sm:$0xf] %vm304, %v651
        %v852 = vld [vmem:[%s313 + $0x8c] sm:$0x1]
        %v853 = vsel %vm316, %v652, %v852
        %854 = vst [vmem:[%s313 + $0x8c] sm:$0x1] %v853
        %v855 = vld [vmem:[%s313 + $0x90] sm:$0xf]
        %v856 = vsel %vm770, %v659, %v855
        %857 = vst [vmem:[%s313 + $0x90] sm:$0xf] %v856
        %858 = vst.msk [vmem:[%s313 + $0x94] sm:$0xf] %vm304, %v668
        %v859 = vld [vmem:[%s313 + $0x98] sm:$0x1]
        %v860 = vsel %vm316, %v669, %v859
        %861 = vst [vmem:[%s313 + $0x98] sm:$0x1] %v860
        %v862 = vld [vmem:[%s313 + $0x9c] sm:$0xf]
        %v863 = vsel %vm770, %v676, %v862
        %864 = vst [vmem:[%s313 + $0x9c] sm:$0xf] %v863
        %865 = vst.msk [vmem:[%s313 + $0xa0] sm:$0xf] %vm304, %v685
        %v866 = vld [vmem:[%s313 + $0xa4] sm:$0x1]
        %v867 = vsel %vm316, %v686, %v866
        %868 = vst [vmem:[%s313 + $0xa4] sm:$0x1] %v867
        %v869 = vld [vmem:[%s313 + $0xa8] sm:$0xf]
        %v870 = vsel %vm770, %v693, %v869
        %871 = vst [vmem:[%s313 + $0xa8] sm:$0xf] %v870
        %872 = vst.msk [vmem:[%s313 + $0xac] sm:$0xf] %vm304, %v702
        %v873 = vld [vmem:[%s313 + $0xb0] sm:$0x1]
        %v874 = vsel %vm316, %v703, %v873
        %875 = vst [vmem:[%s313 + $0xb0] sm:$0x1] %v874
        %v876 = vld [vmem:[%s313 + $0xb4] sm:$0xf]
        %v877 = vsel %vm770, %v710, %v876
        %878 = vst [vmem:[%s313 + $0xb4] sm:$0xf] %v877
        %879 = vst.msk [vmem:[%s313 + $0xb8] sm:$0xf] %vm304, %v719
        %v880 = vld [vmem:[%s313 + $0xbc] sm:$0x1]
        %v881 = vsel %vm316, %v720, %v880
        %882 = vst [vmem:[%s313 + $0xbc] sm:$0x1] %v881
        %vm883 = vcmask 1047840
        %884 = vst.msk [vmem:[#allocation3] sm:$0xff] %vm883, 0
        %885 = vst.msk [vmem:[#allocation3 + $0x8] sm:$0xff] %vm883, 0
        %886 = vst.msk [vmem:[#allocation3 + $0x10] sm:$0xff] %vm883, 0
        %887 = vst.msk [vmem:[#allocation3 + $0x18] sm:$0xff] %vm883, 0
        %888 = vst.msk [vmem:[#allocation3 + $0x20] sm:$0xff] %vm883, 0
        %889 = vst.msk [vmem:[#allocation3 + $0x28] sm:$0xff] %vm883, 0
        %890 = vst.msk [vmem:[#allocation3 + $0x30] sm:$0xff] %vm883, 0
        %891 = vst.msk [vmem:[#allocation3 + $0x38] sm:$0xff] %vm883, 0
        %892 = vst.msk [vmem:[#allocation3 + $0x40] sm:$0xff] %vm883, 0
        %893 = vst.msk [vmem:[#allocation3 + $0x48] sm:$0xff] %vm883, 0
        %894 = vst.msk [vmem:[#allocation3 + $0x50] sm:$0xff] %vm883, 0
        %895 = vst.msk [vmem:[#allocation3 + $0x58] sm:$0xff] %vm883, 0
        %896 = vst.msk [vmem:[#allocation3 + $0x60] sm:$0xff] %vm883, 0
        %897 = vst.msk [vmem:[#allocation3 + $0x68] sm:$0xff] %vm883, 0
        %898 = vst.msk [vmem:[#allocation3 + $0x70] sm:$0xff] %vm883, 0
        %899 = vst.msk [vmem:[#allocation3 + $0x78] sm:$0xff] %vm883, 0
        %v900 = vld [vmem:[#allocation2] sm:$0xf]
        %v901 = vld [vmem:[#allocation2 + $0x4] sm:$0xf]
        %v902 = vld [vmem:[#allocation2 + $0xc] sm:$0xf]
        %v903 = vld [vmem:[#allocation2 + $0x10] sm:$0xf]
        %v904 = vld [vmem:[#allocation2 + $0x18] sm:$0xf]
        %v905 = vld [vmem:[#allocation2 + $0x1c] sm:$0xf]
        %v906 = vld [vmem:[#allocation2 + $0x24] sm:$0xf]
        %v907 = vld [vmem:[#allocation2 + $0x28] sm:$0xf]
        %v908 = vld [vmem:[#allocation2 + $0x30] sm:$0xf]
        %v909 = vld [vmem:[#allocation2 + $0x34] sm:$0xf]
        %v910 = vld [vmem:[#allocation2 + $0x3c] sm:$0xf]
        %v911 = vld [vmem:[#allocation2 + $0x40] sm:$0xf]
        %v912 = vld [vmem:[#allocation2 + $0x48] sm:$0xf]
        %v913 = vld [vmem:[#allocation2 + $0x4c] sm:$0xf]
        %v914 = vld [vmem:[#allocation2 + $0x54] sm:$0xf]
        %v915 = vld [vmem:[#allocation2 + $0x58] sm:$0xf]
        %v916 = vld [vmem:[#allocation2 + $0x60] sm:$0xf]
        %v917 = vld [vmem:[#allocation2 + $0x64] sm:$0xf]
        %v918 = vld [vmem:[#allocation2 + $0x6c] sm:$0xf]
        %v919 = vld [vmem:[#allocation2 + $0x70] sm:$0xf]
        %v920 = vld [vmem:[#allocation2 + $0x78] sm:$0xf]
        %v921 = vld [vmem:[#allocation2 + $0x7c] sm:$0xf]
        %v922 = vld [vmem:[#allocation2 + $0x84] sm:$0xf]
        %v923 = vld [vmem:[#allocation2 + $0x88] sm:$0xf]
        %v924 = vld [vmem:[#allocation2 + $0x90] sm:$0xf]
        %v925 = vld [vmem:[#allocation2 + $0x94] sm:$0xf]
        %v926 = vld [vmem:[#allocation2 + $0x9c] sm:$0xf]
        %v927 = vld [vmem:[#allocation2 + $0xa0] sm:$0xf]
        %v928 = vld [vmem:[#allocation2 + $0xa8] sm:$0xf]
        %v929 = vld [vmem:[#allocation2 + $0xac] sm:$0xf]
        %v930 = vld [vmem:[#allocation2 + $0xb4] sm:$0xf]
        %v931 = vld [vmem:[#allocation2 + $0xb8] sm:$0xf]
        %v964 = vunpack.c.l.b16 %v900
        %v965 = vunpack.c.l.b16 %v901
        %v966 = vunpack.c.l.b16 %v902
        %v967 = vunpack.c.l.b16 %v903
        %v968 = vunpack.c.l.b16 %v904
        %v969 = vunpack.c.l.b16 %v905
        %v970 = vunpack.c.l.b16 %v906
        %v971 = vunpack.c.l.b16 %v907
        %v972 = vunpack.c.l.b16 %v908
        %v973 = vunpack.c.l.b16 %v909
        %v974 = vunpack.c.l.b16 %v910
        %v975 = vunpack.c.l.b16 %v911
        %v976 = vunpack.c.l.b16 %v912
        %v977 = vunpack.c.l.b16 %v913
        %v978 = vunpack.c.l.b16 %v914
        %v979 = vunpack.c.l.b16 %v915
        %v980 = vunpack.c.l.b16 %v916
        %v981 = vunpack.c.l.b16 %v917
        %v982 = vunpack.c.l.b16 %v918
        %v983 = vunpack.c.l.b16 %v919
        %v984 = vunpack.c.l.b16 %v920
        %v985 = vunpack.c.l.b16 %v921
        %v986 = vunpack.c.l.b16 %v922
        %v987 = vunpack.c.l.b16 %v923
        %v988 = vunpack.c.l.b16 %v924
        %v989 = vunpack.c.l.b16 %v925
        %v990 = vunpack.c.l.b16 %v926
        %v991 = vunpack.c.l.b16 %v927
        %v992 = vunpack.c.l.b16 %v928
        %v993 = vunpack.c.l.b16 %v929
        %v994 = vunpack.c.l.b16 %v930
        %v995 = vunpack.c.l.b16 %v931
        %v996 = vpack.c.b16 %v965, %v964
        %v997 = vpack.c.b16 %v967, %v966
        %v998 = vpack.c.b16 %v969, %v968
        %v999 = vpack.c.b16 %v971, %v970
        %v1000 = vpack.c.b16 %v973, %v972
        %v1001 = vpack.c.b16 %v975, %v974
        %v1002 = vpack.c.b16 %v977, %v976
        %v1003 = vpack.c.b16 %v979, %v978
        %v1004 = vpack.c.b16 %v981, %v980
        %v1005 = vpack.c.b16 %v983, %v982
        %v1006 = vpack.c.b16 %v985, %v984
        %v1007 = vpack.c.b16 %v987, %v986
        %v1008 = vpack.c.b16 %v989, %v988
        %v1009 = vpack.c.b16 %v991, %v990
        %v1010 = vpack.c.b16 %v993, %v992
        %v1011 = vpack.c.b16 %v995, %v994
        %vm1028 = vcmask 31744
        %1029 = vst.msk [vmem:[#allocation3] sm:$0xff] %vm1028, %v996
        %1030 = vst.msk [vmem:[#allocation3 + $0x8] sm:$0xff] %vm1028, %v997
        %1031 = vst.msk [vmem:[#allocation3 + $0x10] sm:$0xff] %vm1028, %v998
        %1032 = vst.msk [vmem:[#allocation3 + $0x18] sm:$0xff] %vm1028, %v999
        %1033 = vst.msk [vmem:[#allocation3 + $0x20] sm:$0xff] %vm1028, %v1000
        %1034 = vst.msk [vmem:[#allocation3 + $0x28] sm:$0xff] %vm1028, %v1001
        %1035 = vst.msk [vmem:[#allocation3 + $0x30] sm:$0xff] %vm1028, %v1002
        %1036 = vst.msk [vmem:[#allocation3 + $0x38] sm:$0xff] %vm1028, %v1003
        %1037 = vst.msk [vmem:[#allocation3 + $0x40] sm:$0xff] %vm1028, %v1004
        %1038 = vst.msk [vmem:[#allocation3 + $0x48] sm:$0xff] %vm1028, %v1005
        %1039 = vst.msk [vmem:[#allocation3 + $0x50] sm:$0xff] %vm1028, %v1006
        %1040 = vst.msk [vmem:[#allocation3 + $0x58] sm:$0xff] %vm1028, %v1007
        %1041 = vst.msk [vmem:[#allocation3 + $0x60] sm:$0xff] %vm1028, %v1008
        %1042 = vst.msk [vmem:[#allocation3 + $0x68] sm:$0xff] %vm1028, %v1009
        %1043 = vst.msk [vmem:[#allocation3 + $0x70] sm:$0xff] %vm1028, %v1010
        %1044 = vst.msk [vmem:[#allocation3 + $0x78] sm:$0xff] %vm1028, %v1011
        %v1045 = vld [vmem:[#allocation2] sm:$0xf]
        %v1046 = vld [vmem:[#allocation2 + $0x4] sm:$0xf]
        %v1047 = vld [vmem:[#allocation2 + $0x8] sm:$0x1]
        %v1048 = vld [vmem:[#allocation2 + $0xc] sm:$0xf]
        %v1049 = vld [vmem:[#allocation2 + $0x10] sm:$0xf]
        %v1050 = vld [vmem:[#allocation2 + $0x14] sm:$0x1]
        %v1051 = vld [vmem:[#allocation2 + $0x18] sm:$0xf]
        %v1052 = vld [vmem:[#allocation2 + $0x1c] sm:$0xf]
        %v1053 = vld [vmem:[#allocation2 + $0x20] sm:$0x1]
        %v1054 = vld [vmem:[#allocation2 + $0x24] sm:$0xf]
        %v1055 = vld [vmem:[#allocation2 + $0x28] sm:$0xf]
        %v1056 = vld [vmem:[#allocation2 + $0x2c] sm:$0x1]
        %v1057 = vld [vmem:[#allocation2 + $0x30] sm:$0xf]
        %v1058 = vld [vmem:[#allocation2 + $0x34] sm:$0xf]
        %v1059 = vld [vmem:[#allocation2 + $0x38] sm:$0x1]
        %v1060 = vld [vmem:[#allocation2 + $0x3c] sm:$0xf]
        %v1061 = vld [vmem:[#allocation2 + $0x40] sm:$0xf]
        %v1062 = vld [vmem:[#allocation2 + $0x44] sm:$0x1]
        %v1063 = vld [vmem:[#allocation2 + $0x48] sm:$0xf]
        %v1064 = vld [vmem:[#allocation2 + $0x4c] sm:$0xf]
        %v1065 = vld [vmem:[#allocation2 + $0x50] sm:$0x1]
        %v1066 = vld [vmem:[#allocation2 + $0x54] sm:$0xf]
        %v1067 = vld [vmem:[#allocation2 + $0x58] sm:$0xf]
        %v1068 = vld [vmem:[#allocation2 + $0x5c] sm:$0x1]
        %v1069 = vld [vmem:[#allocation2 + $0x60] sm:$0xf]
        %v1070 = vld [vmem:[#allocation2 + $0x64] sm:$0xf]
        %v1071 = vld [vmem:[#allocation2 + $0x68] sm:$0x1]
        %v1072 = vld [vmem:[#allocation2 + $0x6c] sm:$0xf]
        %v1073 = vld [vmem:[#allocation2 + $0x70] sm:$0xf]
        %v1074 = vld [vmem:[#allocation2 + $0x74] sm:$0x1]
        %v1075 = vld [vmem:[#allocation2 + $0x78] sm:$0xf]
        %v1076 = vld [vmem:[#allocation2 + $0x7c] sm:$0xf]
        %v1077 = vld [vmem:[#allocation2 + $0x80] sm:$0x1]
        %v1078 = vld [vmem:[#allocation2 + $0x84] sm:$0xf]
        %v1079 = vld [vmem:[#allocation2 + $0x88] sm:$0xf]
        %v1080 = vld [vmem:[#allocation2 + $0x8c] sm:$0x1]
        %v1081 = vld [vmem:[#allocation2 + $0x90] sm:$0xf]
        %v1082 = vld [vmem:[#allocation2 + $0x94] sm:$0xf]
        %v1083 = vld [vmem:[#allocation2 + $0x98] sm:$0x1]
        %v1084 = vld [vmem:[#allocation2 + $0x9c] sm:$0xf]
        %v1085 = vld [vmem:[#allocation2 + $0xa0] sm:$0xf]
        %v1086 = vld [vmem:[#allocation2 + $0xa4] sm:$0x1]
        %v1087 = vld [vmem:[#allocation2 + $0xa8] sm:$0xf]
        %v1088 = vld [vmem:[#allocation2 + $0xac] sm:$0xf]
        %v1089 = vld [vmem:[#allocation2 + $0xb0] sm:$0x1]
        %v1090 = vld [vmem:[#allocation2 + $0xb4] sm:$0xf]
        %v1091 = vld [vmem:[#allocation2 + $0xb8] sm:$0xf]
        %v1092 = vld [vmem:[#allocation2 + $0xbc] sm:$0x1]
        %vm1093 = vsmask.f32 3328
        %vm1094 = vsmask.f32 7440
        %vm1095 = vmor %vm1093, %vm1094
        %v1097 = vshrl.u32 %v1045, 16
        %v1099 = vrot.slane %v1097, 4
        %v1100 = vshll.u32 %v1045, 16
        %v1102 = vrot.slane %v1100, 5
        %v1103 = vor.u32 %v1099, %v1102
        %v1104 = vrot.slane %v1103, 4
        %v1106 = vshll.u32 %v1046, 16
        %v1108 = vrot.slane %v1106, 5
        %v1109 = vsel %vm1095, %v1104, %v1108
        %v1110 = vshrl.u32 %v1046, 16
        %v1112 = vrot.slane %v1110, 4
        %v1113 = vor.u32 %v1112, %v1108
        %v1114 = vrot.slane %v1113, 4
        %v1116 = vshll.u32 %v1047, 16
        %v1118 = vrot.slane %v1116, 5
        %v1119 = vsel %vm1095, %v1114, %v1118
        %v1121 = vshrl.u32 %v1048, 16
        %v1123 = vrot.slane %v1121, 4
        %v1124 = vshll.u32 %v1048, 16
        %v1126 = vrot.slane %v1124, 5
        %v1127 = vor.u32 %v1123, %v1126
        %v1128 = vrot.slane %v1127, 4
        %v1130 = vshll.u32 %v1049, 16
        %v1132 = vrot.slane %v1130, 5
        %v1133 = vsel %vm1095, %v1128, %v1132
        %v1134 = vshrl.u32 %v1049, 16
        %v1136 = vrot.slane %v1134, 4
        %v1137 = vor.u32 %v1136, %v1132
        %v1138 = vrot.slane %v1137, 4
        %v1140 = vshll.u32 %v1050, 16
        %v1142 = vrot.slane %v1140, 5
        %v1143 = vsel %vm1095, %v1138, %v1142
        %v1145 = vshrl.u32 %v1051, 16
        %v1147 = vrot.slane %v1145, 4
        %v1148 = vshll.u32 %v1051, 16
        %v1150 = vrot.slane %v1148, 5
        %v1151 = vor.u32 %v1147, %v1150
        %v1152 = vrot.slane %v1151, 4
        %v1154 = vshll.u32 %v1052, 16
        %v1156 = vrot.slane %v1154, 5
        %v1157 = vsel %vm1095, %v1152, %v1156
        %v1158 = vshrl.u32 %v1052, 16
        %v1160 = vrot.slane %v1158, 4
        %v1161 = vor.u32 %v1160, %v1156
        %v1162 = vrot.slane %v1161, 4
        %v1164 = vshll.u32 %v1053, 16
        %v1166 = vrot.slane %v1164, 5
        %v1167 = vsel %vm1095, %v1162, %v1166
        %v1169 = vshrl.u32 %v1054, 16
        %v1171 = vrot.slane %v1169, 4
        %v1172 = vshll.u32 %v1054, 16
        %v1174 = vrot.slane %v1172, 5
        %v1175 = vor.u32 %v1171, %v1174
        %v1176 = vrot.slane %v1175, 4
        %v1178 = vshll.u32 %v1055, 16
        %v1180 = vrot.slane %v1178, 5
        %v1181 = vsel %vm1095, %v1176, %v1180
        %v1182 = vshrl.u32 %v1055, 16
        %v1184 = vrot.slane %v1182, 4
        %v1185 = vor.u32 %v1184, %v1180
        %v1186 = vrot.slane %v1185, 4
        %v1188 = vshll.u32 %v1056, 16
        %v1190 = vrot.slane %v1188, 5
        %v1191 = vsel %vm1095, %v1186, %v1190
        %v1193 = vshrl.u32 %v1057, 16
        %v1195 = vrot.slane %v1193, 4
        %v1196 = vshll.u32 %v1057, 16
        %v1198 = vrot.slane %v1196, 5
        %v1199 = vor.u32 %v1195, %v1198
        %v1200 = vrot.slane %v1199, 4
        %v1202 = vshll.u32 %v1058, 16
        %v1204 = vrot.slane %v1202, 5
        %v1205 = vsel %vm1095, %v1200, %v1204
        %v1206 = vshrl.u32 %v1058, 16
        %v1208 = vrot.slane %v1206, 4
        %v1209 = vor.u32 %v1208, %v1204
        %v1210 = vrot.slane %v1209, 4
        %v1212 = vshll.u32 %v1059, 16
        %v1214 = vrot.slane %v1212, 5
        %v1215 = vsel %vm1095, %v1210, %v1214
        %v1217 = vshrl.u32 %v1060, 16
        %v1219 = vrot.slane %v1217, 4
        %v1220 = vshll.u32 %v1060, 16
        %v1222 = vrot.slane %v1220, 5
        %v1223 = vor.u32 %v1219, %v1222
        %v1224 = vrot.slane %v1223, 4
        %v1226 = vshll.u32 %v1061, 16
        %v1228 = vrot.slane %v1226, 5
        %v1229 = vsel %vm1095, %v1224, %v1228
        %v1230 = vshrl.u32 %v1061, 16
        %v1232 = vrot.slane %v1230, 4
        %v1233 = vor.u32 %v1232, %v1228
        %v1234 = vrot.slane %v1233, 4
        %v1236 = vshll.u32 %v1062, 16
        %v1238 = vrot.slane %v1236, 5
        %v1239 = vsel %vm1095, %v1234, %v1238
        %v1241 = vshrl.u32 %v1063, 16
        %v1243 = vrot.slane %v1241, 4
        %v1244 = vshll.u32 %v1063, 16
        %v1246 = vrot.slane %v1244, 5
        %v1247 = vor.u32 %v1243, %v1246
        %v1248 = vrot.slane %v1247, 4
        %v1250 = vshll.u32 %v1064, 16
        %v1252 = vrot.slane %v1250, 5
        %v1253 = vsel %vm1095, %v1248, %v1252
        %v1254 = vshrl.u32 %v1064, 16
        %v1256 = vrot.slane %v1254, 4
        %v1257 = vor.u32 %v1256, %v1252
        %v1258 = vrot.slane %v1257, 4
        %v1260 = vshll.u32 %v1065, 16
        %v1262 = vrot.slane %v1260, 5
        %v1263 = vsel %vm1095, %v1258, %v1262
        %v1265 = vshrl.u32 %v1066, 16
        %v1267 = vrot.slane %v1265, 4
        %v1268 = vshll.u32 %v1066, 16
        %v1270 = vrot.slane %v1268, 5
        %v1271 = vor.u32 %v1267, %v1270
        %v1272 = vrot.slane %v1271, 4
        %v1274 = vshll.u32 %v1067, 16
        %v1276 = vrot.slane %v1274, 5
        %v1277 = vsel %vm1095, %v1272, %v1276
        %v1278 = vshrl.u32 %v1067, 16
        %v1280 = vrot.slane %v1278, 4
        %v1281 = vor.u32 %v1280, %v1276
        %v1282 = vrot.slane %v1281, 4
        %v1284 = vshll.u32 %v1068, 16
        %v1286 = vrot.slane %v1284, 5
        %v1287 = vsel %vm1095, %v1282, %v1286
        %v1289 = vshrl.u32 %v1069, 16
        %v1291 = vrot.slane %v1289, 4
        %v1292 = vshll.u32 %v1069, 16
        %v1294 = vrot.slane %v1292, 5
        %v1295 = vor.u32 %v1291, %v1294
        %v1296 = vrot.slane %v1295, 4
        %v1298 = vshll.u32 %v1070, 16
        %v1300 = vrot.slane %v1298, 5
        %v1301 = vsel %vm1095, %v1296, %v1300
        %v1302 = vshrl.u32 %v1070, 16
        %v1304 = vrot.slane %v1302, 4
        %v1305 = vor.u32 %v1304, %v1300
        %v1306 = vrot.slane %v1305, 4
        %v1308 = vshll.u32 %v1071, 16
        %v1310 = vrot.slane %v1308, 5
        %v1311 = vsel %vm1095, %v1306, %v1310
        %v1313 = vshrl.u32 %v1072, 16
        %v1315 = vrot.slane %v1313, 4
        %v1316 = vshll.u32 %v1072, 16
        %v1318 = vrot.slane %v1316, 5
        %v1319 = vor.u32 %v1315, %v1318
        %v1320 = vrot.slane %v1319, 4
        %v1322 = vshll.u32 %v1073, 16
        %v1324 = vrot.slane %v1322, 5
        %v1325 = vsel %vm1095, %v1320, %v1324
        %v1326 = vshrl.u32 %v1073, 16
        %v1328 = vrot.slane %v1326, 4
        %v1329 = vor.u32 %v1328, %v1324
        %v1330 = vrot.slane %v1329, 4
        %v1332 = vshll.u32 %v1074, 16
        %v1334 = vrot.slane %v1332, 5
        %v1335 = vsel %vm1095, %v1330, %v1334
        %v1337 = vshrl.u32 %v1075, 16
        %v1339 = vrot.slane %v1337, 4
        %v1340 = vshll.u32 %v1075, 16
        %v1342 = vrot.slane %v1340, 5
        %v1343 = vor.u32 %v1339, %v1342
        %v1344 = vrot.slane %v1343, 4
        %v1346 = vshll.u32 %v1076, 16
        %v1348 = vrot.slane %v1346, 5
        %v1349 = vsel %vm1095, %v1344, %v1348
        %v1350 = vshrl.u32 %v1076, 16
        %v1352 = vrot.slane %v1350, 4
        %v1353 = vor.u32 %v1352, %v1348
        %v1354 = vrot.slane %v1353, 4
        %v1356 = vshll.u32 %v1077, 16
        %v1358 = vrot.slane %v1356, 5
        %v1359 = vsel %vm1095, %v1354, %v1358
        %v1361 = vshrl.u32 %v1078, 16
        %v1363 = vrot.slane %v1361, 4
        %v1364 = vshll.u32 %v1078, 16
        %v1366 = vrot.slane %v1364, 5
        %v1367 = vor.u32 %v1363, %v1366
        %v1368 = vrot.slane %v1367, 4
        %v1370 = vshll.u32 %v1079, 16
        %v1372 = vrot.slane %v1370, 5
        %v1373 = vsel %vm1095, %v1368, %v1372
        %v1374 = vshrl.u32 %v1079, 16
        %v1376 = vrot.slane %v1374, 4
        %v1377 = vor.u32 %v1376, %v1372
        %v1378 = vrot.slane %v1377, 4
        %v1380 = vshll.u32 %v1080, 16
        %v1382 = vrot.slane %v1380, 5
        %v1383 = vsel %vm1095, %v1378, %v1382
        %v1385 = vshrl.u32 %v1081, 16
        %v1387 = vrot.slane %v1385, 4
        %v1388 = vshll.u32 %v1081, 16
        %v1390 = vrot.slane %v1388, 5
        %v1391 = vor.u32 %v1387, %v1390
        %v1392 = vrot.slane %v1391, 4
        %v1394 = vshll.u32 %v1082, 16
        %v1396 = vrot.slane %v1394, 5
        %v1397 = vsel %vm1095, %v1392, %v1396
        %v1398 = vshrl.u32 %v1082, 16
        %v1400 = vrot.slane %v1398, 4
        %v1401 = vor.u32 %v1400, %v1396
        %v1402 = vrot.slane %v1401, 4
        %v1404 = vshll.u32 %v1083, 16
        %v1406 = vrot.slane %v1404, 5
        %v1407 = vsel %vm1095, %v1402, %v1406
        %v1409 = vshrl.u32 %v1084, 16
        %v1411 = vrot.slane %v1409, 4
        %v1412 = vshll.u32 %v1084, 16
        %v1414 = vrot.slane %v1412, 5
        %v1415 = vor.u32 %v1411, %v1414
        %v1416 = vrot.slane %v1415, 4
        %v1418 = vshll.u32 %v1085, 16
        %v1420 = vrot.slane %v1418, 5
        %v1421 = vsel %vm1095, %v1416, %v1420
        %v1422 = vshrl.u32 %v1085, 16
        %v1424 = vrot.slane %v1422, 4
        %v1425 = vor.u32 %v1424, %v1420
        %v1426 = vrot.slane %v1425, 4
        %v1428 = vshll.u32 %v1086, 16
        %v1430 = vrot.slane %v1428, 5
        %v1431 = vsel %vm1095, %v1426, %v1430
        %v1433 = vshrl.u32 %v1087, 16
        %v1435 = vrot.slane %v1433, 4
        %v1436 = vshll.u32 %v1087, 16
        %v1438 = vrot.slane %v1436, 5
        %v1439 = vor.u32 %v1435, %v1438
        %v1440 = vrot.slane %v1439, 4
        %v1442 = vshll.u32 %v1088, 16
        %v1444 = vrot.slane %v1442, 5
        %v1445 = vsel %vm1095, %v1440, %v1444
        %v1446 = vshrl.u32 %v1088, 16
        %v1448 = vrot.slane %v1446, 4
        %v1449 = vor.u32 %v1448, %v1444
        %v1450 = vrot.slane %v1449, 4
        %v1452 = vshll.u32 %v1089, 16
        %v1454 = vrot.slane %v1452, 5
        %v1455 = vsel %vm1095, %v1450, %v1454
        %v1457 = vshrl.u32 %v1090, 16
        %v1459 = vrot.slane %v1457, 4
        %v1460 = vshll.u32 %v1090, 16
        %v1462 = vrot.slane %v1460, 5
        %v1463 = vor.u32 %v1459, %v1462
        %v1464 = vrot.slane %v1463, 4
        %v1466 = vshll.u32 %v1091, 16
        %v1468 = vrot.slane %v1466, 5
        %v1469 = vsel %vm1095, %v1464, %v1468
        %v1470 = vshrl.u32 %v1091, 16
        %v1472 = vrot.slane %v1470, 4
        %v1473 = vor.u32 %v1472, %v1468
        %v1474 = vrot.slane %v1473, 4
        %v1476 = vshll.u32 %v1092, 16
        %v1478 = vrot.slane %v1476, 5
        %v1479 = vsel %vm1095, %v1474, %v1478
        %v1480 = vunpack.c.l.b16 %v1109
        %v1481 = vunpack.c.l.b16 %v1119
        %v1482 = vunpack.c.l.b16 %v1133
        %v1483 = vunpack.c.l.b16 %v1143
        %v1484 = vunpack.c.l.b16 %v1157
        %v1485 = vunpack.c.l.b16 %v1167
        %v1486 = vunpack.c.l.b16 %v1181
        %v1487 = vunpack.c.l.b16 %v1191
        %v1488 = vunpack.c.l.b16 %v1205
        %v1489 = vunpack.c.l.b16 %v1215
        %v1490 = vunpack.c.l.b16 %v1229
        %v1491 = vunpack.c.l.b16 %v1239
        %v1492 = vunpack.c.l.b16 %v1253
        %v1493 = vunpack.c.l.b16 %v1263
        %v1494 = vunpack.c.l.b16 %v1277
        %v1495 = vunpack.c.l.b16 %v1287
        %v1496 = vunpack.c.l.b16 %v1301
        %v1497 = vunpack.c.l.b16 %v1311
        %v1498 = vunpack.c.l.b16 %v1325
        %v1499 = vunpack.c.l.b16 %v1335
        %v1500 = vunpack.c.l.b16 %v1349
        %v1501 = vunpack.c.l.b16 %v1359
        %v1502 = vunpack.c.l.b16 %v1373
        %v1503 = vunpack.c.l.b16 %v1383
        %v1504 = vunpack.c.l.b16 %v1397
        %v1505 = vunpack.c.l.b16 %v1407
        %v1506 = vunpack.c.l.b16 %v1421
        %v1507 = vunpack.c.l.b16 %v1431
        %v1508 = vunpack.c.l.b16 %v1445
        %v1509 = vunpack.c.l.b16 %v1455
        %v1510 = vunpack.c.l.b16 %v1469
        %v1511 = vunpack.c.l.b16 %v1479
        %v1512 = vpack.c.b16 %v1481, %v1480
        %v1513 = vpack.c.b16 %v1483, %v1482
        %v1514 = vpack.c.b16 %v1485, %v1484
        %v1515 = vpack.c.b16 %v1487, %v1486
        %v1516 = vpack.c.b16 %v1489, %v1488
        %v1517 = vpack.c.b16 %v1491, %v1490
        %v1518 = vpack.c.b16 %v1493, %v1492
        %v1519 = vpack.c.b16 %v1495, %v1494
        %v1520 = vpack.c.b16 %v1497, %v1496
        %v1521 = vpack.c.b16 %v1499, %v1498
        %v1522 = vpack.c.b16 %v1501, %v1500
        %v1523 = vpack.c.b16 %v1503, %v1502
        %v1524 = vpack.c.b16 %v1505, %v1504
        %v1525 = vpack.c.b16 %v1507, %v1506
        %v1526 = vpack.c.b16 %v1509, %v1508
        %v1527 = vpack.c.b16 %v1511, %v1510
        %1528 = vrot.lane.b32.xlu0 %v1512, 4
        %v1529 = vpop.permute.xlu0 %1528
        %1530 = vrot.lane.b32.xlu0 %v1513, 4
        %v1531 = vpop.permute.xlu0 %1530
        %1532 = vrot.lane.b32.xlu0 %v1514, 4
        %v1533 = vpop.permute.xlu0 %1532
        %1534 = vrot.lane.b32.xlu0 %v1515, 4
        %v1535 = vpop.permute.xlu0 %1534
        %1536 = vrot.lane.b32.xlu0 %v1516, 4
        %v1537 = vpop.permute.xlu0 %1536
        %1538 = vrot.lane.b32.xlu0 %v1517, 4
        %v1539 = vpop.permute.xlu0 %1538
        %1540 = vrot.lane.b32.xlu0 %v1518, 4
        %v1541 = vpop.permute.xlu0 %1540
        %1542 = vrot.lane.b32.xlu0 %v1519, 4
        %v1543 = vpop.permute.xlu0 %1542
        %1544 = vrot.lane.b32.xlu0 %v1520, 4
        %v1545 = vpop.permute.xlu0 %1544
        %1546 = vrot.lane.b32.xlu0 %v1521, 4
        %v1547 = vpop.permute.xlu0 %1546
        %1548 = vrot.lane.b32.xlu0 %v1522, 4
        %v1549 = vpop.permute.xlu0 %1548
        %1550 = vrot.lane.b32.xlu0 %v1523, 4
        %v1551 = vpop.permute.xlu0 %1550
        %1552 = vrot.lane.b32.xlu0 %v1524, 4
        %v1553 = vpop.permute.xlu0 %1552
        %1554 = vrot.lane.b32.xlu0 %v1525, 4
        %v1555 = vpop.permute.xlu0 %1554
        %1556 = vrot.lane.b32.xlu0 %v1526, 4
        %v1557 = vpop.permute.xlu0 %1556
        %1558 = vrot.lane.b32.xlu0 %v1527, 4
        %v1559 = vpop.permute.xlu0 %1558
        %vm1576 = vcmask 64544
        %1577 = vst.msk [vmem:[#allocation3] sm:$0xff] %vm1576, %v1529
        %1578 = vst.msk [vmem:[#allocation3 + $0x8] sm:$0xff] %vm1576, %v1531
        %1579 = vst.msk [vmem:[#allocation3 + $0x10] sm:$0xff] %vm1576, %v1533
        %1580 = vst.msk [vmem:[#allocation3 + $0x18] sm:$0xff] %vm1576, %v1535
        %1581 = vst.msk [vmem:[#allocation3 + $0x20] sm:$0xff] %vm1576, %v1537
        %1582 = vst.msk [vmem:[#allocation3 + $0x28] sm:$0xff] %vm1576, %v1539
        %1583 = vst.msk [vmem:[#allocation3 + $0x30] sm:$0xff] %vm1576, %v1541
        %1584 = vst.msk [vmem:[#allocation3 + $0x38] sm:$0xff] %vm1576, %v1543
        %1585 = vst.msk [vmem:[#allocation3 + $0x40] sm:$0xff] %vm1576, %v1545
        %1586 = vst.msk [vmem:[#allocation3 + $0x48] sm:$0xff] %vm1576, %v1547
        %1587 = vst.msk [vmem:[#allocation3 + $0x50] sm:$0xff] %vm1576, %v1549
        %1588 = vst.msk [vmem:[#allocation3 + $0x58] sm:$0xff] %vm1576, %v1551
        %1589 = vst.msk [vmem:[#allocation3 + $0x60] sm:$0xff] %vm1576, %v1553
        %1590 = vst.msk [vmem:[#allocation3 + $0x68] sm:$0xff] %vm1576, %v1555
        %1591 = vst.msk [vmem:[#allocation3 + $0x70] sm:$0xff] %vm1576, %v1557
        %1592 = vst.msk [vmem:[#allocation3 + $0x78] sm:$0xff] %vm1576, %v1559
        %v1593 = vld [vmem:[#allocation2] sm:$0xe]
        %v1594 = vld [vmem:[#allocation2 + $0x4] sm:$0xf]
        %v1595 = vld [vmem:[#allocation2 + $0x8] sm:$0x1]
        %v1596 = vld [vmem:[#allocation2 + $0xc] sm:$0xe]
        %v1597 = vld [vmem:[#allocation2 + $0x10] sm:$0xf]
        %v1598 = vld [vmem:[#allocation2 + $0x14] sm:$0x1]
        %v1599 = vld [vmem:[#allocation2 + $0x18] sm:$0xe]
        %v1600 = vld [vmem:[#allocation2 + $0x1c] sm:$0xf]
        %v1601 = vld [vmem:[#allocation2 + $0x20] sm:$0x1]
        %v1602 = vld [vmem:[#allocation2 + $0x24] sm:$0xe]
        %v1603 = vld [vmem:[#allocation2 + $0x28] sm:$0xf]
        %v1604 = vld [vmem:[#allocation2 + $0x2c] sm:$0x1]
        %v1605 = vld [vmem:[#allocation2 + $0x30] sm:$0xe]
        %v1606 = vld [vmem:[#allocation2 + $0x34] sm:$0xf]
        %v1607 = vld [vmem:[#allocation2 + $0x38] sm:$0x1]
        %v1608 = vld [vmem:[#allocation2 + $0x3c] sm:$0xe]
        %v1609 = vld [vmem:[#allocation2 + $0x40] sm:$0xf]
        %v1610 = vld [vmem:[#allocation2 + $0x44] sm:$0x1]
        %v1611 = vld [vmem:[#allocation2 + $0x48] sm:$0xe]
        %v1612 = vld [vmem:[#allocation2 + $0x4c] sm:$0xf]
        %v1613 = vld [vmem:[#allocation2 + $0x50] sm:$0x1]
        %v1614 = vld [vmem:[#allocation2 + $0x54] sm:$0xe]
        %v1615 = vld [vmem:[#allocation2 + $0x58] sm:$0xf]
        %v1616 = vld [vmem:[#allocation2 + $0x5c] sm:$0x1]
        %v1617 = vld [vmem:[#allocation2 + $0x60] sm:$0xe]
        %v1618 = vld [vmem:[#allocation2 + $0x64] sm:$0xf]
        %v1619 = vld [vmem:[#allocation2 + $0x68] sm:$0x1]
        %v1620 = vld [vmem:[#allocation2 + $0x6c] sm:$0xe]
        %v1621 = vld [vmem:[#allocation2 + $0x70] sm:$0xf]
        %v1622 = vld [vmem:[#allocation2 + $0x74] sm:$0x1]
        %v1623 = vld [vmem:[#allocation2 + $0x78] sm:$0xe]
        %v1624 = vld [vmem:[#allocation2 + $0x7c] sm:$0xf]
        %v1625 = vld [vmem:[#allocation2 + $0x80] sm:$0x1]
        %v1626 = vld [vmem:[#allocation2 + $0x84] sm:$0xe]
        %v1627 = vld [vmem:[#allocation2 + $0x88] sm:$0xf]
        %v1628 = vld [vmem:[#allocation2 + $0x8c] sm:$0x1]
        %v1629 = vld [vmem:[#allocation2 + $0x90] sm:$0xe]
        %v1630 = vld [vmem:[#allocation2 + $0x94] sm:$0xf]
        %v1631 = vld [vmem:[#allocation2 + $0x98] sm:$0x1]
        %v1632 = vld [vmem:[#allocation2 + $0x9c] sm:$0xe]
        %v1633 = vld [vmem:[#allocation2 + $0xa0] sm:$0xf]
        %v1634 = vld [vmem:[#allocation2 + $0xa4] sm:$0x1]
        %v1635 = vld [vmem:[#allocation2 + $0xa8] sm:$0xe]
        %v1636 = vld [vmem:[#allocation2 + $0xac] sm:$0xf]
        %v1637 = vld [vmem:[#allocation2 + $0xb0] sm:$0x1]
        %v1638 = vld [vmem:[#allocation2 + $0xb4] sm:$0xe]
        %v1639 = vld [vmem:[#allocation2 + $0xb8] sm:$0xf]
        %v1640 = vld [vmem:[#allocation2 + $0xbc] sm:$0x1]
        %vm1689 = vcmask 1042432
        %vm1690 = vcmask 1046532
        %vm1691 = vmor %vm1689, %vm1690
        %v1692 = vrot.slane %v1593, 5
        %v1693 = vrot.slane %v1692, 4
        %v1694 = vrot.slane %v1594, 5
        %v1695 = vsel %vm1691, %v1693, %v1694
        %v1696 = vrot.slane %v1694, 4
        %v1697 = vrot.slane %v1595, 5
        %v1698 = vsel %vm1691, %v1696, %v1697
        %v1699 = vrot.slane %v1596, 5
        %v1700 = vrot.slane %v1699, 4
        %v1701 = vrot.slane %v1597, 5
        %v1702 = vsel %vm1691, %v1700, %v1701
        %v1703 = vrot.slane %v1701, 4
        %v1704 = vrot.slane %v1598, 5
        %v1705 = vsel %vm1691, %v1703, %v1704
        %v1706 = vrot.slane %v1599, 5
        %v1707 = vrot.slane %v1706, 4
        %v1708 = vrot.slane %v1600, 5
        %v1709 = vsel %vm1691, %v1707, %v1708
        %v1710 = vrot.slane %v1708, 4
        %v1711 = vrot.slane %v1601, 5
        %v1712 = vsel %vm1691, %v1710, %v1711
        %v1713 = vrot.slane %v1602, 5
        %v1714 = vrot.slane %v1713, 4
        %v1715 = vrot.slane %v1603, 5
        %v1716 = vsel %vm1691, %v1714, %v1715
        %v1717 = vrot.slane %v1715, 4
        %v1718 = vrot.slane %v1604, 5
        %v1719 = vsel %vm1691, %v1717, %v1718
        %v1720 = vrot.slane %v1605, 5
        %v1721 = vrot.slane %v1720, 4
        %v1722 = vrot.slane %v1606, 5
        %v1723 = vsel %vm1691, %v1721, %v1722
        %v1724 = vrot.slane %v1722, 4
        %v1725 = vrot.slane %v1607, 5
        %v1726 = vsel %vm1691, %v1724, %v1725
        %v1727 = vrot.slane %v1608, 5
        %v1728 = vrot.slane %v1727, 4
        %v1729 = vrot.slane %v1609, 5
        %v1730 = vsel %vm1691, %v1728, %v1729
        %v1731 = vrot.slane %v1729, 4
        %v1732 = vrot.slane %v1610, 5
        %v1733 = vsel %vm1691, %v1731, %v1732
        %v1734 = vrot.slane %v1611, 5
        %v1735 = vrot.slane %v1734, 4
        %v1736 = vrot.slane %v1612, 5
        %v1737 = vsel %vm1691, %v1735, %v1736
        %v1738 = vrot.slane %v1736, 4
        %v1739 = vrot.slane %v1613, 5
        %v1740 = vsel %vm1691, %v1738, %v1739
        %v1741 = vrot.slane %v1614, 5
        %v1742 = vrot.slane %v1741, 4
        %v1743 = vrot.slane %v1615, 5
        %v1744 = vsel %vm1691, %v1742, %v1743
        %v1745 = vrot.slane %v1743, 4
        %v1746 = vrot.slane %v1616, 5
        %v1747 = vsel %vm1691, %v1745, %v1746
        %v1748 = vrot.slane %v1617, 5
        %v1749 = vrot.slane %v1748, 4
        %v1750 = vrot.slane %v1618, 5
        %v1751 = vsel %vm1691, %v1749, %v1750
        %v1752 = vrot.slane %v1750, 4
        %v1753 = vrot.slane %v1619, 5
        %v1754 = vsel %vm1691, %v1752, %v1753
        %v1755 = vrot.slane %v1620, 5
        %v1756 = vrot.slane %v1755, 4
        %v1757 = vrot.slane %v1621, 5
        %v1758 = vsel %vm1691, %v1756, %v1757
        %v1759 = vrot.slane %v1757, 4
        %v1760 = vrot.slane %v1622, 5
        %v1761 = vsel %vm1691, %v1759, %v1760
        %v1762 = vrot.slane %v1623, 5
        %v1763 = vrot.slane %v1762, 4
        %v1764 = vrot.slane %v1624, 5
        %v1765 = vsel %vm1691, %v1763, %v1764
        %v1766 = vrot.slane %v1764, 4
        %v1767 = vrot.slane %v1625, 5
        %v1768 = vsel %vm1691, %v1766, %v1767
        %v1769 = vrot.slane %v1626, 5
        %v1770 = vrot.slane %v1769, 4
        %v1771 = vrot.slane %v1627, 5
        %v1772 = vsel %vm1691, %v1770, %v1771
        %v1773 = vrot.slane %v1771, 4
        %v1774 = vrot.slane %v1628, 5
        %v1775 = vsel %vm1691, %v1773, %v1774
        %v1776 = vrot.slane %v1629, 5
        %v1777 = vrot.slane %v1776, 4
        %v1778 = vrot.slane %v1630, 5
        %v1779 = vsel %vm1691, %v1777, %v1778
        %v1780 = vrot.slane %v1778, 4
        %v1781 = vrot.slane %v1631, 5
        %v1782 = vsel %vm1691, %v1780, %v1781
        %v1783 = vrot.slane %v1632, 5
        %v1784 = vrot.slane %v1783, 4
        %v1785 = vrot.slane %v1633, 5
        %v1786 = vsel %vm1691, %v1784, %v1785
        %v1787 = vrot.slane %v1785, 4
        %v1788 = vrot.slane %v1634, 5
        %v1789 = vsel %vm1691, %v1787, %v1788
        %v1790 = vrot.slane %v1635, 5
        %v1791 = vrot.slane %v1790, 4
        %v1792 = vrot.slane %v1636, 5
        %v1793 = vsel %vm1691, %v1791, %v1792
        %v1794 = vrot.slane %v1792, 4
        %v1795 = vrot.slane %v1637, 5
        %v1796 = vsel %vm1691, %v1794, %v1795
        %v1797 = vrot.slane %v1638, 5
        %v1798 = vrot.slane %v1797, 4
        %v1799 = vrot.slane %v1639, 5
        %v1800 = vsel %vm1691, %v1798, %v1799
        %v1801 = vrot.slane %v1799, 4
        %v1802 = vrot.slane %v1640, 5
        %v1803 = vsel %vm1691, %v1801, %v1802
        %v1804 = vunpack.c.l.b16 %v1695
        %v1805 = vunpack.c.l.b16 %v1698
        %v1806 = vunpack.c.l.b16 %v1702
        %v1807 = vunpack.c.l.b16 %v1705
        %v1808 = vunpack.c.l.b16 %v1709
        %v1809 = vunpack.c.l.b16 %v1712
        %v1810 = vunpack.c.l.b16 %v1716
        %v1811 = vunpack.c.l.b16 %v1719
        %v1812 = vunpack.c.l.b16 %v1723
        %v1813 = vunpack.c.l.b16 %v1726
        %v1814 = vunpack.c.l.b16 %v1730
        %v1815 = vunpack.c.l.b16 %v1733
        %v1816 = vunpack.c.l.b16 %v1737
        %v1817 = vunpack.c.l.b16 %v1740
        %v1818 = vunpack.c.l.b16 %v1744
        %v1819 = vunpack.c.l.b16 %v1747
        %v1820 = vunpack.c.l.b16 %v1751
        %v1821 = vunpack.c.l.b16 %v1754
        %v1822 = vunpack.c.l.b16 %v1758
        %v1823 = vunpack.c.l.b16 %v1761
        %v1824 = vunpack.c.l.b16 %v1765
        %v1825 = vunpack.c.l.b16 %v1768
        %v1826 = vunpack.c.l.b16 %v1772
        %v1827 = vunpack.c.l.b16 %v1775
        %v1828 = vunpack.c.l.b16 %v1779
        %v1829 = vunpack.c.l.b16 %v1782
        %v1830 = vunpack.c.l.b16 %v1786
        %v1831 = vunpack.c.l.b16 %v1789
        %v1832 = vunpack.c.l.b16 %v1793
        %v1833 = vunpack.c.l.b16 %v1796
        %v1834 = vunpack.c.l.b16 %v1800
        %v1835 = vunpack.c.l.b16 %v1803
        %v1836 = vpack.c.b16 %v1805, %v1804
        %v1837 = vpack.c.b16 %v1807, %v1806
        %v1838 = vpack.c.b16 %v1809, %v1808
        %v1839 = vpack.c.b16 %v1811, %v1810
        %v1840 = vpack.c.b16 %v1813, %v1812
        %v1841 = vpack.c.b16 %v1815, %v1814
        %v1842 = vpack.c.b16 %v1817, %v1816
        %v1843 = vpack.c.b16 %v1819, %v1818
        %v1844 = vpack.c.b16 %v1821, %v1820
        %v1845 = vpack.c.b16 %v1823, %v1822
        %v1846 = vpack.c.b16 %v1825, %v1824
        %v1847 = vpack.c.b16 %v1827, %v1826
        %v1848 = vpack.c.b16 %v1829, %v1828
        %v1849 = vpack.c.b16 %v1831, %v1830
        %v1850 = vpack.c.b16 %v1833, %v1832
        %v1851 = vpack.c.b16 %v1835, %v1834
        %1852 = vrot.lane.b32.xlu0 %v1836, 8
        %v1853 = vpop.permute.xlu0 %1852
        %1854 = vrot.lane.b32.xlu0 %v1837, 8
        %v1855 = vpop.permute.xlu0 %1854
        %1856 = vrot.lane.b32.xlu0 %v1838, 8
        %v1857 = vpop.permute.xlu0 %1856
        %1858 = vrot.lane.b32.xlu0 %v1839, 8
        %v1859 = vpop.permute.xlu0 %1858
        %1860 = vrot.lane.b32.xlu0 %v1840, 8
        %v1861 = vpop.permute.xlu0 %1860
        %1862 = vrot.lane.b32.xlu0 %v1841, 8
        %v1863 = vpop.permute.xlu0 %1862
        %1864 = vrot.lane.b32.xlu0 %v1842, 8
        %v1865 = vpop.permute.xlu0 %1864
        %1866 = vrot.lane.b32.xlu0 %v1843, 8
        %v1867 = vpop.permute.xlu0 %1866
        %1868 = vrot.lane.b32.xlu0 %v1844, 8
        %v1869 = vpop.permute.xlu0 %1868
        %1870 = vrot.lane.b32.xlu0 %v1845, 8
        %v1871 = vpop.permute.xlu0 %1870
        %1872 = vrot.lane.b32.xlu0 %v1846, 8
        %v1873 = vpop.permute.xlu0 %1872
        %1874 = vrot.lane.b32.xlu0 %v1847, 8
        %v1875 = vpop.permute.xlu0 %1874
        %1876 = vrot.lane.b32.xlu0 %v1848, 8
        %v1877 = vpop.permute.xlu0 %1876
        %1878 = vrot.lane.b32.xlu0 %v1849, 8
        %v1879 = vpop.permute.xlu0 %1878
        %1880 = vrot.lane.b32.xlu0 %v1850, 8
        %v1881 = vpop.permute.xlu0 %1880
        %1882 = vrot.lane.b32.xlu0 %v1851, 8
        %v1883 = vpop.permute.xlu0 %1882
        %vm1900 = vcmask 97344
        %1901 = vst.msk [vmem:[#allocation3] sm:$0xff] %vm1900, %v1853
        %1902 = vst.msk [vmem:[#allocation3 + $0x8] sm:$0xff] %vm1900, %v1855
        %1903 = vst.msk [vmem:[#allocation3 + $0x10] sm:$0xff] %vm1900, %v1857
        %1904 = vst.msk [vmem:[#allocation3 + $0x18] sm:$0xff] %vm1900, %v1859
        %1905 = vst.msk [vmem:[#allocation3 + $0x20] sm:$0xff] %vm1900, %v1861
        %1906 = vst.msk [vmem:[#allocation3 + $0x28] sm:$0xff] %vm1900, %v1863
        %1907 = vst.msk [vmem:[#allocation3 + $0x30] sm:$0xff] %vm1900, %v1865
        %1908 = vst.msk [vmem:[#allocation3 + $0x38] sm:$0xff] %vm1900, %v1867
        %1909 = vst.msk [vmem:[#allocation3 + $0x40] sm:$0xff] %vm1900, %v1869
        %1910 = vst.msk [vmem:[#allocation3 + $0x48] sm:$0xff] %vm1900, %v1871
        %1911 = vst.msk [vmem:[#allocation3 + $0x50] sm:$0xff] %vm1900, %v1873
        %1912 = vst.msk [vmem:[#allocation3 + $0x58] sm:$0xff] %vm1900, %v1875
        %1913 = vst.msk [vmem:[#allocation3 + $0x60] sm:$0xff] %vm1900, %v1877
        %1914 = vst.msk [vmem:[#allocation3 + $0x68] sm:$0xff] %vm1900, %v1879
        %1915 = vst.msk [vmem:[#allocation3 + $0x70] sm:$0xff] %vm1900, %v1881
        %1916 = vst.msk [vmem:[#allocation3 + $0x78] sm:$0xff] %vm1900, %v1883
        %v1917 = vld [vmem:[%s313] sm:$0xf]
        %v1918 = vld [vmem:[%s313 + $0x4] sm:$0xf]
        %v1919 = vld [vmem:[%s313 + $0xc] sm:$0xf]
        %v1920 = vld [vmem:[%s313 + $0x10] sm:$0xf]
        %v1921 = vld [vmem:[%s313 + $0x18] sm:$0xf]
        %v1922 = vld [vmem:[%s313 + $0x1c] sm:$0xf]
        %v1923 = vld [vmem:[%s313 + $0x24] sm:$0xf]
        %v1924 = vld [vmem:[%s313 + $0x28] sm:$0xf]
        %v1925 = vld [vmem:[%s313 + $0x30] sm:$0xf]
        %v1926 = vld [vmem:[%s313 + $0x34] sm:$0xf]
        %v1927 = vld [vmem:[%s313 + $0x3c] sm:$0xf]
        %v1928 = vld [vmem:[%s313 + $0x40] sm:$0xf]
        %v1929 = vld [vmem:[%s313 + $0x48] sm:$0xf]
        %v1930 = vld [vmem:[%s313 + $0x4c] sm:$0xf]
        %v1931 = vld [vmem:[%s313 + $0x54] sm:$0xf]
        %v1932 = vld [vmem:[%s313 + $0x58] sm:$0xf]
        %v1933 = vld [vmem:[%s313 + $0x60] sm:$0xf]
        %v1934 = vld [vmem:[%s313 + $0x64] sm:$0xf]
        %v1935 = vld [vmem:[%s313 + $0x6c] sm:$0xf]
        %v1936 = vld [vmem:[%s313 + $0x70] sm:$0xf]
        %v1937 = vld [vmem:[%s313 + $0x78] sm:$0xf]
        %v1938 = vld [vmem:[%s313 + $0x7c] sm:$0xf]
        %v1939 = vld [vmem:[%s313 + $0x84] sm:$0xf]
        %v1940 = vld [vmem:[%s313 + $0x88] sm:$0xf]
        %v1941 = vld [vmem:[%s313 + $0x90] sm:$0xf]
        %v1942 = vld [vmem:[%s313 + $0x94] sm:$0xf]
        %v1943 = vld [vmem:[%s313 + $0x9c] sm:$0xf]
        %v1944 = vld [vmem:[%s313 + $0xa0] sm:$0xf]
        %v1945 = vld [vmem:[%s313 + $0xa8] sm:$0xf]
        %v1946 = vld [vmem:[%s313 + $0xac] sm:$0xf]
        %v1947 = vld [vmem:[%s313 + $0xb4] sm:$0xf]
        %v1948 = vld [vmem:[%s313 + $0xb8] sm:$0xf]
        %v1981 = vunpack.c.l.b16 %v1917
        %v1982 = vunpack.c.l.b16 %v1918
        %v1983 = vunpack.c.l.b16 %v1919
        %v1984 = vunpack.c.l.b16 %v1920
        %v1985 = vunpack.c.l.b16 %v1921
        %v1986 = vunpack.c.l.b16 %v1922
        %v1987 = vunpack.c.l.b16 %v1923
        %v1988 = vunpack.c.l.b16 %v1924
        %v1989 = vunpack.c.l.b16 %v1925
        %v1990 = vunpack.c.l.b16 %v1926
        %v1991 = vunpack.c.l.b16 %v1927
        %v1992 = vunpack.c.l.b16 %v1928
        %v1993 = vunpack.c.l.b16 %v1929
        %v1994 = vunpack.c.l.b16 %v1930
        %v1995 = vunpack.c.l.b16 %v1931
        %v1996 = vunpack.c.l.b16 %v1932
        %v1997 = vunpack.c.l.b16 %v1933
        %v1998 = vunpack.c.l.b16 %v1934
        %v1999 = vunpack.c.l.b16 %v1935
        %v2000 = vunpack.c.l.b16 %v1936
        %v2001 = vunpack.c.l.b16 %v1937
        %v2002 = vunpack.c.l.b16 %v1938
        %v2003 = vunpack.c.l.b16 %v1939
        %v2004 = vunpack.c.l.b16 %v1940
        %v2005 = vunpack.c.l.b16 %v1941
        %v2006 = vunpack.c.l.b16 %v1942
        %v2007 = vunpack.c.l.b16 %v1943
        %v2008 = vunpack.c.l.b16 %v1944
        %v2009 = vunpack.c.l.b16 %v1945
        %v2010 = vunpack.c.l.b16 %v1946
        %v2011 = vunpack.c.l.b16 %v1947
        %v2012 = vunpack.c.l.b16 %v1948
        %v2013 = vpack.c.b16 %v1982, %v1981
        %v2014 = vpack.c.b16 %v1984, %v1983
        %v2015 = vpack.c.b16 %v1986, %v1985
        %v2016 = vpack.c.b16 %v1988, %v1987
        %v2017 = vpack.c.b16 %v1990, %v1989
        %v2018 = vpack.c.b16 %v1992, %v1991
        %v2019 = vpack.c.b16 %v1994, %v1993
        %v2020 = vpack.c.b16 %v1996, %v1995
        %v2021 = vpack.c.b16 %v1998, %v1997
        %v2022 = vpack.c.b16 %v2000, %v1999
        %v2023 = vpack.c.b16 %v2002, %v2001
        %v2024 = vpack.c.b16 %v2004, %v2003
        %v2025 = vpack.c.b16 %v2006, %v2005
        %v2026 = vpack.c.b16 %v2008, %v2007
        %v2027 = vpack.c.b16 %v2010, %v2009
        %v2028 = vpack.c.b16 %v2012, %v2011
        %2029 = vrot.lane.b32.xlu0 %v2013, 12
        %v2030 = vpop.permute.xlu0 %2029
        %2031 = vrot.lane.b32.xlu0 %v2014, 12
        %v2032 = vpop.permute.xlu0 %2031
        %2033 = vrot.lane.b32.xlu0 %v2015, 12
        %v2034 = vpop.permute.xlu0 %2033
        %2035 = vrot.lane.b32.xlu0 %v2016, 12
        %v2036 = vpop.permute.xlu0 %2035
        %2037 = vrot.lane.b32.xlu0 %v2017, 12
        %v2038 = vpop.permute.xlu0 %2037
        %2039 = vrot.lane.b32.xlu0 %v2018, 12
        %v2040 = vpop.permute.xlu0 %2039
        %2041 = vrot.lane.b32.xlu0 %v2019, 12
        %v2042 = vpop.permute.xlu0 %2041
        %2043 = vrot.lane.b32.xlu0 %v2020, 12
        %v2044 = vpop.permute.xlu0 %2043
        %2045 = vrot.lane.b32.xlu0 %v2021, 12
        %v2046 = vpop.permute.xlu0 %2045
        %2047 = vrot.lane.b32.xlu0 %v2022, 12
        %v2048 = vpop.permute.xlu0 %2047
        %2049 = vrot.lane.b32.xlu0 %v2023, 12
        %v2050 = vpop.permute.xlu0 %2049
        %2051 = vrot.lane.b32.xlu0 %v2024, 12
        %v2052 = vpop.permute.xlu0 %2051
        %2053 = vrot.lane.b32.xlu0 %v2025, 12
        %v2054 = vpop.permute.xlu0 %2053
        %2055 = vrot.lane.b32.xlu0 %v2026, 12
        %v2056 = vpop.permute.xlu0 %2055
        %2057 = vrot.lane.b32.xlu0 %v2027, 12
        %v2058 = vpop.permute.xlu0 %2057
        %2059 = vrot.lane.b32.xlu0 %v2028, 12
        %v2060 = vpop.permute.xlu0 %2059
        %vm2077 = vcmask 130144
        %2078 = vst.msk [vmem:[#allocation3] sm:$0xff] %vm2077, %v2030
        %2079 = vst.msk [vmem:[#allocation3 + $0x8] sm:$0xff] %vm2077, %v2032
        %2080 = vst.msk [vmem:[#allocation3 + $0x10] sm:$0xff] %vm2077, %v2034
        %2081 = vst.msk [vmem:[#allocation3 + $0x18] sm:$0xff] %vm2077, %v2036
        %2082 = vst.msk [vmem:[#allocation3 + $0x20] sm:$0xff] %vm2077, %v2038
        %2083 = vst.msk [vmem:[#allocation3 + $0x28] sm:$0xff] %vm2077, %v2040
        %2084 = vst.msk [vmem:[#allocation3 + $0x30] sm:$0xff] %vm2077, %v2042
        %2085 = vst.msk [vmem:[#allocation3 + $0x38] sm:$0xff] %vm2077, %v2044
        %2086 = vst.msk [vmem:[#allocation3 + $0x40] sm:$0xff] %vm2077, %v2046
        %2087 = vst.msk [vmem:[#allocation3 + $0x48] sm:$0xff] %vm2077, %v2048
        %2088 = vst.msk [vmem:[#allocation3 + $0x50] sm:$0xff] %vm2077, %v2050
        %2089 = vst.msk [vmem:[#allocation3 + $0x58] sm:$0xff] %vm2077, %v2052
        %2090 = vst.msk [vmem:[#allocation3 + $0x60] sm:$0xff] %vm2077, %v2054
        %2091 = vst.msk [vmem:[#allocation3 + $0x68] sm:$0xff] %vm2077, %v2056
        %2092 = vst.msk [vmem:[#allocation3 + $0x70] sm:$0xff] %vm2077, %v2058
        %2093 = vst.msk [vmem:[#allocation3 + $0x78] sm:$0xff] %vm2077, %v2060
        %v2094 = vld [vmem:[%s313] sm:$0xf]
        %v2095 = vld [vmem:[%s313 + $0x4] sm:$0xf]
        %v2096 = vld [vmem:[%s313 + $0x8] sm:$0x1]
        %v2097 = vld [vmem:[%s313 + $0xc] sm:$0xf]
        %v2098 = vld [vmem:[%s313 + $0x10] sm:$0xf]
        %v2099 = vld [vmem:[%s313 + $0x14] sm:$0x1]
        %v2100 = vld [vmem:[%s313 + $0x18] sm:$0xf]
        %v2101 = vld [vmem:[%s313 + $0x1c] sm:$0xf]
        %v2102 = vld [vmem:[%s313 + $0x20] sm:$0x1]
        %v2103 = vld [vmem:[%s313 + $0x24] sm:$0xf]
        %v2104 = vld [vmem:[%s313 + $0x28] sm:$0xf]
        %v2105 = vld [vmem:[%s313 + $0x2c] sm:$0x1]
        %v2106 = vld [vmem:[%s313 + $0x30] sm:$0xf]
        %v2107 = vld [vmem:[%s313 + $0x34] sm:$0xf]
        %v2108 = vld [vmem:[%s313 + $0x38] sm:$0x1]
        %v2109 = vld [vmem:[%s313 + $0x3c] sm:$0xf]
        %v2110 = vld [vmem:[%s313 + $0x40] sm:$0xf]
        %v2111 = vld [vmem:[%s313 + $0x44] sm:$0x1]
        %v2112 = vld [vmem:[%s313 + $0x48] sm:$0xf]
        %v2113 = vld [vmem:[%s313 + $0x4c] sm:$0xf]
        %v2114 = vld [vmem:[%s313 + $0x50] sm:$0x1]
        %v2115 = vld [vmem:[%s313 + $0x54] sm:$0xf]
        %v2116 = vld [vmem:[%s313 + $0x58] sm:$0xf]
        %v2117 = vld [vmem:[%s313 + $0x5c] sm:$0x1]
        %v2118 = vld [vmem:[%s313 + $0x60] sm:$0xf]
        %v2119 = vld [vmem:[%s313 + $0x64] sm:$0xf]
        %v2120 = vld [vmem:[%s313 + $0x68] sm:$0x1]
        %v2121 = vld [vmem:[%s313 + $0x6c] sm:$0xf]
        %v2122 = vld [vmem:[%s313 + $0x70] sm:$0xf]
        %v2123 = vld [vmem:[%s313 + $0x74] sm:$0x1]
        %v2124 = vld [vmem:[%s313 + $0x78] sm:$0xf]
        %v2125 = vld [vmem:[%s313 + $0x7c] sm:$0xf]
        %v2126 = vld [vmem:[%s313 + $0x80] sm:$0x1]
        %v2127 = vld [vmem:[%s313 + $0x84] sm:$0xf]
        %v2128 = vld [vmem:[%s313 + $0x88] sm:$0xf]
        %v2129 = vld [vmem:[%s313 + $0x8c] sm:$0x1]
        %v2130 = vld [vmem:[%s313 + $0x90] sm:$0xf]
        %v2131 = vld [vmem:[%s313 + $0x94] sm:$0xf]
        %v2132 = vld [vmem:[%s313 + $0x98] sm:$0x1]
        %v2133 = vld [vmem:[%s313 + $0x9c] sm:$0xf]
        %v2134 = vld [vmem:[%s313 + $0xa0] sm:$0xf]
        %v2135 = vld [vmem:[%s313 + $0xa4] sm:$0x1]
        %v2136 = vld [vmem:[%s313 + $0xa8] sm:$0xf]
        %v2137 = vld [vmem:[%s313 + $0xac] sm:$0xf]
        %v2138 = vld [vmem:[%s313 + $0xb0] sm:$0x1]
        %v2139 = vld [vmem:[%s313 + $0xb4] sm:$0xf]
        %v2140 = vld [vmem:[%s313 + $0xb8] sm:$0xf]
        %v2141 = vld [vmem:[%s313 + $0xbc] sm:$0x1]
        %v2143 = vshrl.u32 %v2094, 16
        %v2145 = vrot.slane %v2143, 4
        %v2146 = vshll.u32 %v2094, 16
        %v2148 = vrot.slane %v2146, 5
        %v2149 = vor.u32 %v2145, %v2148
        %v2150 = vrot.slane %v2149, 4
        %v2152 = vshll.u32 %v2095, 16
        %v2154 = vrot.slane %v2152, 5
        %v2155 = vsel %vm1095, %v2150, %v2154
        %v2156 = vshrl.u32 %v2095, 16
        %v2158 = vrot.slane %v2156, 4
        %v2159 = vor.u32 %v2158, %v2154
        %v2160 = vrot.slane %v2159, 4
        %v2162 = vshll.u32 %v2096, 16
        %v2164 = vrot.slane %v2162, 5
        %v2165 = vsel %vm1095, %v2160, %v2164
        %v2167 = vshrl.u32 %v2097, 16
        %v2169 = vrot.slane %v2167, 4
        %v2170 = vshll.u32 %v2097, 16
        %v2172 = vrot.slane %v2170, 5
        %v2173 = vor.u32 %v2169, %v2172
        %v2174 = vrot.slane %v2173, 4
        %v2176 = vshll.u32 %v2098, 16
        %v2178 = vrot.slane %v2176, 5
        %v2179 = vsel %vm1095, %v2174, %v2178
        %v2180 = vshrl.u32 %v2098, 16
        %v2182 = vrot.slane %v2180, 4
        %v2183 = vor.u32 %v2182, %v2178
        %v2184 = vrot.slane %v2183, 4
        %v2186 = vshll.u32 %v2099, 16
        %v2188 = vrot.slane %v2186, 5
        %v2189 = vsel %vm1095, %v2184, %v2188
        %v2191 = vshrl.u32 %v2100, 16
        %v2193 = vrot.slane %v2191, 4
        %v2194 = vshll.u32 %v2100, 16
        %v2196 = vrot.slane %v2194, 5
        %v2197 = vor.u32 %v2193, %v2196
        %v2198 = vrot.slane %v2197, 4
        %v2200 = vshll.u32 %v2101, 16
        %v2202 = vrot.slane %v2200, 5
        %v2203 = vsel %vm1095, %v2198, %v2202
        %v2204 = vshrl.u32 %v2101, 16
        %v2206 = vrot.slane %v2204, 4
        %v2207 = vor.u32 %v2206, %v2202
        %v2208 = vrot.slane %v2207, 4
        %v2210 = vshll.u32 %v2102, 16
        %v2212 = vrot.slane %v2210, 5
        %v2213 = vsel %vm1095, %v2208, %v2212
        %v2215 = vshrl.u32 %v2103, 16
        %v2217 = vrot.slane %v2215, 4
        %v2218 = vshll.u32 %v2103, 16
        %v2220 = vrot.slane %v2218, 5
        %v2221 = vor.u32 %v2217, %v2220
        %v2222 = vrot.slane %v2221, 4
        %v2224 = vshll.u32 %v2104, 16
        %v2226 = vrot.slane %v2224, 5
        %v2227 = vsel %vm1095, %v2222, %v2226
        %v2228 = vshrl.u32 %v2104, 16
        %v2230 = vrot.slane %v2228, 4
        %v2231 = vor.u32 %v2230, %v2226
        %v2232 = vrot.slane %v2231, 4
        %v2234 = vshll.u32 %v2105, 16
        %v2236 = vrot.slane %v2234, 5
        %v2237 = vsel %vm1095, %v2232, %v2236
        %v2239 = vshrl.u32 %v2106, 16
        %v2241 = vrot.slane %v2239, 4
        %v2242 = vshll.u32 %v2106, 16
        %v2244 = vrot.slane %v2242, 5
        %v2245 = vor.u32 %v2241, %v2244
        %v2246 = vrot.slane %v2245, 4
        %v2248 = vshll.u32 %v2107, 16
        %v2250 = vrot.slane %v2248, 5
        %v2251 = vsel %vm1095, %v2246, %v2250
        %v2252 = vshrl.u32 %v2107, 16
        %v2254 = vrot.slane %v2252, 4
        %v2255 = vor.u32 %v2254, %v2250
        %v2256 = vrot.slane %v2255, 4
        %v2258 = vshll.u32 %v2108, 16
        %v2260 = vrot.slane %v2258, 5
        %v2261 = vsel %vm1095, %v2256, %v2260
        %v2263 = vshrl.u32 %v2109, 16
        %v2265 = vrot.slane %v2263, 4
        %v2266 = vshll.u32 %v2109, 16
        %v2268 = vrot.slane %v2266, 5
        %v2269 = vor.u32 %v2265, %v2268
        %v2270 = vrot.slane %v2269, 4
        %v2272 = vshll.u32 %v2110, 16
        %v2274 = vrot.slane %v2272, 5
        %v2275 = vsel %vm1095, %v2270, %v2274
        %v2276 = vshrl.u32 %v2110, 16
        %v2278 = vrot.slane %v2276, 4
        %v2279 = vor.u32 %v2278, %v2274
        %v2280 = vrot.slane %v2279, 4
        %v2282 = vshll.u32 %v2111, 16
        %v2284 = vrot.slane %v2282, 5
        %v2285 = vsel %vm1095, %v2280, %v2284
        %v2287 = vshrl.u32 %v2112, 16
        %v2289 = vrot.slane %v2287, 4
        %v2290 = vshll.u32 %v2112, 16
        %v2292 = vrot.slane %v2290, 5
        %v2293 = vor.u32 %v2289, %v2292
        %v2294 = vrot.slane %v2293, 4
        %v2296 = vshll.u32 %v2113, 16
        %v2298 = vrot.slane %v2296, 5
        %v2299 = vsel %vm1095, %v2294, %v2298
        %v2300 = vshrl.u32 %v2113, 16
        %v2302 = vrot.slane %v2300, 4
        %v2303 = vor.u32 %v2302, %v2298
        %v2304 = vrot.slane %v2303, 4
        %v2306 = vshll.u32 %v2114, 16
        %v2308 = vrot.slane %v2306, 5
        %v2309 = vsel %vm1095, %v2304, %v2308
        %v2311 = vshrl.u32 %v2115, 16
        %v2313 = vrot.slane %v2311, 4
        %v2314 = vshll.u32 %v2115, 16
        %v2316 = vrot.slane %v2314, 5
        %v2317 = vor.u32 %v2313, %v2316
        %v2318 = vrot.slane %v2317, 4
        %v2320 = vshll.u32 %v2116, 16
        %v2322 = vrot.slane %v2320, 5
        %v2323 = vsel %vm1095, %v2318, %v2322
        %v2324 = vshrl.u32 %v2116, 16
        %v2326 = vrot.slane %v2324, 4
        %v2327 = vor.u32 %v2326, %v2322
        %v2328 = vrot.slane %v2327, 4
        %v2330 = vshll.u32 %v2117, 16
        %v2332 = vrot.slane %v2330, 5
        %v2333 = vsel %vm1095, %v2328, %v2332
        %v2335 = vshrl.u32 %v2118, 16
        %v2337 = vrot.slane %v2335, 4
        %v2338 = vshll.u32 %v2118, 16
        %v2340 = vrot.slane %v2338, 5
        %v2341 = vor.u32 %v2337, %v2340
        %v2342 = vrot.slane %v2341, 4
        %v2344 = vshll.u32 %v2119, 16
        %v2346 = vrot.slane %v2344, 5
        %v2347 = vsel %vm1095, %v2342, %v2346
        %v2348 = vshrl.u32 %v2119, 16
        %v2350 = vrot.slane %v2348, 4
        %v2351 = vor.u32 %v2350, %v2346
        %v2352 = vrot.slane %v2351, 4
        %v2354 = vshll.u32 %v2120, 16
        %v2356 = vrot.slane %v2354, 5
        %v2357 = vsel %vm1095, %v2352, %v2356
        %v2359 = vshrl.u32 %v2121, 16
        %v2361 = vrot.slane %v2359, 4
        %v2362 = vshll.u32 %v2121, 16
        %v2364 = vrot.slane %v2362, 5
        %v2365 = vor.u32 %v2361, %v2364
        %v2366 = vrot.slane %v2365, 4
        %v2368 = vshll.u32 %v2122, 16
        %v2370 = vrot.slane %v2368, 5
        %v2371 = vsel %vm1095, %v2366, %v2370
        %v2372 = vshrl.u32 %v2122, 16
        %v2374 = vrot.slane %v2372, 4
        %v2375 = vor.u32 %v2374, %v2370
        %v2376 = vrot.slane %v2375, 4
        %v2378 = vshll.u32 %v2123, 16
        %v2380 = vrot.slane %v2378, 5
        %v2381 = vsel %vm1095, %v2376, %v2380
        %v2383 = vshrl.u32 %v2124, 16
        %v2385 = vrot.slane %v2383, 4
        %v2386 = vshll.u32 %v2124, 16
        %v2388 = vrot.slane %v2386, 5
        %v2389 = vor.u32 %v2385, %v2388
        %v2390 = vrot.slane %v2389, 4
        %v2392 = vshll.u32 %v2125, 16
        %v2394 = vrot.slane %v2392, 5
        %v2395 = vsel %vm1095, %v2390, %v2394
        %v2396 = vshrl.u32 %v2125, 16
        %v2398 = vrot.slane %v2396, 4
        %v2399 = vor.u32 %v2398, %v2394
        %v2400 = vrot.slane %v2399, 4
        %v2402 = vshll.u32 %v2126, 16
        %v2404 = vrot.slane %v2402, 5
        %v2405 = vsel %vm1095, %v2400, %v2404
        %v2407 = vshrl.u32 %v2127, 16
        %v2409 = vrot.slane %v2407, 4
        %v2410 = vshll.u32 %v2127, 16
        %v2412 = vrot.slane %v2410, 5
        %v2413 = vor.u32 %v2409, %v2412
        %v2414 = vrot.slane %v2413, 4
        %v2416 = vshll.u32 %v2128, 16
        %v2418 = vrot.slane %v2416, 5
        %v2419 = vsel %vm1095, %v2414, %v2418
        %v2420 = vshrl.u32 %v2128, 16
        %v2422 = vrot.slane %v2420, 4
        %v2423 = vor.u32 %v2422, %v2418
        %v2424 = vrot.slane %v2423, 4
        %v2426 = vshll.u32 %v2129, 16
        %v2428 = vrot.slane %v2426, 5
        %v2429 = vsel %vm1095, %v2424, %v2428
        %v2431 = vshrl.u32 %v2130, 16
        %v2433 = vrot.slane %v2431, 4
        %v2434 = vshll.u32 %v2130, 16
        %v2436 = vrot.slane %v2434, 5
        %v2437 = vor.u32 %v2433, %v2436
        %v2438 = vrot.slane %v2437, 4
        %v2440 = vshll.u32 %v2131, 16
        %v2442 = vrot.slane %v2440, 5
        %v2443 = vsel %vm1095, %v2438, %v2442
        %v2444 = vshrl.u32 %v2131, 16
        %v2446 = vrot.slane %v2444, 4
        %v2447 = vor.u32 %v2446, %v2442
        %v2448 = vrot.slane %v2447, 4
        %v2450 = vshll.u32 %v2132, 16
        %v2452 = vrot.slane %v2450, 5
        %v2453 = vsel %vm1095, %v2448, %v2452
        %v2455 = vshrl.u32 %v2133, 16
        %v2457 = vrot.slane %v2455, 4
        %v2458 = vshll.u32 %v2133, 16
        %v2460 = vrot.slane %v2458, 5
        %v2461 = vor.u32 %v2457, %v2460
        %v2462 = vrot.slane %v2461, 4
        %v2464 = vshll.u32 %v2134, 16
        %v2466 = vrot.slane %v2464, 5
        %v2467 = vsel %vm1095, %v2462, %v2466
        %v2468 = vshrl.u32 %v2134, 16
        %v2470 = vrot.slane %v2468, 4
        %v2471 = vor.u32 %v2470, %v2466
        %v2472 = vrot.slane %v2471, 4
        %v2474 = vshll.u32 %v2135, 16
        %v2476 = vrot.slane %v2474, 5
        %v2477 = vsel %vm1095, %v2472, %v2476
        %v2479 = vshrl.u32 %v2136, 16
        %v2481 = vrot.slane %v2479, 4
        %v2482 = vshll.u32 %v2136, 16
        %v2484 = vrot.slane %v2482, 5
        %v2485 = vor.u32 %v2481, %v2484
        %v2486 = vrot.slane %v2485, 4
        %v2488 = vshll.u32 %v2137, 16
        %v2490 = vrot.slane %v2488, 5
        %v2491 = vsel %vm1095, %v2486, %v2490
        %v2492 = vshrl.u32 %v2137, 16
        %v2494 = vrot.slane %v2492, 4
        %v2495 = vor.u32 %v2494, %v2490
        %v2496 = vrot.slane %v2495, 4
        %v2498 = vshll.u32 %v2138, 16
        %v2500 = vrot.slane %v2498, 5
        %v2501 = vsel %vm1095, %v2496, %v2500
        %v2503 = vshrl.u32 %v2139, 16
        %v2505 = vrot.slane %v2503, 4
        %v2506 = vshll.u32 %v2139, 16
        %v2508 = vrot.slane %v2506, 5
        %v2509 = vor.u32 %v2505, %v2508
        %v2510 = vrot.slane %v2509, 4
        %v2512 = vshll.u32 %v2140, 16
        %v2514 = vrot.slane %v2512, 5
        %v2515 = vsel %vm1095, %v2510, %v2514
        %v2516 = vshrl.u32 %v2140, 16
        %v2518 = vrot.slane %v2516, 4
        %v2519 = vor.u32 %v2518, %v2514
        %v2520 = vrot.slane %v2519, 4
        %v2522 = vshll.u32 %v2141, 16
        %v2524 = vrot.slane %v2522, 5
        %v2525 = vsel %vm1095, %v2520, %v2524
        %v2526 = vunpack.c.l.b16 %v2155
        %v2527 = vunpack.c.l.b16 %v2165
        %v2528 = vunpack.c.l.b16 %v2179
        %v2529 = vunpack.c.l.b16 %v2189
        %v2530 = vunpack.c.l.b16 %v2203
        %v2531 = vunpack.c.l.b16 %v2213
        %v2532 = vunpack.c.l.b16 %v2227
        %v2533 = vunpack.c.l.b16 %v2237
        %v2534 = vunpack.c.l.b16 %v2251
        %v2535 = vunpack.c.l.b16 %v2261
        %v2536 = vunpack.c.l.b16 %v2275
        %v2537 = vunpack.c.l.b16 %v2285
        %v2538 = vunpack.c.l.b16 %v2299
        %v2539 = vunpack.c.l.b16 %v2309
        %v2540 = vunpack.c.l.b16 %v2323
        %v2541 = vunpack.c.l.b16 %v2333
        %v2542 = vunpack.c.l.b16 %v2347
        %v2543 = vunpack.c.l.b16 %v2357
        %v2544 = vunpack.c.l.b16 %v2371
        %v2545 = vunpack.c.l.b16 %v2381
        %v2546 = vunpack.c.l.b16 %v2395
        %v2547 = vunpack.c.l.b16 %v2405
        %v2548 = vunpack.c.l.b16 %v2419
        %v2549 = vunpack.c.l.b16 %v2429
        %v2550 = vunpack.c.l.b16 %v2443
        %v2551 = vunpack.c.l.b16 %v2453
        %v2552 = vunpack.c.l.b16 %v2467
        %v2553 = vunpack.c.l.b16 %v2477
        %v2554 = vunpack.c.l.b16 %v2491
        %v2555 = vunpack.c.l.b16 %v2501
        %v2556 = vunpack.c.l.b16 %v2515
        %v2557 = vunpack.c.l.b16 %v2525
        %v2558 = vpack.c.b16 %v2527, %v2526
        %v2559 = vpack.c.b16 %v2529, %v2528
        %v2560 = vpack.c.b16 %v2531, %v2530
        %v2561 = vpack.c.b16 %v2533, %v2532
        %v2562 = vpack.c.b16 %v2535, %v2534
        %v2563 = vpack.c.b16 %v2537, %v2536
        %v2564 = vpack.c.b16 %v2539, %v2538
        %v2565 = vpack.c.b16 %v2541, %v2540
        %v2566 = vpack.c.b16 %v2543, %v2542
        %v2567 = vpack.c.b16 %v2545, %v2544
        %v2568 = vpack.c.b16 %v2547, %v2546
        %v2569 = vpack.c.b16 %v2549, %v2548
        %v2570 = vpack.c.b16 %v2551, %v2550
        %v2571 = vpack.c.b16 %v2553, %v2552
        %v2572 = vpack.c.b16 %v2555, %v2554
        %v2573 = vpack.c.b16 %v2557, %v2556
        %2574 = vrot.lane.b32.xlu0 %v2558, 16
        %v2575 = vpop.permute.xlu0 %2574
        %2576 = vrot.lane.b32.xlu0 %v2559, 16
        %v2577 = vpop.permute.xlu0 %2576
        %2578 = vrot.lane.b32.xlu0 %v2560, 16
        %v2579 = vpop.permute.xlu0 %2578
        %2580 = vrot.lane.b32.xlu0 %v2561, 16
        %v2581 = vpop.permute.xlu0 %2580
        %2582 = vrot.lane.b32.xlu0 %v2562, 16
        %v2583 = vpop.permute.xlu0 %2582
        %2584 = vrot.lane.b32.xlu0 %v2563, 16
        %v2585 = vpop.permute.xlu0 %2584
        %2586 = vrot.lane.b32.xlu0 %v2564, 16
        %v2587 = vpop.permute.xlu0 %2586
        %2588 = vrot.lane.b32.xlu0 %v2565, 16
        %v2589 = vpop.permute.xlu0 %2588
        %2590 = vrot.lane.b32.xlu0 %v2566, 16
        %v2591 = vpop.permute.xlu0 %2590
        %2592 = vrot.lane.b32.xlu0 %v2567, 16
        %v2593 = vpop.permute.xlu0 %2592
        %2594 = vrot.lane.b32.xlu0 %v2568, 16
        %v2595 = vpop.permute.xlu0 %2594
        %2596 = vrot.lane.b32.xlu0 %v2569, 16
        %v2597 = vpop.permute.xlu0 %2596
        %2598 = vrot.lane.b32.xlu0 %v2570, 16
        %v2599 = vpop.permute.xlu0 %2598
        %2600 = vrot.lane.b32.xlu0 %v2571, 16
        %v2601 = vpop.permute.xlu0 %2600
        %2602 = vrot.lane.b32.xlu0 %v2572, 16
        %v2603 = vpop.permute.xlu0 %2602
        %2604 = vrot.lane.b32.xlu0 %v2573, 16
        %v2605 = vpop.permute.xlu0 %2604
        %vm2622 = vcmask 162944
        %2623 = vst.msk [vmem:[#allocation3] sm:$0xff] %vm2622, %v2575
        %2624 = vst.msk [vmem:[#allocation3 + $0x8] sm:$0xff] %vm2622, %v2577
        %2625 = vst.msk [vmem:[#allocation3 + $0x10] sm:$0xff] %vm2622, %v2579
        %2626 = vst.msk [vmem:[#allocation3 + $0x18] sm:$0xff] %vm2622, %v2581
        %2627 = vst.msk [vmem:[#allocation3 + $0x20] sm:$0xff] %vm2622, %v2583
        %2628 = vst.msk [vmem:[#allocation3 + $0x28] sm:$0xff] %vm2622, %v2585
        %2629 = vst.msk [vmem:[#allocation3 + $0x30] sm:$0xff] %vm2622, %v2587
        %2630 = vst.msk [vmem:[#allocation3 + $0x38] sm:$0xff] %vm2622, %v2589
        %2631 = vst.msk [vmem:[#allocation3 + $0x40] sm:$0xff] %vm2622, %v2591
        %2632 = vst.msk [vmem:[#allocation3 + $0x48] sm:$0xff] %vm2622, %v2593
        %2633 = vst.msk [vmem:[#allocation3 + $0x50] sm:$0xff] %vm2622, %v2595
        %2634 = vst.msk [vmem:[#allocation3 + $0x58] sm:$0xff] %vm2622, %v2597
        %2635 = vst.msk [vmem:[#allocation3 + $0x60] sm:$0xff] %vm2622, %v2599
        %2636 = vst.msk [vmem:[#allocation3 + $0x68] sm:$0xff] %vm2622, %v2601
        %2637 = vst.msk [vmem:[#allocation3 + $0x70] sm:$0xff] %vm2622, %v2603
        %2638 = vst.msk [vmem:[#allocation3 + $0x78] sm:$0xff] %vm2622, %v2605
        %v2639 = vld [vmem:[%s313] sm:$0xe]
        %v2640 = vld [vmem:[%s313 + $0x4] sm:$0xf]
        %v2641 = vld [vmem:[%s313 + $0x8] sm:$0x1]
        %v2642 = vld [vmem:[%s313 + $0xc] sm:$0xe]
        %v2643 = vld [vmem:[%s313 + $0x10] sm:$0xf]
        %v2644 = vld [vmem:[%s313 + $0x14] sm:$0x1]
        %v2645 = vld [vmem:[%s313 + $0x18] sm:$0xe]
        %v2646 = vld [vmem:[%s313 + $0x1c] sm:$0xf]
        %v2647 = vld [vmem:[%s313 + $0x20] sm:$0x1]
        %v2648 = vld [vmem:[%s313 + $0x24] sm:$0xe]
        %v2649 = vld [vmem:[%s313 + $0x28] sm:$0xf]
        %v2650 = vld [vmem:[%s313 + $0x2c] sm:$0x1]
        %v2651 = vld [vmem:[%s313 + $0x30] sm:$0xe]
        %v2652 = vld [vmem:[%s313 + $0x34] sm:$0xf]
        %v2653 = vld [vmem:[%s313 + $0x38] sm:$0x1]
        %v2654 = vld [vmem:[%s313 + $0x3c] sm:$0xe]
        %v2655 = vld [vmem:[%s313 + $0x40] sm:$0xf]
        %v2656 = vld [vmem:[%s313 + $0x44] sm:$0x1]
        %v2657 = vld [vmem:[%s313 + $0x48] sm:$0xe]
        %v2658 = vld [vmem:[%s313 + $0x4c] sm:$0xf]
        %v2659 = vld [vmem:[%s313 + $0x50] sm:$0x1]
        %v2660 = vld [vmem:[%s313 + $0x54] sm:$0xe]
        %v2661 = vld [vmem:[%s313 + $0x58] sm:$0xf]
        %v2662 = vld [vmem:[%s313 + $0x5c] sm:$0x1]
        %v2663 = vld [vmem:[%s313 + $0x60] sm:$0xe]
        %v2664 = vld [vmem:[%s313 + $0x64] sm:$0xf]
        %v2665 = vld [vmem:[%s313 + $0x68] sm:$0x1]
        %v2666 = vld [vmem:[%s313 + $0x6c] sm:$0xe]
        %v2667 = vld [vmem:[%s313 + $0x70] sm:$0xf]
        %v2668 = vld [vmem:[%s313 + $0x74] sm:$0x1]
        %v2669 = vld [vmem:[%s313 + $0x78] sm:$0xe]
        %v2670 = vld [vmem:[%s313 + $0x7c] sm:$0xf]
        %v2671 = vld [vmem:[%s313 + $0x80] sm:$0x1]
        %v2672 = vld [vmem:[%s313 + $0x84] sm:$0xe]
        %v2673 = vld [vmem:[%s313 + $0x88] sm:$0xf]
        %v2674 = vld [vmem:[%s313 + $0x8c] sm:$0x1]
        %v2675 = vld [vmem:[%s313 + $0x90] sm:$0xe]
        %v2676 = vld [vmem:[%s313 + $0x94] sm:$0xf]
        %v2677 = vld [vmem:[%s313 + $0x98] sm:$0x1]
        %v2678 = vld [vmem:[%s313 + $0x9c] sm:$0xe]
        %v2679 = vld [vmem:[%s313 + $0xa0] sm:$0xf]
        %v2680 = vld [vmem:[%s313 + $0xa4] sm:$0x1]
        %v2681 = vld [vmem:[%s313 + $0xa8] sm:$0xe]
        %v2682 = vld [vmem:[%s313 + $0xac] sm:$0xf]
        %v2683 = vld [vmem:[%s313 + $0xb0] sm:$0x1]
        %v2684 = vld [vmem:[%s313 + $0xb4] sm:$0xe]
        %v2685 = vld [vmem:[%s313 + $0xb8] sm:$0xf]
        %v2686 = vld [vmem:[%s313 + $0xbc] sm:$0x1]
        %v2735 = vrot.slane %v2639, 5
        %v2736 = vrot.slane %v2735, 4
        %v2737 = vrot.slane %v2640, 5
        %v2738 = vsel %vm1691, %v2736, %v2737
        %v2739 = vrot.slane %v2737, 4
        %v2740 = vrot.slane %v2641, 5
        %v2741 = vsel %vm1691, %v2739, %v2740
        %v2742 = vrot.slane %v2642, 5
        %v2743 = vrot.slane %v2742, 4
        %v2744 = vrot.slane %v2643, 5
        %v2745 = vsel %vm1691, %v2743, %v2744
        %v2746 = vrot.slane %v2744, 4
        %v2747 = vrot.slane %v2644, 5
        %v2748 = vsel %vm1691, %v2746, %v2747
        %v2749 = vrot.slane %v2645, 5
        %v2750 = vrot.slane %v2749, 4
        %v2751 = vrot.slane %v2646, 5
        %v2752 = vsel %vm1691, %v2750, %v2751
        %v2753 = vrot.slane %v2751, 4
        %v2754 = vrot.slane %v2647, 5
        %v2755 = vsel %vm1691, %v2753, %v2754
        %v2756 = vrot.slane %v2648, 5
        %v2757 = vrot.slane %v2756, 4
        %v2758 = vrot.slane %v2649, 5
        %v2759 = vsel %vm1691, %v2757, %v2758
        %v2760 = vrot.slane %v2758, 4
        %v2761 = vrot.slane %v2650, 5
        %v2762 = vsel %vm1691, %v2760, %v2761
        %v2763 = vrot.slane %v2651, 5
        %v2764 = vrot.slane %v2763, 4
        %v2765 = vrot.slane %v2652, 5
        %v2766 = vsel %vm1691, %v2764, %v2765
        %v2767 = vrot.slane %v2765, 4
        %v2768 = vrot.slane %v2653, 5
        %v2769 = vsel %vm1691, %v2767, %v2768
        %v2770 = vrot.slane %v2654, 5
        %v2771 = vrot.slane %v2770, 4
        %v2772 = vrot.slane %v2655, 5
        %v2773 = vsel %vm1691, %v2771, %v2772
        %v2774 = vrot.slane %v2772, 4
        %v2775 = vrot.slane %v2656, 5
        %v2776 = vsel %vm1691, %v2774, %v2775
        %v2777 = vrot.slane %v2657, 5
        %v2778 = vrot.slane %v2777, 4
        %v2779 = vrot.slane %v2658, 5
        %v2780 = vsel %vm1691, %v2778, %v2779
        %v2781 = vrot.slane %v2779, 4
        %v2782 = vrot.slane %v2659, 5
        %v2783 = vsel %vm1691, %v2781, %v2782
        %v2784 = vrot.slane %v2660, 5
        %v2785 = vrot.slane %v2784, 4
        %v2786 = vrot.slane %v2661, 5
        %v2787 = vsel %vm1691, %v2785, %v2786
        %v2788 = vrot.slane %v2786, 4
        %v2789 = vrot.slane %v2662, 5
        %v2790 = vsel %vm1691, %v2788, %v2789
        %v2791 = vrot.slane %v2663, 5
        %v2792 = vrot.slane %v2791, 4
        %v2793 = vrot.slane %v2664, 5
        %v2794 = vsel %vm1691, %v2792, %v2793
        %v2795 = vrot.slane %v2793, 4
        %v2796 = vrot.slane %v2665, 5
        %v2797 = vsel %vm1691, %v2795, %v2796
        %v2798 = vrot.slane %v2666, 5
        %v2799 = vrot.slane %v2798, 4
        %v2800 = vrot.slane %v2667, 5
        %v2801 = vsel %vm1691, %v2799, %v2800
        %v2802 = vrot.slane %v2800, 4
        %v2803 = vrot.slane %v2668, 5
        %v2804 = vsel %vm1691, %v2802, %v2803
        %v2805 = vrot.slane %v2669, 5
        %v2806 = vrot.slane %v2805, 4
        %v2807 = vrot.slane %v2670, 5
        %v2808 = vsel %vm1691, %v2806, %v2807
        %v2809 = vrot.slane %v2807, 4
        %v2810 = vrot.slane %v2671, 5
        %v2811 = vsel %vm1691, %v2809, %v2810
        %v2812 = vrot.slane %v2672, 5
        %v2813 = vrot.slane %v2812, 4
        %v2814 = vrot.slane %v2673, 5
        %v2815 = vsel %vm1691, %v2813, %v2814
        %v2816 = vrot.slane %v2814, 4
        %v2817 = vrot.slane %v2674, 5
        %v2818 = vsel %vm1691, %v2816, %v2817
        %v2819 = vrot.slane %v2675, 5
        %v2820 = vrot.slane %v2819, 4
        %v2821 = vrot.slane %v2676, 5
        %v2822 = vsel %vm1691, %v2820, %v2821
        %v2823 = vrot.slane %v2821, 4
        %v2824 = vrot.slane %v2677, 5
        %v2825 = vsel %vm1691, %v2823, %v2824
        %v2826 = vrot.slane %v2678, 5
        %v2827 = vrot.slane %v2826, 4
        %v2828 = vrot.slane %v2679, 5
        %v2829 = vsel %vm1691, %v2827, %v2828
        %v2830 = vrot.slane %v2828, 4
        %v2831 = vrot.slane %v2680, 5
        %v2832 = vsel %vm1691, %v2830, %v2831
        %v2833 = vrot.slane %v2681, 5
        %v2834 = vrot.slane %v2833, 4
        %v2835 = vrot.slane %v2682, 5
        %v2836 = vsel %vm1691, %v2834, %v2835
        %v2837 = vrot.slane %v2835, 4
        %v2838 = vrot.slane %v2683, 5
        %v2839 = vsel %vm1691, %v2837, %v2838
        %v2840 = vrot.slane %v2684, 5
        %v2841 = vrot.slane %v2840, 4
        %v2842 = vrot.slane %v2685, 5
        %v2843 = vsel %vm1691, %v2841, %v2842
        %v2844 = vrot.slane %v2842, 4
        %v2845 = vrot.slane %v2686, 5
        %v2846 = vsel %vm1691, %v2844, %v2845
        %v2847 = vunpack.c.l.b16 %v2738
        %v2848 = vunpack.c.l.b16 %v2741
        %v2849 = vunpack.c.l.b16 %v2745
        %v2850 = vunpack.c.l.b16 %v2748
        %v2851 = vunpack.c.l.b16 %v2752
        %v2852 = vunpack.c.l.b16 %v2755
        %v2853 = vunpack.c.l.b16 %v2759
        %v2854 = vunpack.c.l.b16 %v2762
        %v2855 = vunpack.c.l.b16 %v2766
        %v2856 = vunpack.c.l.b16 %v2769
        %v2857 = vunpack.c.l.b16 %v2773
        %v2858 = vunpack.c.l.b16 %v2776
        %v2859 = vunpack.c.l.b16 %v2780
        %v2860 = vunpack.c.l.b16 %v2783
        %v2861 = vunpack.c.l.b16 %v2787
        %v2862 = vunpack.c.l.b16 %v2790
        %v2863 = vunpack.c.l.b16 %v2794
        %v2864 = vunpack.c.l.b16 %v2797
        %v2865 = vunpack.c.l.b16 %v2801
        %v2866 = vunpack.c.l.b16 %v2804
        %v2867 = vunpack.c.l.b16 %v2808
        %v2868 = vunpack.c.l.b16 %v2811
        %v2869 = vunpack.c.l.b16 %v2815
        %v2870 = vunpack.c.l.b16 %v2818
        %v2871 = vunpack.c.l.b16 %v2822
        %v2872 = vunpack.c.l.b16 %v2825
        %v2873 = vunpack.c.l.b16 %v2829
        %v2874 = vunpack.c.l.b16 %v2832
        %v2875 = vunpack.c.l.b16 %v2836
        %v2876 = vunpack.c.l.b16 %v2839
        %v2877 = vunpack.c.l.b16 %v2843
        %v2878 = vunpack.c.l.b16 %v2846
        %v2879 = vpack.c.b16 %v2848, %v2847
        %v2880 = vpack.c.b16 %v2850, %v2849
        %v2881 = vpack.c.b16 %v2852, %v2851
        %v2882 = vpack.c.b16 %v2854, %v2853
        %v2883 = vpack.c.b16 %v2856, %v2855
        %v2884 = vpack.c.b16 %v2858, %v2857
        %v2885 = vpack.c.b16 %v2860, %v2859
        %v2886 = vpack.c.b16 %v2862, %v2861
        %v2887 = vpack.c.b16 %v2864, %v2863
        %v2888 = vpack.c.b16 %v2866, %v2865
        %v2889 = vpack.c.b16 %v2868, %v2867
        %v2890 = vpack.c.b16 %v2870, %v2869
        %v2891 = vpack.c.b16 %v2872, %v2871
        %v2892 = vpack.c.b16 %v2874, %v2873
        %v2893 = vpack.c.b16 %v2876, %v2875
        %v2894 = vpack.c.b16 %v2878, %v2877
        %2895 = vrot.lane.b32.xlu0 %v2879, 20
        %v2896 = vpop.permute.xlu0 %2895
        %2897 = vrot.lane.b32.xlu0 %v2880, 20
        %v2898 = vpop.permute.xlu0 %2897
        %2899 = vrot.lane.b32.xlu0 %v2881, 20
        %v2900 = vpop.permute.xlu0 %2899
        %2901 = vrot.lane.b32.xlu0 %v2882, 20
        %v2902 = vpop.permute.xlu0 %2901
        %2903 = vrot.lane.b32.xlu0 %v2883, 20
        %v2904 = vpop.permute.xlu0 %2903
        %2905 = vrot.lane.b32.xlu0 %v2884, 20
        %v2906 = vpop.permute.xlu0 %2905
        %2907 = vrot.lane.b32.xlu0 %v2885, 20
        %v2908 = vpop.permute.xlu0 %2907
        %2909 = vrot.lane.b32.xlu0 %v2886, 20
        %v2910 = vpop.permute.xlu0 %2909
        %2911 = vrot.lane.b32.xlu0 %v2887, 20
        %v2912 = vpop.permute.xlu0 %2911
        %2913 = vrot.lane.b32.xlu0 %v2888, 20
        %v2914 = vpop.permute.xlu0 %2913
        %2915 = vrot.lane.b32.xlu0 %v2889, 20
        %v2916 = vpop.permute.xlu0 %2915
        %2917 = vrot.lane.b32.xlu0 %v2890, 20
        %v2918 = vpop.permute.xlu0 %2917
        %2919 = vrot.lane.b32.xlu0 %v2891, 20
        %v2920 = vpop.permute.xlu0 %2919
        %2921 = vrot.lane.b32.xlu0 %v2892, 20
        %v2922 = vpop.permute.xlu0 %2921
        %2923 = vrot.lane.b32.xlu0 %v2893, 20
        %v2924 = vpop.permute.xlu0 %2923
        %2925 = vrot.lane.b32.xlu0 %v2894, 20
        %v2926 = vpop.permute.xlu0 %2925
        %vm2943 = vcmask 195744
        %2944 = vst.msk [vmem:[#allocation3] sm:$0xff] %vm2943, %v2896
        %2945 = vst.msk [vmem:[#allocation3 + $0x8] sm:$0xff] %vm2943, %v2898
        %2946 = vst.msk [vmem:[#allocation3 + $0x10] sm:$0xff] %vm2943, %v2900
        %2947 = vst.msk [vmem:[#allocation3 + $0x18] sm:$0xff] %vm2943, %v2902
        %2948 = vst.msk [vmem:[#allocation3 + $0x20] sm:$0xff] %vm2943, %v2904
        %2949 = vst.msk [vmem:[#allocation3 + $0x28] sm:$0xff] %vm2943, %v2906
        %2950 = vst.msk [vmem:[#allocation3 + $0x30] sm:$0xff] %vm2943, %v2908
        %2951 = vst.msk [vmem:[#allocation3 + $0x38] sm:$0xff] %vm2943, %v2910
        %2952 = vst.msk [vmem:[#allocation3 + $0x40] sm:$0xff] %vm2943, %v2912
        %2953 = vst.msk [vmem:[#allocation3 + $0x48] sm:$0xff] %vm2943, %v2914
        %2954 = vst.msk [vmem:[#allocation3 + $0x50] sm:$0xff] %vm2943, %v2916
        %2955 = vst.msk [vmem:[#allocation3 + $0x58] sm:$0xff] %vm2943, %v2918
        %2956 = vst.msk [vmem:[#allocation3 + $0x60] sm:$0xff] %vm2943, %v2920
        %2957 = vst.msk [vmem:[#allocation3 + $0x68] sm:$0xff] %vm2943, %v2922
        %2958 = vst.msk [vmem:[#allocation3 + $0x70] sm:$0xff] %vm2943, %v2924
        %2959 = vst.msk [vmem:[#allocation3 + $0x78] sm:$0xff] %vm2943, %v2926
        %s2960 = scalar_lea.vmem [#allocation2], 24
        %v2961 = vld [vmem:[%s2960] sm:$0xf]
        %v2962 = vld [vmem:[%s2960 + $0x4] sm:$0xf]
        %v2963 = vld [vmem:[%s2960 + $0xc] sm:$0xf]
        %v2964 = vld [vmem:[%s2960 + $0x10] sm:$0xf]
        %v2965 = vld [vmem:[%s2960 + $0x18] sm:$0xf]
        %v2966 = vld [vmem:[%s2960 + $0x1c] sm:$0xf]
        %v2967 = vld [vmem:[%s2960 + $0x24] sm:$0xf]
        %v2968 = vld [vmem:[%s2960 + $0x28] sm:$0xf]
        %v2969 = vld [vmem:[%s2960 + $0x30] sm:$0xf]
        %v2970 = vld [vmem:[%s2960 + $0x34] sm:$0xf]
        %v2971 = vld [vmem:[%s2960 + $0x3c] sm:$0xf]
        %v2972 = vld [vmem:[%s2960 + $0x40] sm:$0xf]
        %v2973 = vld [vmem:[%s2960 + $0x48] sm:$0xf]
        %v2974 = vld [vmem:[%s2960 + $0x4c] sm:$0xf]
        %v2975 = vld [vmem:[%s2960 + $0x54] sm:$0xf]
        %v2976 = vld [vmem:[%s2960 + $0x58] sm:$0xf]
        %v2977 = vld [vmem:[%s2960 + $0x60] sm:$0xf]
        %v2978 = vld [vmem:[%s2960 + $0x64] sm:$0xf]
        %v2979 = vld [vmem:[%s2960 + $0x6c] sm:$0xf]
        %v2980 = vld [vmem:[%s2960 + $0x70] sm:$0xf]
        %v2981 = vld [vmem:[%s2960 + $0x78] sm:$0xf]
        %v2982 = vld [vmem:[%s2960 + $0x7c] sm:$0xf]
        %v2983 = vld [vmem:[%s2960 + $0x84] sm:$0xf]
        %v2984 = vld [vmem:[%s2960 + $0x88] sm:$0xf]
        %v2985 = vld [vmem:[%s2960 + $0x90] sm:$0xf]
        %v2986 = vld [vmem:[%s2960 + $0x94] sm:$0xf]
        %v2987 = vld [vmem:[%s2960 + $0x9c] sm:$0xf]
        %v2988 = vld [vmem:[%s2960 + $0xa0] sm:$0xf]
        %v2989 = vld [vmem:[%s2960 + $0xa8] sm:$0xf]
        %v2990 = vld [vmem:[%s2960 + $0xac] sm:$0xf]
        %v2991 = vld [vmem:[%s2960 + $0xb4] sm:$0xf]
        %v2992 = vld [vmem:[%s2960 + $0xb8] sm:$0xf]
        %v3025 = vunpack.c.l.b16 %v2961
        %v3026 = vunpack.c.l.b16 %v2962
        %v3027 = vunpack.c.l.b16 %v2963
        %v3028 = vunpack.c.l.b16 %v2964
        %v3029 = vunpack.c.l.b16 %v2965
        %v3030 = vunpack.c.l.b16 %v2966
        %v3031 = vunpack.c.l.b16 %v2967
        %v3032 = vunpack.c.l.b16 %v2968
        %v3033 = vunpack.c.l.b16 %v2969
        %v3034 = vunpack.c.l.b16 %v2970
        %v3035 = vunpack.c.l.b16 %v2971
        %v3036 = vunpack.c.l.b16 %v2972
        %v3037 = vunpack.c.l.b16 %v2973
        %v3038 = vunpack.c.l.b16 %v2974
        %v3039 = vunpack.c.l.b16 %v2975
        %v3040 = vunpack.c.l.b16 %v2976
        %v3041 = vunpack.c.l.b16 %v2977
        %v3042 = vunpack.c.l.b16 %v2978
        %v3043 = vunpack.c.l.b16 %v2979
        %v3044 = vunpack.c.l.b16 %v2980
        %v3045 = vunpack.c.l.b16 %v2981
        %v3046 = vunpack.c.l.b16 %v2982
        %v3047 = vunpack.c.l.b16 %v2983
        %v3048 = vunpack.c.l.b16 %v2984
        %v3049 = vunpack.c.l.b16 %v2985
        %v3050 = vunpack.c.l.b16 %v2986
        %v3051 = vunpack.c.l.b16 %v2987
        %v3052 = vunpack.c.l.b16 %v2988
        %v3053 = vunpack.c.l.b16 %v2989
        %v3054 = vunpack.c.l.b16 %v2990
        %v3055 = vunpack.c.l.b16 %v2991
        %v3056 = vunpack.c.l.b16 %v2992
        %v3057 = vpack.c.b16 %v3026, %v3025
        %v3058 = vpack.c.b16 %v3028, %v3027
        %v3059 = vpack.c.b16 %v3030, %v3029
        %v3060 = vpack.c.b16 %v3032, %v3031
        %v3061 = vpack.c.b16 %v3034, %v3033
        %v3062 = vpack.c.b16 %v3036, %v3035
        %v3063 = vpack.c.b16 %v3038, %v3037
        %v3064 = vpack.c.b16 %v3040, %v3039
        %v3065 = vpack.c.b16 %v3042, %v3041
        %v3066 = vpack.c.b16 %v3044, %v3043
        %v3067 = vpack.c.b16 %v3046, %v3045
        %v3068 = vpack.c.b16 %v3048, %v3047
        %v3069 = vpack.c.b16 %v3050, %v3049
        %v3070 = vpack.c.b16 %v3052, %v3051
        %v3071 = vpack.c.b16 %v3054, %v3053
        %v3072 = vpack.c.b16 %v3056, %v3055
        %3073 = vrot.lane.b32.xlu0 %v3057, 24
        %v3074 = vpop.permute.xlu0 %3073
        %3075 = vrot.lane.b32.xlu0 %v3058, 24
        %v3076 = vpop.permute.xlu0 %3075
        %3077 = vrot.lane.b32.xlu0 %v3059, 24
        %v3078 = vpop.permute.xlu0 %3077
        %3079 = vrot.lane.b32.xlu0 %v3060, 24
        %v3080 = vpop.permute.xlu0 %3079
        %3081 = vrot.lane.b32.xlu0 %v3061, 24
        %v3082 = vpop.permute.xlu0 %3081
        %3083 = vrot.lane.b32.xlu0 %v3062, 24
        %v3084 = vpop.permute.xlu0 %3083
        %3085 = vrot.lane.b32.xlu0 %v3063, 24
        %v3086 = vpop.permute.xlu0 %3085
        %3087 = vrot.lane.b32.xlu0 %v3064, 24
        %v3088 = vpop.permute.xlu0 %3087
        %3089 = vrot.lane.b32.xlu0 %v3065, 24
        %v3090 = vpop.permute.xlu0 %3089
        %3091 = vrot.lane.b32.xlu0 %v3066, 24
        %v3092 = vpop.permute.xlu0 %3091
        %3093 = vrot.lane.b32.xlu0 %v3067, 24
        %v3094 = vpop.permute.xlu0 %3093
        %3095 = vrot.lane.b32.xlu0 %v3068, 24
        %v3096 = vpop.permute.xlu0 %3095
        %3097 = vrot.lane.b32.xlu0 %v3069, 24
        %v3098 = vpop.permute.xlu0 %3097
        %3099 = vrot.lane.b32.xlu0 %v3070, 24
        %v3100 = vpop.permute.xlu0 %3099
        %3101 = vrot.lane.b32.xlu0 %v3071, 24
        %v3102 = vpop.permute.xlu0 %3101
        %3103 = vrot.lane.b32.xlu0 %v3072, 24
        %v3104 = vpop.permute.xlu0 %3103
        %vm3121 = vcmask 228544
        %3122 = vst.msk [vmem:[#allocation3] sm:$0xff] %vm3121, %v3074
        %3123 = vst.msk [vmem:[#allocation3 + $0x8] sm:$0xff] %vm3121, %v3076
        %3124 = vst.msk [vmem:[#allocation3 + $0x10] sm:$0xff] %vm3121, %v3078
        %3125 = vst.msk [vmem:[#allocation3 + $0x18] sm:$0xff] %vm3121, %v3080
        %3126 = vst.msk [vmem:[#allocation3 + $0x20] sm:$0xff] %vm3121, %v3082
        %3127 = vst.msk [vmem:[#allocation3 + $0x28] sm:$0xff] %vm3121, %v3084
        %3128 = vst.msk [vmem:[#allocation3 + $0x30] sm:$0xff] %vm3121, %v3086
        %3129 = vst.msk [vmem:[#allocation3 + $0x38] sm:$0xff] %vm3121, %v3088
        %3130 = vst.msk [vmem:[#allocation3 + $0x40] sm:$0xff] %vm3121, %v3090
        %3131 = vst.msk [vmem:[#allocation3 + $0x48] sm:$0xff] %vm3121, %v3092
        %3132 = vst.msk [vmem:[#allocation3 + $0x50] sm:$0xff] %vm3121, %v3094
        %3133 = vst.msk [vmem:[#allocation3 + $0x58] sm:$0xff] %vm3121, %v3096
        %3134 = vst.msk [vmem:[#allocation3 + $0x60] sm:$0xff] %vm3121, %v3098
        %3135 = vst.msk [vmem:[#allocation3 + $0x68] sm:$0xff] %vm3121, %v3100
        %3136 = vst.msk [vmem:[#allocation3 + $0x70] sm:$0xff] %vm3121, %v3102
        %3137 = vst.msk [vmem:[#allocation3 + $0x78] sm:$0xff] %vm3121, %v3104
        %v3138 = vld [vmem:[%s2960] sm:$0xf]
        %v3139 = vld [vmem:[%s2960 + $0x4] sm:$0xf]
        %v3140 = vld [vmem:[%s2960 + $0x8] sm:$0x1]
        %v3141 = vld [vmem:[%s2960 + $0xc] sm:$0xf]
        %v3142 = vld [vmem:[%s2960 + $0x10] sm:$0xf]
        %v3143 = vld [vmem:[%s2960 + $0x14] sm:$0x1]
        %v3144 = vld [vmem:[%s2960 + $0x18] sm:$0xf]
        %v3145 = vld [vmem:[%s2960 + $0x1c] sm:$0xf]
        %v3146 = vld [vmem:[%s2960 + $0x20] sm:$0x1]
        %v3147 = vld [vmem:[%s2960 + $0x24] sm:$0xf]
        %v3148 = vld [vmem:[%s2960 + $0x28] sm:$0xf]
        %v3149 = vld [vmem:[%s2960 + $0x2c] sm:$0x1]
        %v3150 = vld [vmem:[%s2960 + $0x30] sm:$0xf]
        %v3151 = vld [vmem:[%s2960 + $0x34] sm:$0xf]
        %v3152 = vld [vmem:[%s2960 + $0x38] sm:$0x1]
        %v3153 = vld [vmem:[%s2960 + $0x3c] sm:$0xf]
        %v3154 = vld [vmem:[%s2960 + $0x40] sm:$0xf]
        %v3155 = vld [vmem:[%s2960 + $0x44] sm:$0x1]
        %v3156 = vld [vmem:[%s2960 + $0x48] sm:$0xf]
        %v3157 = vld [vmem:[%s2960 + $0x4c] sm:$0xf]
        %v3158 = vld [vmem:[%s2960 + $0x50] sm:$0x1]
        %v3159 = vld [vmem:[%s2960 + $0x54] sm:$0xf]
        %v3160 = vld [vmem:[%s2960 + $0x58] sm:$0xf]
        %v3161 = vld [vmem:[%s2960 + $0x5c] sm:$0x1]
        %v3162 = vld [vmem:[%s2960 + $0x60] sm:$0xf]
        %v3163 = vld [vmem:[%s2960 + $0x64] sm:$0xf]
        %v3164 = vld [vmem:[%s2960 + $0x68] sm:$0x1]
        %v3165 = vld [vmem:[%s2960 + $0x6c] sm:$0xf]
        %v3166 = vld [vmem:[%s2960 + $0x70] sm:$0xf]
        %v3167 = vld [vmem:[%s2960 + $0x74] sm:$0x1]
        %v3168 = vld [vmem:[%s2960 + $0x78] sm:$0xf]
        %v3169 = vld [vmem:[%s2960 + $0x7c] sm:$0xf]
        %v3170 = vld [vmem:[%s2960 + $0x80] sm:$0x1]
        %v3171 = vld [vmem:[%s2960 + $0x84] sm:$0xf]
        %v3172 = vld [vmem:[%s2960 + $0x88] sm:$0xf]
        %v3173 = vld [vmem:[%s2960 + $0x8c] sm:$0x1]
        %v3174 = vld [vmem:[%s2960 + $0x90] sm:$0xf]
        %v3175 = vld [vmem:[%s2960 + $0x94] sm:$0xf]
        %v3176 = vld [vmem:[%s2960 + $0x98] sm:$0x1]
        %v3177 = vld [vmem:[%s2960 + $0x9c] sm:$0xf]
        %v3178 = vld [vmem:[%s2960 + $0xa0] sm:$0xf]
        %v3179 = vld [vmem:[%s2960 + $0xa4] sm:$0x1]
        %v3180 = vld [vmem:[%s2960 + $0xa8] sm:$0xf]
        %v3181 = vld [vmem:[%s2960 + $0xac] sm:$0xf]
        %v3182 = vld [vmem:[%s2960 + $0xb0] sm:$0x1]
        %v3183 = vld [vmem:[%s2960 + $0xb4] sm:$0xf]
        %v3184 = vld [vmem:[%s2960 + $0xb8] sm:$0xf]
        %v3185 = vld [vmem:[%s2960 + $0xbc] sm:$0x1]
        %v3187 = vshrl.u32 %v3138, 16
        %v3189 = vrot.slane %v3187, 4
        %v3190 = vshll.u32 %v3138, 16
        %v3192 = vrot.slane %v3190, 5
        %v3193 = vor.u32 %v3189, %v3192
        %v3194 = vrot.slane %v3193, 4
        %v3196 = vshll.u32 %v3139, 16
        %v3198 = vrot.slane %v3196, 5
        %v3199 = vsel %vm1095, %v3194, %v3198
        %v3200 = vshrl.u32 %v3139, 16
        %v3202 = vrot.slane %v3200, 4
        %v3203 = vor.u32 %v3202, %v3198
        %v3204 = vrot.slane %v3203, 4
        %v3206 = vshll.u32 %v3140, 16
        %v3208 = vrot.slane %v3206, 5
        %v3209 = vsel %vm1095, %v3204, %v3208
        %v3211 = vshrl.u32 %v3141, 16
        %v3213 = vrot.slane %v3211, 4
        %v3214 = vshll.u32 %v3141, 16
        %v3216 = vrot.slane %v3214, 5
        %v3217 = vor.u32 %v3213, %v3216
        %v3218 = vrot.slane %v3217, 4
        %v3220 = vshll.u32 %v3142, 16
        %v3222 = vrot.slane %v3220, 5
        %v3223 = vsel %vm1095, %v3218, %v3222
        %v3224 = vshrl.u32 %v3142, 16
        %v3226 = vrot.slane %v3224, 4
        %v3227 = vor.u32 %v3226, %v3222
        %v3228 = vrot.slane %v3227, 4
        %v3230 = vshll.u32 %v3143, 16
        %v3232 = vrot.slane %v3230, 5
        %v3233 = vsel %vm1095, %v3228, %v3232
        %v3235 = vshrl.u32 %v3144, 16
        %v3237 = vrot.slane %v3235, 4
        %v3238 = vshll.u32 %v3144, 16
        %v3240 = vrot.slane %v3238, 5
        %v3241 = vor.u32 %v3237, %v3240
        %v3242 = vrot.slane %v3241, 4
        %v3244 = vshll.u32 %v3145, 16
        %v3246 = vrot.slane %v3244, 5
        %v3247 = vsel %vm1095, %v3242, %v3246
        %v3248 = vshrl.u32 %v3145, 16
        %v3250 = vrot.slane %v3248, 4
        %v3251 = vor.u32 %v3250, %v3246
        %v3252 = vrot.slane %v3251, 4
        %v3254 = vshll.u32 %v3146, 16
        %v3256 = vrot.slane %v3254, 5
        %v3257 = vsel %vm1095, %v3252, %v3256
        %v3259 = vshrl.u32 %v3147, 16
        %v3261 = vrot.slane %v3259, 4
        %v3262 = vshll.u32 %v3147, 16
        %v3264 = vrot.slane %v3262, 5
        %v3265 = vor.u32 %v3261, %v3264
        %v3266 = vrot.slane %v3265, 4
        %v3268 = vshll.u32 %v3148, 16
        %v3270 = vrot.slane %v3268, 5
        %v3271 = vsel %vm1095, %v3266, %v3270
        %v3272 = vshrl.u32 %v3148, 16
        %v3274 = vrot.slane %v3272, 4
        %v3275 = vor.u32 %v3274, %v3270
        %v3276 = vrot.slane %v3275, 4
        %v3278 = vshll.u32 %v3149, 16
        %v3280 = vrot.slane %v3278, 5
        %v3281 = vsel %vm1095, %v3276, %v3280
        %v3283 = vshrl.u32 %v3150, 16
        %v3285 = vrot.slane %v3283, 4
        %v3286 = vshll.u32 %v3150, 16
        %v3288 = vrot.slane %v3286, 5
        %v3289 = vor.u32 %v3285, %v3288
        %v3290 = vrot.slane %v3289, 4
        %v3292 = vshll.u32 %v3151, 16
        %v3294 = vrot.slane %v3292, 5
        %v3295 = vsel %vm1095, %v3290, %v3294
        %v3296 = vshrl.u32 %v3151, 16
        %v3298 = vrot.slane %v3296, 4
        %v3299 = vor.u32 %v3298, %v3294
        %v3300 = vrot.slane %v3299, 4
        %v3302 = vshll.u32 %v3152, 16
        %v3304 = vrot.slane %v3302, 5
        %v3305 = vsel %vm1095, %v3300, %v3304
        %v3307 = vshrl.u32 %v3153, 16
        %v3309 = vrot.slane %v3307, 4
        %v3310 = vshll.u32 %v3153, 16
        %v3312 = vrot.slane %v3310, 5
        %v3313 = vor.u32 %v3309, %v3312
        %v3314 = vrot.slane %v3313, 4
        %v3316 = vshll.u32 %v3154, 16
        %v3318 = vrot.slane %v3316, 5
        %v3319 = vsel %vm1095, %v3314, %v3318
        %v3320 = vshrl.u32 %v3154, 16
        %v3322 = vrot.slane %v3320, 4
        %v3323 = vor.u32 %v3322, %v3318
        %v3324 = vrot.slane %v3323, 4
        %v3326 = vshll.u32 %v3155, 16
        %v3328 = vrot.slane %v3326, 5
        %v3329 = vsel %vm1095, %v3324, %v3328
        %v3331 = vshrl.u32 %v3156, 16
        %v3333 = vrot.slane %v3331, 4
        %v3334 = vshll.u32 %v3156, 16
        %v3336 = vrot.slane %v3334, 5
        %v3337 = vor.u32 %v3333, %v3336
        %v3338 = vrot.slane %v3337, 4
        %v3340 = vshll.u32 %v3157, 16
        %v3342 = vrot.slane %v3340, 5
        %v3343 = vsel %vm1095, %v3338, %v3342
        %v3344 = vshrl.u32 %v3157, 16
        %v3346 = vrot.slane %v3344, 4
        %v3347 = vor.u32 %v3346, %v3342
        %v3348 = vrot.slane %v3347, 4
        %v3350 = vshll.u32 %v3158, 16
        %v3352 = vrot.slane %v3350, 5
        %v3353 = vsel %vm1095, %v3348, %v3352
        %v3355 = vshrl.u32 %v3159, 16
        %v3357 = vrot.slane %v3355, 4
        %v3358 = vshll.u32 %v3159, 16
        %v3360 = vrot.slane %v3358, 5
        %v3361 = vor.u32 %v3357, %v3360
        %v3362 = vrot.slane %v3361, 4
        %v3364 = vshll.u32 %v3160, 16
        %v3366 = vrot.slane %v3364, 5
        %v3367 = vsel %vm1095, %v3362, %v3366
        %v3368 = vshrl.u32 %v3160, 16
        %v3370 = vrot.slane %v3368, 4
        %v3371 = vor.u32 %v3370, %v3366
        %v3372 = vrot.slane %v3371, 4
        %v3374 = vshll.u32 %v3161, 16
        %v3376 = vrot.slane %v3374, 5
        %v3377 = vsel %vm1095, %v3372, %v3376
        %v3379 = vshrl.u32 %v3162, 16
        %v3381 = vrot.slane %v3379, 4
        %v3382 = vshll.u32 %v3162, 16
        %v3384 = vrot.slane %v3382, 5
        %v3385 = vor.u32 %v3381, %v3384
        %v3386 = vrot.slane %v3385, 4
        %v3388 = vshll.u32 %v3163, 16
        %v3390 = vrot.slane %v3388, 5
        %v3391 = vsel %vm1095, %v3386, %v3390
        %v3392 = vshrl.u32 %v3163, 16
        %v3394 = vrot.slane %v3392, 4
        %v3395 = vor.u32 %v3394, %v3390
        %v3396 = vrot.slane %v3395, 4
        %v3398 = vshll.u32 %v3164, 16
        %v3400 = vrot.slane %v3398, 5
        %v3401 = vsel %vm1095, %v3396, %v3400
        %v3403 = vshrl.u32 %v3165, 16
        %v3405 = vrot.slane %v3403, 4
        %v3406 = vshll.u32 %v3165, 16
        %v3408 = vrot.slane %v3406, 5
        %v3409 = vor.u32 %v3405, %v3408
        %v3410 = vrot.slane %v3409, 4
        %v3412 = vshll.u32 %v3166, 16
        %v3414 = vrot.slane %v3412, 5
        %v3415 = vsel %vm1095, %v3410, %v3414
        %v3416 = vshrl.u32 %v3166, 16
        %v3418 = vrot.slane %v3416, 4
        %v3419 = vor.u32 %v3418, %v3414
        %v3420 = vrot.slane %v3419, 4
        %v3422 = vshll.u32 %v3167, 16
        %v3424 = vrot.slane %v3422, 5
        %v3425 = vsel %vm1095, %v3420, %v3424
        %v3427 = vshrl.u32 %v3168, 16
        %v3429 = vrot.slane %v3427, 4
        %v3430 = vshll.u32 %v3168, 16
        %v3432 = vrot.slane %v3430, 5
        %v3433 = vor.u32 %v3429, %v3432
        %v3434 = vrot.slane %v3433, 4
        %v3436 = vshll.u32 %v3169, 16
        %v3438 = vrot.slane %v3436, 5
        %v3439 = vsel %vm1095, %v3434, %v3438
        %v3440 = vshrl.u32 %v3169, 16
        %v3442 = vrot.slane %v3440, 4
        %v3443 = vor.u32 %v3442, %v3438
        %v3444 = vrot.slane %v3443, 4
        %v3446 = vshll.u32 %v3170, 16
        %v3448 = vrot.slane %v3446, 5
        %v3449 = vsel %vm1095, %v3444, %v3448
        %v3451 = vshrl.u32 %v3171, 16
        %v3453 = vrot.slane %v3451, 4
        %v3454 = vshll.u32 %v3171, 16
        %v3456 = vrot.slane %v3454, 5
        %v3457 = vor.u32 %v3453, %v3456
        %v3458 = vrot.slane %v3457, 4
        %v3460 = vshll.u32 %v3172, 16
        %v3462 = vrot.slane %v3460, 5
        %v3463 = vsel %vm1095, %v3458, %v3462
        %v3464 = vshrl.u32 %v3172, 16
        %v3466 = vrot.slane %v3464, 4
        %v3467 = vor.u32 %v3466, %v3462
        %v3468 = vrot.slane %v3467, 4
        %v3470 = vshll.u32 %v3173, 16
        %v3472 = vrot.slane %v3470, 5
        %v3473 = vsel %vm1095, %v3468, %v3472
        %v3475 = vshrl.u32 %v3174, 16
        %v3477 = vrot.slane %v3475, 4
        %v3478 = vshll.u32 %v3174, 16
        %v3480 = vrot.slane %v3478, 5
        %v3481 = vor.u32 %v3477, %v3480
        %v3482 = vrot.slane %v3481, 4
        %v3484 = vshll.u32 %v3175, 16
        %v3486 = vrot.slane %v3484, 5
        %v3487 = vsel %vm1095, %v3482, %v3486
        %v3488 = vshrl.u32 %v3175, 16
        %v3490 = vrot.slane %v3488, 4
        %v3491 = vor.u32 %v3490, %v3486
        %v3492 = vrot.slane %v3491, 4
        %v3494 = vshll.u32 %v3176, 16
        %v3496 = vrot.slane %v3494, 5
        %v3497 = vsel %vm1095, %v3492, %v3496
        %v3499 = vshrl.u32 %v3177, 16
        %v3501 = vrot.slane %v3499, 4
        %v3502 = vshll.u32 %v3177, 16
        %v3504 = vrot.slane %v3502, 5
        %v3505 = vor.u32 %v3501, %v3504
        %v3506 = vrot.slane %v3505, 4
        %v3508 = vshll.u32 %v3178, 16
        %v3510 = vrot.slane %v3508, 5
        %v3511 = vsel %vm1095, %v3506, %v3510
        %v3512 = vshrl.u32 %v3178, 16
        %v3514 = vrot.slane %v3512, 4
        %v3515 = vor.u32 %v3514, %v3510
        %v3516 = vrot.slane %v3515, 4
        %v3518 = vshll.u32 %v3179, 16
        %v3520 = vrot.slane %v3518, 5
        %v3521 = vsel %vm1095, %v3516, %v3520
        %v3523 = vshrl.u32 %v3180, 16
        %v3525 = vrot.slane %v3523, 4
        %v3526 = vshll.u32 %v3180, 16
        %v3528 = vrot.slane %v3526, 5
        %v3529 = vor.u32 %v3525, %v3528
        %v3530 = vrot.slane %v3529, 4
        %v3532 = vshll.u32 %v3181, 16
        %v3534 = vrot.slane %v3532, 5
        %v3535 = vsel %vm1095, %v3530, %v3534
        %v3536 = vshrl.u32 %v3181, 16
        %v3538 = vrot.slane %v3536, 4
        %v3539 = vor.u32 %v3538, %v3534
        %v3540 = vrot.slane %v3539, 4
        %v3542 = vshll.u32 %v3182, 16
        %v3544 = vrot.slane %v3542, 5
        %v3545 = vsel %vm1095, %v3540, %v3544
        %v3547 = vshrl.u32 %v3183, 16
        %v3549 = vrot.slane %v3547, 4
        %v3550 = vshll.u32 %v3183, 16
        %v3552 = vrot.slane %v3550, 5
        %v3553 = vor.u32 %v3549, %v3552
        %v3554 = vrot.slane %v3553, 4
        %v3556 = vshll.u32 %v3184, 16
        %v3558 = vrot.slane %v3556, 5
        %v3559 = vsel %vm1095, %v3554, %v3558
        %v3560 = vshrl.u32 %v3184, 16
        %v3562 = vrot.slane %v3560, 4
        %v3563 = vor.u32 %v3562, %v3558
        %v3564 = vrot.slane %v3563, 4
        %v3566 = vshll.u32 %v3185, 16
        %v3568 = vrot.slane %v3566, 5
        %v3569 = vsel %vm1095, %v3564, %v3568
        %v3570 = vunpack.c.l.b16 %v3199
        %v3571 = vunpack.c.l.b16 %v3209
        %v3572 = vunpack.c.l.b16 %v3223
        %v3573 = vunpack.c.l.b16 %v3233
        %v3574 = vunpack.c.l.b16 %v3247
        %v3575 = vunpack.c.l.b16 %v3257
        %v3576 = vunpack.c.l.b16 %v3271
        %v3577 = vunpack.c.l.b16 %v3281
        %v3578 = vunpack.c.l.b16 %v3295
        %v3579 = vunpack.c.l.b16 %v3305
        %v3580 = vunpack.c.l.b16 %v3319
        %v3581 = vunpack.c.l.b16 %v3329
        %v3582 = vunpack.c.l.b16 %v3343
        %v3583 = vunpack.c.l.b16 %v3353
        %v3584 = vunpack.c.l.b16 %v3367
        %v3585 = vunpack.c.l.b16 %v3377
        %v3586 = vunpack.c.l.b16 %v3391
        %v3587 = vunpack.c.l.b16 %v3401
        %v3588 = vunpack.c.l.b16 %v3415
        %v3589 = vunpack.c.l.b16 %v3425
        %v3590 = vunpack.c.l.b16 %v3439
        %v3591 = vunpack.c.l.b16 %v3449
        %v3592 = vunpack.c.l.b16 %v3463
        %v3593 = vunpack.c.l.b16 %v3473
        %v3594 = vunpack.c.l.b16 %v3487
        %v3595 = vunpack.c.l.b16 %v3497
        %v3596 = vunpack.c.l.b16 %v3511
        %v3597 = vunpack.c.l.b16 %v3521
        %v3598 = vunpack.c.l.b16 %v3535
        %v3599 = vunpack.c.l.b16 %v3545
        %v3600 = vunpack.c.l.b16 %v3559
        %v3601 = vunpack.c.l.b16 %v3569
        %v3602 = vpack.c.b16 %v3571, %v3570
        %v3603 = vpack.c.b16 %v3573, %v3572
        %v3604 = vpack.c.b16 %v3575, %v3574
        %v3605 = vpack.c.b16 %v3577, %v3576
        %v3606 = vpack.c.b16 %v3579, %v3578
        %v3607 = vpack.c.b16 %v3581, %v3580
        %v3608 = vpack.c.b16 %v3583, %v3582
        %v3609 = vpack.c.b16 %v3585, %v3584
        %v3610 = vpack.c.b16 %v3587, %v3586
        %v3611 = vpack.c.b16 %v3589, %v3588
        %v3612 = vpack.c.b16 %v3591, %v3590
        %v3613 = vpack.c.b16 %v3593, %v3592
        %v3614 = vpack.c.b16 %v3595, %v3594
        %v3615 = vpack.c.b16 %v3597, %v3596
        %v3616 = vpack.c.b16 %v3599, %v3598
        %v3617 = vpack.c.b16 %v3601, %v3600
        %3618 = vrot.lane.b32.xlu0 %v3602, 28
        %v3619 = vpop.permute.xlu0 %3618
        %3620 = vrot.lane.b32.xlu0 %v3603, 28
        %v3621 = vpop.permute.xlu0 %3620
        %3622 = vrot.lane.b32.xlu0 %v3604, 28
        %v3623 = vpop.permute.xlu0 %3622
        %3624 = vrot.lane.b32.xlu0 %v3605, 28
        %v3625 = vpop.permute.xlu0 %3624
        %3626 = vrot.lane.b32.xlu0 %v3606, 28
        %v3627 = vpop.permute.xlu0 %3626
        %3628 = vrot.lane.b32.xlu0 %v3607, 28
        %v3629 = vpop.permute.xlu0 %3628
        %3630 = vrot.lane.b32.xlu0 %v3608, 28
        %v3631 = vpop.permute.xlu0 %3630
        %3632 = vrot.lane.b32.xlu0 %v3609, 28
        %v3633 = vpop.permute.xlu0 %3632
        %3634 = vrot.lane.b32.xlu0 %v3610, 28
        %v3635 = vpop.permute.xlu0 %3634
        %3636 = vrot.lane.b32.xlu0 %v3611, 28
        %v3637 = vpop.permute.xlu0 %3636
        %3638 = vrot.lane.b32.xlu0 %v3612, 28
        %v3639 = vpop.permute.xlu0 %3638
        %3640 = vrot.lane.b32.xlu0 %v3613, 28
        %v3641 = vpop.permute.xlu0 %3640
        %3642 = vrot.lane.b32.xlu0 %v3614, 28
        %v3643 = vpop.permute.xlu0 %3642
        %3644 = vrot.lane.b32.xlu0 %v3615, 28
        %v3645 = vpop.permute.xlu0 %3644
        %3646 = vrot.lane.b32.xlu0 %v3616, 28
        %v3647 = vpop.permute.xlu0 %3646
        %3648 = vrot.lane.b32.xlu0 %v3617, 28
        %v3649 = vpop.permute.xlu0 %3648
        %vm3666 = vcmask 261344
        %3667 = vst.msk [vmem:[#allocation3] sm:$0xff] %vm3666, %v3619
        %3668 = vst.msk [vmem:[#allocation3 + $0x8] sm:$0xff] %vm3666, %v3621
        %3669 = vst.msk [vmem:[#allocation3 + $0x10] sm:$0xff] %vm3666, %v3623
        %3670 = vst.msk [vmem:[#allocation3 + $0x18] sm:$0xff] %vm3666, %v3625
        %3671 = vst.msk [vmem:[#allocation3 + $0x20] sm:$0xff] %vm3666, %v3627
        %3672 = vst.msk [vmem:[#allocation3 + $0x28] sm:$0xff] %vm3666, %v3629
        %3673 = vst.msk [vmem:[#allocation3 + $0x30] sm:$0xff] %vm3666, %v3631
        %3674 = vst.msk [vmem:[#allocation3 + $0x38] sm:$0xff] %vm3666, %v3633
        %3675 = vst.msk [vmem:[#allocation3 + $0x40] sm:$0xff] %vm3666, %v3635
        %3676 = vst.msk [vmem:[#allocation3 + $0x48] sm:$0xff] %vm3666, %v3637
        %3677 = vst.msk [vmem:[#allocation3 + $0x50] sm:$0xff] %vm3666, %v3639
        %3678 = vst.msk [vmem:[#allocation3 + $0x58] sm:$0xff] %vm3666, %v3641
        %3679 = vst.msk [vmem:[#allocation3 + $0x60] sm:$0xff] %vm3666, %v3643
        %3680 = vst.msk [vmem:[#allocation3 + $0x68] sm:$0xff] %vm3666, %v3645
        %3681 = vst.msk [vmem:[#allocation3 + $0x70] sm:$0xff] %vm3666, %v3647
        %3682 = vst.msk [vmem:[#allocation3 + $0x78] sm:$0xff] %vm3666, %v3649
        %v3683 = vld [vmem:[%s2960] sm:$0xe]
        %v3684 = vld [vmem:[%s2960 + $0x4] sm:$0xf]
        %v3685 = vld [vmem:[%s2960 + $0x8] sm:$0x1]
        %v3686 = vld [vmem:[%s2960 + $0xc] sm:$0xe]
        %v3687 = vld [vmem:[%s2960 + $0x10] sm:$0xf]
        %v3688 = vld [vmem:[%s2960 + $0x14] sm:$0x1]
        %v3689 = vld [vmem:[%s2960 + $0x18] sm:$0xe]
        %v3690 = vld [vmem:[%s2960 + $0x1c] sm:$0xf]
        %v3691 = vld [vmem:[%s2960 + $0x20] sm:$0x1]
        %v3692 = vld [vmem:[%s2960 + $0x24] sm:$0xe]
        %v3693 = vld [vmem:[%s2960 + $0x28] sm:$0xf]
        %v3694 = vld [vmem:[%s2960 + $0x2c] sm:$0x1]
        %v3695 = vld [vmem:[%s2960 + $0x30] sm:$0xe]
        %v3696 = vld [vmem:[%s2960 + $0x34] sm:$0xf]
        %v3697 = vld [vmem:[%s2960 + $0x38] sm:$0x1]
        %v3698 = vld [vmem:[%s2960 + $0x3c] sm:$0xe]
        %v3699 = vld [vmem:[%s2960 + $0x40] sm:$0xf]
        %v3700 = vld [vmem:[%s2960 + $0x44] sm:$0x1]
        %v3701 = vld [vmem:[%s2960 + $0x48] sm:$0xe]
        %v3702 = vld [vmem:[%s2960 + $0x4c] sm:$0xf]
        %v3703 = vld [vmem:[%s2960 + $0x50] sm:$0x1]
        %v3704 = vld [vmem:[%s2960 + $0x54] sm:$0xe]
        %v3705 = vld [vmem:[%s2960 + $0x58] sm:$0xf]
        %v3706 = vld [vmem:[%s2960 + $0x5c] sm:$0x1]
        %v3707 = vld [vmem:[%s2960 + $0x60] sm:$0xe]
        %v3708 = vld [vmem:[%s2960 + $0x64] sm:$0xf]
        %v3709 = vld [vmem:[%s2960 + $0x68] sm:$0x1]
        %v3710 = vld [vmem:[%s2960 + $0x6c] sm:$0xe]
        %v3711 = vld [vmem:[%s2960 + $0x70] sm:$0xf]
        %v3712 = vld [vmem:[%s2960 + $0x74] sm:$0x1]
        %v3713 = vld [vmem:[%s2960 + $0x78] sm:$0xe]
        %v3714 = vld [vmem:[%s2960 + $0x7c] sm:$0xf]
        %v3715 = vld [vmem:[%s2960 + $0x80] sm:$0x1]
        %v3716 = vld [vmem:[%s2960 + $0x84] sm:$0xe]
        %v3717 = vld [vmem:[%s2960 + $0x88] sm:$0xf]
        %v3718 = vld [vmem:[%s2960 + $0x8c] sm:$0x1]
        %v3719 = vld [vmem:[%s2960 + $0x90] sm:$0xe]
        %v3720 = vld [vmem:[%s2960 + $0x94] sm:$0xf]
        %v3721 = vld [vmem:[%s2960 + $0x98] sm:$0x1]
        %v3722 = vld [vmem:[%s2960 + $0x9c] sm:$0xe]
        %v3723 = vld [vmem:[%s2960 + $0xa0] sm:$0xf]
        %v3724 = vld [vmem:[%s2960 + $0xa4] sm:$0x1]
        %v3725 = vld [vmem:[%s2960 + $0xa8] sm:$0xe]
        %v3726 = vld [vmem:[%s2960 + $0xac] sm:$0xf]
        %v3727 = vld [vmem:[%s2960 + $0xb0] sm:$0x1]
        %v3728 = vld [vmem:[%s2960 + $0xb4] sm:$0xe]
        %v3729 = vld [vmem:[%s2960 + $0xb8] sm:$0xf]
        %v3730 = vld [vmem:[%s2960 + $0xbc] sm:$0x1]
        %v3779 = vrot.slane %v3683, 5
        %v3780 = vrot.slane %v3779, 4
        %v3781 = vrot.slane %v3684, 5
        %v3782 = vsel %vm1691, %v3780, %v3781
        %v3783 = vrot.slane %v3781, 4
        %v3784 = vrot.slane %v3685, 5
        %v3785 = vsel %vm1691, %v3783, %v3784
        %v3786 = vrot.slane %v3686, 5
        %v3787 = vrot.slane %v3786, 4
        %v3788 = vrot.slane %v3687, 5
        %v3789 = vsel %vm1691, %v3787, %v3788
        %v3790 = vrot.slane %v3788, 4
        %v3791 = vrot.slane %v3688, 5
        %v3792 = vsel %vm1691, %v3790, %v3791
        %v3793 = vrot.slane %v3689, 5
        %v3794 = vrot.slane %v3793, 4
        %v3795 = vrot.slane %v3690, 5
        %v3796 = vsel %vm1691, %v3794, %v3795
        %v3797 = vrot.slane %v3795, 4
        %v3798 = vrot.slane %v3691, 5
        %v3799 = vsel %vm1691, %v3797, %v3798
        %v3800 = vrot.slane %v3692, 5
        %v3801 = vrot.slane %v3800, 4
        %v3802 = vrot.slane %v3693, 5
        %v3803 = vsel %vm1691, %v3801, %v3802
        %v3804 = vrot.slane %v3802, 4
        %v3805 = vrot.slane %v3694, 5
        %v3806 = vsel %vm1691, %v3804, %v3805
        %v3807 = vrot.slane %v3695, 5
        %v3808 = vrot.slane %v3807, 4
        %v3809 = vrot.slane %v3696, 5
        %v3810 = vsel %vm1691, %v3808, %v3809
        %v3811 = vrot.slane %v3809, 4
        %v3812 = vrot.slane %v3697, 5
        %v3813 = vsel %vm1691, %v3811, %v3812
        %v3814 = vrot.slane %v3698, 5
        %v3815 = vrot.slane %v3814, 4
        %v3816 = vrot.slane %v3699, 5
        %v3817 = vsel %vm1691, %v3815, %v3816
        %v3818 = vrot.slane %v3816, 4
        %v3819 = vrot.slane %v3700, 5
        %v3820 = vsel %vm1691, %v3818, %v3819
        %v3821 = vrot.slane %v3701, 5
        %v3822 = vrot.slane %v3821, 4
        %v3823 = vrot.slane %v3702, 5
        %v3824 = vsel %vm1691, %v3822, %v3823
        %v3825 = vrot.slane %v3823, 4
        %v3826 = vrot.slane %v3703, 5
        %v3827 = vsel %vm1691, %v3825, %v3826
        %v3828 = vrot.slane %v3704, 5
        %v3829 = vrot.slane %v3828, 4
        %v3830 = vrot.slane %v3705, 5
        %v3831 = vsel %vm1691, %v3829, %v3830
        %v3832 = vrot.slane %v3830, 4
        %v3833 = vrot.slane %v3706, 5
        %v3834 = vsel %vm1691, %v3832, %v3833
        %v3835 = vrot.slane %v3707, 5
        %v3836 = vrot.slane %v3835, 4
        %v3837 = vrot.slane %v3708, 5
        %v3838 = vsel %vm1691, %v3836, %v3837
        %v3839 = vrot.slane %v3837, 4
        %v3840 = vrot.slane %v3709, 5
        %v3841 = vsel %vm1691, %v3839, %v3840
        %v3842 = vrot.slane %v3710, 5
        %v3843 = vrot.slane %v3842, 4
        %v3844 = vrot.slane %v3711, 5
        %v3845 = vsel %vm1691, %v3843, %v3844
        %v3846 = vrot.slane %v3844, 4
        %v3847 = vrot.slane %v3712, 5
        %v3848 = vsel %vm1691, %v3846, %v3847
        %v3849 = vrot.slane %v3713, 5
        %v3850 = vrot.slane %v3849, 4
        %v3851 = vrot.slane %v3714, 5
        %v3852 = vsel %vm1691, %v3850, %v3851
        %v3853 = vrot.slane %v3851, 4
        %v3854 = vrot.slane %v3715, 5
        %v3855 = vsel %vm1691, %v3853, %v3854
        %v3856 = vrot.slane %v3716, 5
        %v3857 = vrot.slane %v3856, 4
        %v3858 = vrot.slane %v3717, 5
        %v3859 = vsel %vm1691, %v3857, %v3858
        %v3860 = vrot.slane %v3858, 4
        %v3861 = vrot.slane %v3718, 5
        %v3862 = vsel %vm1691, %v3860, %v3861
        %v3863 = vrot.slane %v3719, 5
        %v3864 = vrot.slane %v3863, 4
        %v3865 = vrot.slane %v3720, 5
        %v3866 = vsel %vm1691, %v3864, %v3865
        %v3867 = vrot.slane %v3865, 4
        %v3868 = vrot.slane %v3721, 5
        %v3869 = vsel %vm1691, %v3867, %v3868
        %v3870 = vrot.slane %v3722, 5
        %v3871 = vrot.slane %v3870, 4
        %v3872 = vrot.slane %v3723, 5
        %v3873 = vsel %vm1691, %v3871, %v3872
        %v3874 = vrot.slane %v3872, 4
        %v3875 = vrot.slane %v3724, 5
        %v3876 = vsel %vm1691, %v3874, %v3875
        %v3877 = vrot.slane %v3725, 5
        %v3878 = vrot.slane %v3877, 4
        %v3879 = vrot.slane %v3726, 5
        %v3880 = vsel %vm1691, %v3878, %v3879
        %v3881 = vrot.slane %v3879, 4
        %v3882 = vrot.slane %v3727, 5
        %v3883 = vsel %vm1691, %v3881, %v3882
        %v3884 = vrot.slane %v3728, 5
        %v3885 = vrot.slane %v3884, 4
        %v3886 = vrot.slane %v3729, 5
        %v3887 = vsel %vm1691, %v3885, %v3886
        %v3888 = vrot.slane %v3886, 4
        %v3889 = vrot.slane %v3730, 5
        %v3890 = vsel %vm1691, %v3888, %v3889
        %v3891 = vunpack.c.l.b16 %v3782
        %v3892 = vunpack.c.l.b16 %v3785
        %v3893 = vunpack.c.l.b16 %v3789
        %v3894 = vunpack.c.l.b16 %v3792
        %v3895 = vunpack.c.l.b16 %v3796
        %v3896 = vunpack.c.l.b16 %v3799
        %v3897 = vunpack.c.l.b16 %v3803
        %v3898 = vunpack.c.l.b16 %v3806
        %v3899 = vunpack.c.l.b16 %v3810
        %v3900 = vunpack.c.l.b16 %v3813
        %v3901 = vunpack.c.l.b16 %v3817
        %v3902 = vunpack.c.l.b16 %v3820
        %v3903 = vunpack.c.l.b16 %v3824
        %v3904 = vunpack.c.l.b16 %v3827
        %v3905 = vunpack.c.l.b16 %v3831
        %v3906 = vunpack.c.l.b16 %v3834
        %v3907 = vunpack.c.l.b16 %v3838
        %v3908 = vunpack.c.l.b16 %v3841
        %v3909 = vunpack.c.l.b16 %v3845
        %v3910 = vunpack.c.l.b16 %v3848
        %v3911 = vunpack.c.l.b16 %v3852
        %v3912 = vunpack.c.l.b16 %v3855
        %v3913 = vunpack.c.l.b16 %v3859
        %v3914 = vunpack.c.l.b16 %v3862
        %v3915 = vunpack.c.l.b16 %v3866
        %v3916 = vunpack.c.l.b16 %v3869
        %v3917 = vunpack.c.l.b16 %v3873
        %v3918 = vunpack.c.l.b16 %v3876
        %v3919 = vunpack.c.l.b16 %v3880
        %v3920 = vunpack.c.l.b16 %v3883
        %v3921 = vunpack.c.l.b16 %v3887
        %v3922 = vunpack.c.l.b16 %v3890
        %v3923 = vpack.c.b16 %v3892, %v3891
        %v3924 = vpack.c.b16 %v3894, %v3893
        %v3925 = vpack.c.b16 %v3896, %v3895
        %v3926 = vpack.c.b16 %v3898, %v3897
        %v3927 = vpack.c.b16 %v3900, %v3899
        %v3928 = vpack.c.b16 %v3902, %v3901
        %v3929 = vpack.c.b16 %v3904, %v3903
        %v3930 = vpack.c.b16 %v3906, %v3905
        %v3931 = vpack.c.b16 %v3908, %v3907
        %v3932 = vpack.c.b16 %v3910, %v3909
        %v3933 = vpack.c.b16 %v3912, %v3911
        %v3934 = vpack.c.b16 %v3914, %v3913
        %v3935 = vpack.c.b16 %v3916, %v3915
        %v3936 = vpack.c.b16 %v3918, %v3917
        %v3937 = vpack.c.b16 %v3920, %v3919
        %v3938 = vpack.c.b16 %v3922, %v3921
        %3939 = vrot.lane.b32.xlu0 %v3923, 32
        %v3940 = vpop.permute.xlu0 %3939
        %3941 = vrot.lane.b32.xlu0 %v3924, 32
        %v3942 = vpop.permute.xlu0 %3941
        %3943 = vrot.lane.b32.xlu0 %v3925, 32
        %v3944 = vpop.permute.xlu0 %3943
        %3945 = vrot.lane.b32.xlu0 %v3926, 32
        %v3946 = vpop.permute.xlu0 %3945
        %3947 = vrot.lane.b32.xlu0 %v3927, 32
        %v3948 = vpop.permute.xlu0 %3947
        %3949 = vrot.lane.b32.xlu0 %v3928, 32
        %v3950 = vpop.permute.xlu0 %3949
        %3951 = vrot.lane.b32.xlu0 %v3929, 32
        %v3952 = vpop.permute.xlu0 %3951
        %3953 = vrot.lane.b32.xlu0 %v3930, 32
        %v3954 = vpop.permute.xlu0 %3953
        %3955 = vrot.lane.b32.xlu0 %v3931, 32
        %v3956 = vpop.permute.xlu0 %3955
        %3957 = vrot.lane.b32.xlu0 %v3932, 32
        %v3958 = vpop.permute.xlu0 %3957
        %3959 = vrot.lane.b32.xlu0 %v3933, 32
        %v3960 = vpop.permute.xlu0 %3959
        %3961 = vrot.lane.b32.xlu0 %v3934, 32
        %v3962 = vpop.permute.xlu0 %3961
        %3963 = vrot.lane.b32.xlu0 %v3935, 32
        %v3964 = vpop.permute.xlu0 %3963
        %3965 = vrot.lane.b32.xlu0 %v3936, 32
        %v3966 = vpop.permute.xlu0 %3965
        %3967 = vrot.lane.b32.xlu0 %v3937, 32
        %v3968 = vpop.permute.xlu0 %3967
        %3969 = vrot.lane.b32.xlu0 %v3938, 32
        %v3970 = vpop.permute.xlu0 %3969
        %vm3987 = vcmask 294144
        %3988 = vst.msk [vmem:[#allocation3] sm:$0xff] %vm3987, %v3940
        %3989 = vst.msk [vmem:[#allocation3 + $0x8] sm:$0xff] %vm3987, %v3942
        %3990 = vst.msk [vmem:[#allocation3 + $0x10] sm:$0xff] %vm3987, %v3944
        %3991 = vst.msk [vmem:[#allocation3 + $0x18] sm:$0xff] %vm3987, %v3946
        %3992 = vst.msk [vmem:[#allocation3 + $0x20] sm:$0xff] %vm3987, %v3948
        %3993 = vst.msk [vmem:[#allocation3 + $0x28] sm:$0xff] %vm3987, %v3950
        %3994 = vst.msk [vmem:[#allocation3 + $0x30] sm:$0xff] %vm3987, %v3952
        %3995 = vst.msk [vmem:[#allocation3 + $0x38] sm:$0xff] %vm3987, %v3954
        %3996 = vst.msk [vmem:[#allocation3 + $0x40] sm:$0xff] %vm3987, %v3956
        %3997 = vst.msk [vmem:[#allocation3 + $0x48] sm:$0xff] %vm3987, %v3958
        %3998 = vst.msk [vmem:[#allocation3 + $0x50] sm:$0xff] %vm3987, %v3960
        %3999 = vst.msk [vmem:[#allocation3 + $0x58] sm:$0xff] %vm3987, %v3962
        %4000 = vst.msk [vmem:[#allocation3 + $0x60] sm:$0xff] %vm3987, %v3964
        %4001 = vst.msk [vmem:[#allocation3 + $0x68] sm:$0xff] %vm3987, %v3966
        %4002 = vst.msk [vmem:[#allocation3 + $0x70] sm:$0xff] %vm3987, %v3968
        %4003 = vst.msk [vmem:[#allocation3 + $0x78] sm:$0xff] %vm3987, %v3970
        %v4004 = vld [vmem:[#allocation3] sm:$0xff]
        %v4005 = vld [vmem:[#allocation3 + $0x8] sm:$0xff]
        %v4006 = vld [vmem:[#allocation3 + $0x10] sm:$0xff]
        %v4007 = vld [vmem:[#allocation3 + $0x18] sm:$0xff]
        %v4008 = vld [vmem:[#allocation3 + $0x20] sm:$0xff]
        %v4009 = vld [vmem:[#allocation3 + $0x28] sm:$0xff]
        %v4010 = vld [vmem:[#allocation3 + $0x30] sm:$0xff]
        %v4011 = vld [vmem:[#allocation3 + $0x38] sm:$0xff]
        %v4012 = vld [vmem:[#allocation3 + $0x40] sm:$0xff]
        %v4013 = vld [vmem:[#allocation3 + $0x48] sm:$0xff]
        %v4014 = vld [vmem:[#allocation3 + $0x50] sm:$0xff]
        %v4015 = vld [vmem:[#allocation3 + $0x58] sm:$0xff]
        %v4016 = vld [vmem:[#allocation3 + $0x60] sm:$0xff]
        %v4017 = vld [vmem:[#allocation3 + $0x68] sm:$0xff]
        %v4018 = vld [vmem:[#allocation3 + $0x70] sm:$0xff]
        %v4019 = vld [vmem:[#allocation3 + $0x78] sm:$0xff]
        %v4020 = vld [vmem:[#allocation4] sm:$0xf]
        %v4021 = vld [vmem:[#allocation4 + $0x4] sm:$0xf]
        %v4022 = vld [vmem:[#allocation4 + $0x8] sm:$0xf]
        %v4023 = vld [vmem:[#allocation4 + $0xc] sm:$0xf]
        %v4024 = vld [vmem:[#allocation4 + $0x10] sm:$0xf]
        %v4025 = vld [vmem:[#allocation4 + $0x14] sm:$0xf]
        %v4026 = vld [vmem:[#allocation4 + $0x18] sm:$0xf]
        %v4027 = vld [vmem:[#allocation4 + $0x1c] sm:$0xf]
        %v4028 = vld [vmem:[#allocation4 + $0x20] sm:$0xf]
        %v4029 = vld [vmem:[#allocation4 + $0x24] sm:$0xf]
        %v4030 = vld [vmem:[#allocation4 + $0x28] sm:$0xf]
        %v4031 = vld [vmem:[#allocation4 + $0x2c] sm:$0xf]
        %v4032 = vld [vmem:[#allocation4 + $0x30] sm:$0xf]
        %v4033 = vld [vmem:[#allocation4 + $0x34] sm:$0xf]
        %v4034 = vld [vmem:[#allocation4 + $0x38] sm:$0xf]
        %v4035 = vld [vmem:[#allocation4 + $0x3c] sm:$0xf]
        %v4052 = vunpack.c.l.b16 %v4020
        %v4053 = vunpack.c.l.b16 %v4021
        %v4054 = vunpack.c.l.b16 %v4022
        %v4055 = vunpack.c.l.b16 %v4023
        %v4056 = vunpack.c.l.b16 %v4024
        %v4057 = vunpack.c.l.b16 %v4025
        %v4058 = vunpack.c.l.b16 %v4026
        %v4059 = vunpack.c.l.b16 %v4027
        %v4060 = vunpack.c.l.b16 %v4028
        %v4061 = vunpack.c.l.b16 %v4029
        %v4062 = vunpack.c.l.b16 %v4030
        %v4063 = vunpack.c.l.b16 %v4031
        %v4064 = vunpack.c.l.b16 %v4032
        %v4065 = vunpack.c.l.b16 %v4033
        %v4066 = vunpack.c.l.b16 %v4034
        %v4067 = vunpack.c.l.b16 %v4035
        %v4068 = vpack.c.b16 %v4053, %v4052
        %v4069 = vpack.c.b16 %v4055, %v4054
        %v4070 = vpack.c.b16 %v4057, %v4056
        %v4071 = vpack.c.b16 %v4059, %v4058
        %v4072 = vpack.c.b16 %v4061, %v4060
        %v4073 = vpack.c.b16 %v4063, %v4062
        %v4074 = vpack.c.b16 %v4065, %v4064
        %v4075 = vpack.c.b16 %v4067, %v4066
        %4084 = vmatprep.subr.bf16.mxu0 0
        %4085 = vmatpush1.bf16.msra.mxu0 %v4068
        %4086 = vmatprep.subr.bf16.mxu0 0
        %4087 = vmatpush1.bf16.msra.mxu0 %v4069
        %4088 = vmatprep.subr.bf16.mxu0 0
        %4089 = vmatpush1.bf16.msra.mxu0 %v4070
        %4090 = vmatprep.subr.bf16.mxu0 0
        %4091 = vmatpush1.bf16.msra.mxu0 %v4071
        %4092 = vmatprep.subr.bf16.mxu0 0
        %4093 = vmatpush1.bf16.msra.mxu0 %v4072
        %4094 = vmatprep.subr.bf16.mxu0 0
        %4095 = vmatpush1.bf16.msra.mxu0 %v4073
        %4096 = vmatprep.subr.bf16.mxu0 0
        %4097 = vmatpush1.bf16.msra.mxu0 %v4074
        %4098 = vmatprep.subr.bf16.mxu0 0
        %4099 = vmatpush1.bf16.msra.mxu0 %v4075
        %4100 = vmatprep.subr.bf16.mxu0 0
        %4101 = vmatpush1.bf16.msra.mxu0 0
        %4102 = vmatprep.subr.bf16.mxu0 0
        %4103 = vmatpush1.bf16.msra.mxu0 0
        %4104 = vmatprep.subr.bf16.mxu0 0
        %4105 = vmatpush1.bf16.msra.mxu0 0
        %4106 = vmatprep.subr.bf16.mxu0 0
        %4107 = vmatpush1.bf16.msra.mxu0 0
        %4108 = vmatprep.subr.bf16.mxu0 0
        %4109 = vmatpush1.bf16.msra.mxu0 0
        %4110 = vmatprep.subr.bf16.mxu0 0
        %4111 = vmatpush1.bf16.msra.mxu0 0
        %4112 = vmatprep.subr.bf16.mxu0 0
        %4113 = vmatpush1.bf16.msra.mxu0 0
        %4114 = vmatprep.subr.bf16.mxu0 0
        %4115 = vmatpush1.bf16.msra.mxu0 0
        %4116 = vmatprep.mubr.bf16.mxu0 0
        %4117 = vmatmul.mubr.bf16.gmra.mrb[0].mxu0 %v4004
        %v4118 = vpop.f32.mrb[0].mxu0
        %v4119 = vadd.f32 0.0, %v4118
        %v4120 = vpop.f32.mrb[0].mxu0
        %v4121 = vpop.f32.mrb[0].mxu0
        %v4122 = vadd.f32 0.0, %v4121
        %v4123 = vpop.f32.mrb[0].mxu0
        %4124 = vmatprep.mubr.bf16.mxu0 0
        %4125 = vmatmul.mubr.bf16.gmra.mrb[0].mxu0 %v4005
        %v4126 = vpop.f32.mrb[0].mxu0
        %v4127 = vadd.f32 0.0, %v4126
        %v4128 = vpop.f32.mrb[0].mxu0
        %v4129 = vpop.f32.mrb[0].mxu0
        %v4130 = vadd.f32 0.0, %v4129
        %v4131 = vpop.f32.mrb[0].mxu0
        %4132 = vmatprep.mubr.bf16.mxu0 0
        %4133 = vmatmul.mubr.bf16.gmra.mrb[0].mxu0 %v4006
        %v4134 = vpop.f32.mrb[0].mxu0
        %v4135 = vadd.f32 0.0, %v4134
        %v4136 = vpop.f32.mrb[0].mxu0
        %v4137 = vpop.f32.mrb[0].mxu0
        %v4138 = vadd.f32 0.0, %v4137
        %v4139 = vpop.f32.mrb[0].mxu0
        %4140 = vmatprep.mubr.bf16.mxu0 0
        %4141 = vmatmul.mubr.bf16.gmra.mrb[0].mxu0 %v4007
        %v4142 = vpop.f32.mrb[0].mxu0
        %v4143 = vadd.f32 0.0, %v4142
        %v4144 = vpop.f32.mrb[0].mxu0
        %v4145 = vpop.f32.mrb[0].mxu0
        %v4146 = vadd.f32 0.0, %v4145
        %v4147 = vpop.f32.mrb[0].mxu0
        %4148 = vmatprep.mubr.bf16.mxu0 0
        %4149 = vmatmul.mubr.bf16.gmra.mrb[0].mxu0 %v4008
        %v4150 = vpop.f32.mrb[0].mxu0
        %v4151 = vadd.f32 0.0, %v4150
        %v4152 = vpop.f32.mrb[0].mxu0
        %v4153 = vpop.f32.mrb[0].mxu0
        %v4154 = vadd.f32 0.0, %v4153
        %v4155 = vpop.f32.mrb[0].mxu0
        %4156 = vmatprep.mubr.bf16.mxu0 0
        %4157 = vmatmul.mubr.bf16.gmra.mrb[0].mxu0 %v4009
        %v4158 = vpop.f32.mrb[0].mxu0
        %v4159 = vadd.f32 0.0, %v4158
        %v4160 = vpop.f32.mrb[0].mxu0
        %v4161 = vpop.f32.mrb[0].mxu0
        %v4162 = vadd.f32 0.0, %v4161
        %v4163 = vpop.f32.mrb[0].mxu0
        %4164 = vmatprep.mubr.bf16.mxu0 0
        %4165 = vmatmul.mubr.bf16.gmra.mrb[0].mxu0 %v4010
        %v4166 = vpop.f32.mrb[0].mxu0
        %v4167 = vadd.f32 0.0, %v4166
        %v4168 = vpop.f32.mrb[0].mxu0
        %v4169 = vpop.f32.mrb[0].mxu0
        %v4170 = vadd.f32 0.0, %v4169
        %v4171 = vpop.f32.mrb[0].mxu0
        %4172 = vmatprep.mubr.bf16.mxu0 0
        %4173 = vmatmul.mubr.bf16.gmra.mrb[0].mxu0 %v4011
        %v4174 = vpop.f32.mrb[0].mxu0
        %v4175 = vadd.f32 0.0, %v4174
        %v4176 = vpop.f32.mrb[0].mxu0
        %v4177 = vpop.f32.mrb[0].mxu0
        %v4178 = vadd.f32 0.0, %v4177
        %v4179 = vpop.f32.mrb[0].mxu0
        %4180 = vmatprep.mubr.bf16.mxu0 0
        %4181 = vmatmul.mubr.bf16.gmra.mrb[0].mxu0 %v4012
        %v4182 = vpop.f32.mrb[0].mxu0
        %v4183 = vadd.f32 0.0, %v4182
        %v4184 = vpop.f32.mrb[0].mxu0
        %v4185 = vpop.f32.mrb[0].mxu0
        %v4186 = vadd.f32 0.0, %v4185
        %v4187 = vpop.f32.mrb[0].mxu0
        %4188 = vmatprep.mubr.bf16.mxu0 0
        %4189 = vmatmul.mubr.bf16.gmra.mrb[0].mxu0 %v4013
        %v4190 = vpop.f32.mrb[0].mxu0
        %v4191 = vadd.f32 0.0, %v4190
        %v4192 = vpop.f32.mrb[0].mxu0
        %v4193 = vpop.f32.mrb[0].mxu0
        %v4194 = vadd.f32 0.0, %v4193
        %v4195 = vpop.f32.mrb[0].mxu0
        %4196 = vmatprep.mubr.bf16.mxu0 0
        %4197 = vmatmul.mubr.bf16.gmra.mrb[0].mxu0 %v4014
        %v4198 = vpop.f32.mrb[0].mxu0
        %v4199 = vadd.f32 0.0, %v4198
        %v4200 = vpop.f32.mrb[0].mxu0
        %v4201 = vpop.f32.mrb[0].mxu0
        %v4202 = vadd.f32 0.0, %v4201
        %v4203 = vpop.f32.mrb[0].mxu0
        %4204 = vmatprep.mubr.bf16.mxu0 0
        %4205 = vmatmul.mubr.bf16.gmra.mrb[0].mxu0 %v4015
        %v4206 = vpop.f32.mrb[0].mxu0
        %v4207 = vadd.f32 0.0, %v4206
        %v4208 = vpop.f32.mrb[0].mxu0
        %v4209 = vpop.f32.mrb[0].mxu0
        %v4210 = vadd.f32 0.0, %v4209
        %v4211 = vpop.f32.mrb[0].mxu0
        %4212 = vmatprep.mubr.bf16.mxu0 0
        %4213 = vmatmul.mubr.bf16.gmra.mrb[0].mxu0 %v4016
        %v4214 = vpop.f32.mrb[0].mxu0
        %v4215 = vadd.f32 0.0, %v4214
        %v4216 = vpop.f32.mrb[0].mxu0
        %v4217 = vpop.f32.mrb[0].mxu0
        %v4218 = vadd.f32 0.0, %v4217
        %v4219 = vpop.f32.mrb[0].mxu0
        %4220 = vmatprep.mubr.bf16.mxu0 0
        %4221 = vmatmul.mubr.bf16.gmra.mrb[0].mxu0 %v4017
        %v4222 = vpop.f32.mrb[0].mxu0
        %v4223 = vadd.f32 0.0, %v4222
        %v4224 = vpop.f32.mrb[0].mxu0
        %v4225 = vpop.f32.mrb[0].mxu0
        %v4226 = vadd.f32 0.0, %v4225
        %v4227 = vpop.f32.mrb[0].mxu0
        %4228 = vmatprep.mubr.bf16.mxu0 0
        %4229 = vmatmul.mubr.bf16.gmra.mrb[0].mxu0 %v4018
        %v4230 = vpop.f32.mrb[0].mxu0
        %v4231 = vadd.f32 0.0, %v4230
        %v4232 = vpop.f32.mrb[0].mxu0
        %v4233 = vpop.f32.mrb[0].mxu0
        %v4234 = vadd.f32 0.0, %v4233
        %v4235 = vpop.f32.mrb[0].mxu0
        %4236 = vmatprep.mubr.bf16.mxu0 0
        %4237 = vmatmul.mubr.bf16.gmra.mrb[0].mxu0 %v4019
        %v4238 = vpop.f32.mrb[0].mxu0
        %v4239 = vadd.f32 0.0, %v4238
        %v4240 = vpop.f32.mrb[0].mxu0
        %v4241 = vpop.f32.mrb[0].mxu0
        %v4242 = vadd.f32 0.0, %v4241
        %v4243 = vpop.f32.mrb[0].mxu0
        %4244 = vdwg.mxu0
        %v4245 = vpack.c.bf16 %v4122, %v4119
        %v4246 = vpack.c.bf16 %v4130, %v4127
        %v4247 = vpack.c.bf16 %v4138, %v4135
        %v4248 = vpack.c.bf16 %v4146, %v4143
        %v4249 = vpack.c.bf16 %v4154, %v4151
        %v4250 = vpack.c.bf16 %v4162, %v4159
        %v4251 = vpack.c.bf16 %v4170, %v4167
        %v4252 = vpack.c.bf16 %v4178, %v4175
        %v4253 = vpack.c.bf16 %v4186, %v4183
        %v4254 = vpack.c.bf16 %v4194, %v4191
        %v4255 = vpack.c.bf16 %v4202, %v4199
        %v4256 = vpack.c.bf16 %v4210, %v4207
        %v4257 = vpack.c.bf16 %v4218, %v4215
        %v4258 = vpack.c.bf16 %v4226, %v4223
        %v4259 = vpack.c.bf16 %v4234, %v4231
        %v4260 = vpack.c.bf16 %v4242, %v4239
        %v4277 = vunpack.c.l.b16 %v4245
        %v4278 = vunpack.c.h.b16 %v4245
        %v4279 = vunpack.c.l.b16 %v4246
        %v4280 = vunpack.c.h.b16 %v4246
        %v4281 = vunpack.c.l.b16 %v4247
        %v4282 = vunpack.c.h.b16 %v4247
        %v4283 = vunpack.c.l.b16 %v4248
        %v4284 = vunpack.c.h.b16 %v4248
        %v4285 = vunpack.c.l.b16 %v4249
        %v4286 = vunpack.c.h.b16 %v4249
        %v4287 = vunpack.c.l.b16 %v4250
        %v4288 = vunpack.c.h.b16 %v4250
        %v4289 = vunpack.c.l.b16 %v4251
        %v4290 = vunpack.c.h.b16 %v4251
        %v4291 = vunpack.c.l.b16 %v4252
        %v4292 = vunpack.c.h.b16 %v4252
        %v4293 = vunpack.c.l.b16 %v4253
        %v4294 = vunpack.c.h.b16 %v4253
        %v4295 = vunpack.c.l.b16 %v4254
        %v4296 = vunpack.c.h.b16 %v4254
        %v4297 = vunpack.c.l.b16 %v4255
        %v4298 = vunpack.c.h.b16 %v4255
        %v4299 = vunpack.c.l.b16 %v4256
        %v4300 = vunpack.c.h.b16 %v4256
        %v4301 = vunpack.c.l.b16 %v4257
        %v4302 = vunpack.c.h.b16 %v4257
        %v4303 = vunpack.c.l.b16 %v4258
        %v4304 = vunpack.c.h.b16 %v4258
        %v4305 = vunpack.c.l.b16 %v4259
        %v4306 = vunpack.c.h.b16 %v4259
        %v4307 = vunpack.c.l.b16 %v4260
        %v4308 = vunpack.c.h.b16 %v4260
        %v4309 = vpack.c.b16 %v4277, %v4277
        %v4310 = vpack.c.b16 %v4278, %v4278
        %v4311 = vpack.c.b16 %v4279, %v4279
        %v4312 = vpack.c.b16 %v4280, %v4280
        %v4313 = vpack.c.b16 %v4281, %v4281
        %v4314 = vpack.c.b16 %v4282, %v4282
        %v4315 = vpack.c.b16 %v4283, %v4283
        %v4316 = vpack.c.b16 %v4284, %v4284
        %v4317 = vpack.c.b16 %v4285, %v4285
        %v4318 = vpack.c.b16 %v4286, %v4286
        %v4319 = vpack.c.b16 %v4287, %v4287
        %v4320 = vpack.c.b16 %v4288, %v4288
        %v4321 = vpack.c.b16 %v4289, %v4289
        %v4322 = vpack.c.b16 %v4290, %v4290
        %v4323 = vpack.c.b16 %v4291, %v4291
        %v4324 = vpack.c.b16 %v4292, %v4292
        %v4325 = vpack.c.b16 %v4293, %v4293
        %v4326 = vpack.c.b16 %v4294, %v4294
        %v4327 = vpack.c.b16 %v4295, %v4295
        %v4328 = vpack.c.b16 %v4296, %v4296
        %v4329 = vpack.c.b16 %v4297, %v4297
        %v4330 = vpack.c.b16 %v4298, %v4298
        %v4331 = vpack.c.b16 %v4299, %v4299
        %v4332 = vpack.c.b16 %v4300, %v4300
        %v4333 = vpack.c.b16 %v4301, %v4301
        %v4334 = vpack.c.b16 %v4302, %v4302
        %v4335 = vpack.c.b16 %v4303, %v4303
        %v4336 = vpack.c.b16 %v4304, %v4304
        %v4337 = vpack.c.b16 %v4305, %v4305
        %v4338 = vpack.c.b16 %v4306, %v4306
        %v4339 = vpack.c.b16 %v4307, %v4307
        %v4340 = vpack.c.b16 %v4308, %v4308
        %4373 = vst [vmem:[%s293] sm:$0xf] %v4309
        %4374 = vst [vmem:[%s293 + $0x4] sm:$0xf] %v4310
        %4375 = vst [vmem:[%s293 + $0x8] sm:$0xf] %v4311
        %4376 = vst [vmem:[%s293 + $0xc] sm:$0xf] %v4312
        %4377 = vst [vmem:[%s293 + $0x10] sm:$0xf] %v4313
        %4378 = vst [vmem:[%s293 + $0x14] sm:$0xf] %v4314
        %4379 = vst [vmem:[%s293 + $0x18] sm:$0xf] %v4315
        %4380 = vst [vmem:[%s293 + $0x1c] sm:$0xf] %v4316
        %4381 = vst [vmem:[%s293 + $0x20] sm:$0xf] %v4317
        %4382 = vst [vmem:[%s293 + $0x24] sm:$0xf] %v4318
        %4383 = vst [vmem:[%s293 + $0x28] sm:$0xf] %v4319
        %4384 = vst [vmem:[%s293 + $0x2c] sm:$0xf] %v4320
        %4385 = vst [vmem:[%s293 + $0x30] sm:$0xf] %v4321
        %4386 = vst [vmem:[%s293 + $0x34] sm:$0xf] %v4322
        %4387 = vst [vmem:[%s293 + $0x38] sm:$0xf] %v4323
        %4388 = vst [vmem:[%s293 + $0x3c] sm:$0xf] %v4324
        %4389 = vst [vmem:[%s293 + $0x40] sm:$0xf] %v4325
        %4390 = vst [vmem:[%s293 + $0x44] sm:$0xf] %v4326
        %4391 = vst [vmem:[%s293 + $0x48] sm:$0xf] %v4327
        %4392 = vst [vmem:[%s293 + $0x4c] sm:$0xf] %v4328
        %4393 = vst [vmem:[%s293 + $0x50] sm:$0xf] %v4329
        %4394 = vst [vmem:[%s293 + $0x54] sm:$0xf] %v4330
        %4395 = vst [vmem:[%s293 + $0x58] sm:$0xf] %v4331
        %4396 = vst [vmem:[%s293 + $0x5c] sm:$0xf] %v4332
        %4397 = vst [vmem:[%s293 + $0x60] sm:$0xf] %v4333
        %4398 = vst [vmem:[%s293 + $0x64] sm:$0xf] %v4334
        %4399 = vst [vmem:[%s293 + $0x68] sm:$0xf] %v4335
        %4400 = vst [vmem:[%s293 + $0x6c] sm:$0xf] %v4336
        %4401 = vst [vmem:[%s293 + $0x70] sm:$0xf] %v4337
        %4402 = vst [vmem:[%s293 + $0x74] sm:$0xf] %v4338
        %4403 = vst [vmem:[%s293 + $0x78] sm:$0xf] %v4339
        %4404 = vst [vmem:[%s293 + $0x7c] sm:$0xf] %v4340
        %v4405 = vadd.f32 %v4119, %v4122
        %v4406 = vadd.f32 %v4405, %v4127
        %v4407 = vadd.f32 %v4406, %v4130
        %v4408 = vadd.f32 %v4407, %v4135
        %v4409 = vadd.f32 %v4408, %v4138
        %v4410 = vadd.f32 %v4409, %v4143
        %v4411 = vadd.f32 %v4410, %v4146
        %v4412 = vadd.f32 %v4411, %v4151
        %v4413 = vadd.f32 %v4412, %v4154
        %v4414 = vadd.f32 %v4413, %v4159
        %v4415 = vadd.f32 %v4414, %v4162
        %v4416 = vadd.f32 %v4415, %v4167
        %v4417 = vadd.f32 %v4416, %v4170
        %v4418 = vadd.f32 %v4417, %v4175
        %v4419 = vadd.f32 %v4418, %v4178
        %v4420 = vadd.f32 %v4419, %v4183
        %v4421 = vadd.f32 %v4420, %v4186
        %v4422 = vadd.f32 %v4421, %v4191
        %v4423 = vadd.f32 %v4422, %v4194
        %v4424 = vadd.f32 %v4423, %v4199
        %v4425 = vadd.f32 %v4424, %v4202
        %v4426 = vadd.f32 %v4425, %v4207
        %v4427 = vadd.f32 %v4426, %v4210
        %v4428 = vadd.f32 %v4427, %v4215
        %v4429 = vadd.f32 %v4428, %v4218
        %v4430 = vadd.f32 %v4429, %v4223
        %v4431 = vadd.f32 %v4430, %v4226
        %v4432 = vadd.f32 %v4431, %v4231
        %v4433 = vadd.f32 %v4432, %v4234
        %v4434 = vadd.f32 %v4433, %v4239
        %v4435 = vadd.f32 %v4434, %v4242
        %v4436 = vrot.slane %v4435, 4
        %v4437 = vadd.f32 %v4435, %v4436
        %v4438 = vrot.slane %v4437, 2
        %v4439 = vadd.f32 %v4437, %v4438
        %v4440 = vrot.slane %v4439, 1
        %v4441 = vadd.f32 %v4439, %v4440
        %v4442 = vmul.f32 %v4119, %v4119
        %v4443 = vmul.f32 %v4122, %v4122
        %v4444 = vmul.f32 %v4127, %v4127
        %v4445 = vmul.f32 %v4130, %v4130
        %v4446 = vmul.f32 %v4135, %v4135
        %v4447 = vmul.f32 %v4138, %v4138
        %v4448 = vmul.f32 %v4143, %v4143
        %v4449 = vmul.f32 %v4146, %v4146
        %v4450 = vmul.f32 %v4151, %v4151
        %v4451 = vmul.f32 %v4154, %v4154
        %v4452 = vmul.f32 %v4159, %v4159
        %v4453 = vmul.f32 %v4162, %v4162
        %v4454 = vmul.f32 %v4167, %v4167
        %v4455 = vmul.f32 %v4170, %v4170
        %v4456 = vmul.f32 %v4175, %v4175
        %v4457 = vmul.f32 %v4178, %v4178
        %v4458 = vmul.f32 %v4183, %v4183
        %v4459 = vmul.f32 %v4186, %v4186
        %v4460 = vmul.f32 %v4191, %v4191
        %v4461 = vmul.f32 %v4194, %v4194
        %v4462 = vmul.f32 %v4199, %v4199
        %v4463 = vmul.f32 %v4202, %v4202
        %v4464 = vmul.f32 %v4207, %v4207
        %v4465 = vmul.f32 %v4210, %v4210
        %v4466 = vmul.f32 %v4215, %v4215
        %v4467 = vmul.f32 %v4218, %v4218
        %v4468 = vmul.f32 %v4223, %v4223
        %v4469 = vmul.f32 %v4226, %v4226
        %v4470 = vmul.f32 %v4231, %v4231
        %v4471 = vmul.f32 %v4234, %v4234
        %v4472 = vmul.f32 %v4239, %v4239
        %v4473 = vmul.f32 %v4242, %v4242
        %v4474 = vadd.f32 %v4442, %v4443
        %v4475 = vadd.f32 %v4474, %v4444
        %v4476 = vadd.f32 %v4475, %v4445
        %v4477 = vadd.f32 %v4476, %v4446
        %v4478 = vadd.f32 %v4477, %v4447
        %v4479 = vadd.f32 %v4478, %v4448
        %v4480 = vadd.f32 %v4479, %v4449
        %v4481 = vadd.f32 %v4480, %v4450
        %v4482 = vadd.f32 %v4481, %v4451
        %v4483 = vadd.f32 %v4482, %v4452
        %v4484 = vadd.f32 %v4483, %v4453
        %v4485 = vadd.f32 %v4484, %v4454
        %v4486 = vadd.f32 %v4485, %v4455
        %v4487 = vadd.f32 %v4486, %v4456
        %v4488 = vadd.f32 %v4487, %v4457
        %v4489 = vadd.f32 %v4488, %v4458
        %v4490 = vadd.f32 %v4489, %v4459
        %v4491 = vadd.f32 %v4490, %v4460
        %v4492 = vadd.f32 %v4491, %v4461
        %v4493 = vadd.f32 %v4492, %v4462
        %v4494 = vadd.f32 %v4493, %v4463
        %v4495 = vadd.f32 %v4494, %v4464
        %v4496 = vadd.f32 %v4495, %v4465
        %v4497 = vadd.f32 %v4496, %v4466
        %v4498 = vadd.f32 %v4497, %v4467
        %v4499 = vadd.f32 %v4498, %v4468
        %v4500 = vadd.f32 %v4499, %v4469
        %v4501 = vadd.f32 %v4500, %v4470
        %v4502 = vadd.f32 %v4501, %v4471
        %v4503 = vadd.f32 %v4502, %v4472
        %v4504 = vadd.f32 %v4503, %v4473
        %v4505 = vrot.slane %v4504, 4
        %v4506 = vadd.f32 %v4504, %v4505
        %v4507 = vrot.slane %v4506, 2
        %v4508 = vadd.f32 %v4506, %v4507
        %v4509 = vrot.slane %v4508, 1
        %v4510 = vadd.f32 %v4508, %v4509
        %vm4511 = vcmask 1040384
        %v4512 = vsel %vm4511, %v4441, %v4510
        %4513 = vst [vmem:[%s302] sm:$0x3] %v4512
        %v4514 = vld [vmem:[%s2] sm:$0xf]
        %v4515 = vld [vmem:[%s2 + $0x4] sm:$0xf]
        %v4516 = vld [vmem:[%s2 + $0x8] sm:$0xf]
        %v4517 = vld [vmem:[%s2 + $0xc] sm:$0xf]
        %v4518 = vld [vmem:[%s2 + $0x10] sm:$0xf]
        %v4519 = vld [vmem:[%s2 + $0x14] sm:$0xf]
        %v4520 = vld [vmem:[%s2 + $0x18] sm:$0xf]
        %v4521 = vld [vmem:[%s2 + $0x1c] sm:$0xf]
        %v4522 = vld [vmem:[%s2 + $0x20] sm:$0xf]
        %v4523 = vld [vmem:[%s2 + $0x24] sm:$0xf]
        %v4524 = vld [vmem:[%s2 + $0x28] sm:$0xf]
        %v4525 = vld [vmem:[%s2 + $0x2c] sm:$0xf]
        %v4526 = vld [vmem:[%s2 + $0x30] sm:$0xf]
        %v4527 = vld [vmem:[%s2 + $0x34] sm:$0xf]
        %v4528 = vld [vmem:[%s2 + $0x38] sm:$0xf]
        %v4529 = vld [vmem:[%s2 + $0x3c] sm:$0xf]
        %v4530 = vld [vmem:[#allocation6] sm:$0x1]
        %v4532 = vlaneseq
        %v4533 = vshrl.u32 %v4532, 7
        %v4534 = vsub.s32 0, %v4533
        %v4535 = vrot.slane %v4530, %v4534
        %v4553 = vunpack.c.l.b16 %v4514
        %v4554 = vunpack.c.l.b16 %v4515
        %v4555 = vunpack.c.l.b16 %v4516
        %v4556 = vunpack.c.l.b16 %v4517
        %v4557 = vunpack.c.l.b16 %v4518
        %v4558 = vunpack.c.l.b16 %v4519
        %v4559 = vunpack.c.l.b16 %v4520
        %v4560 = vunpack.c.l.b16 %v4521
        %v4561 = vunpack.c.l.b16 %v4522
        %v4562 = vunpack.c.l.b16 %v4523
        %v4563 = vunpack.c.l.b16 %v4524
        %v4564 = vunpack.c.l.b16 %v4525
        %v4565 = vunpack.c.l.b16 %v4526
        %v4566 = vunpack.c.l.b16 %v4527
        %v4567 = vunpack.c.l.b16 %v4528
        %v4568 = vunpack.c.l.b16 %v4529
        %v4569 = vpack.c.b16 %v4554, %v4553
        %v4570 = vpack.c.b16 %v4556, %v4555
        %v4571 = vpack.c.b16 %v4558, %v4557
        %v4572 = vpack.c.b16 %v4560, %v4559
        %v4573 = vpack.c.b16 %v4562, %v4561
        %v4574 = vpack.c.b16 %v4564, %v4563
        %v4575 = vpack.c.b16 %v4566, %v4565
        %v4576 = vpack.c.b16 %v4568, %v4567
        %4585 = vmatprep.subr.bf16.mxu0 0
        %4586 = vmatpush1.bf16.msra.mxu0 %v4569
        %4587 = vmatprep.subr.bf16.mxu0 0
        %4588 = vmatpush1.bf16.msra.mxu0 %v4570
        %4589 = vmatprep.subr.bf16.mxu0 0
        %4590 = vmatpush1.bf16.msra.mxu0 %v4571
        %4591 = vmatprep.subr.bf16.mxu0 0
        %4592 = vmatpush1.bf16.msra.mxu0 %v4572
        %4593 = vmatprep.subr.bf16.mxu0 0
        %4594 = vmatpush1.bf16.msra.mxu0 %v4573
        %4595 = vmatprep.subr.bf16.mxu0 0
        %4596 = vmatpush1.bf16.msra.mxu0 %v4574
        %4597 = vmatprep.subr.bf16.mxu0 0
        %4598 = vmatpush1.bf16.msra.mxu0 %v4575
        %4599 = vmatprep.subr.bf16.mxu0 0
        %4600 = vmatpush1.bf16.msra.mxu0 %v4576
        %4601 = vmatprep.subr.bf16.mxu0 0
        %4602 = vmatpush1.bf16.msra.mxu0 0
        %4603 = vmatprep.subr.bf16.mxu0 0
        %4604 = vmatpush1.bf16.msra.mxu0 0
        %4605 = vmatprep.subr.bf16.mxu0 0
        %4606 = vmatpush1.bf16.msra.mxu0 0
        %4607 = vmatprep.subr.bf16.mxu0 0
        %4608 = vmatpush1.bf16.msra.mxu0 0
        %4609 = vmatprep.subr.bf16.mxu0 0
        %4610 = vmatpush1.bf16.msra.mxu0 0
        %4611 = vmatprep.subr.bf16.mxu0 0
        %4612 = vmatpush1.bf16.msra.mxu0 0
        %4613 = vmatprep.subr.bf16.mxu0 0
        %4614 = vmatpush1.bf16.msra.mxu0 0
        %4615 = vmatprep.subr.bf16.mxu0 0
        %4616 = vmatpush1.bf16.msra.mxu0 0
        %4617 = vmatprep.mubr.bf16.mxu0 0
        %4618 = vmatmul.mubr.bf16.gmra.mrb[0].mxu0 %v4004
        %v4619 = vpop.f32.mrb[0].mxu0
        %v4620 = vadd.f32 %v4535, %v4619
        %v4621 = vpop.f32.mrb[0].mxu0
        %v4622 = vpop.f32.mrb[0].mxu0
        %v4623 = vadd.f32 %v4535, %v4622
        %v4624 = vpop.f32.mrb[0].mxu0
        %4625 = vmatprep.mubr.bf16.mxu0 0
        %4626 = vmatmul.mubr.bf16.gmra.mrb[0].mxu0 %v4005
        %v4627 = vpop.f32.mrb[0].mxu0
        %v4628 = vadd.f32 %v4535, %v4627
        %v4629 = vpop.f32.mrb[0].mxu0
        %v4630 = vpop.f32.mrb[0].mxu0
        %v4631 = vadd.f32 %v4535, %v4630
        %v4632 = vpop.f32.mrb[0].mxu0
        %4633 = vmatprep.mubr.bf16.mxu0 0
        %4634 = vmatmul.mubr.bf16.gmra.mrb[0].mxu0 %v4006
        %v4635 = vpop.f32.mrb[0].mxu0
        %v4636 = vadd.f32 %v4535, %v4635
        %v4637 = vpop.f32.mrb[0].mxu0
        %v4638 = vpop.f32.mrb[0].mxu0
        %v4639 = vadd.f32 %v4535, %v4638
        %v4640 = vpop.f32.mrb[0].mxu0
        %4641 = vmatprep.mubr.bf16.mxu0 0
        %4642 = vmatmul.mubr.bf16.gmra.mrb[0].mxu0 %v4007
        %v4643 = vpop.f32.mrb[0].mxu0
        %v4644 = vadd.f32 %v4535, %v4643
        %v4645 = vpop.f32.mrb[0].mxu0
        %v4646 = vpop.f32.mrb[0].mxu0
        %v4647 = vadd.f32 %v4535, %v4646
        %v4648 = vpop.f32.mrb[0].mxu0
        %4649 = vmatprep.mubr.bf16.mxu0 0
        %4650 = vmatmul.mubr.bf16.gmra.mrb[0].mxu0 %v4008
        %v4651 = vpop.f32.mrb[0].mxu0
        %v4652 = vadd.f32 %v4535, %v4651
        %v4653 = vpop.f32.mrb[0].mxu0
        %v4654 = vpop.f32.mrb[0].mxu0
        %v4655 = vadd.f32 %v4535, %v4654
        %v4656 = vpop.f32.mrb[0].mxu0
        %4657 = vmatprep.mubr.bf16.mxu0 0
        %4658 = vmatmul.mubr.bf16.gmra.mrb[0].mxu0 %v4009
        %v4659 = vpop.f32.mrb[0].mxu0
        %v4660 = vadd.f32 %v4535, %v4659
        %v4661 = vpop.f32.mrb[0].mxu0
        %v4662 = vpop.f32.mrb[0].mxu0
        %v4663 = vadd.f32 %v4535, %v4662
        %v4664 = vpop.f32.mrb[0].mxu0
        %4665 = vmatprep.mubr.bf16.mxu0 0
        %4666 = vmatmul.mubr.bf16.gmra.mrb[0].mxu0 %v4010
        %v4667 = vpop.f32.mrb[0].mxu0
        %v4668 = vadd.f32 %v4535, %v4667
        %v4669 = vpop.f32.mrb[0].mxu0
        %v4670 = vpop.f32.mrb[0].mxu0
        %v4671 = vadd.f32 %v4535, %v4670
        %v4672 = vpop.f32.mrb[0].mxu0
        %4673 = vmatprep.mubr.bf16.mxu0 0
        %4674 = vmatmul.mubr.bf16.gmra.mrb[0].mxu0 %v4011
        %v4675 = vpop.f32.mrb[0].mxu0
        %v4676 = vadd.f32 %v4535, %v4675
        %v4677 = vpop.f32.mrb[0].mxu0
        %v4678 = vpop.f32.mrb[0].mxu0
        %v4679 = vadd.f32 %v4535, %v4678
        %v4680 = vpop.f32.mrb[0].mxu0
        %4681 = vmatprep.mubr.bf16.mxu0 0
        %4682 = vmatmul.mubr.bf16.gmra.mrb[0].mxu0 %v4012
        %v4683 = vpop.f32.mrb[0].mxu0
        %v4684 = vadd.f32 %v4535, %v4683
        %v4685 = vpop.f32.mrb[0].mxu0
        %v4686 = vpop.f32.mrb[0].mxu0
        %v4687 = vadd.f32 %v4535, %v4686
        %v4688 = vpop.f32.mrb[0].mxu0
        %4689 = vmatprep.mubr.bf16.mxu0 0
        %4690 = vmatmul.mubr.bf16.gmra.mrb[0].mxu0 %v4013
        %v4691 = vpop.f32.mrb[0].mxu0
        %v4692 = vadd.f32 %v4535, %v4691
        %v4693 = vpop.f32.mrb[0].mxu0
        %v4694 = vpop.f32.mrb[0].mxu0
        %v4695 = vadd.f32 %v4535, %v4694
        %v4696 = vpop.f32.mrb[0].mxu0
        %4697 = vmatprep.mubr.bf16.mxu0 0
        %4698 = vmatmul.mubr.bf16.gmra.mrb[0].mxu0 %v4014
        %v4699 = vpop.f32.mrb[0].mxu0
        %v4700 = vadd.f32 %v4535, %v4699
        %v4701 = vpop.f32.mrb[0].mxu0
        %v4702 = vpop.f32.mrb[0].mxu0
        %v4703 = vadd.f32 %v4535, %v4702
        %v4704 = vpop.f32.mrb[0].mxu0
        %4705 = vmatprep.mubr.bf16.mxu0 0
        %4706 = vmatmul.mubr.bf16.gmra.mrb[0].mxu0 %v4015
        %v4707 = vpop.f32.mrb[0].mxu0
        %v4708 = vadd.f32 %v4535, %v4707
        %v4709 = vpop.f32.mrb[0].mxu0
        %v4710 = vpop.f32.mrb[0].mxu0
        %v4711 = vadd.f32 %v4535, %v4710
        %v4712 = vpop.f32.mrb[0].mxu0
        %4713 = vmatprep.mubr.bf16.mxu0 0
        %4714 = vmatmul.mubr.bf16.gmra.mrb[0].mxu0 %v4016
        %v4715 = vpop.f32.mrb[0].mxu0
        %v4716 = vadd.f32 %v4535, %v4715
        %v4717 = vpop.f32.mrb[0].mxu0
        %v4718 = vpop.f32.mrb[0].mxu0
        %v4719 = vadd.f32 %v4535, %v4718
        %v4720 = vpop.f32.mrb[0].mxu0
        %4721 = vmatprep.mubr.bf16.mxu0 0
        %4722 = vmatmul.mubr.bf16.gmra.mrb[0].mxu0 %v4017
        %v4723 = vpop.f32.mrb[0].mxu0
        %v4724 = vadd.f32 %v4535, %v4723
        %v4725 = vpop.f32.mrb[0].mxu0
        %v4726 = vpop.f32.mrb[0].mxu0
        %v4727 = vadd.f32 %v4535, %v4726
        %v4728 = vpop.f32.mrb[0].mxu0
        %4729 = vmatprep.mubr.bf16.mxu0 0
        %4730 = vmatmul.mubr.bf16.gmra.mrb[0].mxu0 %v4018
        %v4731 = vpop.f32.mrb[0].mxu0
        %v4732 = vadd.f32 %v4535, %v4731
        %v4733 = vpop.f32.mrb[0].mxu0
        %v4734 = vpop.f32.mrb[0].mxu0
        %v4735 = vadd.f32 %v4535, %v4734
        %v4736 = vpop.f32.mrb[0].mxu0
        %4737 = vmatprep.mubr.bf16.mxu0 0
        %4738 = vmatmul.mubr.bf16.gmra.mrb[0].mxu0 %v4019
        %v4739 = vpop.f32.mrb[0].mxu0
        %v4740 = vadd.f32 %v4535, %v4739
        %v4741 = vpop.f32.mrb[0].mxu0
        %v4742 = vpop.f32.mrb[0].mxu0
        %v4743 = vadd.f32 %v4535, %v4742
        %v4744 = vpop.f32.mrb[0].mxu0
        %4745 = vdwg.mxu0
        %v4746 = vpack.c.bf16 %v4623, %v4620
        %v4747 = vpack.c.bf16 %v4631, %v4628
        %v4748 = vpack.c.bf16 %v4639, %v4636
        %v4749 = vpack.c.bf16 %v4647, %v4644
        %v4750 = vpack.c.bf16 %v4655, %v4652
        %v4751 = vpack.c.bf16 %v4663, %v4660
        %v4752 = vpack.c.bf16 %v4671, %v4668
        %v4753 = vpack.c.bf16 %v4679, %v4676
        %v4754 = vpack.c.bf16 %v4687, %v4684
        %v4755 = vpack.c.bf16 %v4695, %v4692
        %v4756 = vpack.c.bf16 %v4703, %v4700
        %v4757 = vpack.c.bf16 %v4711, %v4708
        %v4758 = vpack.c.bf16 %v4719, %v4716
        %v4759 = vpack.c.bf16 %v4727, %v4724
        %v4760 = vpack.c.bf16 %v4735, %v4732
        %v4761 = vpack.c.bf16 %v4743, %v4740
        %v4778 = vunpack.c.l.b16 %v4746
        %v4779 = vunpack.c.h.b16 %v4746
        %v4780 = vunpack.c.l.b16 %v4747
        %v4781 = vunpack.c.h.b16 %v4747
        %v4782 = vunpack.c.l.b16 %v4748
        %v4783 = vunpack.c.h.b16 %v4748
        %v4784 = vunpack.c.l.b16 %v4749
        %v4785 = vunpack.c.h.b16 %v4749
        %v4786 = vunpack.c.l.b16 %v4750
        %v4787 = vunpack.c.h.b16 %v4750
        %v4788 = vunpack.c.l.b16 %v4751
        %v4789 = vunpack.c.h.b16 %v4751
        %v4790 = vunpack.c.l.b16 %v4752
        %v4791 = vunpack.c.h.b16 %v4752
        %v4792 = vunpack.c.l.b16 %v4753
        %v4793 = vunpack.c.h.b16 %v4753
        %v4794 = vunpack.c.l.b16 %v4754
        %v4795 = vunpack.c.h.b16 %v4754
        %v4796 = vunpack.c.l.b16 %v4755
        %v4797 = vunpack.c.h.b16 %v4755
        %v4798 = vunpack.c.l.b16 %v4756
        %v4799 = vunpack.c.h.b16 %v4756
        %v4800 = vunpack.c.l.b16 %v4757
        %v4801 = vunpack.c.h.b16 %v4757
        %v4802 = vunpack.c.l.b16 %v4758
        %v4803 = vunpack.c.h.b16 %v4758
        %v4804 = vunpack.c.l.b16 %v4759
        %v4805 = vunpack.c.h.b16 %v4759
        %v4806 = vunpack.c.l.b16 %v4760
        %v4807 = vunpack.c.h.b16 %v4760
        %v4808 = vunpack.c.l.b16 %v4761
        %v4809 = vunpack.c.h.b16 %v4761
        %v4810 = vpack.c.b16 %v4778, %v4778
        %v4811 = vpack.c.b16 %v4779, %v4779
        %v4812 = vpack.c.b16 %v4780, %v4780
        %v4813 = vpack.c.b16 %v4781, %v4781
        %v4814 = vpack.c.b16 %v4782, %v4782
        %v4815 = vpack.c.b16 %v4783, %v4783
        %v4816 = vpack.c.b16 %v4784, %v4784
        %v4817 = vpack.c.b16 %v4785, %v4785
        %v4818 = vpack.c.b16 %v4786, %v4786
        %v4819 = vpack.c.b16 %v4787, %v4787
        %v4820 = vpack.c.b16 %v4788, %v4788
        %v4821 = vpack.c.b16 %v4789, %v4789
        %v4822 = vpack.c.b16 %v4790, %v4790
        %v4823 = vpack.c.b16 %v4791, %v4791
        %v4824 = vpack.c.b16 %v4792, %v4792
        %v4825 = vpack.c.b16 %v4793, %v4793
        %v4826 = vpack.c.b16 %v4794, %v4794
        %v4827 = vpack.c.b16 %v4795, %v4795
        %v4828 = vpack.c.b16 %v4796, %v4796
        %v4829 = vpack.c.b16 %v4797, %v4797
        %v4830 = vpack.c.b16 %v4798, %v4798
        %v4831 = vpack.c.b16 %v4799, %v4799
        %v4832 = vpack.c.b16 %v4800, %v4800
        %v4833 = vpack.c.b16 %v4801, %v4801
        %v4834 = vpack.c.b16 %v4802, %v4802
        %v4835 = vpack.c.b16 %v4803, %v4803
        %v4836 = vpack.c.b16 %v4804, %v4804
        %v4837 = vpack.c.b16 %v4805, %v4805
        %v4838 = vpack.c.b16 %v4806, %v4806
        %v4839 = vpack.c.b16 %v4807, %v4807
        %v4840 = vpack.c.b16 %v4808, %v4808
        %v4841 = vpack.c.b16 %v4809, %v4809
        %4874 = vst [vmem:[%s298] sm:$0xf] %v4810
        %4875 = vst [vmem:[%s298 + $0x4] sm:$0xf] %v4811
        %4876 = vst [vmem:[%s298 + $0x8] sm:$0xf] %v4812
        %4877 = vst [vmem:[%s298 + $0xc] sm:$0xf] %v4813
        %4878 = vst [vmem:[%s298 + $0x10] sm:$0xf] %v4814
        %4879 = vst [vmem:[%s298 + $0x14] sm:$0xf] %v4815
        %4880 = vst [vmem:[%s298 + $0x18] sm:$0xf] %v4816
        %4881 = vst [vmem:[%s298 + $0x1c] sm:$0xf] %v4817
        %4882 = vst [vmem:[%s298 + $0x20] sm:$0xf] %v4818
        %4883 = vst [vmem:[%s298 + $0x24] sm:$0xf] %v4819
        %4884 = vst [vmem:[%s298 + $0x28] sm:$0xf] %v4820
        %4885 = vst [vmem:[%s298 + $0x2c] sm:$0xf] %v4821
        %4886 = vst [vmem:[%s298 + $0x30] sm:$0xf] %v4822
        %4887 = vst [vmem:[%s298 + $0x34] sm:$0xf] %v4823
        %4888 = vst [vmem:[%s298 + $0x38] sm:$0xf] %v4824
        %4889 = vst [vmem:[%s298 + $0x3c] sm:$0xf] %v4825
        %4890 = vst [vmem:[%s298 + $0x40] sm:$0xf] %v4826
        %4891 = vst [vmem:[%s298 + $0x44] sm:$0xf] %v4827
        %4892 = vst [vmem:[%s298 + $0x48] sm:$0xf] %v4828
        %4893 = vst [vmem:[%s298 + $0x4c] sm:$0xf] %v4829
        %4894 = vst [vmem:[%s298 + $0x50] sm:$0xf] %v4830
        %4895 = vst [vmem:[%s298 + $0x54] sm:$0xf] %v4831
        %4896 = vst [vmem:[%s298 + $0x58] sm:$0xf] %v4832
        %4897 = vst [vmem:[%s298 + $0x5c] sm:$0xf] %v4833
        %4898 = vst [vmem:[%s298 + $0x60] sm:$0xf] %v4834
        %4899 = vst [vmem:[%s298 + $0x64] sm:$0xf] %v4835
        %4900 = vst [vmem:[%s298 + $0x68] sm:$0xf] %v4836
        %4901 = vst [vmem:[%s298 + $0x6c] sm:$0xf] %v4837
        %4902 = vst [vmem:[%s298 + $0x70] sm:$0xf] %v4838
        %4903 = vst [vmem:[%s298 + $0x74] sm:$0xf] %v4839
        %4904 = vst [vmem:[%s298 + $0x78] sm:$0xf] %v4840
        %4905 = vst [vmem:[%s298 + $0x7c] sm:$0xf] %v4841
        %p4906 = scmp.lt.s32.totalorder %s20, 1
        %s4907 = scalar_select %p4906, %s20, 1
        %s4908 = smul.addr %s4907, 32
        %s4909 = smul.addr %s4908, 4
        %s4910 = scalar_lea.vmem %s4, %s4909
        %p4911 = scmp.lt.s32.totalorder %s20, 1
        %s4912 = scalar_select %p4911, %s20, 1
        %s4913 = smul.addr %s4912, 32
        %s4914 = smul.addr %s4913, 4
        %s4915 = scalar_lea.vmem %s5, %s4914
        %p4916 = scmp.lt.s32.totalorder %s20, 1
        %s4917 = scalar_select %p4916, %s20, 1
        %s4918 = smul.addr %s4917, 2
        %s4919 = scalar_lea.vmem %s6, %s4918
        // Predicated region
        $region45: #{residual_block_forward.3} parent=35 // pred_check
          %p4920 = pneg %p127
        $region46: #{residual_block_forward.3} parent=35 // pred_check_branch
          %4922 = sbr.rel (%p4920) target = $region48
        $region47: #{residual_block_forward.3} parent=35 // pred_region
          _
        $region48: #{residual_block_forward.3} parent=35 // pred_fallthru
          _
        // Predicated region
        $region49: #{residual_block_forward.3} parent=35 // pred_check
          %p4923 = pneg %p153
        $region50: #{residual_block_forward.3} parent=35 // pred_check_branch
          %4925 = sbr.rel (%p4923) target = $region52
        $region51: #{residual_block_forward.3} parent=35 // pred_region
          _
        $region52: #{residual_block_forward.3} parent=35 // pred_fallthru
          _
        // Predicated region
        $region53: #{residual_block_forward.3} parent=35 // pred_check
          %p4926 = pneg %p179
        $region54: #{residual_block_forward.3} parent=35 // pred_check_branch
          %4928 = sbr.rel (%p4926) target = $region56
        $region55: #{residual_block_forward.3} parent=35 // pred_region
          _
        $region56: #{residual_block_forward.3} parent=35 // pred_fallthru
          _
      $region36: #{residual_block_forward.3} parent=5 // pred_fallthru
        _
      %p4929 = scmp.le.s32.totalorder 2, %s15
      // Predicated region
      $region57: #{residual_block_forward.3} parent=5 // pred_check
        %p4930 = pneg %p4929
      $region58: #{residual_block_forward.3} parent=5 // pred_check_branch
        %4932 = sbr.rel (%p4930) target = $region60
      $region59: #{residual_block_forward.3} parent=5 // pred_region
        %s4933 = ssub.s32 %s15, 2
        // Predicated region
        $region61: #{residual_block_forward.3} parent=59 // pred_check
          %p4934 = pneg %p133
        $region62: #{residual_block_forward.3} parent=59 // pred_check_branch
          %4936 = sbr.rel (%p4934) target = $region64
        $region63: #{residual_block_forward.3} parent=59 // pred_region
          %p4937 = scmp.lt.s32.totalorder %s21, 1
          %s4938 = scalar_select %p4937, %s21, 1
          %s4939 = smul.addr %s4938, 32
          %s4940 = smul.addr %s4939, 4
          %s4941 = scalar_lea.vmem %s4, %s4940
        $region64: #{residual_block_forward.3} parent=59 // pred_fallthru
          _
        // Predicated region
        $region65: #{residual_block_forward.3} parent=59 // pred_check
          %p4942 = pneg %p159
        $region66: #{residual_block_forward.3} parent=59 // pred_check_branch
          %4944 = sbr.rel (%p4942) target = $region68
        $region67: #{residual_block_forward.3} parent=59 // pred_region
          %p4945 = scmp.lt.s32.totalorder %s21, 1
          %s4946 = scalar_select %p4945, %s21, 1
          %s4947 = smul.addr %s4946, 32
          %s4948 = smul.addr %s4947, 4
          %s4949 = scalar_lea.vmem %s5, %s4948
        $region68: #{residual_block_forward.3} parent=59 // pred_fallthru
          _
        // Predicated region
        $region69: #{residual_block_forward.3} parent=59 // pred_check
          %p4950 = pneg %p185
        $region70: #{residual_block_forward.3} parent=59 // pred_check_branch
          %4952 = sbr.rel (%p4950) target = $region72
        $region71: #{residual_block_forward.3} parent=59 // pred_region
          %p4953 = scmp.lt.s32.totalorder %s21, 1
          %s4954 = scalar_select %p4953, %s21, 1
          %s4955 = smul.addr %s4954, 2
          %s4956 = scalar_lea.vmem %s6, %s4955
        $region72: #{residual_block_forward.3} parent=59 // pred_fallthru
          _
      $region60: #{residual_block_forward.3} parent=5 // pred_fallthru
        _
    $region6: #{residual_block_forward.3} parent=1 // loop_footer
      %s19 = sadd.s32 1, %s15
    $region7: #{residual_block_forward.3} parent=1 // loop_footer_branch
      %14 = sbr.rel target = $region3
    $region8: #{residual_block_forward.3} parent=1 // loop_exit
      _
    %4957 = vsyncpa [#allocation5], 1
    %s4958 = scalar_lea.sflag [#allocation5], 1
    %4959 = vsyncpa %s4958, 1
    %4960 = vsyncpa [#allocation7], 1

// kernel: residual_block_forward.4
$region0: #{residual_block_forward.4}
  #allocation0 [shape = 'u32[]', space=smem, size = 0x4, offset = 0x4, fixed_abs, tag = 'smem constant byte address 0x4 - core index']
  #allocation1 [shape = 'u32[144,128]{1,0:T(1,128)}', space=vmem, size = 0x12000, scoped, tag = 'internal scratch']
  #allocation2 [shape = 'bf16[18,18,128]{2,1,0:T(8,128)(2,1)}', space=vmem, size = 0x1b000, scoped, tag = 'scratch operand']
  #allocation3 [shape = 'bf16[256,1152]{1,0:T(16,128)(2,1)}', space=vmem, size = 0x90000, scoped, tag = 'scratch operand']
  %s0 = inlined_call_operand.vmem [shape: bf16[2,16,16,128], index: 0, kind: input, shape index: {}]
  %s1 = inlined_call_operand.vmem [shape: f32[1,128], index: 1, kind: input, shape index: {}]
  %s2 = inlined_call_operand.vmem [shape: f32[1,128], index: 2, kind: input, shape index: {}]
  %s3 = inlined_call_operand.vmem [shape: bf16[1152,128], index: 3, kind: input, shape index: {}]
  %s4 = inlined_call_operand.vmem [shape: bf16[2,16,16,128], index: 4, kind: output, shape index: {0}]
  %s5 = inlined_call_operand.vmem [shape: f32[2,2,128], index: 5, kind: output, shape index: {1}]
  %6 = xla_tuple %s4, %s5
  %s7 = sld [smem:[#allocation0]]
  $region57: #{residual_block_forward.4} parent=0
    _
  %s9 = ssub.s32 1, %s7
  %s10 = scalar_select 0, %s9, %s7
  loop: start=0, step=1, limit=4
  $region2: #{residual_block_forward.4} parent=0 // loop_pre_header
    _
  $region3: #{residual_block_forward.4} parent=0 // loop_header
    %s12 = sphi 0, %s16
    %p13 = scmp.ge.s32.totalorder %s12, 4
    %s22 = sphi 0, %s24
    %s25 = sphi 0, %s22
    %s26 = sphi 0, %s25
    %s42 = sphi 0, %s26
    %s46 = sphi 0, %s46
    %s48 = sphi 0, %s46
    %s49 = sphi 0, %s48
    %s63 = sphi 0, %s49
    %s67 = sphi 0, %s67
    %s69 = sphi 0, %s67
    %s70 = sphi 0, %s69
    %s84 = sphi 0, %s70
    %s88 = sphi 0, %s88
    %s90 = sphi 0, %s88
    %s91 = sphi 0, %s90
    %s105 = sphi 0, %s91
    %s111 = sphi 0, %s113
    %s114 = sphi 0, %s111
    %s115 = sphi 0, %s114
    %s131 = sphi 0, %s115
    %s137 = sphi 0, %s139
    %s140 = sphi 0, %s137
    %s141 = sphi 0, %s140
    %s157 = sphi 0, %s141
  $region4: #{residual_block_forward.4} parent=0 // loop_header_branch
    %15 = sbr.rel (%p13) target = $region8
  $region5: #{residual_block_forward.4} parent=0 // loop_body
    %s17 = ssub.s32 %s12, 1
    %s18 = ssub.s32 %s12, 2
    %s19 = sadd.s32 %s12, 1
    %s20 = ssub.s32 %s12, %s19
    %p21 = scmp.eq.s32.totalorder %s20, 0
    %s23 = sadd.s32 %s22, 1
    %s24 = scalar_select %p21, %s22, %s23
    %p27 = pneg %p21
    %p28 = scmp.eq.s32.totalorder %s12, 1
    %p29 = por %p27, %p28
    %p30 = scmp.ne.s32.totalorder %s22, %s25
    %p31 = scmp.eq.s32.totalorder %s12, 0
    %p32 = por %p30, %p31
    %p33 = scmp.ne.s32.totalorder %s22, %s25
    %p34 = scmp.eq.s32.totalorder %s17, 1
    %p35 = por %p33, %p34
    %p36 = scmp.ne.s32.totalorder %s25, %s26
    %p37 = scmp.eq.s32.totalorder %s17, 0
    %p38 = por %p36, %p37
    %p39 = scmp.ne.s32.totalorder %s25, %s26
    %p40 = scmp.eq.s32.totalorder %s18, 1
    %p41 = por %p39, %p40
    %p43 = scmp.ne.s32.totalorder %s26, %s42
    %p44 = scmp.eq.s32.totalorder %s18, 0
    %p45 = por %p43, %p44
    %s47 = sadd.s32 %s46, 1
    %p50 = scmp.eq.s32.totalorder %s12, 1
    %p51 = scmp.ne.s32.totalorder %s46, %s48
    %p52 = scmp.eq.s32.totalorder %s12, 0
    %p53 = por %p51, %p52
    %p54 = scmp.ne.s32.totalorder %s46, %s48
    %p55 = scmp.eq.s32.totalorder %s17, 1
    %p56 = por %p54, %p55
    %p57 = scmp.ne.s32.totalorder %s48, %s49
    %p58 = scmp.eq.s32.totalorder %s17, 0
    %p59 = por %p57, %p58
    %p60 = scmp.ne.s32.totalorder %s48, %s49
    %p61 = scmp.eq.s32.totalorder %s18, 1
    %p62 = por %p60, %p61
    %p64 = scmp.ne.s32.totalorder %s49, %s63
    %p65 = scmp.eq.s32.totalorder %s18, 0
    %p66 = por %p64, %p65
    %s68 = sadd.s32 %s67, 1
    %p71 = scmp.eq.s32.totalorder %s12, 1
    %p72 = scmp.ne.s32.totalorder %s67, %s69
    %p73 = scmp.eq.s32.totalorder %s12, 0
    %p74 = por %p72, %p73
    %p75 = scmp.ne.s32.totalorder %s67, %s69
    %p76 = scmp.eq.s32.totalorder %s17, 1
    %p77 = por %p75, %p76
    %p78 = scmp.ne.s32.totalorder %s69, %s70
    %p79 = scmp.eq.s32.totalorder %s17, 0
    %p80 = por %p78, %p79
    %p81 = scmp.ne.s32.totalorder %s69, %s70
    %p82 = scmp.eq.s32.totalorder %s18, 1
    %p83 = por %p81, %p82
    %p85 = scmp.ne.s32.totalorder %s70, %s84
    %p86 = scmp.eq.s32.totalorder %s18, 0
    %p87 = por %p85, %p86
    %s89 = sadd.s32 %s88, 1
    %p92 = scmp.eq.s32.totalorder %s12, 1
    %p93 = scmp.ne.s32.totalorder %s88, %s90
    %p94 = scmp.eq.s32.totalorder %s12, 0
    %p95 = por %p93, %p94
    %p96 = scmp.ne.s32.totalorder %s88, %s90
    %p97 = scmp.eq.s32.totalorder %s17, 1
    %p98 = por %p96, %p97
    %p99 = scmp.ne.s32.totalorder %s90, %s91
    %p100 = scmp.eq.s32.totalorder %s17, 0
    %p101 = por %p99, %p100
    %p102 = scmp.ne.s32.totalorder %s90, %s91
    %p103 = scmp.eq.s32.totalorder %s18, 1
    %p104 = por %p102, %p103
    %p106 = scmp.ne.s32.totalorder %s91, %s105
    %p107 = scmp.eq.s32.totalorder %s18, 0
    %p108 = por %p106, %p107
    %s109 = ssub.s32 %s12, %s19
    %p110 = scmp.eq.s32.totalorder %s109, 0
    %s112 = sadd.s32 %s111, 1
    %s113 = scalar_select %p110, %s111, %s112
    %p116 = pneg %p110
    %p117 = scmp.eq.s32.totalorder %s12, 1
    %p118 = por %p116, %p117
    %p119 = scmp.ne.s32.totalorder %s111, %s114
    %p120 = scmp.eq.s32.totalorder %s12, 0
    %p121 = por %p119, %p120
    %p122 = scmp.ne.s32.totalorder %s111, %s114
    %p123 = scmp.eq.s32.totalorder %s17, 1
    %p124 = por %p122, %p123
    %p125 = scmp.ne.s32.totalorder %s114, %s115
    %p126 = scmp.eq.s32.totalorder %s17, 0
    %p127 = por %p125, %p126
    %p128 = scmp.ne.s32.totalorder %s114, %s115
    %p129 = scmp.eq.s32.totalorder %s18, 1
    %p130 = por %p128, %p129
    %p132 = scmp.ne.s32.totalorder %s115, %s131
    %p133 = scmp.eq.s32.totalorder %s18, 0
    %p134 = por %p132, %p133
    %s135 = ssub.s32 %s12, %s19
    %p136 = scmp.eq.s32.totalorder %s135, 0
    %s138 = sadd.s32 %s137, 1
    %s139 = scalar_select %p136, %s137, %s138
    %p142 = pneg %p136
    %p143 = scmp.eq.s32.totalorder %s12, 1
    %p144 = por %p142, %p143
    %p145 = scmp.ne.s32.totalorder %s137, %s140
    %p146 = scmp.eq.s32.totalorder %s12, 0
    %p147 = por %p145, %p146
    %p148 = scmp.ne.s32.totalorder %s137, %s140
    %p149 = scmp.eq.s32.totalorder %s17, 1
    %p150 = por %p148, %p149
    %p151 = scmp.ne.s32.totalorder %s140, %s141
    %p152 = scmp.eq.s32.totalorder %s17, 0
    %p153 = por %p151, %p152
    %p154 = scmp.ne.s32.totalorder %s140, %s141
    %p155 = scmp.eq.s32.totalorder %s18, 1
    %p156 = por %p154, %p155
    %p158 = scmp.ne.s32.totalorder %s141, %s157
    %p159 = scmp.eq.s32.totalorder %s18, 0
    %p160 = por %p158, %p159
    %p161 = scmp.le.s32.totalorder 1, %s12
    %p162 = scmp.lt.s32.totalorder %s12, 3
    %p163 = pnand %p161, %p162
    %p164 = pneg %p163
    // Predicated region
    $region9: #{residual_block_forward.4} parent=5 // pred_check
      _
    $region10: #{residual_block_forward.4} parent=5 // pred_check_branch
      %166 = sbr.rel (%p163) target = $region12
    $region11: #{residual_block_forward.4} parent=5 // pred_region
      %s167 = ssub.s32 %s12, 1
      // Predicated region
      $region13: #{residual_block_forward.4} parent=11 // pred_check
        %p168 = pneg %p59
      $region14: #{residual_block_forward.4} parent=11 // pred_check_branch
        %170 = sbr.rel (%p168) target = $region16
      $region15: #{residual_block_forward.4} parent=11 // pred_region
        _
      $region16: #{residual_block_forward.4} parent=11 // pred_fallthru
        _
      // Predicated region
      $region17: #{residual_block_forward.4} parent=11 // pred_check
        %p171 = pneg %p80
      $region18: #{residual_block_forward.4} parent=11 // pred_check_branch
        %173 = sbr.rel (%p171) target = $region20
      $region19: #{residual_block_forward.4} parent=11 // pred_region
        _
      $region20: #{residual_block_forward.4} parent=11 // pred_fallthru
        _
      // Predicated region
      $region21: #{residual_block_forward.4} parent=11 // pred_check
        %p174 = pneg %p101
      $region22: #{residual_block_forward.4} parent=11 // pred_check_branch
        %176 = sbr.rel (%p174) target = $region24
      $region23: #{residual_block_forward.4} parent=11 // pred_region
        _
      $region24: #{residual_block_forward.4} parent=11 // pred_fallthru
        _
    $region12: #{residual_block_forward.4} parent=5 // pred_fallthru
      _
    %p177 = scmp.lt.s32.totalorder %s12, 2
    // Predicated region
    $region25: #{residual_block_forward.4} parent=5 // pred_check
      %p178 = pneg %p177
    $region26: #{residual_block_forward.4} parent=5 // pred_check_branch
      %180 = sbr.rel (%p178) target = $region28
    $region27: #{residual_block_forward.4} parent=5 // pred_region
      // Predicated region
      $region29: #{residual_block_forward.4} parent=27 // pred_check
        %p181 = pneg %p32
      $region30: #{residual_block_forward.4} parent=27 // pred_check_branch
        %183 = sbr.rel (%p181) target = $region32
      $region31: #{residual_block_forward.4} parent=27 // pred_region
        %p184 = scmp.lt.s32.totalorder %s12, 1
        %s185 = scalar_select %p184, %s12, 1
        %s186 = smul.addr %s185, 32
        %s187 = smul.addr %s186, 4
        %s188 = scalar_lea.vmem %s0, %s187
      $region32: #{residual_block_forward.4} parent=27 // pred_fallthru
        _
    $region28: #{residual_block_forward.4} parent=5 // pred_fallthru
      _
    %p189 = scmp.le.s32.totalorder 1, %s12
    %p190 = scmp.lt.s32.totalorder %s12, 3
    %p191 = pnand %p189, %p190
    %p192 = pneg %p191
    // Predicated region
    $region33: #{residual_block_forward.4} parent=5 // pred_check
      _
    $region34: #{residual_block_forward.4} parent=5 // pred_check_branch
      %194 = sbr.rel (%p191) target = $region36
    $region35: #{residual_block_forward.4} parent=5 // pred_region
      %s195 = ssub.s32 %s12, 1
      %p196 = scmp.lt.s32.totalorder %s17, 1
      %s197 = scalar_select %p196, %s17, 1
      %s198 = smul.addr %s197, 32
      %s199 = smul.addr %s198, 4
      %s200 = scalar_lea.vmem %s0, %s199
      %p201 = pneg %p38
      %p202 = pneg %p35
      %p203 = pneg %p59
      %p204 = pneg %p56
      %p205 = pneg %p80
      %p206 = pneg %p77
      %p207 = pneg %p101
      %p208 = pneg %p98
      %p209 = pneg %p127
      %p210 = pneg %p124
      %p211 = scmp.lt.s32.totalorder %s17, 1
      %s212 = scalar_select %p211, %s17, 1
      %s213 = smul.addr %s212, 32
      %s214 = smul.addr %s213, 4
      %s215 = scalar_lea.vmem %s4, %s214
      %p216 = pneg %p153
      %p217 = pneg %p150
      %p218 = scmp.lt.s32.totalorder %s17, 1
      %s219 = scalar_select %p218, %s17, 1
      %s220 = smul.addr %s219, 2
      %s221 = scalar_lea.vmem %s5, %s220
      %p222 = scmp.lt.s32.totalorder %s17, 1
      %s223 = scalar_select %p222, %s17, 1
      %s224 = smul.addr %s223, 32
      %s225 = smul.addr %s224, 4
      %s226 = scalar_lea.vmem %s0, %s225
      %p227 = scmp.lt.s32.totalorder %s17, 1
      %s228 = scalar_select %p227, %s17, 1
      %s229 = smul.addr %s228, 32
      %s230 = smul.addr %s229, 4
      %s231 = scalar_lea.vmem %s4, %s230
      %p232 = scmp.lt.s32.totalorder %s17, 1
      %s233 = scalar_select %p232, %s17, 1
      %s234 = smul.addr %s233, 2
      %s235 = scalar_lea.vmem %s5, %s234
      %v237 = vld [vmem:[%s226] sm:$0xf]
      %v238 = vld [vmem:[%s226 + $0x4] sm:$0xf]
      %v239 = vld [vmem:[%s226 + $0x8] sm:$0xf]
      %v240 = vld [vmem:[%s226 + $0xc] sm:$0xf]
      %v241 = vld [vmem:[%s226 + $0x10] sm:$0xf]
      %v242 = vld [vmem:[%s226 + $0x14] sm:$0xf]
      %v243 = vld [vmem:[%s226 + $0x18] sm:$0xf]
      %v244 = vld [vmem:[%s226 + $0x1c] sm:$0xf]
      %v245 = vld [vmem:[%s226 + $0x20] sm:$0xf]
      %v246 = vld [vmem:[%s226 + $0x24] sm:$0xf]
      %v247 = vld [vmem:[%s226 + $0x28] sm:$0xf]
      %v248 = vld [vmem:[%s226 + $0x2c] sm:$0xf]
      %v249 = vld [vmem:[%s226 + $0x30] sm:$0xf]
      %v250 = vld [vmem:[%s226 + $0x34] sm:$0xf]
      %v251 = vld [vmem:[%s226 + $0x38] sm:$0xf]
      %v252 = vld [vmem:[%s226 + $0x3c] sm:$0xf]
      %v253 = vld [vmem:[%s226 + $0x40] sm:$0xf]
      %v254 = vld [vmem:[%s226 + $0x44] sm:$0xf]
      %v255 = vld [vmem:[%s226 + $0x48] sm:$0xf]
      %v256 = vld [vmem:[%s226 + $0x4c] sm:$0xf]
      %v257 = vld [vmem:[%s226 + $0x50] sm:$0xf]
      %v258 = vld [vmem:[%s226 + $0x54] sm:$0xf]
      %v259 = vld [vmem:[%s226 + $0x58] sm:$0xf]
      %v260 = vld [vmem:[%s226 + $0x5c] sm:$0xf]
      %v261 = vld [vmem:[%s226 + $0x60] sm:$0xf]
      %v262 = vld [vmem:[%s226 + $0x64] sm:$0xf]
      %v263 = vld [vmem:[%s226 + $0x68] sm:$0xf]
      %v264 = vld [vmem:[%s226 + $0x6c] sm:$0xf]
      %v265 = vld [vmem:[%s226 + $0x70] sm:$0xf]
      %v266 = vld [vmem:[%s226 + $0x74] sm:$0xf]
      %v267 = vld [vmem:[%s226 + $0x78] sm:$0xf]
      %v268 = vld [vmem:[%s226 + $0x7c] sm:$0xf]
      %v269 = vunpack.c.l.bf16 %v237
      %v270 = vunpack.c.l.bf16 %v238
      %v271 = vunpack.c.l.bf16 %v239
      %v272 = vunpack.c.l.bf16 %v240
      %v273 = vunpack.c.l.bf16 %v241
      %v274 = vunpack.c.l.bf16 %v242
      %v275 = vunpack.c.l.bf16 %v243
      %v276 = vunpack.c.l.bf16 %v244
      %v277 = vunpack.c.l.bf16 %v245
      %v278 = vunpack.c.l.bf16 %v246
      %v279 = vunpack.c.l.bf16 %v247
      %v280 = vunpack.c.l.bf16 %v248
      %v281 = vunpack.c.l.bf16 %v249
      %v282 = vunpack.c.l.bf16 %v250
      %v283 = vunpack.c.l.bf16 %v251
      %v284 = vunpack.c.l.bf16 %v252
      %v285 = vunpack.c.l.bf16 %v253
      %v286 = vunpack.c.l.bf16 %v254
      %v287 = vunpack.c.l.bf16 %v255
      %v288 = vunpack.c.l.bf16 %v256
      %v289 = vunpack.c.l.bf16 %v257
      %v290 = vunpack.c.l.bf16 %v258
      %v291 = vunpack.c.l.bf16 %v259
      %v292 = vunpack.c.l.bf16 %v260
      %v293 = vunpack.c.l.bf16 %v261
      %v294 = vunpack.c.l.bf16 %v262
      %v295 = vunpack.c.l.bf16 %v263
      %v296 = vunpack.c.l.bf16 %v264
      %v297 = vunpack.c.l.bf16 %v265
      %v298 = vunpack.c.l.bf16 %v266
      %v299 = vunpack.c.l.bf16 %v267
      %v300 = vunpack.c.l.bf16 %v268
      %v301 = vld [vmem:[%s1] sm:$0x1]
      %v303 = vlaneseq
      %v304 = vshrl.u32 %v303, 7
      %v305 = vsub.s32 0, %v304
      %v306 = vrot.slane %v301, %v305
      %v308 = vmul.f32 %v269, %v306
      %v309 = vmul.f32 %v270, %v306
      %v310 = vmul.f32 %v271, %v306
      %v311 = vmul.f32 %v272, %v306
      %v312 = vmul.f32 %v273, %v306
      %v313 = vmul.f32 %v274, %v306
      %v314 = vmul.f32 %v275, %v306
      %v315 = vmul.f32 %v276, %v306
      %v316 = vmul.f32 %v277, %v306
      %v317 = vmul.f32 %v278, %v306
      %v318 = vmul.f32 %v279, %v306
      %v319 = vmul.f32 %v280, %v306
      %v320 = vmul.f32 %v281, %v306
      %v321 = vmul.f32 %v282, %v306
      %v322 = vmul.f32 %v283, %v306
      %v323 = vmul.f32 %v284, %v306
      %v324 = vmul.f32 %v285, %v306
      %v325 = vmul.f32 %v286, %v306
      %v326 = vmul.f32 %v287, %v306
      %v327 = vmul.f32 %v288, %v306
      %v328 = vmul.f32 %v289, %v306
      %v329 = vmul.f32 %v290, %v306
      %v330 = vmul.f32 %v291, %v306
      %v331 = vmul.f32 %v292, %v306
      %v332 = vmul.f32 %v293, %v306
      %v333 = vmul.f32 %v294, %v306
      %v334 = vmul.f32 %v295, %v306
      %v335 = vmul.f32 %v296, %v306
      %v336 = vmul.f32 %v297, %v306
      %v337 = vmul.f32 %v298, %v306
      %v338 = vmul.f32 %v299, %v306
      %v339 = vmul.f32 %v300, %v306
      %v340 = vld [vmem:[%s2] sm:$0x1]
      %v342 = vlaneseq
      %v343 = vshrl.u32 %v342, 7
      %v344 = vsub.s32 0, %v343
      %v345 = vrot.slane %v340, %v344
      %v347 = vadd.f32 %v308, %v345
      %v348 = vadd.f32 %v309, %v345
      %v349 = vadd.f32 %v310, %v345
      %v350 = vadd.f32 %v311, %v345
      %v351 = vadd.f32 %v312, %v345
      %v352 = vadd.f32 %v313, %v345
      %v353 = vadd.f32 %v314, %v345
      %v354 = vadd.f32 %v315, %v345
      %v355 = vadd.f32 %v316, %v345
      %v356 = vadd.f32 %v317, %v345
      %v357 = vadd.f32 %v318, %v345
      %v358 = vadd.f32 %v319, %v345
      %v359 = vadd.f32 %v320, %v345
      %v360 = vadd.f32 %v321, %v345
      %v361 = vadd.f32 %v322, %v345
      %v362 = vadd.f32 %v323, %v345
      %v363 = vadd.f32 %v324, %v345
      %v364 = vadd.f32 %v325, %v345
      %v365 = vadd.f32 %v326, %v345
      %v366 = vadd.f32 %v327, %v345
      %v367 = vadd.f32 %v328, %v345
      %v368 = vadd.f32 %v329, %v345
      %v369 = vadd.f32 %v330, %v345
      %v370 = vadd.f32 %v331, %v345
      %v371 = vadd.f32 %v332, %v345
      %v372 = vadd.f32 %v333, %v345
      %v373 = vadd.f32 %v334, %v345
      %v374 = vadd.f32 %v335, %v345
      %v375 = vadd.f32 %v336, %v345
      %v376 = vadd.f32 %v337, %v345
      %v377 = vadd.f32 %v338, %v345
      %v378 = vadd.f32 %v339, %v345
      %v379 = vmax.f32 %v347, 0.0
      %v380 = vmax.f32 %v348, 0.0
      %v381 = vmax.f32 %v349, 0.0
      %v382 = vmax.f32 %v350, 0.0
      %v383 = vmax.f32 %v351, 0.0
      %v384 = vmax.f32 %v352, 0.0
      %v385 = vmax.f32 %v353, 0.0
      %v386 = vmax.f32 %v354, 0.0
      %v387 = vmax.f32 %v355, 0.0
      %v388 = vmax.f32 %v356, 0.0
      %v389 = vmax.f32 %v357, 0.0
      %v390 = vmax.f32 %v358, 0.0
      %v391 = vmax.f32 %v359, 0.0
      %v392 = vmax.f32 %v360, 0.0
      %v393 = vmax.f32 %v361, 0.0
      %v394 = vmax.f32 %v362, 0.0
      %v395 = vmax.f32 %v363, 0.0
      %v396 = vmax.f32 %v364, 0.0
      %v397 = vmax.f32 %v365, 0.0
      %v398 = vmax.f32 %v366, 0.0
      %v399 = vmax.f32 %v367, 0.0
      %v400 = vmax.f32 %v368, 0.0
      %v401 = vmax.f32 %v369, 0.0
      %v402 = vmax.f32 %v370, 0.0
      %v403 = vmax.f32 %v371, 0.0
      %v404 = vmax.f32 %v372, 0.0
      %v405 = vmax.f32 %v373, 0.0
      %v406 = vmax.f32 %v374, 0.0
      %v407 = vmax.f32 %v375, 0.0
      %v408 = vmax.f32 %v376, 0.0
      %v409 = vmax.f32 %v377, 0.0
      %v410 = vmax.f32 %v378, 0.0
      %411 = vst [vmem:[#allocation2] sm:$0xf] 0
      %412 = vst [vmem:[#allocation2 + $0x4] sm:$0xf] 0
      %413 = vst [vmem:[#allocation2 + $0x8] sm:$0x1] 0
      %s414 = scalar_lea.vmem [#allocation2], 204
      %415 = vst [vmem:[%s414] sm:$0xf] 0
      %416 = vst [vmem:[%s414 + $0x4] sm:$0xf] 0
      %417 = vst [vmem:[%s414 + $0x8] sm:$0x1] 0
      %s418 = scalar_lea.vmem [#allocation2], 12
      %vm419 = vcmask 1040384
      %vm420 = vsmask.f32 256
      %vm421 = vmand %vm419, %vm420
      %v422 = vld [vmem:[%s418] sm:$0x1]
      %v423 = vsel %vm421, 0, %v422
      %424 = vst [vmem:[%s418] sm:$0x1] %v423
      %v425 = vld [vmem:[%s418 + $0xc] sm:$0x1]
      %v426 = vsel %vm421, 0, %v425
      %427 = vst [vmem:[%s418 + $0xc] sm:$0x1] %v426
      %v428 = vld [vmem:[%s418 + $0x18] sm:$0x1]
      %v429 = vsel %vm421, 0, %v428
      %430 = vst [vmem:[%s418 + $0x18] sm:$0x1] %v429
      %v431 = vld [vmem:[%s418 + $0x24] sm:$0x1]
      %v432 = vsel %vm421, 0, %v431
      %433 = vst [vmem:[%s418 + $0x24] sm:$0x1] %v432
      %v434 = vld [vmem:[%s418 + $0x30] sm:$0x1]
      %v435 = vsel %vm421, 0, %v434
      %436 = vst [vmem:[%s418 + $0x30] sm:$0x1] %v435
      %v437 = vld [vmem:[%s418 + $0x3c] sm:$0x1]
      %v438 = vsel %vm421, 0, %v437
      %439 = vst [vmem:[%s418 + $0x3c] sm:$0x1] %v438
      %v440 = vld [vmem:[%s418 + $0x48] sm:$0x1]
      %v441 = vsel %vm421, 0, %v440
      %442 = vst [vmem:[%s418 + $0x48] sm:$0x1] %v441
      %v443 = vld [vmem:[%s418 + $0x54] sm:$0x1]
      %v444 = vsel %vm421, 0, %v443
      %445 = vst [vmem:[%s418 + $0x54] sm:$0x1] %v444
      %v446 = vld [vmem:[%s418 + $0x60] sm:$0x1]
      %v447 = vsel %vm421, 0, %v446
      %448 = vst [vmem:[%s418 + $0x60] sm:$0x1] %v447
      %v449 = vld [vmem:[%s418 + $0x6c] sm:$0x1]
      %v450 = vsel %vm421, 0, %v449
      %451 = vst [vmem:[%s418 + $0x6c] sm:$0x1] %v450
      %v452 = vld [vmem:[%s418 + $0x78] sm:$0x1]
      %v453 = vsel %vm421, 0, %v452
      %454 = vst [vmem:[%s418 + $0x78] sm:$0x1] %v453
      %v455 = vld [vmem:[%s418 + $0x84] sm:$0x1]
      %v456 = vsel %vm421, 0, %v455
      %457 = vst [vmem:[%s418 + $0x84] sm:$0x1] %v456
      %v458 = vld [vmem:[%s418 + $0x90] sm:$0x1]
      %v459 = vsel %vm421, 0, %v458
      %460 = vst [vmem:[%s418 + $0x90] sm:$0x1] %v459
      %v461 = vld [vmem:[%s418 + $0x9c] sm:$0x1]
      %v462 = vsel %vm421, 0, %v461
      %463 = vst [vmem:[%s418 + $0x9c] sm:$0x1] %v462
      %v464 = vld [vmem:[%s418 + $0xa8] sm:$0x1]
      %v465 = vsel %vm421, 0, %v464
      %466 = vst [vmem:[%s418 + $0xa8] sm:$0x1] %v465
      %v467 = vld [vmem:[%s418 + $0xb4] sm:$0x1]
      %v468 = vsel %vm421, 0, %v467
      %469 = vst [vmem:[%s418 + $0xb4] sm:$0x1] %v468
      %vm470 = vsmask.f32 7938
      %vm471 = vmand %vm419, %vm470
      %v472 = vld [vmem:[%s418 + $0x8] sm:$0x1]
      %v473 = vsel %vm471, 0, %v472
      %474 = vst [vmem:[%s418 + $0x8] sm:$0x1] %v473
      %v475 = vld [vmem:[%s418 + $0x14] sm:$0x1]
      %v476 = vsel %vm471, 0, %v475
      %477 = vst [vmem:[%s418 + $0x14] sm:$0x1] %v476
      %v478 = vld [vmem:[%s418 + $0x20] sm:$0x1]
      %v479 = vsel %vm471, 0, %v478
      %480 = vst [vmem:[%s418 + $0x20] sm:$0x1] %v479
      %v481 = vld [vmem:[%s418 + $0x2c] sm:$0x1]
      %v482 = vsel %vm471, 0, %v481
      %483 = vst [vmem:[%s418 + $0x2c] sm:$0x1] %v482
      %v484 = vld [vmem:[%s418 + $0x38] sm:$0x1]
      %v485 = vsel %vm471, 0, %v484
      %486 = vst [vmem:[%s418 + $0x38] sm:$0x1] %v485
      %v487 = vld [vmem:[%s418 + $0x44] sm:$0x1]
      %v488 = vsel %vm471, 0, %v487
      %489 = vst [vmem:[%s418 + $0x44] sm:$0x1] %v488
      %v490 = vld [vmem:[%s418 + $0x50] sm:$0x1]
      %v491 = vsel %vm471, 0, %v490
      %492 = vst [vmem:[%s418 + $0x50] sm:$0x1] %v491
      %v493 = vld [vmem:[%s418 + $0x5c] sm:$0x1]
      %v494 = vsel %vm471, 0, %v493
      %495 = vst [vmem:[%s418 + $0x5c] sm:$0x1] %v494
      %v496 = vld [vmem:[%s418 + $0x68] sm:$0x1]
      %v497 = vsel %vm471, 0, %v496
      %498 = vst [vmem:[%s418 + $0x68] sm:$0x1] %v497
      %v499 = vld [vmem:[%s418 + $0x74] sm:$0x1]
      %v500 = vsel %vm471, 0, %v499
      %501 = vst [vmem:[%s418 + $0x74] sm:$0x1] %v500
      %v502 = vld [vmem:[%s418 + $0x80] sm:$0x1]
      %v503 = vsel %vm471, 0, %v502
      %504 = vst [vmem:[%s418 + $0x80] sm:$0x1] %v503
      %v505 = vld [vmem:[%s418 + $0x8c] sm:$0x1]
      %v506 = vsel %vm471, 0, %v505
      %507 = vst [vmem:[%s418 + $0x8c] sm:$0x1] %v506
      %v508 = vld [vmem:[%s418 + $0x98] sm:$0x1]
      %v509 = vsel %vm471, 0, %v508
      %510 = vst [vmem:[%s418 + $0x98] sm:$0x1] %v509
      %v511 = vld [vmem:[%s418 + $0xa4] sm:$0x1]
      %v512 = vsel %vm471, 0, %v511
      %513 = vst [vmem:[%s418 + $0xa4] sm:$0x1] %v512
      %v514 = vld [vmem:[%s418 + $0xb0] sm:$0x1]
      %v515 = vsel %vm471, 0, %v514
      %516 = vst [vmem:[%s418 + $0xb0] sm:$0x1] %v515
      %v517 = vld [vmem:[%s418 + $0xbc] sm:$0x1]
      %v518 = vsel %vm471, 0, %v517
      %519 = vst [vmem:[%s418 + $0xbc] sm:$0x1] %v518
      %v520 = vpack.c.bf16 %v380, %v379
      %v521 = vpack.c.bf16 %v382, %v381
      %v522 = vpack.c.bf16 %v384, %v383
      %v523 = vpack.c.bf16 %v386, %v385
      %v524 = vpack.c.bf16 %v388, %v387
      %v525 = vpack.c.bf16 %v390, %v389
      %v526 = vpack.c.bf16 %v392, %v391
      %v527 = vpack.c.bf16 %v394, %v393
      %v528 = vpack.c.bf16 %v396, %v395
      %v529 = vpack.c.bf16 %v398, %v397
      %v530 = vpack.c.bf16 %v400, %v399
      %v531 = vpack.c.bf16 %v402, %v401
      %v532 = vpack.c.bf16 %v404, %v403
      %v533 = vpack.c.bf16 %v406, %v405
      %v534 = vpack.c.bf16 %v408, %v407
      %v535 = vpack.c.bf16 %v410, %v409
      %v552 = vunpack.c.l.b16 %v520
      %v553 = vunpack.c.h.b16 %v520
      %v554 = vunpack.c.l.b16 %v521
      %v555 = vunpack.c.h.b16 %v521
      %v556 = vunpack.c.l.b16 %v522
      %v557 = vunpack.c.h.b16 %v522
      %v558 = vunpack.c.l.b16 %v523
      %v559 = vunpack.c.h.b16 %v523
      %v560 = vunpack.c.l.b16 %v524
      %v561 = vunpack.c.h.b16 %v524
      %v562 = vunpack.c.l.b16 %v525
      %v563 = vunpack.c.h.b16 %v525
      %v564 = vunpack.c.l.b16 %v526
      %v565 = vunpack.c.h.b16 %v526
      %v566 = vunpack.c.l.b16 %v527
      %v567 = vunpack.c.h.b16 %v527
      %v568 = vunpack.c.l.b16 %v528
      %v569 = vunpack.c.h.b16 %v528
      %v570 = vunpack.c.l.b16 %v529
      %v571 = vunpack.c.h.b16 %v529
      %v572 = vunpack.c.l.b16 %v530
      %v573 = vunpack.c.h.b16 %v530
      %v574 = vunpack.c.l.b16 %v531
      %v575 = vunpack.c.h.b16 %v531
      %v576 = vunpack.c.l.b16 %v532
      %v577 = vunpack.c.h.b16 %v532
      %v578 = vunpack.c.l.b16 %v533
      %v579 = vunpack.c.h.b16 %v533
      %v580 = vunpack.c.l.b16 %v534
      %v581 = vunpack.c.h.b16 %v534
      %v582 = vunpack.c.l.b16 %v535
      %v583 = vunpack.c.h.b16 %v535
      %v584 = vpack.c.b16 %v552, %v552
      %v585 = vpack.c.b16 %v553, %v553
      %v586 = vpack.c.b16 %v554, %v554
      %v587 = vpack.c.b16 %v555, %v555
      %v588 = vpack.c.b16 %v556, %v556
      %v589 = vpack.c.b16 %v557, %v557
      %v590 = vpack.c.b16 %v558, %v558
      %v591 = vpack.c.b16 %v559, %v559
      %v592 = vpack.c.b16 %v560, %v560
      %v593 = vpack.c.b16 %v561, %v561
      %v594 = vpack.c.b16 %v562, %v562
      %v595 = vpack.c.b16 %v563, %v563
      %v596 = vpack.c.b16 %v564, %v564
      %v597 = vpack.c.b16 %v565, %v565
      %v598 = vpack.c.b16 %v566, %v566
      %v599 = vpack.c.b16 %v567, %v567
      %v600 = vpack.c.b16 %v568, %v568
      %v601 = vpack.c.b16 %v569, %v569
      %v602 = vpack.c.b16 %v570, %v570
      %v603 = vpack.c.b16 %v571, %v571
      %v604 = vpack.c.b16 %v572, %v572
      %v605 = vpack.c.b16 %v573, %v573
      %v606 = vpack.c.b16 %v574, %v574
      %v607 = vpack.c.b16 %v575, %v575
      %v608 = vpack.c.b16 %v576, %v576
      %v609 = vpack.c.b16 %v577, %v577
      %v610 = vpack.c.b16 %v578, %v578
      %v611 = vpack.c.b16 %v579, %v579
      %v612 = vpack.c.b16 %v580, %v580
      %v613 = vpack.c.b16 %v581, %v581
      %v614 = vpack.c.b16 %v582, %v582
      %v615 = vpack.c.b16 %v583, %v583
      %vm616 = vsmask.f32 4368
      %vm617 = vmor %vm420, %vm616
      %v619 = vshrl.u32 %v584, 16
      %v621 = vrot.slane %v619, 7
      %v622 = vshll.u32 %v584, 16
      %v624 = vor.u32 %v621, %v622
      %v625 = vrot.slane %v621, 4
      %v627 = vshrl.u32 %v585, 16
      %v629 = vrot.slane %v627, 7
      %v630 = vshll.u32 %v585, 16
      %v632 = vor.u32 %v629, %v630
      %v633 = vsel %vm617, %v625, %v632
      %v634 = vrot.slane %v629, 4
      %v636 = vshrl.u32 %v586, 16
      %v638 = vrot.slane %v636, 7
      %v639 = vshll.u32 %v586, 16
      %v641 = vor.u32 %v638, %v639
      %v642 = vrot.slane %v638, 4
      %v644 = vshrl.u32 %v587, 16
      %v646 = vrot.slane %v644, 7
      %v647 = vshll.u32 %v587, 16
      %v649 = vor.u32 %v646, %v647
      %v650 = vsel %vm617, %v642, %v649
      %v651 = vrot.slane %v646, 4
      %v653 = vshrl.u32 %v588, 16
      %v655 = vrot.slane %v653, 7
      %v656 = vshll.u32 %v588, 16
      %v658 = vor.u32 %v655, %v656
      %v659 = vrot.slane %v655, 4
      %v661 = vshrl.u32 %v589, 16
      %v663 = vrot.slane %v661, 7
      %v664 = vshll.u32 %v589, 16
      %v666 = vor.u32 %v663, %v664
      %v667 = vsel %vm617, %v659, %v666
      %v668 = vrot.slane %v663, 4
      %v670 = vshrl.u32 %v590, 16
      %v672 = vrot.slane %v670, 7
      %v673 = vshll.u32 %v590, 16
      %v675 = vor.u32 %v672, %v673
      %v676 = vrot.slane %v672, 4
      %v678 = vshrl.u32 %v591, 16
      %v680 = vrot.slane %v678, 7
      %v681 = vshll.u32 %v591, 16
      %v683 = vor.u32 %v680, %v681
      %v684 = vsel %vm617, %v676, %v683
      %v685 = vrot.slane %v680, 4
      %v687 = vshrl.u32 %v592, 16
      %v689 = vrot.slane %v687, 7
      %v690 = vshll.u32 %v592, 16
      %v692 = vor.u32 %v689, %v690
      %v693 = vrot.slane %v689, 4
      %v695 = vshrl.u32 %v593, 16
      %v697 = vrot.slane %v695, 7
      %v698 = vshll.u32 %v593, 16
      %v700 = vor.u32 %v697, %v698
      %v701 = vsel %vm617, %v693, %v700
      %v702 = vrot.slane %v697, 4
      %v704 = vshrl.u32 %v594, 16
      %v706 = vrot.slane %v704, 7
      %v707 = vshll.u32 %v594, 16
      %v709 = vor.u32 %v706, %v707
      %v710 = vrot.slane %v706, 4
      %v712 = vshrl.u32 %v595, 16
      %v714 = vrot.slane %v712, 7
      %v715 = vshll.u32 %v595, 16
      %v717 = vor.u32 %v714, %v715
      %v718 = vsel %vm617, %v710, %v717
      %v719 = vrot.slane %v714, 4
      %v721 = vshrl.u32 %v596, 16
      %v723 = vrot.slane %v721, 7
      %v724 = vshll.u32 %v596, 16
      %v726 = vor.u32 %v723, %v724
      %v727 = vrot.slane %v723, 4
      %v729 = vshrl.u32 %v597, 16
      %v731 = vrot.slane %v729, 7
      %v732 = vshll.u32 %v597, 16
      %v734 = vor.u32 %v731, %v732
      %v735 = vsel %vm617, %v727, %v734
      %v736 = vrot.slane %v731, 4
      %v738 = vshrl.u32 %v598, 16
      %v740 = vrot.slane %v738, 7
      %v741 = vshll.u32 %v598, 16
      %v743 = vor.u32 %v740, %v741
      %v744 = vrot.slane %v740, 4
      %v746 = vshrl.u32 %v599, 16
      %v748 = vrot.slane %v746, 7
      %v749 = vshll.u32 %v599, 16
      %v751 = vor.u32 %v748, %v749
      %v752 = vsel %vm617, %v744, %v751
      %v753 = vrot.slane %v748, 4
      %v755 = vshrl.u32 %v600, 16
      %v757 = vrot.slane %v755, 7
      %v758 = vshll.u32 %v600, 16
      %v760 = vor.u32 %v757, %v758
      %v761 = vrot.slane %v757, 4
      %v763 = vshrl.u32 %v601, 16
      %v765 = vrot.slane %v763, 7
      %v766 = vshll.u32 %v601, 16
      %v768 = vor.u32 %v765, %v766
      %v769 = vsel %vm617, %v761, %v768
      %v770 = vrot.slane %v765, 4
      %v772 = vshrl.u32 %v602, 16
      %v774 = vrot.slane %v772, 7
      %v775 = vshll.u32 %v602, 16
      %v777 = vor.u32 %v774, %v775
      %v778 = vrot.slane %v774, 4
      %v780 = vshrl.u32 %v603, 16
      %v782 = vrot.slane %v780, 7
      %v783 = vshll.u32 %v603, 16
      %v785 = vor.u32 %v782, %v783
      %v786 = vsel %vm617, %v778, %v785
      %v787 = vrot.slane %v782, 4
      %v789 = vshrl.u32 %v604, 16
      %v791 = vrot.slane %v789, 7
      %v792 = vshll.u32 %v604, 16
      %v794 = vor.u32 %v791, %v792
      %v795 = vrot.slane %v791, 4
      %v797 = vshrl.u32 %v605, 16
      %v799 = vrot.slane %v797, 7
      %v800 = vshll.u32 %v605, 16
      %v802 = vor.u32 %v799, %v800
      %v803 = vsel %vm617, %v795, %v802
      %v804 = vrot.slane %v799, 4
      %v806 = vshrl.u32 %v606, 16
      %v808 = vrot.slane %v806, 7
      %v809 = vshll.u32 %v606, 16
      %v811 = vor.u32 %v808, %v809
      %v812 = vrot.slane %v808, 4
      %v814 = vshrl.u32 %v607, 16
      %v816 = vrot.slane %v814, 7
      %v817 = vshll.u32 %v607, 16
      %v819 = vor.u32 %v816, %v817
      %v820 = vsel %vm617, %v812, %v819
      %v821 = vrot.slane %v816, 4
      %v823 = vshrl.u32 %v608, 16
      %v825 = vrot.slane %v823, 7
      %v826 = vshll.u32 %v608, 16
      %v828 = vor.u32 %v825, %v826
      %v829 = vrot.slane %v825, 4
      %v831 = vshrl.u32 %v609, 16
      %v833 = vrot.slane %v831, 7
      %v834 = vshll.u32 %v609, 16
      %v836 = vor.u32 %v833, %v834
      %v837 = vsel %vm617, %v829, %v836
      %v838 = vrot.slane %v833, 4
      %v840 = vshrl.u32 %v610, 16
      %v842 = vrot.slane %v840, 7
      %v843 = vshll.u32 %v610, 16
      %v845 = vor.u32 %v842, %v843
      %v846 = vrot.slane %v842, 4
      %v848 = vshrl.u32 %v611, 16
      %v850 = vrot.slane %v848, 7
      %v851 = vshll.u32 %v611, 16
      %v853 = vor.u32 %v850, %v851
      %v854 = vsel %vm617, %v846, %v853
      %v855 = vrot.slane %v850, 4
      %v857 = vshrl.u32 %v612, 16
      %v859 = vrot.slane %v857, 7
      %v860 = vshll.u32 %v612, 16
      %v862 = vor.u32 %v859, %v860
      %v863 = vrot.slane %v859, 4
      %v865 = vshrl.u32 %v613, 16
      %v867 = vrot.slane %v865, 7
      %v868 = vshll.u32 %v613, 16
      %v870 = vor.u32 %v867, %v868
      %v871 = vsel %vm617, %v863, %v870
      %v872 = vrot.slane %v867, 4
      %v874 = vshrl.u32 %v614, 16
      %v876 = vrot.slane %v874, 7
      %v877 = vshll.u32 %v614, 16
      %v879 = vor.u32 %v876, %v877
      %v880 = vrot.slane %v876, 4
      %v882 = vshrl.u32 %v615, 16
      %v884 = vrot.slane %v882, 7
      %v885 = vshll.u32 %v615, 16
      %v887 = vor.u32 %v884, %v885
      %v888 = vsel %vm617, %v880, %v887
      %v889 = vrot.slane %v884, 4
      %vm938 = vcmask 1043456
      %vm939 = vmand %vm938, %vm470
      %v940 = vld [vmem:[%s418] sm:$0xf]
      %v941 = vsel %vm939, %v624, %v940
      %942 = vst [vmem:[%s418] sm:$0xf] %v941
      %943 = vst [vmem:[%s418 + $0x4] sm:$0xf] %v633
      %v944 = vld [vmem:[%s418 + $0x8] sm:$0x1]
      %v945 = vsel %vm421, %v634, %v944
      %946 = vst [vmem:[%s418 + $0x8] sm:$0x1] %v945
      %v947 = vld [vmem:[%s418 + $0xc] sm:$0xf]
      %v948 = vsel %vm939, %v641, %v947
      %949 = vst [vmem:[%s418 + $0xc] sm:$0xf] %v948
      %950 = vst [vmem:[%s418 + $0x10] sm:$0xf] %v650
      %v951 = vld [vmem:[%s418 + $0x14] sm:$0x1]
      %v952 = vsel %vm421, %v651, %v951
      %953 = vst [vmem:[%s418 + $0x14] sm:$0x1] %v952
      %v954 = vld [vmem:[%s418 + $0x18] sm:$0xf]
      %v955 = vsel %vm939, %v658, %v954
      %956 = vst [vmem:[%s418 + $0x18] sm:$0xf] %v955
      %957 = vst [vmem:[%s418 + $0x1c] sm:$0xf] %v667
      %v958 = vld [vmem:[%s418 + $0x20] sm:$0x1]
      %v959 = vsel %vm421, %v668, %v958
      %960 = vst [vmem:[%s418 + $0x20] sm:$0x1] %v959
      %v961 = vld [vmem:[%s418 + $0x24] sm:$0xf]
      %v962 = vsel %vm939, %v675, %v961
      %963 = vst [vmem:[%s418 + $0x24] sm:$0xf] %v962
      %964 = vst [vmem:[%s418 + $0x28] sm:$0xf] %v684
      %v965 = vld [vmem:[%s418 + $0x2c] sm:$0x1]
      %v966 = vsel %vm421, %v685, %v965
      %967 = vst [vmem:[%s418 + $0x2c] sm:$0x1] %v966
      %v968 = vld [vmem:[%s418 + $0x30] sm:$0xf]
      %v969 = vsel %vm939, %v692, %v968
      %970 = vst [vmem:[%s418 + $0x30] sm:$0xf] %v969
      %971 = vst [vmem:[%s418 + $0x34] sm:$0xf] %v701
      %v972 = vld [vmem:[%s418 + $0x38] sm:$0x1]
      %v973 = vsel %vm421, %v702, %v972
      %974 = vst [vmem:[%s418 + $0x38] sm:$0x1] %v973
      %v975 = vld [vmem:[%s418 + $0x3c] sm:$0xf]
      %v976 = vsel %vm939, %v709, %v975
      %977 = vst [vmem:[%s418 + $0x3c] sm:$0xf] %v976
      %978 = vst [vmem:[%s418 + $0x40] sm:$0xf] %v718
      %v979 = vld [vmem:[%s418 + $0x44] sm:$0x1]
      %v980 = vsel %vm421, %v719, %v979
      %981 = vst [vmem:[%s418 + $0x44] sm:$0x1] %v980
      %v982 = vld [vmem:[%s418 + $0x48] sm:$0xf]
      %v983 = vsel %vm939, %v726, %v982
      %984 = vst [vmem:[%s418 + $0x48] sm:$0xf] %v983
      %985 = vst [vmem:[%s418 + $0x4c] sm:$0xf] %v735
      %v986 = vld [vmem:[%s418 + $0x50] sm:$0x1]
      %v987 = vsel %vm421, %v736, %v986
      %988 = vst [vmem:[%s418 + $0x50] sm:$0x1] %v987
      %v989 = vld [vmem:[%s418 + $0x54] sm:$0xf]
      %v990 = vsel %vm939, %v743, %v989
      %991 = vst [vmem:[%s418 + $0x54] sm:$0xf] %v990
      %992 = vst [vmem:[%s418 + $0x58] sm:$0xf] %v752
      %v993 = vld [vmem:[%s418 + $0x5c] sm:$0x1]
      %v994 = vsel %vm421, %v753, %v993
      %995 = vst [vmem:[%s418 + $0x5c] sm:$0x1] %v994
      %v996 = vld [vmem:[%s418 + $0x60] sm:$0xf]
      %v997 = vsel %vm939, %v760, %v996
      %998 = vst [vmem:[%s418 + $0x60] sm:$0xf] %v997
      %999 = vst [vmem:[%s418 + $0x64] sm:$0xf] %v769
      %v1000 = vld [vmem:[%s418 + $0x68] sm:$0x1]
      %v1001 = vsel %vm421, %v770, %v1000
      %1002 = vst [vmem:[%s418 + $0x68] sm:$0x1] %v1001
      %v1003 = vld [vmem:[%s418 + $0x6c] sm:$0xf]
      %v1004 = vsel %vm939, %v777, %v1003
      %1005 = vst [vmem:[%s418 + $0x6c] sm:$0xf] %v1004
      %1006 = vst [vmem:[%s418 + $0x70] sm:$0xf] %v786
      %v1007 = vld [vmem:[%s418 + $0x74] sm:$0x1]
      %v1008 = vsel %vm421, %v787, %v1007
      %1009 = vst [vmem:[%s418 + $0x74] sm:$0x1] %v1008
      %v1010 = vld [vmem:[%s418 + $0x78] sm:$0xf]
      %v1011 = vsel %vm939, %v794, %v1010
      %1012 = vst [vmem:[%s418 + $0x78] sm:$0xf] %v1011
      %1013 = vst [vmem:[%s418 + $0x7c] sm:$0xf] %v803
      %v1014 = vld [vmem:[%s418 + $0x80] sm:$0x1]
      %v1015 = vsel %vm421, %v804, %v1014
      %1016 = vst [vmem:[%s418 + $0x80] sm:$0x1] %v1015
      %v1017 = vld [vmem:[%s418 + $0x84] sm:$0xf]
      %v1018 = vsel %vm939, %v811, %v1017
      %1019 = vst [vmem:[%s418 + $0x84] sm:$0xf] %v1018
      %1020 = vst [vmem:[%s418 + $0x88] sm:$0xf] %v820
      %v1021 = vld [vmem:[%s418 + $0x8c] sm:$0x1]
      %v1022 = vsel %vm421, %v821, %v1021
      %1023 = vst [vmem:[%s418 + $0x8c] sm:$0x1] %v1022
      %v1024 = vld [vmem:[%s418 + $0x90] sm:$0xf]
      %v1025 = vsel %vm939, %v828, %v1024
      %1026 = vst [vmem:[%s418 + $0x90] sm:$0xf] %v1025
      %1027 = vst [vmem:[%s418 + $0x94] sm:$0xf] %v837
      %v1028 = vld [vmem:[%s418 + $0x98] sm:$0x1]
      %v1029 = vsel %vm421, %v838, %v1028
      %1030 = vst [vmem:[%s418 + $0x98] sm:$0x1] %v1029
      %v1031 = vld [vmem:[%s418 + $0x9c] sm:$0xf]
      %v1032 = vsel %vm939, %v845, %v1031
      %1033 = vst [vmem:[%s418 + $0x9c] sm:$0xf] %v1032
      %1034 = vst [vmem:[%s418 + $0xa0] sm:$0xf] %v854
      %v1035 = vld [vmem:[%s418 + $0xa4] sm:$0x1]
      %v1036 = vsel %vm421, %v855, %v1035
      %1037 = vst [vmem:[%s418 + $0xa4] sm:$0x1] %v1036
      %v1038 = vld [vmem:[%s418 + $0xa8] sm:$0xf]
      %v1039 = vsel %vm939, %v862, %v1038
      %1040 = vst [vmem:[%s418 + $0xa8] sm:$0xf] %v1039
      %1041 = vst [vmem:[%s418 + $0xac] sm:$0xf] %v871
      %v1042 = vld [vmem:[%s418 + $0xb0] sm:$0x1]
      %v1043 = vsel %vm421, %v872, %v1042
      %1044 = vst [vmem:[%s418 + $0xb0] sm:$0x1] %v1043
      %v1045 = vld [vmem:[%s418 + $0xb4] sm:$0xf]
      %v1046 = vsel %vm939, %v879, %v1045
      %1047 = vst [vmem:[%s418 + $0xb4] sm:$0xf] %v1046
      %1048 = vst [vmem:[%s418 + $0xb8] sm:$0xf] %v888
      %v1049 = vld [vmem:[%s418 + $0xbc] sm:$0x1]
      %v1050 = vsel %vm421, %v889, %v1049
      %1051 = vst [vmem:[%s418 + $0xbc] sm:$0x1] %v1050
      %v1052 = vld [vmem:[#allocation2] sm:$0xf]
      %v1053 = vld [vmem:[#allocation2 + $0x4] sm:$0xf]
      %v1054 = vld [vmem:[#allocation2 + $0xc] sm:$0xf]
      %v1055 = vld [vmem:[#allocation2 + $0x10] sm:$0xf]
      %v1056 = vld [vmem:[#allocation2 + $0x18] sm:$0xf]
      %v1057 = vld [vmem:[#allocation2 + $0x1c] sm:$0xf]
      %v1058 = vld [vmem:[#allocation2 + $0x24] sm:$0xf]
      %v1059 = vld [vmem:[#allocation2 + $0x28] sm:$0xf]
      %v1060 = vld [vmem:[#allocation2 + $0x30] sm:$0xf]
      %v1061 = vld [vmem:[#allocation2 + $0x34] sm:$0xf]
      %v1062 = vld [vmem:[#allocation2 + $0x3c] sm:$0xf]
      %v1063 = vld [vmem:[#allocation2 + $0x40] sm:$0xf]
      %v1064 = vld [vmem:[#allocation2 + $0x48] sm:$0xf]
      %v1065 = vld [vmem:[#allocation2 + $0x4c] sm:$0xf]
      %v1066 = vld [vmem:[#allocation2 + $0x54] sm:$0xf]
      %v1067 = vld [vmem:[#allocation2 + $0x58] sm:$0xf]
      %v1068 = vld [vmem:[#allocation2 + $0x60] sm:$0xf]
      %v1069 = vld [vmem:[#allocation2 + $0x64] sm:$0xf]
      %v1070 = vld [vmem:[#allocation2 + $0x6c] sm:$0xf]
      %v1071 = vld [vmem:[#allocation2 + $0x70] sm:$0xf]
      %v1072 = vld [vmem:[#allocation2 + $0x78] sm:$0xf]
      %v1073 = vld [vmem:[#allocation2 + $0x7c] sm:$0xf]
      %v1074 = vld [vmem:[#allocation2 + $0x84] sm:$0xf]
      %v1075 = vld [vmem:[#allocation2 + $0x88] sm:$0xf]
      %v1076 = vld [vmem:[#allocation2 + $0x90] sm:$0xf]
      %v1077 = vld [vmem:[#allocation2 + $0x94] sm:$0xf]
      %v1078 = vld [vmem:[#allocation2 + $0x9c] sm:$0xf]
      %v1079 = vld [vmem:[#allocation2 + $0xa0] sm:$0xf]
      %v1080 = vld [vmem:[#allocation2 + $0xa8] sm:$0xf]
      %v1081 = vld [vmem:[#allocation2 + $0xac] sm:$0xf]
      %v1082 = vld [vmem:[#allocation2 + $0xb4] sm:$0xf]
      %v1083 = vld [vmem:[#allocation2 + $0xb8] sm:$0xf]
      %v1116 = vunpack.c.l.b16 %v1052
      %v1117 = vunpack.c.l.b16 %v1053
      %v1118 = vunpack.c.l.b16 %v1054
      %v1119 = vunpack.c.l.b16 %v1055
      %v1120 = vunpack.c.l.b16 %v1056
      %v1121 = vunpack.c.l.b16 %v1057
      %v1122 = vunpack.c.l.b16 %v1058
      %v1123 = vunpack.c.l.b16 %v1059
      %v1124 = vunpack.c.l.b16 %v1060
      %v1125 = vunpack.c.l.b16 %v1061
      %v1126 = vunpack.c.l.b16 %v1062
      %v1127 = vunpack.c.l.b16 %v1063
      %v1128 = vunpack.c.l.b16 %v1064
      %v1129 = vunpack.c.l.b16 %v1065
      %v1130 = vunpack.c.l.b16 %v1066
      %v1131 = vunpack.c.l.b16 %v1067
      %v1132 = vunpack.c.l.b16 %v1068
      %v1133 = vunpack.c.l.b16 %v1069
      %v1134 = vunpack.c.l.b16 %v1070
      %v1135 = vunpack.c.l.b16 %v1071
      %v1136 = vunpack.c.l.b16 %v1072
      %v1137 = vunpack.c.l.b16 %v1073
      %v1138 = vunpack.c.l.b16 %v1074
      %v1139 = vunpack.c.l.b16 %v1075
      %v1140 = vunpack.c.l.b16 %v1076
      %v1141 = vunpack.c.l.b16 %v1077
      %v1142 = vunpack.c.l.b16 %v1078
      %v1143 = vunpack.c.l.b16 %v1079
      %v1144 = vunpack.c.l.b16 %v1080
      %v1145 = vunpack.c.l.b16 %v1081
      %v1146 = vunpack.c.l.b16 %v1082
      %v1147 = vunpack.c.l.b16 %v1083
      %v1148 = vpack.c.b16 %v1117, %v1116
      %v1149 = vpack.c.b16 %v1119, %v1118
      %v1150 = vpack.c.b16 %v1121, %v1120
      %v1151 = vpack.c.b16 %v1123, %v1122
      %v1152 = vpack.c.b16 %v1125, %v1124
      %v1153 = vpack.c.b16 %v1127, %v1126
      %v1154 = vpack.c.b16 %v1129, %v1128
      %v1155 = vpack.c.b16 %v1131, %v1130
      %v1156 = vpack.c.b16 %v1133, %v1132
      %v1157 = vpack.c.b16 %v1135, %v1134
      %v1158 = vpack.c.b16 %v1137, %v1136
      %v1159 = vpack.c.b16 %v1139, %v1138
      %v1160 = vpack.c.b16 %v1141, %v1140
      %v1161 = vpack.c.b16 %v1143, %v1142
      %v1162 = vpack.c.b16 %v1145, %v1144
      %v1163 = vpack.c.b16 %v1147, %v1146
      %1180 = vst [vmem:[#allocation3] sm:$0xff] %v1148
      %1181 = vst [vmem:[#allocation3 + $0x48] sm:$0xff] %v1149
      %1182 = vst [vmem:[#allocation3 + $0x90] sm:$0xff] %v1150
      %1183 = vst [vmem:[#allocation3 + $0xd8] sm:$0xff] %v1151
      %1184 = vst [vmem:[#allocation3 + $0x120] sm:$0xff] %v1152
      %1185 = vst [vmem:[#allocation3 + $0x168] sm:$0xff] %v1153
      %1186 = vst [vmem:[#allocation3 + $0x1b0] sm:$0xff] %v1154
      %1187 = vst [vmem:[#allocation3 + $0x1f8] sm:$0xff] %v1155
      %1188 = vst [vmem:[#allocation3 + $0x240] sm:$0xff] %v1156
      %1189 = vst [vmem:[#allocation3 + $0x288] sm:$0xff] %v1157
      %1190 = vst [vmem:[#allocation3 + $0x2d0] sm:$0xff] %v1158
      %1191 = vst [vmem:[#allocation3 + $0x318] sm:$0xff] %v1159
      %1192 = vst [vmem:[#allocation3 + $0x360] sm:$0xff] %v1160
      %1193 = vst [vmem:[#allocation3 + $0x3a8] sm:$0xff] %v1161
      %1194 = vst [vmem:[#allocation3 + $0x3f0] sm:$0xff] %v1162
      %1195 = vst [vmem:[#allocation3 + $0x438] sm:$0xff] %v1163
      %v1196 = vld [vmem:[#allocation2] sm:$0xf]
      %v1197 = vld [vmem:[#allocation2 + $0x4] sm:$0xf]
      %v1198 = vld [vmem:[#allocation2 + $0x8] sm:$0x1]
      %v1199 = vld [vmem:[#allocation2 + $0xc] sm:$0xf]
      %v1200 = vld [vmem:[#allocation2 + $0x10] sm:$0xf]
      %v1201 = vld [vmem:[#allocation2 + $0x14] sm:$0x1]
      %v1202 = vld [vmem:[#allocation2 + $0x18] sm:$0xf]
      %v1203 = vld [vmem:[#allocation2 + $0x1c] sm:$0xf]
      %v1204 = vld [vmem:[#allocation2 + $0x20] sm:$0x1]
      %v1205 = vld [vmem:[#allocation2 + $0x24] sm:$0xf]
      %v1206 = vld [vmem:[#allocation2 + $0x28] sm:$0xf]
      %v1207 = vld [vmem:[#allocation2 + $0x2c] sm:$0x1]
      %v1208 = vld [vmem:[#allocation2 + $0x30] sm:$0xf]
      %v1209 = vld [vmem:[#allocation2 + $0x34] sm:$0xf]
      %v1210 = vld [vmem:[#allocation2 + $0x38] sm:$0x1]
      %v1211 = vld [vmem:[#allocation2 + $0x3c] sm:$0xf]
      %v1212 = vld [vmem:[#allocation2 + $0x40] sm:$0xf]
      %v1213 = vld [vmem:[#allocation2 + $0x44] sm:$0x1]
      %v1214 = vld [vmem:[#allocation2 + $0x48] sm:$0xf]
      %v1215 = vld [vmem:[#allocation2 + $0x4c] sm:$0xf]
      %v1216 = vld [vmem:[#allocation2 + $0x50] sm:$0x1]
      %v1217 = vld [vmem:[#allocation2 + $0x54] sm:$0xf]
      %v1218 = vld [vmem:[#allocation2 + $0x58] sm:$0xf]
      %v1219 = vld [vmem:[#allocation2 + $0x5c] sm:$0x1]
      %v1220 = vld [vmem:[#allocation2 + $0x60] sm:$0xf]
      %v1221 = vld [vmem:[#allocation2 + $0x64] sm:$0xf]
      %v1222 = vld [vmem:[#allocation2 + $0x68] sm:$0x1]
      %v1223 = vld [vmem:[#allocation2 + $0x6c] sm:$0xf]
      %v1224 = vld [vmem:[#allocation2 + $0x70] sm:$0xf]
      %v1225 = vld [vmem:[#allocation2 + $0x74] sm:$0x1]
      %v1226 = vld [vmem:[#allocation2 + $0x78] sm:$0xf]
      %v1227 = vld [vmem:[#allocation2 + $0x7c] sm:$0xf]
      %v1228 = vld [vmem:[#allocation2 + $0x80] sm:$0x1]
      %v1229 = vld [vmem:[#allocation2 + $0x84] sm:$0xf]
      %v1230 = vld [vmem:[#allocation2 + $0x88] sm:$0xf]
      %v1231 = vld [vmem:[#allocation2 + $0x8c] sm:$0x1]
      %v1232 = vld [vmem:[#allocation2 + $0x90] sm:$0xf]
      %v1233 = vld [vmem:[#allocation2 + $0x94] sm:$0xf]
      %v1234 = vld [vmem:[#allocation2 + $0x98] sm:$0x1]
      %v1235 = vld [vmem:[#allocation2 + $0x9c] sm:$0xf]
      %v1236 = vld [vmem:[#allocation2 + $0xa0] sm:$0xf]
      %v1237 = vld [vmem:[#allocation2 + $0xa4] sm:$0x1]
      %v1238 = vld [vmem:[#allocation2 + $0xa8] sm:$0xf]
      %v1239 = vld [vmem:[#allocation2 + $0xac] sm:$0xf]
      %v1240 = vld [vmem:[#allocation2 + $0xb0] sm:$0x1]
      %v1241 = vld [vmem:[#allocation2 + $0xb4] sm:$0xf]
      %v1242 = vld [vmem:[#allocation2 + $0xb8] sm:$0xf]
      %v1243 = vld [vmem:[#allocation2 + $0xbc] sm:$0x1]
      %vm1244 = vsmask.f32 3328
      %vm1245 = vsmask.f32 7440
      %vm1246 = vmor %vm1244, %vm1245
      %v1248 = vshrl.u32 %v1196, 16
      %v1250 = vrot.slane %v1248, 4
      %v1251 = vshll.u32 %v1196, 16
      %v1253 = vrot.slane %v1251, 5
      %v1254 = vor.u32 %v1250, %v1253
      %v1255 = vrot.slane %v1254, 4
      %v1257 = vshll.u32 %v1197, 16
      %v1259 = vrot.slane %v1257, 5
      %v1260 = vsel %vm1246, %v1255, %v1259
      %v1261 = vshrl.u32 %v1197, 16
      %v1263 = vrot.slane %v1261, 4
      %v1264 = vor.u32 %v1263, %v1259
      %v1265 = vrot.slane %v1264, 4
      %v1267 = vshll.u32 %v1198, 16
      %v1269 = vrot.slane %v1267, 5
      %v1270 = vsel %vm1246, %v1265, %v1269
      %v1272 = vshrl.u32 %v1199, 16
      %v1274 = vrot.slane %v1272, 4
      %v1275 = vshll.u32 %v1199, 16
      %v1277 = vrot.slane %v1275, 5
      %v1278 = vor.u32 %v1274, %v1277
      %v1279 = vrot.slane %v1278, 4
      %v1281 = vshll.u32 %v1200, 16
      %v1283 = vrot.slane %v1281, 5
      %v1284 = vsel %vm1246, %v1279, %v1283
      %v1285 = vshrl.u32 %v1200, 16
      %v1287 = vrot.slane %v1285, 4
      %v1288 = vor.u32 %v1287, %v1283
      %v1289 = vrot.slane %v1288, 4
      %v1291 = vshll.u32 %v1201, 16
      %v1293 = vrot.slane %v1291, 5
      %v1294 = vsel %vm1246, %v1289, %v1293
      %v1296 = vshrl.u32 %v1202, 16
      %v1298 = vrot.slane %v1296, 4
      %v1299 = vshll.u32 %v1202, 16
      %v1301 = vrot.slane %v1299, 5
      %v1302 = vor.u32 %v1298, %v1301
      %v1303 = vrot.slane %v1302, 4
      %v1305 = vshll.u32 %v1203, 16
      %v1307 = vrot.slane %v1305, 5
      %v1308 = vsel %vm1246, %v1303, %v1307
      %v1309 = vshrl.u32 %v1203, 16
      %v1311 = vrot.slane %v1309, 4
      %v1312 = vor.u32 %v1311, %v1307
      %v1313 = vrot.slane %v1312, 4
      %v1315 = vshll.u32 %v1204, 16
      %v1317 = vrot.slane %v1315, 5
      %v1318 = vsel %vm1246, %v1313, %v1317
      %v1320 = vshrl.u32 %v1205, 16
      %v1322 = vrot.slane %v1320, 4
      %v1323 = vshll.u32 %v1205, 16
      %v1325 = vrot.slane %v1323, 5
      %v1326 = vor.u32 %v1322, %v1325
      %v1327 = vrot.slane %v1326, 4
      %v1329 = vshll.u32 %v1206, 16
      %v1331 = vrot.slane %v1329, 5
      %v1332 = vsel %vm1246, %v1327, %v1331
      %v1333 = vshrl.u32 %v1206, 16
      %v1335 = vrot.slane %v1333, 4
      %v1336 = vor.u32 %v1335, %v1331
      %v1337 = vrot.slane %v1336, 4
      %v1339 = vshll.u32 %v1207, 16
      %v1341 = vrot.slane %v1339, 5
      %v1342 = vsel %vm1246, %v1337, %v1341
      %v1344 = vshrl.u32 %v1208, 16
      %v1346 = vrot.slane %v1344, 4
      %v1347 = vshll.u32 %v1208, 16
      %v1349 = vrot.slane %v1347, 5
      %v1350 = vor.u32 %v1346, %v1349
      %v1351 = vrot.slane %v1350, 4
      %v1353 = vshll.u32 %v1209, 16
      %v1355 = vrot.slane %v1353, 5
      %v1356 = vsel %vm1246, %v1351, %v1355
      %v1357 = vshrl.u32 %v1209, 16
      %v1359 = vrot.slane %v1357, 4
      %v1360 = vor.u32 %v1359, %v1355
      %v1361 = vrot.slane %v1360, 4
      %v1363 = vshll.u32 %v1210, 16
      %v1365 = vrot.slane %v1363, 5
      %v1366 = vsel %vm1246, %v1361, %v1365
      %v1368 = vshrl.u32 %v1211, 16
      %v1370 = vrot.slane %v1368, 4
      %v1371 = vshll.u32 %v1211, 16
      %v1373 = vrot.slane %v1371, 5
      %v1374 = vor.u32 %v1370, %v1373
      %v1375 = vrot.slane %v1374, 4
      %v1377 = vshll.u32 %v1212, 16
      %v1379 = vrot.slane %v1377, 5
      %v1380 = vsel %vm1246, %v1375, %v1379
      %v1381 = vshrl.u32 %v1212, 16
      %v1383 = vrot.slane %v1381, 4
      %v1384 = vor.u32 %v1383, %v1379
      %v1385 = vrot.slane %v1384, 4
      %v1387 = vshll.u32 %v1213, 16
      %v1389 = vrot.slane %v1387, 5
      %v1390 = vsel %vm1246, %v1385, %v1389
      %v1392 = vshrl.u32 %v1214, 16
      %v1394 = vrot.slane %v1392, 4
      %v1395 = vshll.u32 %v1214, 16
      %v1397 = vrot.slane %v1395, 5
      %v1398 = vor.u32 %v1394, %v1397
      %v1399 = vrot.slane %v1398, 4
      %v1401 = vshll.u32 %v1215, 16
      %v1403 = vrot.slane %v1401, 5
      %v1404 = vsel %vm1246, %v1399, %v1403
      %v1405 = vshrl.u32 %v1215, 16
      %v1407 = vrot.slane %v1405, 4
      %v1408 = vor.u32 %v1407, %v1403
      %v1409 = vrot.slane %v1408, 4
      %v1411 = vshll.u32 %v1216, 16
      %v1413 = vrot.slane %v1411, 5
      %v1414 = vsel %vm1246, %v1409, %v1413
      %v1416 = vshrl.u32 %v1217, 16
      %v1418 = vrot.slane %v1416, 4
      %v1419 = vshll.u32 %v1217, 16
      %v1421 = vrot.slane %v1419, 5
      %v1422 = vor.u32 %v1418, %v1421
      %v1423 = vrot.slane %v1422, 4
      %v1425 = vshll.u32 %v1218, 16
      %v1427 = vrot.slane %v1425, 5
      %v1428 = vsel %vm1246, %v1423, %v1427
      %v1429 = vshrl.u32 %v1218, 16
      %v1431 = vrot.slane %v1429, 4
      %v1432 = vor.u32 %v1431, %v1427
      %v1433 = vrot.slane %v1432, 4
      %v1435 = vshll.u32 %v1219, 16
      %v1437 = vrot.slane %v1435, 5
      %v1438 = vsel %vm1246, %v1433, %v1437
      %v1440 = vshrl.u32 %v1220, 16
      %v1442 = vrot.slane %v1440, 4
      %v1443 = vshll.u32 %v1220, 16
      %v1445 = vrot.slane %v1443, 5
      %v1446 = vor.u32 %v1442, %v1445
      %v1447 = vrot.slane %v1446, 4
      %v1449 = vshll.u32 %v1221, 16
      %v1451 = vrot.slane %v1449, 5
      %v1452 = vsel %vm1246, %v1447, %v1451
      %v1453 = vshrl.u32 %v1221, 16
      %v1455 = vrot.slane %v1453, 4
      %v1456 = vor.u32 %v1455, %v1451
      %v1457 = vrot.slane %v1456, 4
      %v1459 = vshll.u32 %v1222, 16
      %v1461 = vrot.slane %v1459, 5
      %v1462 = vsel %vm1246, %v1457, %v1461
      %v1464 = vshrl.u32 %v1223, 16
      %v1466 = vrot.slane %v1464, 4
      %v1467 = vshll.u32 %v1223, 16
      %v1469 = vrot.slane %v1467, 5
      %v1470 = vor.u32 %v1466, %v1469
      %v1471 = vrot.slane %v1470, 4
      %v1473 = vshll.u32 %v1224, 16
      %v1475 = vrot.slane %v1473, 5
      %v1476 = vsel %vm1246, %v1471, %v1475
      %v1477 = vshrl.u32 %v1224, 16
      %v1479 = vrot.slane %v1477, 4
      %v1480 = vor.u32 %v1479, %v1475
      %v1481 = vrot.slane %v1480, 4
      %v1483 = vshll.u32 %v1225, 16
      %v1485 = vrot.slane %v1483, 5
      %v1486 = vsel %vm1246, %v1481, %v1485
      %v1488 = vshrl.u32 %v1226, 16
      %v1490 = vrot.slane %v1488, 4
      %v1491 = vshll.u32 %v1226, 16
      %v1493 = vrot.slane %v1491, 5
      %v1494 = vor.u32 %v1490, %v1493
      %v1495 = vrot.slane %v1494, 4
      %v1497 = vshll.u32 %v1227, 16
      %v1499 = vrot.slane %v1497, 5
      %v1500 = vsel %vm1246, %v1495, %v1499
      %v1501 = vshrl.u32 %v1227, 16
      %v1503 = vrot.slane %v1501, 4
      %v1504 = vor.u32 %v1503, %v1499
      %v1505 = vrot.slane %v1504, 4
      %v1507 = vshll.u32 %v1228, 16
      %v1509 = vrot.slane %v1507, 5
      %v1510 = vsel %vm1246, %v1505, %v1509
      %v1512 = vshrl.u32 %v1229, 16
      %v1514 = vrot.slane %v1512, 4
      %v1515 = vshll.u32 %v1229, 16
      %v1517 = vrot.slane %v1515, 5
      %v1518 = vor.u32 %v1514, %v1517
      %v1519 = vrot.slane %v1518, 4
      %v1521 = vshll.u32 %v1230, 16
      %v1523 = vrot.slane %v1521, 5
      %v1524 = vsel %vm1246, %v1519, %v1523
      %v1525 = vshrl.u32 %v1230, 16
      %v1527 = vrot.slane %v1525, 4
      %v1528 = vor.u32 %v1527, %v1523
      %v1529 = vrot.slane %v1528, 4
      %v1531 = vshll.u32 %v1231, 16
      %v1533 = vrot.slane %v1531, 5
      %v1534 = vsel %vm1246, %v1529, %v1533
      %v1536 = vshrl.u32 %v1232, 16
      %v1538 = vrot.slane %v1536, 4
      %v1539 = vshll.u32 %v1232, 16
      %v1541 = vrot.slane %v1539, 5
      %v1542 = vor.u32 %v1538, %v1541
      %v1543 = vrot.slane %v1542, 4
      %v1545 = vshll.u32 %v1233, 16
      %v1547 = vrot.slane %v1545, 5
      %v1548 = vsel %vm1246, %v1543, %v1547
      %v1549 = vshrl.u32 %v1233, 16
      %v1551 = vrot.slane %v1549, 4
      %v1552 = vor.u32 %v1551, %v1547
      %v1553 = vrot.slane %v1552, 4
      %v1555 = vshll.u32 %v1234, 16
      %v1557 = vrot.slane %v1555, 5
      %v1558 = vsel %vm1246, %v1553, %v1557
      %v1560 = vshrl.u32 %v1235, 16
      %v1562 = vrot.slane %v1560, 4
      %v1563 = vshll.u32 %v1235, 16
      %v1565 = vrot.slane %v1563, 5
      %v1566 = vor.u32 %v1562, %v1565
      %v1567 = vrot.slane %v1566, 4
      %v1569 = vshll.u32 %v1236, 16
      %v1571 = vrot.slane %v1569, 5
      %v1572 = vsel %vm1246, %v1567, %v1571
      %v1573 = vshrl.u32 %v1236, 16
      %v1575 = vrot.slane %v1573, 4
      %v1576 = vor.u32 %v1575, %v1571
      %v1577 = vrot.slane %v1576, 4
      %v1579 = vshll.u32 %v1237, 16
      %v1581 = vrot.slane %v1579, 5
      %v1582 = vsel %vm1246, %v1577, %v1581
      %v1584 = vshrl.u32 %v1238, 16
      %v1586 = vrot.slane %v1584, 4
      %v1587 = vshll.u32 %v1238, 16
      %v1589 = vrot.slane %v1587, 5
      %v1590 = vor.u32 %v1586, %v1589
      %v1591 = vrot.slane %v1590, 4
      %v1593 = vshll.u32 %v1239, 16
      %v1595 = vrot.slane %v1593, 5
      %v1596 = vsel %vm1246, %v1591, %v1595
      %v1597 = vshrl.u32 %v1239, 16
      %v1599 = vrot.slane %v1597, 4
      %v1600 = vor.u32 %v1599, %v1595
      %v1601 = vrot.slane %v1600, 4
      %v1603 = vshll.u32 %v1240, 16
      %v1605 = vrot.slane %v1603, 5
      %v1606 = vsel %vm1246, %v1601, %v1605
      %v1608 = vshrl.u32 %v1241, 16
      %v1610 = vrot.slane %v1608, 4
      %v1611 = vshll.u32 %v1241, 16
      %v1613 = vrot.slane %v1611, 5
      %v1614 = vor.u32 %v1610, %v1613
      %v1615 = vrot.slane %v1614, 4
      %v1617 = vshll.u32 %v1242, 16
      %v1619 = vrot.slane %v1617, 5
      %v1620 = vsel %vm1246, %v1615, %v1619
      %v1621 = vshrl.u32 %v1242, 16
      %v1623 = vrot.slane %v1621, 4
      %v1624 = vor.u32 %v1623, %v1619
      %v1625 = vrot.slane %v1624, 4
      %v1627 = vshll.u32 %v1243, 16
      %v1629 = vrot.slane %v1627, 5
      %v1630 = vsel %vm1246, %v1625, %v1629
      %v1631 = vunpack.c.l.b16 %v1260
      %v1632 = vunpack.c.l.b16 %v1270
      %v1633 = vunpack.c.l.b16 %v1284
      %v1634 = vunpack.c.l.b16 %v1294
      %v1635 = vunpack.c.l.b16 %v1308
      %v1636 = vunpack.c.l.b16 %v1318
      %v1637 = vunpack.c.l.b16 %v1332
      %v1638 = vunpack.c.l.b16 %v1342
      %v1639 = vunpack.c.l.b16 %v1356
      %v1640 = vunpack.c.l.b16 %v1366
      %v1641 = vunpack.c.l.b16 %v1380
      %v1642 = vunpack.c.l.b16 %v1390
      %v1643 = vunpack.c.l.b16 %v1404
      %v1644 = vunpack.c.l.b16 %v1414
      %v1645 = vunpack.c.l.b16 %v1428
      %v1646 = vunpack.c.l.b16 %v1438
      %v1647 = vunpack.c.l.b16 %v1452
      %v1648 = vunpack.c.l.b16 %v1462
      %v1649 = vunpack.c.l.b16 %v1476
      %v1650 = vunpack.c.l.b16 %v1486
      %v1651 = vunpack.c.l.b16 %v1500
      %v1652 = vunpack.c.l.b16 %v1510
      %v1653 = vunpack.c.l.b16 %v1524
      %v1654 = vunpack.c.l.b16 %v1534
      %v1655 = vunpack.c.l.b16 %v1548
      %v1656 = vunpack.c.l.b16 %v1558
      %v1657 = vunpack.c.l.b16 %v1572
      %v1658 = vunpack.c.l.b16 %v1582
      %v1659 = vunpack.c.l.b16 %v1596
      %v1660 = vunpack.c.l.b16 %v1606
      %v1661 = vunpack.c.l.b16 %v1620
      %v1662 = vunpack.c.l.b16 %v1630
      %v1663 = vpack.c.b16 %v1632, %v1631
      %v1664 = vpack.c.b16 %v1634, %v1633
      %v1665 = vpack.c.b16 %v1636, %v1635
      %v1666 = vpack.c.b16 %v1638, %v1637
      %v1667 = vpack.c.b16 %v1640, %v1639
      %v1668 = vpack.c.b16 %v1642, %v1641
      %v1669 = vpack.c.b16 %v1644, %v1643
      %v1670 = vpack.c.b16 %v1646, %v1645
      %v1671 = vpack.c.b16 %v1648, %v1647
      %v1672 = vpack.c.b16 %v1650, %v1649
      %v1673 = vpack.c.b16 %v1652, %v1651
      %v1674 = vpack.c.b16 %v1654, %v1653
      %v1675 = vpack.c.b16 %v1656, %v1655
      %v1676 = vpack.c.b16 %v1658, %v1657
      %v1677 = vpack.c.b16 %v1660, %v1659
      %v1678 = vpack.c.b16 %v1662, %v1661
      %1695 = vst [vmem:[#allocation3 + $0x8] sm:$0xff] %v1663
      %1696 = vst [vmem:[#allocation3 + $0x50] sm:$0xff] %v1664
      %1697 = vst [vmem:[#allocation3 + $0x98] sm:$0xff] %v1665
      %1698 = vst [vmem:[#allocation3 + $0xe0] sm:$0xff] %v1666
      %1699 = vst [vmem:[#allocation3 + $0x128] sm:$0xff] %v1667
      %1700 = vst [vmem:[#allocation3 + $0x170] sm:$0xff] %v1668
      %1701 = vst [vmem:[#allocation3 + $0x1b8] sm:$0xff] %v1669
      %1702 = vst [vmem:[#allocation3 + $0x200] sm:$0xff] %v1670
      %1703 = vst [vmem:[#allocation3 + $0x248] sm:$0xff] %v1671
      %1704 = vst [vmem:[#allocation3 + $0x290] sm:$0xff] %v1672
      %1705 = vst [vmem:[#allocation3 + $0x2d8] sm:$0xff] %v1673
      %1706 = vst [vmem:[#allocation3 + $0x320] sm:$0xff] %v1674
      %1707 = vst [vmem:[#allocation3 + $0x368] sm:$0xff] %v1675
      %1708 = vst [vmem:[#allocation3 + $0x3b0] sm:$0xff] %v1676
      %1709 = vst [vmem:[#allocation3 + $0x3f8] sm:$0xff] %v1677
      %1710 = vst [vmem:[#allocation3 + $0x440] sm:$0xff] %v1678
      %v1711 = vld [vmem:[#allocation2] sm:$0xe]
      %v1712 = vld [vmem:[#allocation2 + $0x4] sm:$0xf]
      %v1713 = vld [vmem:[#allocation2 + $0x8] sm:$0x1]
      %v1714 = vld [vmem:[#allocation2 + $0xc] sm:$0xe]
      %v1715 = vld [vmem:[#allocation2 + $0x10] sm:$0xf]
      %v1716 = vld [vmem:[#allocation2 + $0x14] sm:$0x1]
      %v1717 = vld [vmem:[#allocation2 + $0x18] sm:$0xe]
      %v1718 = vld [vmem:[#allocation2 + $0x1c] sm:$0xf]
      %v1719 = vld [vmem:[#allocation2 + $0x20] sm:$0x1]
      %v1720 = vld [vmem:[#allocation2 + $0x24] sm:$0xe]
      %v1721 = vld [vmem:[#allocation2 + $0x28] sm:$0xf]
      %v1722 = vld [vmem:[#allocation2 + $0x2c] sm:$0x1]
      %v1723 = vld [vmem:[#allocation2 + $0x30] sm:$0xe]
      %v1724 = vld [vmem:[#allocation2 + $0x34] sm:$0xf]
      %v1725 = vld [vmem:[#allocation2 + $0x38] sm:$0x1]
      %v1726 = vld [vmem:[#allocation2 + $0x3c] sm:$0xe]
      %v1727 = vld [vmem:[#allocation2 + $0x40] sm:$0xf]
      %v1728 = vld [vmem:[#allocation2 + $0x44] sm:$0x1]
      %v1729 = vld [vmem:[#allocation2 + $0x48] sm:$0xe]
      %v1730 = vld [vmem:[#allocation2 + $0x4c] sm:$0xf]
      %v1731 = vld [vmem:[#allocation2 + $0x50] sm:$0x1]
      %v1732 = vld [vmem:[#allocation2 + $0x54] sm:$0xe]
      %v1733 = vld [vmem:[#allocation2 + $0x58] sm:$0xf]
      %v1734 = vld [vmem:[#allocation2 + $0x5c] sm:$0x1]
      %v1735 = vld [vmem:[#allocation2 + $0x60] sm:$0xe]
      %v1736 = vld [vmem:[#allocation2 + $0x64] sm:$0xf]
      %v1737 = vld [vmem:[#allocation2 + $0x68] sm:$0x1]
      %v1738 = vld [vmem:[#allocation2 + $0x6c] sm:$0xe]
      %v1739 = vld [vmem:[#allocation2 + $0x70] sm:$0xf]
      %v1740 = vld [vmem:[#allocation2 + $0x74] sm:$0x1]
      %v1741 = vld [vmem:[#allocation2 + $0x78] sm:$0xe]
      %v1742 = vld [vmem:[#allocation2 + $0x7c] sm:$0xf]
      %v1743 = vld [vmem:[#allocation2 + $0x80] sm:$0x1]
      %v1744 = vld [vmem:[#allocation2 + $0x84] sm:$0xe]
      %v1745 = vld [vmem:[#allocation2 + $0x88] sm:$0xf]
      %v1746 = vld [vmem:[#allocation2 + $0x8c] sm:$0x1]
      %v1747 = vld [vmem:[#allocation2 + $0x90] sm:$0xe]
      %v1748 = vld [vmem:[#allocation2 + $0x94] sm:$0xf]
      %v1749 = vld [vmem:[#allocation2 + $0x98] sm:$0x1]
      %v1750 = vld [vmem:[#allocation2 + $0x9c] sm:$0xe]
      %v1751 = vld [vmem:[#allocation2 + $0xa0] sm:$0xf]
      %v1752 = vld [vmem:[#allocation2 + $0xa4] sm:$0x1]
      %v1753 = vld [vmem:[#allocation2 + $0xa8] sm:$0xe]
      %v1754 = vld [vmem:[#allocation2 + $0xac] sm:$0xf]
      %v1755 = vld [vmem:[#allocation2 + $0xb0] sm:$0x1]
      %v1756 = vld [vmem:[#allocation2 + $0xb4] sm:$0xe]
      %v1757 = vld [vmem:[#allocation2 + $0xb8] sm:$0xf]
      %v1758 = vld [vmem:[#allocation2 + $0xbc] sm:$0x1]
      %vm1807 = vcmask 1042432
      %vm1808 = vcmask 1046532
      %vm1809 = vmor %vm1807, %vm1808
      %v1810 = vrot.slane %v1711, 5
      %v1811 = vrot.slane %v1810, 4
      %v1812 = vrot.slane %v1712, 5
      %v1813 = vsel %vm1809, %v1811, %v1812
      %v1814 = vrot.slane %v1812, 4
      %v1815 = vrot.slane %v1713, 5
      %v1816 = vsel %vm1809, %v1814, %v1815
      %v1817 = vrot.slane %v1714, 5
      %v1818 = vrot.slane %v1817, 4
      %v1819 = vrot.slane %v1715, 5
      %v1820 = vsel %vm1809, %v1818, %v1819
      %v1821 = vrot.slane %v1819, 4
      %v1822 = vrot.slane %v1716, 5
      %v1823 = vsel %vm1809, %v1821, %v1822
      %v1824 = vrot.slane %v1717, 5
      %v1825 = vrot.slane %v1824, 4
      %v1826 = vrot.slane %v1718, 5
      %v1827 = vsel %vm1809, %v1825, %v1826
      %v1828 = vrot.slane %v1826, 4
      %v1829 = vrot.slane %v1719, 5
      %v1830 = vsel %vm1809, %v1828, %v1829
      %v1831 = vrot.slane %v1720, 5
      %v1832 = vrot.slane %v1831, 4
      %v1833 = vrot.slane %v1721, 5
      %v1834 = vsel %vm1809, %v1832, %v1833
      %v1835 = vrot.slane %v1833, 4
      %v1836 = vrot.slane %v1722, 5
      %v1837 = vsel %vm1809, %v1835, %v1836
      %v1838 = vrot.slane %v1723, 5
      %v1839 = vrot.slane %v1838, 4
      %v1840 = vrot.slane %v1724, 5
      %v1841 = vsel %vm1809, %v1839, %v1840
      %v1842 = vrot.slane %v1840, 4
      %v1843 = vrot.slane %v1725, 5
      %v1844 = vsel %vm1809, %v1842, %v1843
      %v1845 = vrot.slane %v1726, 5
      %v1846 = vrot.slane %v1845, 4
      %v1847 = vrot.slane %v1727, 5
      %v1848 = vsel %vm1809, %v1846, %v1847
      %v1849 = vrot.slane %v1847, 4
      %v1850 = vrot.slane %v1728, 5
      %v1851 = vsel %vm1809, %v1849, %v1850
      %v1852 = vrot.slane %v1729, 5
      %v1853 = vrot.slane %v1852, 4
      %v1854 = vrot.slane %v1730, 5
      %v1855 = vsel %vm1809, %v1853, %v1854
      %v1856 = vrot.slane %v1854, 4
      %v1857 = vrot.slane %v1731, 5
      %v1858 = vsel %vm1809, %v1856, %v1857
      %v1859 = vrot.slane %v1732, 5
      %v1860 = vrot.slane %v1859, 4
      %v1861 = vrot.slane %v1733, 5
      %v1862 = vsel %vm1809, %v1860, %v1861
      %v1863 = vrot.slane %v1861, 4
      %v1864 = vrot.slane %v1734, 5
      %v1865 = vsel %vm1809, %v1863, %v1864
      %v1866 = vrot.slane %v1735, 5
      %v1867 = vrot.slane %v1866, 4
      %v1868 = vrot.slane %v1736, 5
      %v1869 = vsel %vm1809, %v1867, %v1868
      %v1870 = vrot.slane %v1868, 4
      %v1871 = vrot.slane %v1737, 5
      %v1872 = vsel %vm1809, %v1870, %v1871
      %v1873 = vrot.slane %v1738, 5
      %v1874 = vrot.slane %v1873, 4
      %v1875 = vrot.slane %v1739, 5
      %v1876 = vsel %vm1809, %v1874, %v1875
      %v1877 = vrot.slane %v1875, 4
      %v1878 = vrot.slane %v1740, 5
      %v1879 = vsel %vm1809, %v1877, %v1878
      %v1880 = vrot.slane %v1741, 5
      %v1881 = vrot.slane %v1880, 4
      %v1882 = vrot.slane %v1742, 5
      %v1883 = vsel %vm1809, %v1881, %v1882
      %v1884 = vrot.slane %v1882, 4
      %v1885 = vrot.slane %v1743, 5
      %v1886 = vsel %vm1809, %v1884, %v1885
      %v1887 = vrot.slane %v1744, 5
      %v1888 = vrot.slane %v1887, 4
      %v1889 = vrot.slane %v1745, 5
      %v1890 = vsel %vm1809, %v1888, %v1889
      %v1891 = vrot.slane %v1889, 4
      %v1892 = vrot.slane %v1746, 5
      %v1893 = vsel %vm1809, %v1891, %v1892
      %v1894 = vrot.slane %v1747, 5
      %v1895 = vrot.slane %v1894, 4
      %v1896 = vrot.slane %v1748, 5
      %v1897 = vsel %vm1809, %v1895, %v1896
      %v1898 = vrot.slane %v1896, 4
      %v1899 = vrot.slane %v1749, 5
      %v1900 = vsel %vm1809, %v1898, %v1899
      %v1901 = vrot.slane %v1750, 5
      %v1902 = vrot.slane %v1901, 4
      %v1903 = vrot.slane %v1751, 5
      %v1904 = vsel %vm1809, %v1902, %v1903
      %v1905 = vrot.slane %v1903, 4
      %v1906 = vrot.slane %v1752, 5
      %v1907 = vsel %vm1809, %v1905, %v1906
      %v1908 = vrot.slane %v1753, 5
      %v1909 = vrot.slane %v1908, 4
      %v1910 = vrot.slane %v1754, 5
      %v1911 = vsel %vm1809, %v1909, %v1910
      %v1912 = vrot.slane %v1910, 4
      %v1913 = vrot.slane %v1755, 5
      %v1914 = vsel %vm1809, %v1912, %v1913
      %v1915 = vrot.slane %v1756, 5
      %v1916 = vrot.slane %v1915, 4
      %v1917 = vrot.slane %v1757, 5
      %v1918 = vsel %vm1809, %v1916, %v1917
      %v1919 = vrot.slane %v1917, 4
      %v1920 = vrot.slane %v1758, 5
      %v1921 = vsel %vm1809, %v1919, %v1920
      %v1922 = vunpack.c.l.b16 %v1813
      %v1923 = vunpack.c.l.b16 %v1816
      %v1924 = vunpack.c.l.b16 %v1820
      %v1925 = vunpack.c.l.b16 %v1823
      %v1926 = vunpack.c.l.b16 %v1827
      %v1927 = vunpack.c.l.b16 %v1830
      %v1928 = vunpack.c.l.b16 %v1834
      %v1929 = vunpack.c.l.b16 %v1837
      %v1930 = vunpack.c.l.b16 %v1841
      %v1931 = vunpack.c.l.b16 %v1844
      %v1932 = vunpack.c.l.b16 %v1848
      %v1933 = vunpack.c.l.b16 %v1851
      %v1934 = vunpack.c.l.b16 %v1855
      %v1935 = vunpack.c.l.b16 %v1858
      %v1936 = vunpack.c.l.b16 %v1862
      %v1937 = vunpack.c.l.b16 %v1865
      %v1938 = vunpack.c.l.b16 %v1869
      %v1939 = vunpack.c.l.b16 %v1872
      %v1940 = vunpack.c.l.b16 %v1876
      %v1941 = vunpack.c.l.b16 %v1879
      %v1942 = vunpack.c.l.b16 %v1883
      %v1943 = vunpack.c.l.b16 %v1886
      %v1944 = vunpack.c.l.b16 %v1890
      %v1945 = vunpack.c.l.b16 %v1893
      %v1946 = vunpack.c.l.b16 %v1897
      %v1947 = vunpack.c.l.b16 %v1900
      %v1948 = vunpack.c.l.b16 %v1904
      %v1949 = vunpack.c.l.b16 %v1907
      %v1950 = vunpack.c.l.b16 %v1911
      %v1951 = vunpack.c.l.b16 %v1914
      %v1952 = vunpack.c.l.b16 %v1918
      %v1953 = vunpack.c.l.b16 %v1921
      %v1954 = vpack.c.b16 %v1923, %v1922
      %v1955 = vpack.c.b16 %v1925, %v1924
      %v1956 = vpack.c.b16 %v1927, %v1926
      %v1957 = vpack.c.b16 %v1929, %v1928
      %v1958 = vpack.c.b16 %v1931, %v1930
      %v1959 = vpack.c.b16 %v1933, %v1932
      %v1960 = vpack.c.b16 %v1935, %v1934
      %v1961 = vpack.c.b16 %v1937, %v1936
      %v1962 = vpack.c.b16 %v1939, %v1938
      %v1963 = vpack.c.b16 %v1941, %v1940
      %v1964 = vpack.c.b16 %v1943, %v1942
      %v1965 = vpack.c.b16 %v1945, %v1944
      %v1966 = vpack.c.b16 %v1947, %v1946
      %v1967 = vpack.c.b16 %v1949, %v1948
      %v1968 = vpack.c.b16 %v1951, %v1950
      %v1969 = vpack.c.b16 %v1953, %v1952
      %1986 = vst [vmem:[#allocation3 + $0x10] sm:$0xff] %v1954
      %1987 = vst [vmem:[#allocation3 + $0x58] sm:$0xff] %v1955
      %1988 = vst [vmem:[#allocation3 + $0xa0] sm:$0xff] %v1956
      %1989 = vst [vmem:[#allocation3 + $0xe8] sm:$0xff] %v1957
      %1990 = vst [vmem:[#allocation3 + $0x130] sm:$0xff] %v1958
      %1991 = vst [vmem:[#allocation3 + $0x178] sm:$0xff] %v1959
      %1992 = vst [vmem:[#allocation3 + $0x1c0] sm:$0xff] %v1960
      %1993 = vst [vmem:[#allocation3 + $0x208] sm:$0xff] %v1961
      %1994 = vst [vmem:[#allocation3 + $0x250] sm:$0xff] %v1962
      %1995 = vst [vmem:[#allocation3 + $0x298] sm:$0xff] %v1963
      %1996 = vst [vmem:[#allocation3 + $0x2e0] sm:$0xff] %v1964
      %1997 = vst [vmem:[#allocation3 + $0x328] sm:$0xff] %v1965
      %1998 = vst [vmem:[#allocation3 + $0x370] sm:$0xff] %v1966
      %1999 = vst [vmem:[#allocation3 + $0x3b8] sm:$0xff] %v1967
      %2000 = vst [vmem:[#allocation3 + $0x400] sm:$0xff] %v1968
      %2001 = vst [vmem:[#allocation3 + $0x448] sm:$0xff] %v1969
      %v2002 = vld [vmem:[%s418] sm:$0xf]
      %v2003 = vld [vmem:[%s418 + $0x4] sm:$0xf]
      %v2004 = vld [vmem:[%s418 + $0xc] sm:$0xf]
      %v2005 = vld [vmem:[%s418 + $0x10] sm:$0xf]
      %v2006 = vld [vmem:[%s418 + $0x18] sm:$0xf]
      %v2007 = vld [vmem:[%s418 + $0x1c] sm:$0xf]
      %v2008 = vld [vmem:[%s418 + $0x24] sm:$0xf]
      %v2009 = vld [vmem:[%s418 + $0x28] sm:$0xf]
      %v2010 = vld [vmem:[%s418 + $0x30] sm:$0xf]
      %v2011 = vld [vmem:[%s418 + $0x34] sm:$0xf]
      %v2012 = vld [vmem:[%s418 + $0x3c] sm:$0xf]
      %v2013 = vld [vmem:[%s418 + $0x40] sm:$0xf]
      %v2014 = vld [vmem:[%s418 + $0x48] sm:$0xf]
      %v2015 = vld [vmem:[%s418 + $0x4c] sm:$0xf]
      %v2016 = vld [vmem:[%s418 + $0x54] sm:$0xf]
      %v2017 = vld [vmem:[%s418 + $0x58] sm:$0xf]
      %v2018 = vld [vmem:[%s418 + $0x60] sm:$0xf]
      %v2019 = vld [vmem:[%s418 + $0x64] sm:$0xf]
      %v2020 = vld [vmem:[%s418 + $0x6c] sm:$0xf]
      %v2021 = vld [vmem:[%s418 + $0x70] sm:$0xf]
      %v2022 = vld [vmem:[%s418 + $0x78] sm:$0xf]
      %v2023 = vld [vmem:[%s418 + $0x7c] sm:$0xf]
      %v2024 = vld [vmem:[%s418 + $0x84] sm:$0xf]
      %v2025 = vld [vmem:[%s418 + $0x88] sm:$0xf]
      %v2026 = vld [vmem:[%s418 + $0x90] sm:$0xf]
      %v2027 = vld [vmem:[%s418 + $0x94] sm:$0xf]
      %v2028 = vld [vmem:[%s418 + $0x9c] sm:$0xf]
      %v2029 = vld [vmem:[%s418 + $0xa0] sm:$0xf]
      %v2030 = vld [vmem:[%s418 + $0xa8] sm:$0xf]
      %v2031 = vld [vmem:[%s418 + $0xac] sm:$0xf]
      %v2032 = vld [vmem:[%s418 + $0xb4] sm:$0xf]
      %v2033 = vld [vmem:[%s418 + $0xb8] sm:$0xf]
      %v2066 = vunpack.c.l.b16 %v2002
      %v2067 = vunpack.c.l.b16 %v2003
      %v2068 = vunpack.c.l.b16 %v2004
      %v2069 = vunpack.c.l.b16 %v2005
      %v2070 = vunpack.c.l.b16 %v2006
      %v2071 = vunpack.c.l.b16 %v2007
      %v2072 = vunpack.c.l.b16 %v2008
      %v2073 = vunpack.c.l.b16 %v2009
      %v2074 = vunpack.c.l.b16 %v2010
      %v2075 = vunpack.c.l.b16 %v2011
      %v2076 = vunpack.c.l.b16 %v2012
      %v2077 = vunpack.c.l.b16 %v2013
      %v2078 = vunpack.c.l.b16 %v2014
      %v2079 = vunpack.c.l.b16 %v2015
      %v2080 = vunpack.c.l.b16 %v2016
      %v2081 = vunpack.c.l.b16 %v2017
      %v2082 = vunpack.c.l.b16 %v2018
      %v2083 = vunpack.c.l.b16 %v2019
      %v2084 = vunpack.c.l.b16 %v2020
      %v2085 = vunpack.c.l.b16 %v2021
      %v2086 = vunpack.c.l.b16 %v2022
      %v2087 = vunpack.c.l.b16 %v2023
      %v2088 = vunpack.c.l.b16 %v2024
      %v2089 = vunpack.c.l.b16 %v2025
      %v2090 = vunpack.c.l.b16 %v2026
      %v2091 = vunpack.c.l.b16 %v2027
      %v2092 = vunpack.c.l.b16 %v2028
      %v2093 = vunpack.c.l.b16 %v2029
      %v2094 = vunpack.c.l.b16 %v2030
      %v2095 = vunpack.c.l.b16 %v2031
      %v2096 = vunpack.c.l.b16 %v2032
      %v2097 = vunpack.c.l.b16 %v2033
      %v2098 = vpack.c.b16 %v2067, %v2066
      %v2099 = vpack.c.b16 %v2069, %v2068
      %v2100 = vpack.c.b16 %v2071, %v2070
      %v2101 = vpack.c.b16 %v2073, %v2072
      %v2102 = vpack.c.b16 %v2075, %v2074
      %v2103 = vpack.c.b16 %v2077, %v2076
      %v2104 = vpack.c.b16 %v2079, %v2078
      %v2105 = vpack.c.b16 %v2081, %v2080
      %v2106 = vpack.c.b16 %v2083, %v2082
      %v2107 = vpack.c.b16 %v2085, %v2084
      %v2108 = vpack.c.b16 %v2087, %v2086
      %v2109 = vpack.c.b16 %v2089, %v2088
      %v2110 = vpack.c.b16 %v2091, %v2090
      %v2111 = vpack.c.b16 %v2093, %v2092
      %v2112 = vpack.c.b16 %v2095, %v2094
      %v2113 = vpack.c.b16 %v2097, %v2096
      %2130 = vst [vmem:[#allocation3 + $0x18] sm:$0xff] %v2098
      %2131 = vst [vmem:[#allocation3 + $0x60] sm:$0xff] %v2099
      %2132 = vst [vmem:[#allocation3 + $0xa8] sm:$0xff] %v2100
      %2133 = vst [vmem:[#allocation3 + $0xf0] sm:$0xff] %v2101
      %2134 = vst [vmem:[#allocation3 + $0x138] sm:$0xff] %v2102
      %2135 = vst [vmem:[#allocation3 + $0x180] sm:$0xff] %v2103
      %2136 = vst [vmem:[#allocation3 + $0x1c8] sm:$0xff] %v2104
      %2137 = vst [vmem:[#allocation3 + $0x210] sm:$0xff] %v2105
      %2138 = vst [vmem:[#allocation3 + $0x258] sm:$0xff] %v2106
      %2139 = vst [vmem:[#allocation3 + $0x2a0] sm:$0xff] %v2107
      %2140 = vst [vmem:[#allocation3 + $0x2e8] sm:$0xff] %v2108
      %2141 = vst [vmem:[#allocation3 + $0x330] sm:$0xff] %v2109
      %2142 = vst [vmem:[#allocation3 + $0x378] sm:$0xff] %v2110
      %2143 = vst [vmem:[#allocation3 + $0x3c0] sm:$0xff] %v2111
      %2144 = vst [vmem:[#allocation3 + $0x408] sm:$0xff] %v2112
      %2145 = vst [vmem:[#allocation3 + $0x450] sm:$0xff] %v2113
      %v2146 = vld [vmem:[%s418] sm:$0xf]
      %v2147 = vld [vmem:[%s418 + $0x4] sm:$0xf]
      %v2148 = vld [vmem:[%s418 + $0x8] sm:$0x1]
      %v2149 = vld [vmem:[%s418 + $0xc] sm:$0xf]
      %v2150 = vld [vmem:[%s418 + $0x10] sm:$0xf]
      %v2151 = vld [vmem:[%s418 + $0x14] sm:$0x1]
      %v2152 = vld [vmem:[%s418 + $0x18] sm:$0xf]
      %v2153 = vld [vmem:[%s418 + $0x1c] sm:$0xf]
      %v2154 = vld [vmem:[%s418 + $0x20] sm:$0x1]
      %v2155 = vld [vmem:[%s418 + $0x24] sm:$0xf]
      %v2156 = vld [vmem:[%s418 + $0x28] sm:$0xf]
      %v2157 = vld [vmem:[%s418 + $0x2c] sm:$0x1]
      %v2158 = vld [vmem:[%s418 + $0x30] sm:$0xf]
      %v2159 = vld [vmem:[%s418 + $0x34] sm:$0xf]
      %v2160 = vld [vmem:[%s418 + $0x38] sm:$0x1]
      %v2161 = vld [vmem:[%s418 + $0x3c] sm:$0xf]
      %v2162 = vld [vmem:[%s418 + $0x40] sm:$0xf]
      %v2163 = vld [vmem:[%s418 + $0x44] sm:$0x1]
      %v2164 = vld [vmem:[%s418 + $0x48] sm:$0xf]
      %v2165 = vld [vmem:[%s418 + $0x4c] sm:$0xf]
      %v2166 = vld [vmem:[%s418 + $0x50] sm:$0x1]
      %v2167 = vld [vmem:[%s418 + $0x54] sm:$0xf]
      %v2168 = vld [vmem:[%s418 + $0x58] sm:$0xf]
      %v2169 = vld [vmem:[%s418 + $0x5c] sm:$0x1]
      %v2170 = vld [vmem:[%s418 + $0x60] sm:$0xf]
      %v2171 = vld [vmem:[%s418 + $0x64] sm:$0xf]
      %v2172 = vld [vmem:[%s418 + $0x68] sm:$0x1]
      %v2173 = vld [vmem:[%s418 + $0x6c] sm:$0xf]
      %v2174 = vld [vmem:[%s418 + $0x70] sm:$0xf]
      %v2175 = vld [vmem:[%s418 + $0x74] sm:$0x1]
      %v2176 = vld [vmem:[%s418 + $0x78] sm:$0xf]
      %v2177 = vld [vmem:[%s418 + $0x7c] sm:$0xf]
      %v2178 = vld [vmem:[%s418 + $0x80] sm:$0x1]
      %v2179 = vld [vmem:[%s418 + $0x84] sm:$0xf]
      %v2180 = vld [vmem:[%s418 + $0x88] sm:$0xf]
      %v2181 = vld [vmem:[%s418 + $0x8c] sm:$0x1]
      %v2182 = vld [vmem:[%s418 + $0x90] sm:$0xf]
      %v2183 = vld [vmem:[%s418 + $0x94] sm:$0xf]
      %v2184 = vld [vmem:[%s418 + $0x98] sm:$0x1]
      %v2185 = vld [vmem:[%s418 + $0x9c] sm:$0xf]
      %v2186 = vld [vmem:[%s418 + $0xa0] sm:$0xf]
      %v2187 = vld [vmem:[%s418 + $0xa4] sm:$0x1]
      %v2188 = vld [vmem:[%s418 + $0xa8] sm:$0xf]
      %v2189 = vld [vmem:[%s418 + $0xac] sm:$0xf]
      %v2190 = vld [vmem:[%s418 + $0xb0] sm:$0x1]
      %v2191 = vld [vmem:[%s418 + $0xb4] sm:$0xf]
      %v2192 = vld [vmem:[%s418 + $0xb8] sm:$0xf]
      %v2193 = vld [vmem:[%s418 + $0xbc] sm:$0x1]
      %v2195 = vshrl.u32 %v2146, 16
      %v2197 = vrot.slane %v2195, 4
      %v2198 = vshll.u32 %v2146, 16
      %v2200 = vrot.slane %v2198, 5
      %v2201 = vor.u32 %v2197, %v2200
      %v2202 = vrot.slane %v2201, 4
      %v2204 = vshll.u32 %v2147, 16
      %v2206 = vrot.slane %v2204, 5
      %v2207 = vsel %vm1246, %v2202, %v2206
      %v2208 = vshrl.u32 %v2147, 16
      %v2210 = vrot.slane %v2208, 4
      %v2211 = vor.u32 %v2210, %v2206
      %v2212 = vrot.slane %v2211, 4
      %v2214 = vshll.u32 %v2148, 16
      %v2216 = vrot.slane %v2214, 5
      %v2217 = vsel %vm1246, %v2212, %v2216
      %v2219 = vshrl.u32 %v2149, 16
      %v2221 = vrot.slane %v2219, 4
      %v2222 = vshll.u32 %v2149, 16
      %v2224 = vrot.slane %v2222, 5
      %v2225 = vor.u32 %v2221, %v2224
      %v2226 = vrot.slane %v2225, 4
      %v2228 = vshll.u32 %v2150, 16
      %v2230 = vrot.slane %v2228, 5
      %v2231 = vsel %vm1246, %v2226, %v2230
      %v2232 = vshrl.u32 %v2150, 16
      %v2234 = vrot.slane %v2232, 4
      %v2235 = vor.u32 %v2234, %v2230
      %v2236 = vrot.slane %v2235, 4
      %v2238 = vshll.u32 %v2151, 16
      %v2240 = vrot.slane %v2238, 5
      %v2241 = vsel %vm1246, %v2236, %v2240
      %v2243 = vshrl.u32 %v2152, 16
      %v2245 = vrot.slane %v2243, 4
      %v2246 = vshll.u32 %v2152, 16
      %v2248 = vrot.slane %v2246, 5
      %v2249 = vor.u32 %v2245, %v2248
      %v2250 = vrot.slane %v2249, 4
      %v2252 = vshll.u32 %v2153, 16
      %v2254 = vrot.slane %v2252, 5
      %v2255 = vsel %vm1246, %v2250, %v2254
      %v2256 = vshrl.u32 %v2153, 16
      %v2258 = vrot.slane %v2256, 4
      %v2259 = vor.u32 %v2258, %v2254
      %v2260 = vrot.slane %v2259, 4
      %v2262 = vshll.u32 %v2154, 16
      %v2264 = vrot.slane %v2262, 5
      %v2265 = vsel %vm1246, %v2260, %v2264
      %v2267 = vshrl.u32 %v2155, 16
      %v2269 = vrot.slane %v2267, 4
      %v2270 = vshll.u32 %v2155, 16
      %v2272 = vrot.slane %v2270, 5
      %v2273 = vor.u32 %v2269, %v2272
      %v2274 = vrot.slane %v2273, 4
      %v2276 = vshll.u32 %v2156, 16
      %v2278 = vrot.slane %v2276, 5
      %v2279 = vsel %vm1246, %v2274, %v2278
      %v2280 = vshrl.u32 %v2156, 16
      %v2282 = vrot.slane %v2280, 4
      %v2283 = vor.u32 %v2282, %v2278
      %v2284 = vrot.slane %v2283, 4
      %v2286 = vshll.u32 %v2157, 16
      %v2288 = vrot.slane %v2286, 5
      %v2289 = vsel %vm1246, %v2284, %v2288
      %v2291 = vshrl.u32 %v2158, 16
      %v2293 = vrot.slane %v2291, 4
      %v2294 = vshll.u32 %v2158, 16
      %v2296 = vrot.slane %v2294, 5
      %v2297 = vor.u32 %v2293, %v2296
      %v2298 = vrot.slane %v2297, 4
      %v2300 = vshll.u32 %v2159, 16
      %v2302 = vrot.slane %v2300, 5
      %v2303 = vsel %vm1246, %v2298, %v2302
      %v2304 = vshrl.u32 %v2159, 16
      %v2306 = vrot.slane %v2304, 4
      %v2307 = vor.u32 %v2306, %v2302
      %v2308 = vrot.slane %v2307, 4
      %v2310 = vshll.u32 %v2160, 16
      %v2312 = vrot.slane %v2310, 5
      %v2313 = vsel %vm1246, %v2308, %v2312
      %v2315 = vshrl.u32 %v2161, 16
      %v2317 = vrot.slane %v2315, 4
      %v2318 = vshll.u32 %v2161, 16
      %v2320 = vrot.slane %v2318, 5
      %v2321 = vor.u32 %v2317, %v2320
      %v2322 = vrot.slane %v2321, 4
      %v2324 = vshll.u32 %v2162, 16
      %v2326 = vrot.slane %v2324, 5
      %v2327 = vsel %vm1246, %v2322, %v2326
      %v2328 = vshrl.u32 %v2162, 16
      %v2330 = vrot.slane %v2328, 4
      %v2331 = vor.u32 %v2330, %v2326
      %v2332 = vrot.slane %v2331, 4
      %v2334 = vshll.u32 %v2163, 16
      %v2336 = vrot.slane %v2334, 5
      %v2337 = vsel %vm1246, %v2332, %v2336
      %v2339 = vshrl.u32 %v2164, 16
      %v2341 = vrot.slane %v2339, 4
      %v2342 = vshll.u32 %v2164, 16
      %v2344 = vrot.slane %v2342, 5
      %v2345 = vor.u32 %v2341, %v2344
      %v2346 = vrot.slane %v2345, 4
      %v2348 = vshll.u32 %v2165, 16
      %v2350 = vrot.slane %v2348, 5
      %v2351 = vsel %vm1246, %v2346, %v2350
      %v2352 = vshrl.u32 %v2165, 16
      %v2354 = vrot.slane %v2352, 4
      %v2355 = vor.u32 %v2354, %v2350
      %v2356 = vrot.slane %v2355, 4
      %v2358 = vshll.u32 %v2166, 16
      %v2360 = vrot.slane %v2358, 5
      %v2361 = vsel %vm1246, %v2356, %v2360
      %v2363 = vshrl.u32 %v2167, 16
      %v2365 = vrot.slane %v2363, 4
      %v2366 = vshll.u32 %v2167, 16
      %v2368 = vrot.slane %v2366, 5
      %v2369 = vor.u32 %v2365, %v2368
      %v2370 = vrot.slane %v2369, 4
      %v2372 = vshll.u32 %v2168, 16
      %v2374 = vrot.slane %v2372, 5
      %v2375 = vsel %vm1246, %v2370, %v2374
      %v2376 = vshrl.u32 %v2168, 16
      %v2378 = vrot.slane %v2376, 4
      %v2379 = vor.u32 %v2378, %v2374
      %v2380 = vrot.slane %v2379, 4
      %v2382 = vshll.u32 %v2169, 16
      %v2384 = vrot.slane %v2382, 5
      %v2385 = vsel %vm1246, %v2380, %v2384
      %v2387 = vshrl.u32 %v2170, 16
      %v2389 = vrot.slane %v2387, 4
      %v2390 = vshll.u32 %v2170, 16
      %v2392 = vrot.slane %v2390, 5
      %v2393 = vor.u32 %v2389, %v2392
      %v2394 = vrot.slane %v2393, 4
      %v2396 = vshll.u32 %v2171, 16
      %v2398 = vrot.slane %v2396, 5
      %v2399 = vsel %vm1246, %v2394, %v2398
      %v2400 = vshrl.u32 %v2171, 16
      %v2402 = vrot.slane %v2400, 4
      %v2403 = vor.u32 %v2402, %v2398
      %v2404 = vrot.slane %v2403, 4
      %v2406 = vshll.u32 %v2172, 16
      %v2408 = vrot.slane %v2406, 5
      %v2409 = vsel %vm1246, %v2404, %v2408
      %v2411 = vshrl.u32 %v2173, 16
      %v2413 = vrot.slane %v2411, 4
      %v2414 = vshll.u32 %v2173, 16
      %v2416 = vrot.slane %v2414, 5
      %v2417 = vor.u32 %v2413, %v2416
      %v2418 = vrot.slane %v2417, 4
      %v2420 = vshll.u32 %v2174, 16
      %v2422 = vrot.slane %v2420, 5
      %v2423 = vsel %vm1246, %v2418, %v2422
      %v2424 = vshrl.u32 %v2174, 16
      %v2426 = vrot.slane %v2424, 4
      %v2427 = vor.u32 %v2426, %v2422
      %v2428 = vrot.slane %v2427, 4
      %v2430 = vshll.u32 %v2175, 16
      %v2432 = vrot.slane %v2430, 5
      %v2433 = vsel %vm1246, %v2428, %v2432
      %v2435 = vshrl.u32 %v2176, 16
      %v2437 = vrot.slane %v2435, 4
      %v2438 = vshll.u32 %v2176, 16
      %v2440 = vrot.slane %v2438, 5
      %v2441 = vor.u32 %v2437, %v2440
      %v2442 = vrot.slane %v2441, 4
      %v2444 = vshll.u32 %v2177, 16
      %v2446 = vrot.slane %v2444, 5
      %v2447 = vsel %vm1246, %v2442, %v2446
      %v2448 = vshrl.u32 %v2177, 16
      %v2450 = vrot.slane %v2448, 4
      %v2451 = vor.u32 %v2450, %v2446
      %v2452 = vrot.slane %v2451, 4
      %v2454 = vshll.u32 %v2178, 16
      %v2456 = vrot.slane %v2454, 5
      %v2457 = vsel %vm1246, %v2452, %v2456
      %v2459 = vshrl.u32 %v2179, 16
      %v2461 = vrot.slane %v2459, 4
      %v2462 = vshll.u32 %v2179, 16
      %v2464 = vrot.slane %v2462, 5
      %v2465 = vor.u32 %v2461, %v2464
      %v2466 = vrot.slane %v2465, 4
      %v2468 = vshll.u32 %v2180, 16
      %v2470 = vrot.slane %v2468, 5
      %v2471 = vsel %vm1246, %v2466, %v2470
      %v2472 = vshrl.u32 %v2180, 16
      %v2474 = vrot.slane %v2472, 4
      %v2475 = vor.u32 %v2474, %v2470
      %v2476 = vrot.slane %v2475, 4
      %v2478 = vshll.u32 %v2181, 16
      %v2480 = vrot.slane %v2478, 5
      %v2481 = vsel %vm1246, %v2476, %v2480
      %v2483 = vshrl.u32 %v2182, 16
      %v2485 = vrot.slane %v2483, 4
      %v2486 = vshll.u32 %v2182, 16
      %v2488 = vrot.slane %v2486, 5
      %v2489 = vor.u32 %v2485, %v2488
      %v2490 = vrot.slane %v2489, 4
      %v2492 = vshll.u32 %v2183, 16
      %v2494 = vrot.slane %v2492, 5
      %v2495 = vsel %vm1246, %v2490, %v2494
      %v2496 = vshrl.u32 %v2183, 16
      %v2498 = vrot.slane %v2496, 4
      %v2499 = vor.u32 %v2498, %v2494
      %v2500 = vrot.slane %v2499, 4
      %v2502 = vshll.u32 %v2184, 16
      %v2504 = vrot.slane %v2502, 5
      %v2505 = vsel %vm1246, %v2500, %v2504
      %v2507 = vshrl.u32 %v2185, 16
      %v2509 = vrot.slane %v2507, 4
      %v2510 = vshll.u32 %v2185, 16
      %v2512 = vrot.slane %v2510, 5
      %v2513 = vor.u32 %v2509, %v2512
      %v2514 = vrot.slane %v2513, 4
      %v2516 = vshll.u32 %v2186, 16
      %v2518 = vrot.slane %v2516, 5
      %v2519 = vsel %vm1246, %v2514, %v2518
      %v2520 = vshrl.u32 %v2186, 16
      %v2522 = vrot.slane %v2520, 4
      %v2523 = vor.u32 %v2522, %v2518
      %v2524 = vrot.slane %v2523, 4
      %v2526 = vshll.u32 %v2187, 16
      %v2528 = vrot.slane %v2526, 5
      %v2529 = vsel %vm1246, %v2524, %v2528
      %v2531 = vshrl.u32 %v2188, 16
      %v2533 = vrot.slane %v2531, 4
      %v2534 = vshll.u32 %v2188, 16
      %v2536 = vrot.slane %v2534, 5
      %v2537 = vor.u32 %v2533, %v2536
      %v2538 = vrot.slane %v2537, 4
      %v2540 = vshll.u32 %v2189, 16
      %v2542 = vrot.slane %v2540, 5
      %v2543 = vsel %vm1246, %v2538, %v2542
      %v2544 = vshrl.u32 %v2189, 16
      %v2546 = vrot.slane %v2544, 4
      %v2547 = vor.u32 %v2546, %v2542
      %v2548 = vrot.slane %v2547, 4
      %v2550 = vshll.u32 %v2190, 16
      %v2552 = vrot.slane %v2550, 5
      %v2553 = vsel %vm1246, %v2548, %v2552
      %v2555 = vshrl.u32 %v2191, 16
      %v2557 = vrot.slane %v2555, 4
      %v2558 = vshll.u32 %v2191, 16
      %v2560 = vrot.slane %v2558, 5
      %v2561 = vor.u32 %v2557, %v2560
      %v2562 = vrot.slane %v2561, 4
      %v2564 = vshll.u32 %v2192, 16
      %v2566 = vrot.slane %v2564, 5
      %v2567 = vsel %vm1246, %v2562, %v2566
      %v2568 = vshrl.u32 %v2192, 16
      %v2570 = vrot.slane %v2568, 4
      %v2571 = vor.u32 %v2570, %v2566
      %v2572 = vrot.slane %v2571, 4
      %v2574 = vshll.u32 %v2193, 16
      %v2576 = vrot.slane %v2574, 5
      %v2577 = vsel %vm1246, %v2572, %v2576
      %v2578 = vunpack.c.l.b16 %v2207
      %v2579 = vunpack.c.l.b16 %v2217
      %v2580 = vunpack.c.l.b16 %v2231
      %v2581 = vunpack.c.l.b16 %v2241
      %v2582 = vunpack.c.l.b16 %v2255
      %v2583 = vunpack.c.l.b16 %v2265
      %v2584 = vunpack.c.l.b16 %v2279
      %v2585 = vunpack.c.l.b16 %v2289
      %v2586 = vunpack.c.l.b16 %v2303
      %v2587 = vunpack.c.l.b16 %v2313
      %v2588 = vunpack.c.l.b16 %v2327
      %v2589 = vunpack.c.l.b16 %v2337
      %v2590 = vunpack.c.l.b16 %v2351
      %v2591 = vunpack.c.l.b16 %v2361
      %v2592 = vunpack.c.l.b16 %v2375
      %v2593 = vunpack.c.l.b16 %v2385
      %v2594 = vunpack.c.l.b16 %v2399
      %v2595 = vunpack.c.l.b16 %v2409
      %v2596 = vunpack.c.l.b16 %v2423
      %v2597 = vunpack.c.l.b16 %v2433
      %v2598 = vunpack.c.l.b16 %v2447
      %v2599 = vunpack.c.l.b16 %v2457
      %v2600 = vunpack.c.l.b16 %v2471
      %v2601 = vunpack.c.l.b16 %v2481
      %v2602 = vunpack.c.l.b16 %v2495
      %v2603 = vunpack.c.l.b16 %v2505
      %v2604 = vunpack.c.l.b16 %v2519
      %v2605 = vunpack.c.l.b16 %v2529
      %v2606 = vunpack.c.l.b16 %v2543
      %v2607 = vunpack.c.l.b16 %v2553
      %v2608 = vunpack.c.l.b16 %v2567
      %v2609 = vunpack.c.l.b16 %v2577
      %v2610 = vpack.c.b16 %v2579, %v2578
      %v2611 = vpack.c.b16 %v2581, %v2580
      %v2612 = vpack.c.b16 %v2583, %v2582
      %v2613 = vpack.c.b16 %v2585, %v2584
      %v2614 = vpack.c.b16 %v2587, %v2586
      %v2615 = vpack.c.b16 %v2589, %v2588
      %v2616 = vpack.c.b16 %v2591, %v2590
      %v2617 = vpack.c.b16 %v2593, %v2592
      %v2618 = vpack.c.b16 %v2595, %v2594
      %v2619 = vpack.c.b16 %v2597, %v2596
      %v2620 = vpack.c.b16 %v2599, %v2598
      %v2621 = vpack.c.b16 %v2601, %v2600
      %v2622 = vpack.c.b16 %v2603, %v2602
      %v2623 = vpack.c.b16 %v2605, %v2604
      %v2624 = vpack.c.b16 %v2607, %v2606
      %v2625 = vpack.c.b16 %v2609, %v2608
      %2642 = vst [vmem:[#allocation3 + $0x20] sm:$0xff] %v2610
      %2643 = vst [vmem:[#allocation3 + $0x68] sm:$0xff] %v2611
      %2644 = vst [vmem:[#allocation3 + $0xb0] sm:$0xff] %v2612
      %2645 = vst [vmem:[#allocation3 + $0xf8] sm:$0xff] %v2613
      %2646 = vst [vmem:[#allocation3 + $0x140] sm:$0xff] %v2614
      %2647 = vst [vmem:[#allocation3 + $0x188] sm:$0xff] %v2615
      %2648 = vst [vmem:[#allocation3 + $0x1d0] sm:$0xff] %v2616
      %2649 = vst [vmem:[#allocation3 + $0x218] sm:$0xff] %v2617
      %2650 = vst [vmem:[#allocation3 + $0x260] sm:$0xff] %v2618
      %2651 = vst [vmem:[#allocation3 + $0x2a8] sm:$0xff] %v2619
      %2652 = vst [vmem:[#allocation3 + $0x2f0] sm:$0xff] %v2620
      %2653 = vst [vmem:[#allocation3 + $0x338] sm:$0xff] %v2621
      %2654 = vst [vmem:[#allocation3 + $0x380] sm:$0xff] %v2622
      %2655 = vst [vmem:[#allocation3 + $0x3c8] sm:$0xff] %v2623
      %2656 = vst [vmem:[#allocation3 + $0x410] sm:$0xff] %v2624
      %2657 = vst [vmem:[#allocation3 + $0x458] sm:$0xff] %v2625
      %v2658 = vld [vmem:[%s418] sm:$0xe]
      %v2659 = vld [vmem:[%s418 + $0x4] sm:$0xf]
      %v2660 = vld [vmem:[%s418 + $0x8] sm:$0x1]
      %v2661 = vld [vmem:[%s418 + $0xc] sm:$0xe]
      %v2662 = vld [vmem:[%s418 + $0x10] sm:$0xf]
      %v2663 = vld [vmem:[%s418 + $0x14] sm:$0x1]
      %v2664 = vld [vmem:[%s418 + $0x18] sm:$0xe]
      %v2665 = vld [vmem:[%s418 + $0x1c] sm:$0xf]
      %v2666 = vld [vmem:[%s418 + $0x20] sm:$0x1]
      %v2667 = vld [vmem:[%s418 + $0x24] sm:$0xe]
      %v2668 = vld [vmem:[%s418 + $0x28] sm:$0xf]
      %v2669 = vld [vmem:[%s418 + $0x2c] sm:$0x1]
      %v2670 = vld [vmem:[%s418 + $0x30] sm:$0xe]
      %v2671 = vld [vmem:[%s418 + $0x34] sm:$0xf]
      %v2672 = vld [vmem:[%s418 + $0x38] sm:$0x1]
      %v2673 = vld [vmem:[%s418 + $0x3c] sm:$0xe]
      %v2674 = vld [vmem:[%s418 + $0x40] sm:$0xf]
      %v2675 = vld [vmem:[%s418 + $0x44] sm:$0x1]
      %v2676 = vld [vmem:[%s418 + $0x48] sm:$0xe]
      %v2677 = vld [vmem:[%s418 + $0x4c] sm:$0xf]
      %v2678 = vld [vmem:[%s418 + $0x50] sm:$0x1]
      %v2679 = vld [vmem:[%s418 + $0x54] sm:$0xe]
      %v2680 = vld [vmem:[%s418 + $0x58] sm:$0xf]
      %v2681 = vld [vmem:[%s418 + $0x5c] sm:$0x1]
      %v2682 = vld [vmem:[%s418 + $0x60] sm:$0xe]
      %v2683 = vld [vmem:[%s418 + $0x64] sm:$0xf]
      %v2684 = vld [vmem:[%s418 + $0x68] sm:$0x1]
      %v2685 = vld [vmem:[%s418 + $0x6c] sm:$0xe]
      %v2686 = vld [vmem:[%s418 + $0x70] sm:$0xf]
      %v2687 = vld [vmem:[%s418 + $0x74] sm:$0x1]
      %v2688 = vld [vmem:[%s418 + $0x78] sm:$0xe]
      %v2689 = vld [vmem:[%s418 + $0x7c] sm:$0xf]
      %v2690 = vld [vmem:[%s418 + $0x80] sm:$0x1]
      %v2691 = vld [vmem:[%s418 + $0x84] sm:$0xe]
      %v2692 = vld [vmem:[%s418 + $0x88] sm:$0xf]
      %v2693 = vld [vmem:[%s418 + $0x8c] sm:$0x1]
      %v2694 = vld [vmem:[%s418 + $0x90] sm:$0xe]
      %v2695 = vld [vmem:[%s418 + $0x94] sm:$0xf]
      %v2696 = vld [vmem:[%s418 + $0x98] sm:$0x1]
      %v2697 = vld [vmem:[%s418 + $0x9c] sm:$0xe]
      %v2698 = vld [vmem:[%s418 + $0xa0] sm:$0xf]
      %v2699 = vld [vmem:[%s418 + $0xa4] sm:$0x1]
      %v2700 = vld [vmem:[%s418 + $0xa8] sm:$0xe]
      %v2701 = vld [vmem:[%s418 + $0xac] sm:$0xf]
      %v2702 = vld [vmem:[%s418 + $0xb0] sm:$0x1]
      %v2703 = vld [vmem:[%s418 + $0xb4] sm:$0xe]
      %v2704 = vld [vmem:[%s418 + $0xb8] sm:$0xf]
      %v2705 = vld [vmem:[%s418 + $0xbc] sm:$0x1]
      %v2754 = vrot.slane %v2658, 5
      %v2755 = vrot.slane %v2754, 4
      %v2756 = vrot.slane %v2659, 5
      %v2757 = vsel %vm1809, %v2755, %v2756
      %v2758 = vrot.slane %v2756, 4
      %v2759 = vrot.slane %v2660, 5
      %v2760 = vsel %vm1809, %v2758, %v2759
      %v2761 = vrot.slane %v2661, 5
      %v2762 = vrot.slane %v2761, 4
      %v2763 = vrot.slane %v2662, 5
      %v2764 = vsel %vm1809, %v2762, %v2763
      %v2765 = vrot.slane %v2763, 4
      %v2766 = vrot.slane %v2663, 5
      %v2767 = vsel %vm1809, %v2765, %v2766
      %v2768 = vrot.slane %v2664, 5
      %v2769 = vrot.slane %v2768, 4
      %v2770 = vrot.slane %v2665, 5
      %v2771 = vsel %vm1809, %v2769, %v2770
      %v2772 = vrot.slane %v2770, 4
      %v2773 = vrot.slane %v2666, 5
      %v2774 = vsel %vm1809, %v2772, %v2773
      %v2775 = vrot.slane %v2667, 5
      %v2776 = vrot.slane %v2775, 4
      %v2777 = vrot.slane %v2668, 5
      %v2778 = vsel %vm1809, %v2776, %v2777
      %v2779 = vrot.slane %v2777, 4
      %v2780 = vrot.slane %v2669, 5
      %v2781 = vsel %vm1809, %v2779, %v2780
      %v2782 = vrot.slane %v2670, 5
      %v2783 = vrot.slane %v2782, 4
      %v2784 = vrot.slane %v2671, 5
      %v2785 = vsel %vm1809, %v2783, %v2784
      %v2786 = vrot.slane %v2784, 4
      %v2787 = vrot.slane %v2672, 5
      %v2788 = vsel %vm1809, %v2786, %v2787
      %v2789 = vrot.slane %v2673, 5
      %v2790 = vrot.slane %v2789, 4
      %v2791 = vrot.slane %v2674, 5
      %v2792 = vsel %vm1809, %v2790, %v2791
      %v2793 = vrot.slane %v2791, 4
      %v2794 = vrot.slane %v2675, 5
      %v2795 = vsel %vm1809, %v2793, %v2794
      %v2796 = vrot.slane %v2676, 5
      %v2797 = vrot.slane %v2796, 4
      %v2798 = vrot.slane %v2677, 5
      %v2799 = vsel %vm1809, %v2797, %v2798
      %v2800 = vrot.slane %v2798, 4
      %v2801 = vrot.slane %v2678, 5
      %v2802 = vsel %vm1809, %v2800, %v2801
      %v2803 = vrot.slane %v2679, 5
      %v2804 = vrot.slane %v2803, 4
      %v2805 = vrot.slane %v2680, 5
      %v2806 = vsel %vm1809, %v2804, %v2805
      %v2807 = vrot.slane %v2805, 4
      %v2808 = vrot.slane %v2681, 5
      %v2809 = vsel %vm1809, %v2807, %v2808
      %v2810 = vrot.slane %v2682, 5
      %v2811 = vrot.slane %v2810, 4
      %v2812 = vrot.slane %v2683, 5
      %v2813 = vsel %vm1809, %v2811, %v2812
      %v2814 = vrot.slane %v2812, 4
      %v2815 = vrot.slane %v2684, 5
      %v2816 = vsel %vm1809, %v2814, %v2815
      %v2817 = vrot.slane %v2685, 5
      %v2818 = vrot.slane %v2817, 4
      %v2819 = vrot.slane %v2686, 5
      %v2820 = vsel %vm1809, %v2818, %v2819
      %v2821 = vrot.slane %v2819, 4
      %v2822 = vrot.slane %v2687, 5
      %v2823 = vsel %vm1809, %v2821, %v2822
      %v2824 = vrot.slane %v2688, 5
      %v2825 = vrot.slane %v2824, 4
      %v2826 = vrot.slane %v2689, 5
      %v2827 = vsel %vm1809, %v2825, %v2826
      %v2828 = vrot.slane %v2826, 4
      %v2829 = vrot.slane %v2690, 5
      %v2830 = vsel %vm1809, %v2828, %v2829
      %v2831 = vrot.slane %v2691, 5
      %v2832 = vrot.slane %v2831, 4
      %v2833 = vrot.slane %v2692, 5
      %v2834 = vsel %vm1809, %v2832, %v2833
      %v2835 = vrot.slane %v2833, 4
      %v2836 = vrot.slane %v2693, 5
      %v2837 = vsel %vm1809, %v2835, %v2836
      %v2838 = vrot.slane %v2694, 5
      %v2839 = vrot.slane %v2838, 4
      %v2840 = vrot.slane %v2695, 5
      %v2841 = vsel %vm1809, %v2839, %v2840
      %v2842 = vrot.slane %v2840, 4
      %v2843 = vrot.slane %v2696, 5
      %v2844 = vsel %vm1809, %v2842, %v2843
      %v2845 = vrot.slane %v2697, 5
      %v2846 = vrot.slane %v2845, 4
      %v2847 = vrot.slane %v2698, 5
      %v2848 = vsel %vm1809, %v2846, %v2847
      %v2849 = vrot.slane %v2847, 4
      %v2850 = vrot.slane %v2699, 5
      %v2851 = vsel %vm1809, %v2849, %v2850
      %v2852 = vrot.slane %v2700, 5
      %v2853 = vrot.slane %v2852, 4
      %v2854 = vrot.slane %v2701, 5
      %v2855 = vsel %vm1809, %v2853, %v2854
      %v2856 = vrot.slane %v2854, 4
      %v2857 = vrot.slane %v2702, 5
      %v2858 = vsel %vm1809, %v2856, %v2857
      %v2859 = vrot.slane %v2703, 5
      %v2860 = vrot.slane %v2859, 4
      %v2861 = vrot.slane %v2704, 5
      %v2862 = vsel %vm1809, %v2860, %v2861
      %v2863 = vrot.slane %v2861, 4
      %v2864 = vrot.slane %v2705, 5
      %v2865 = vsel %vm1809, %v2863, %v2864
      %v2866 = vunpack.c.l.b16 %v2757
      %v2867 = vunpack.c.l.b16 %v2760
      %v2868 = vunpack.c.l.b16 %v2764
      %v2869 = vunpack.c.l.b16 %v2767
      %v2870 = vunpack.c.l.b16 %v2771
      %v2871 = vunpack.c.l.b16 %v2774
      %v2872 = vunpack.c.l.b16 %v2778
      %v2873 = vunpack.c.l.b16 %v2781
      %v2874 = vunpack.c.l.b16 %v2785
      %v2875 = vunpack.c.l.b16 %v2788
      %v2876 = vunpack.c.l.b16 %v2792
      %v2877 = vunpack.c.l.b16 %v2795
      %v2878 = vunpack.c.l.b16 %v2799
      %v2879 = vunpack.c.l.b16 %v2802
      %v2880 = vunpack.c.l.b16 %v2806
      %v2881 = vunpack.c.l.b16 %v2809
      %v2882 = vunpack.c.l.b16 %v2813
      %v2883 = vunpack.c.l.b16 %v2816
      %v2884 = vunpack.c.l.b16 %v2820
      %v2885 = vunpack.c.l.b16 %v2823
      %v2886 = vunpack.c.l.b16 %v2827
      %v2887 = vunpack.c.l.b16 %v2830
      %v2888 = vunpack.c.l.b16 %v2834
      %v2889 = vunpack.c.l.b16 %v2837
      %v2890 = vunpack.c.l.b16 %v2841
      %v2891 = vunpack.c.l.b16 %v2844
      %v2892 = vunpack.c.l.b16 %v2848
      %v2893 = vunpack.c.l.b16 %v2851
      %v2894 = vunpack.c.l.b16 %v2855
      %v2895 = vunpack.c.l.b16 %v2858
      %v2896 = vunpack.c.l.b16 %v2862
      %v2897 = vunpack.c.l.b16 %v2865
      %v2898 = vpack.c.b16 %v2867, %v2866
      %v2899 = vpack.c.b16 %v2869, %v2868
      %v2900 = vpack.c.b16 %v2871, %v2870
      %v2901 = vpack.c.b16 %v2873, %v2872
      %v2902 = vpack.c.b16 %v2875, %v2874
      %v2903 = vpack.c.b16 %v2877, %v2876
      %v2904 = vpack.c.b16 %v2879, %v2878
      %v2905 = vpack.c.b16 %v2881, %v2880
      %v2906 = vpack.c.b16 %v2883, %v2882
      %v2907 = vpack.c.b16 %v2885, %v2884
      %v2908 = vpack.c.b16 %v2887, %v2886
      %v2909 = vpack.c.b16 %v2889, %v2888
      %v2910 = vpack.c.b16 %v2891, %v2890
      %v2911 = vpack.c.b16 %v2893, %v2892
      %v2912 = vpack.c.b16 %v2895, %v2894
      %v2913 = vpack.c.b16 %v2897, %v2896
      %2930 = vst [vmem:[#allocation3 + $0x28] sm:$0xff] %v2898
      %2931 = vst [vmem:[#allocation3 + $0x70] sm:$0xff] %v2899
      %2932 = vst [vmem:[#allocation3 + $0xb8] sm:$0xff] %v2900
      %2933 = vst [vmem:[#allocation3 + $0x100] sm:$0xff] %v2901
      %2934 = vst [vmem:[#allocation3 + $0x148] sm:$0xff] %v2902
      %2935 = vst [vmem:[#allocation3 + $0x190] sm:$0xff] %v2903
      %2936 = vst [vmem:[#allocation3 + $0x1d8] sm:$0xff] %v2904
      %2937 = vst [vmem:[#allocation3 + $0x220] sm:$0xff] %v2905
      %2938 = vst [vmem:[#allocation3 + $0x268] sm:$0xff] %v2906
      %2939 = vst [vmem:[#allocation3 + $0x2b0] sm:$0xff] %v2907
      %2940 = vst [vmem:[#allocation3 + $0x2f8] sm:$0xff] %v2908
      %2941 = vst [vmem:[#allocation3 + $0x340] sm:$0xff] %v2909
      %2942 = vst [vmem:[#allocation3 + $0x388] sm:$0xff] %v2910
      %2943 = vst [vmem:[#allocation3 + $0x3d0] sm:$0xff] %v2911
      %2944 = vst [vmem:[#allocation3 + $0x418] sm:$0xff] %v2912
      %2945 = vst [vmem:[#allocation3 + $0x460] sm:$0xff] %v2913
      %s2946 = scalar_lea.vmem [#allocation2], 24
      %v2947 = vld [vmem:[%s2946] sm:$0xf]
      %v2948 = vld [vmem:[%s2946 + $0x4] sm:$0xf]
      %v2949 = vld [vmem:[%s2946 + $0xc] sm:$0xf]
      %v2950 = vld [vmem:[%s2946 + $0x10] sm:$0xf]
      %v2951 = vld [vmem:[%s2946 + $0x18] sm:$0xf]
      %v2952 = vld [vmem:[%s2946 + $0x1c] sm:$0xf]
      %v2953 = vld [vmem:[%s2946 + $0x24] sm:$0xf]
      %v2954 = vld [vmem:[%s2946 + $0x28] sm:$0xf]
      %v2955 = vld [vmem:[%s2946 + $0x30] sm:$0xf]
      %v2956 = vld [vmem:[%s2946 + $0x34] sm:$0xf]
      %v2957 = vld [vmem:[%s2946 + $0x3c] sm:$0xf]
      %v2958 = vld [vmem:[%s2946 + $0x40] sm:$0xf]
      %v2959 = vld [vmem:[%s2946 + $0x48] sm:$0xf]
      %v2960 = vld [vmem:[%s2946 + $0x4c] sm:$0xf]
      %v2961 = vld [vmem:[%s2946 + $0x54] sm:$0xf]
      %v2962 = vld [vmem:[%s2946 + $0x58] sm:$0xf]
      %v2963 = vld [vmem:[%s2946 + $0x60] sm:$0xf]
      %v2964 = vld [vmem:[%s2946 + $0x64] sm:$0xf]
      %v2965 = vld [vmem:[%s2946 + $0x6c] sm:$0xf]
      %v2966 = vld [vmem:[%s2946 + $0x70] sm:$0xf]
      %v2967 = vld [vmem:[%s2946 + $0x78] sm:$0xf]
      %v2968 = vld [vmem:[%s2946 + $0x7c] sm:$0xf]
      %v2969 = vld [vmem:[%s2946 + $0x84] sm:$0xf]
      %v2970 = vld [vmem:[%s2946 + $0x88] sm:$0xf]
      %v2971 = vld [vmem:[%s2946 + $0x90] sm:$0xf]
      %v2972 = vld [vmem:[%s2946 + $0x94] sm:$0xf]
      %v2973 = vld [vmem:[%s2946 + $0x9c] sm:$0xf]
      %v2974 = vld [vmem:[%s2946 + $0xa0] sm:$0xf]
      %v2975 = vld [vmem:[%s2946 + $0xa8] sm:$0xf]
      %v2976 = vld [vmem:[%s2946 + $0xac] sm:$0xf]
      %v2977 = vld [vmem:[%s2946 + $0xb4] sm:$0xf]
      %v2978 = vld [vmem:[%s2946 + $0xb8] sm:$0xf]
      %v3011 = vunpack.c.l.b16 %v2947
      %v3012 = vunpack.c.l.b16 %v2948
      %v3013 = vunpack.c.l.b16 %v2949
      %v3014 = vunpack.c.l.b16 %v2950
      %v3015 = vunpack.c.l.b16 %v2951
      %v3016 = vunpack.c.l.b16 %v2952
      %v3017 = vunpack.c.l.b16 %v2953
      %v3018 = vunpack.c.l.b16 %v2954
      %v3019 = vunpack.c.l.b16 %v2955
      %v3020 = vunpack.c.l.b16 %v2956
      %v3021 = vunpack.c.l.b16 %v2957
      %v3022 = vunpack.c.l.b16 %v2958
      %v3023 = vunpack.c.l.b16 %v2959
      %v3024 = vunpack.c.l.b16 %v2960
      %v3025 = vunpack.c.l.b16 %v2961
      %v3026 = vunpack.c.l.b16 %v2962
      %v3027 = vunpack.c.l.b16 %v2963
      %v3028 = vunpack.c.l.b16 %v2964
      %v3029 = vunpack.c.l.b16 %v2965
      %v3030 = vunpack.c.l.b16 %v2966
      %v3031 = vunpack.c.l.b16 %v2967
      %v3032 = vunpack.c.l.b16 %v2968
      %v3033 = vunpack.c.l.b16 %v2969
      %v3034 = vunpack.c.l.b16 %v2970
      %v3035 = vunpack.c.l.b16 %v2971
      %v3036 = vunpack.c.l.b16 %v2972
      %v3037 = vunpack.c.l.b16 %v2973
      %v3038 = vunpack.c.l.b16 %v2974
      %v3039 = vunpack.c.l.b16 %v2975
      %v3040 = vunpack.c.l.b16 %v2976
      %v3041 = vunpack.c.l.b16 %v2977
      %v3042 = vunpack.c.l.b16 %v2978
      %v3043 = vpack.c.b16 %v3012, %v3011
      %v3044 = vpack.c.b16 %v3014, %v3013
      %v3045 = vpack.c.b16 %v3016, %v3015
      %v3046 = vpack.c.b16 %v3018, %v3017
      %v3047 = vpack.c.b16 %v3020, %v3019
      %v3048 = vpack.c.b16 %v3022, %v3021
      %v3049 = vpack.c.b16 %v3024, %v3023
      %v3050 = vpack.c.b16 %v3026, %v3025
      %v3051 = vpack.c.b16 %v3028, %v3027
      %v3052 = vpack.c.b16 %v3030, %v3029
      %v3053 = vpack.c.b16 %v3032, %v3031
      %v3054 = vpack.c.b16 %v3034, %v3033
      %v3055 = vpack.c.b16 %v3036, %v3035
      %v3056 = vpack.c.b16 %v3038, %v3037
      %v3057 = vpack.c.b16 %v3040, %v3039
      %v3058 = vpack.c.b16 %v3042, %v3041
      %3075 = vst [vmem:[#allocation3 + $0x30] sm:$0xff] %v3043
      %3076 = vst [vmem:[#allocation3 + $0x78] sm:$0xff] %v3044
      %3077 = vst [vmem:[#allocation3 + $0xc0] sm:$0xff] %v3045
      %3078 = vst [vmem:[#allocation3 + $0x108] sm:$0xff] %v3046
      %3079 = vst [vmem:[#allocation3 + $0x150] sm:$0xff] %v3047
      %3080 = vst [vmem:[#allocation3 + $0x198] sm:$0xff] %v3048
      %3081 = vst [vmem:[#allocation3 + $0x1e0] sm:$0xff] %v3049
      %3082 = vst [vmem:[#allocation3 + $0x228] sm:$0xff] %v3050
      %3083 = vst [vmem:[#allocation3 + $0x270] sm:$0xff] %v3051
      %3084 = vst [vmem:[#allocation3 + $0x2b8] sm:$0xff] %v3052
      %3085 = vst [vmem:[#allocation3 + $0x300] sm:$0xff] %v3053
      %3086 = vst [vmem:[#allocation3 + $0x348] sm:$0xff] %v3054
      %3087 = vst [vmem:[#allocation3 + $0x390] sm:$0xff] %v3055
      %3088 = vst [vmem:[#allocation3 + $0x3d8] sm:$0xff] %v3056
      %3089 = vst [vmem:[#allocation3 + $0x420] sm:$0xff] %v3057
      %3090 = vst [vmem:[#allocation3 + $0x468] sm:$0xff] %v3058
      %v3091 = vld [vmem:[%s2946] sm:$0xf]
      %v3092 = vld [vmem:[%s2946 + $0x4] sm:$0xf]
      %v3093 = vld [vmem:[%s2946 + $0x8] sm:$0x1]
      %v3094 = vld [vmem:[%s2946 + $0xc] sm:$0xf]
      %v3095 = vld [vmem:[%s2946 + $0x10] sm:$0xf]
      %v3096 = vld [vmem:[%s2946 + $0x14] sm:$0x1]
      %v3097 = vld [vmem:[%s2946 + $0x18] sm:$0xf]
      %v3098 = vld [vmem:[%s2946 + $0x1c] sm:$0xf]
      %v3099 = vld [vmem:[%s2946 + $0x20] sm:$0x1]
      %v3100 = vld [vmem:[%s2946 + $0x24] sm:$0xf]
      %v3101 = vld [vmem:[%s2946 + $0x28] sm:$0xf]
      %v3102 = vld [vmem:[%s2946 + $0x2c] sm:$0x1]
      %v3103 = vld [vmem:[%s2946 + $0x30] sm:$0xf]
      %v3104 = vld [vmem:[%s2946 + $0x34] sm:$0xf]
      %v3105 = vld [vmem:[%s2946 + $0x38] sm:$0x1]
      %v3106 = vld [vmem:[%s2946 + $0x3c] sm:$0xf]
      %v3107 = vld [vmem:[%s2946 + $0x40] sm:$0xf]
      %v3108 = vld [vmem:[%s2946 + $0x44] sm:$0x1]
      %v3109 = vld [vmem:[%s2946 + $0x48] sm:$0xf]
      %v3110 = vld [vmem:[%s2946 + $0x4c] sm:$0xf]
      %v3111 = vld [vmem:[%s2946 + $0x50] sm:$0x1]
      %v3112 = vld [vmem:[%s2946 + $0x54] sm:$0xf]
      %v3113 = vld [vmem:[%s2946 + $0x58] sm:$0xf]
      %v3114 = vld [vmem:[%s2946 + $0x5c] sm:$0x1]
      %v3115 = vld [vmem:[%s2946 + $0x60] sm:$0xf]
      %v3116 = vld [vmem:[%s2946 + $0x64] sm:$0xf]
      %v3117 = vld [vmem:[%s2946 + $0x68] sm:$0x1]
      %v3118 = vld [vmem:[%s2946 + $0x6c] sm:$0xf]
      %v3119 = vld [vmem:[%s2946 + $0x70] sm:$0xf]
      %v3120 = vld [vmem:[%s2946 + $0x74] sm:$0x1]
      %v3121 = vld [vmem:[%s2946 + $0x78] sm:$0xf]
      %v3122 = vld [vmem:[%s2946 + $0x7c] sm:$0xf]
      %v3123 = vld [vmem:[%s2946 + $0x80] sm:$0x1]
      %v3124 = vld [vmem:[%s2946 + $0x84] sm:$0xf]
      %v3125 = vld [vmem:[%s2946 + $0x88] sm:$0xf]
      %v3126 = vld [vmem:[%s2946 + $0x8c] sm:$0x1]
      %v3127 = vld [vmem:[%s2946 + $0x90] sm:$0xf]
      %v3128 = vld [vmem:[%s2946 + $0x94] sm:$0xf]
      %v3129 = vld [vmem:[%s2946 + $0x98] sm:$0x1]
      %v3130 = vld [vmem:[%s2946 + $0x9c] sm:$0xf]
      %v3131 = vld [vmem:[%s2946 + $0xa0] sm:$0xf]
      %v3132 = vld [vmem:[%s2946 + $0xa4] sm:$0x1]
      %v3133 = vld [vmem:[%s2946 + $0xa8] sm:$0xf]
      %v3134 = vld [vmem:[%s2946 + $0xac] sm:$0xf]
      %v3135 = vld [vmem:[%s2946 + $0xb0] sm:$0x1]
      %v3136 = vld [vmem:[%s2946 + $0xb4] sm:$0xf]
      %v3137 = vld [vmem:[%s2946 + $0xb8] sm:$0xf]
      %v3138 = vld [vmem:[%s2946 + $0xbc] sm:$0x1]
      %v3140 = vshrl.u32 %v3091, 16
      %v3142 = vrot.slane %v3140, 4
      %v3143 = vshll.u32 %v3091, 16
      %v3145 = vrot.slane %v3143, 5
      %v3146 = vor.u32 %v3142, %v3145
      %v3147 = vrot.slane %v3146, 4
      %v3149 = vshll.u32 %v3092, 16
      %v3151 = vrot.slane %v3149, 5
      %v3152 = vsel %vm1246, %v3147, %v3151
      %v3153 = vshrl.u32 %v3092, 16
      %v3155 = vrot.slane %v3153, 4
      %v3156 = vor.u32 %v3155, %v3151
      %v3157 = vrot.slane %v3156, 4
      %v3159 = vshll.u32 %v3093, 16
      %v3161 = vrot.slane %v3159, 5
      %v3162 = vsel %vm1246, %v3157, %v3161
      %v3164 = vshrl.u32 %v3094, 16
      %v3166 = vrot.slane %v3164, 4
      %v3167 = vshll.u32 %v3094, 16
      %v3169 = vrot.slane %v3167, 5
      %v3170 = vor.u32 %v3166, %v3169
      %v3171 = vrot.slane %v3170, 4
      %v3173 = vshll.u32 %v3095, 16
      %v3175 = vrot.slane %v3173, 5
      %v3176 = vsel %vm1246, %v3171, %v3175
      %v3177 = vshrl.u32 %v3095, 16
      %v3179 = vrot.slane %v3177, 4
      %v3180 = vor.u32 %v3179, %v3175
      %v3181 = vrot.slane %v3180, 4
      %v3183 = vshll.u32 %v3096, 16
      %v3185 = vrot.slane %v3183, 5
      %v3186 = vsel %vm1246, %v3181, %v3185
      %v3188 = vshrl.u32 %v3097, 16
      %v3190 = vrot.slane %v3188, 4
      %v3191 = vshll.u32 %v3097, 16
      %v3193 = vrot.slane %v3191, 5
      %v3194 = vor.u32 %v3190, %v3193
      %v3195 = vrot.slane %v3194, 4
      %v3197 = vshll.u32 %v3098, 16
      %v3199 = vrot.slane %v3197, 5
      %v3200 = vsel %vm1246, %v3195, %v3199
      %v3201 = vshrl.u32 %v3098, 16
      %v3203 = vrot.slane %v3201, 4
      %v3204 = vor.u32 %v3203, %v3199
      %v3205 = vrot.slane %v3204, 4
      %v3207 = vshll.u32 %v3099, 16
      %v3209 = vrot.slane %v3207, 5
      %v3210 = vsel %vm1246, %v3205, %v3209
      %v3212 = vshrl.u32 %v3100, 16
      %v3214 = vrot.slane %v3212, 4
      %v3215 = vshll.u32 %v3100, 16
      %v3217 = vrot.slane %v3215, 5
      %v3218 = vor.u32 %v3214, %v3217
      %v3219 = vrot.slane %v3218, 4
      %v3221 = vshll.u32 %v3101, 16
      %v3223 = vrot.slane %v3221, 5
      %v3224 = vsel %vm1246, %v3219, %v3223
      %v3225 = vshrl.u32 %v3101, 16
      %v3227 = vrot.slane %v3225, 4
      %v3228 = vor.u32 %v3227, %v3223
      %v3229 = vrot.slane %v3228, 4
      %v3231 = vshll.u32 %v3102, 16
      %v3233 = vrot.slane %v3231, 5
      %v3234 = vsel %vm1246, %v3229, %v3233
      %v3236 = vshrl.u32 %v3103, 16
      %v3238 = vrot.slane %v3236, 4
      %v3239 = vshll.u32 %v3103, 16
      %v3241 = vrot.slane %v3239, 5
      %v3242 = vor.u32 %v3238, %v3241
      %v3243 = vrot.slane %v3242, 4
      %v3245 = vshll.u32 %v3104, 16
      %v3247 = vrot.slane %v3245, 5
      %v3248 = vsel %vm1246, %v3243, %v3247
      %v3249 = vshrl.u32 %v3104, 16
      %v3251 = vrot.slane %v3249, 4
      %v3252 = vor.u32 %v3251, %v3247
      %v3253 = vrot.slane %v3252, 4
      %v3255 = vshll.u32 %v3105, 16
      %v3257 = vrot.slane %v3255, 5
      %v3258 = vsel %vm1246, %v3253, %v3257
      %v3260 = vshrl.u32 %v3106, 16
      %v3262 = vrot.slane %v3260, 4
      %v3263 = vshll.u32 %v3106, 16
      %v3265 = vrot.slane %v3263, 5
      %v3266 = vor.u32 %v3262, %v3265
      %v3267 = vrot.slane %v3266, 4
      %v3269 = vshll.u32 %v3107, 16
      %v3271 = vrot.slane %v3269, 5
      %v3272 = vsel %vm1246, %v3267, %v3271
      %v3273 = vshrl.u32 %v3107, 16
      %v3275 = vrot.slane %v3273, 4
      %v3276 = vor.u32 %v3275, %v3271
      %v3277 = vrot.slane %v3276, 4
      %v3279 = vshll.u32 %v3108, 16
      %v3281 = vrot.slane %v3279, 5
      %v3282 = vsel %vm1246, %v3277, %v3281
      %v3284 = vshrl.u32 %v3109, 16
      %v3286 = vrot.slane %v3284, 4
      %v3287 = vshll.u32 %v3109, 16
      %v3289 = vrot.slane %v3287, 5
      %v3290 = vor.u32 %v3286, %v3289
      %v3291 = vrot.slane %v3290, 4
      %v3293 = vshll.u32 %v3110, 16
      %v3295 = vrot.slane %v3293, 5
      %v3296 = vsel %vm1246, %v3291, %v3295
      %v3297 = vshrl.u32 %v3110, 16
      %v3299 = vrot.slane %v3297, 4
      %v3300 = vor.u32 %v3299, %v3295
      %v3301 = vrot.slane %v3300, 4
      %v3303 = vshll.u32 %v3111, 16
      %v3305 = vrot.slane %v3303, 5
      %v3306 = vsel %vm1246, %v3301, %v3305
      %v3308 = vshrl.u32 %v3112, 16
      %v3310 = vrot.slane %v3308, 4
      %v3311 = vshll.u32 %v3112, 16
      %v3313 = vrot.slane %v3311, 5
      %v3314 = vor.u32 %v3310, %v3313
      %v3315 = vrot.slane %v3314, 4
      %v3317 = vshll.u32 %v3113, 16
      %v3319 = vrot.slane %v3317, 5
      %v3320 = vsel %vm1246, %v3315, %v3319
      %v3321 = vshrl.u32 %v3113, 16
      %v3323 = vrot.slane %v3321, 4
      %v3324 = vor.u32 %v3323, %v3319
      %v3325 = vrot.slane %v3324, 4
      %v3327 = vshll.u32 %v3114, 16
      %v3329 = vrot.slane %v3327, 5
      %v3330 = vsel %vm1246, %v3325, %v3329
      %v3332 = vshrl.u32 %v3115, 16
      %v3334 = vrot.slane %v3332, 4
      %v3335 = vshll.u32 %v3115, 16
      %v3337 = vrot.slane %v3335, 5
      %v3338 = vor.u32 %v3334, %v3337
      %v3339 = vrot.slane %v3338, 4
      %v3341 = vshll.u32 %v3116, 16
      %v3343 = vrot.slane %v3341, 5
      %v3344 = vsel %vm1246, %v3339, %v3343
      %v3345 = vshrl.u32 %v3116, 16
      %v3347 = vrot.slane %v3345, 4
      %v3348 = vor.u32 %v3347, %v3343
      %v3349 = vrot.slane %v3348, 4
      %v3351 = vshll.u32 %v3117, 16
      %v3353 = vrot.slane %v3351, 5
      %v3354 = vsel %vm1246, %v3349, %v3353
      %v3356 = vshrl.u32 %v3118, 16
      %v3358 = vrot.slane %v3356, 4
      %v3359 = vshll.u32 %v3118, 16
      %v3361 = vrot.slane %v3359, 5
      %v3362 = vor.u32 %v3358, %v3361
      %v3363 = vrot.slane %v3362, 4
      %v3365 = vshll.u32 %v3119, 16
      %v3367 = vrot.slane %v3365, 5
      %v3368 = vsel %vm1246, %v3363, %v3367
      %v3369 = vshrl.u32 %v3119, 16
      %v3371 = vrot.slane %v3369, 4
      %v3372 = vor.u32 %v3371, %v3367
      %v3373 = vrot.slane %v3372, 4
      %v3375 = vshll.u32 %v3120, 16
      %v3377 = vrot.slane %v3375, 5
      %v3378 = vsel %vm1246, %v3373, %v3377
      %v3380 = vshrl.u32 %v3121, 16
      %v3382 = vrot.slane %v3380, 4
      %v3383 = vshll.u32 %v3121, 16
      %v3385 = vrot.slane %v3383, 5
      %v3386 = vor.u32 %v3382, %v3385
      %v3387 = vrot.slane %v3386, 4
      %v3389 = vshll.u32 %v3122, 16
      %v3391 = vrot.slane %v3389, 5
      %v3392 = vsel %vm1246, %v3387, %v3391
      %v3393 = vshrl.u32 %v3122, 16
      %v3395 = vrot.slane %v3393, 4
      %v3396 = vor.u32 %v3395, %v3391
      %v3397 = vrot.slane %v3396, 4
      %v3399 = vshll.u32 %v3123, 16
      %v3401 = vrot.slane %v3399, 5
      %v3402 = vsel %vm1246, %v3397, %v3401
      %v3404 = vshrl.u32 %v3124, 16
      %v3406 = vrot.slane %v3404, 4
      %v3407 = vshll.u32 %v3124, 16
      %v3409 = vrot.slane %v3407, 5
      %v3410 = vor.u32 %v3406, %v3409
      %v3411 = vrot.slane %v3410, 4
      %v3413 = vshll.u32 %v3125, 16
      %v3415 = vrot.slane %v3413, 5
      %v3416 = vsel %vm1246, %v3411, %v3415
      %v3417 = vshrl.u32 %v3125, 16
      %v3419 = vrot.slane %v3417, 4
      %v3420 = vor.u32 %v3419, %v3415
      %v3421 = vrot.slane %v3420, 4
      %v3423 = vshll.u32 %v3126, 16
      %v3425 = vrot.slane %v3423, 5
      %v3426 = vsel %vm1246, %v3421, %v3425
      %v3428 = vshrl.u32 %v3127, 16
      %v3430 = vrot.slane %v3428, 4
      %v3431 = vshll.u32 %v3127, 16
      %v3433 = vrot.slane %v3431, 5
      %v3434 = vor.u32 %v3430, %v3433
      %v3435 = vrot.slane %v3434, 4
      %v3437 = vshll.u32 %v3128, 16
      %v3439 = vrot.slane %v3437, 5
      %v3440 = vsel %vm1246, %v3435, %v3439
      %v3441 = vshrl.u32 %v3128, 16
      %v3443 = vrot.slane %v3441, 4
      %v3444 = vor.u32 %v3443, %v3439
      %v3445 = vrot.slane %v3444, 4
      %v3447 = vshll.u32 %v3129, 16
      %v3449 = vrot.slane %v3447, 5
      %v3450 = vsel %vm1246, %v3445, %v3449
      %v3452 = vshrl.u32 %v3130, 16
      %v3454 = vrot.slane %v3452, 4
      %v3455 = vshll.u32 %v3130, 16
      %v3457 = vrot.slane %v3455, 5
      %v3458 = vor.u32 %v3454, %v3457
      %v3459 = vrot.slane %v3458, 4
      %v3461 = vshll.u32 %v3131, 16
      %v3463 = vrot.slane %v3461, 5
      %v3464 = vsel %vm1246, %v3459, %v3463
      %v3465 = vshrl.u32 %v3131, 16
      %v3467 = vrot.slane %v3465, 4
      %v3468 = vor.u32 %v3467, %v3463
      %v3469 = vrot.slane %v3468, 4
      %v3471 = vshll.u32 %v3132, 16
      %v3473 = vrot.slane %v3471, 5
      %v3474 = vsel %vm1246, %v3469, %v3473
      %v3476 = vshrl.u32 %v3133, 16
      %v3478 = vrot.slane %v3476, 4
      %v3479 = vshll.u32 %v3133, 16
      %v3481 = vrot.slane %v3479, 5
      %v3482 = vor.u32 %v3478, %v3481
      %v3483 = vrot.slane %v3482, 4
      %v3485 = vshll.u32 %v3134, 16
      %v3487 = vrot.slane %v3485, 5
      %v3488 = vsel %vm1246, %v3483, %v3487
      %v3489 = vshrl.u32 %v3134, 16
      %v3491 = vrot.slane %v3489, 4
      %v3492 = vor.u32 %v3491, %v3487
      %v3493 = vrot.slane %v3492, 4
      %v3495 = vshll.u32 %v3135, 16
      %v3497 = vrot.slane %v3495, 5
      %v3498 = vsel %vm1246, %v3493, %v3497
      %v3500 = vshrl.u32 %v3136, 16
      %v3502 = vrot.slane %v3500, 4
      %v3503 = vshll.u32 %v3136, 16
      %v3505 = vrot.slane %v3503, 5
      %v3506 = vor.u32 %v3502, %v3505
      %v3507 = vrot.slane %v3506, 4
      %v3509 = vshll.u32 %v3137, 16
      %v3511 = vrot.slane %v3509, 5
      %v3512 = vsel %vm1246, %v3507, %v3511
      %v3513 = vshrl.u32 %v3137, 16
      %v3515 = vrot.slane %v3513, 4
      %v3516 = vor.u32 %v3515, %v3511
      %v3517 = vrot.slane %v3516, 4
      %v3519 = vshll.u32 %v3138, 16
      %v3521 = vrot.slane %v3519, 5
      %v3522 = vsel %vm1246, %v3517, %v3521
      %v3523 = vunpack.c.l.b16 %v3152
      %v3524 = vunpack.c.l.b16 %v3162
      %v3525 = vunpack.c.l.b16 %v3176
      %v3526 = vunpack.c.l.b16 %v3186
      %v3527 = vunpack.c.l.b16 %v3200
      %v3528 = vunpack.c.l.b16 %v3210
      %v3529 = vunpack.c.l.b16 %v3224
      %v3530 = vunpack.c.l.b16 %v3234
      %v3531 = vunpack.c.l.b16 %v3248
      %v3532 = vunpack.c.l.b16 %v3258
      %v3533 = vunpack.c.l.b16 %v3272
      %v3534 = vunpack.c.l.b16 %v3282
      %v3535 = vunpack.c.l.b16 %v3296
      %v3536 = vunpack.c.l.b16 %v3306
      %v3537 = vunpack.c.l.b16 %v3320
      %v3538 = vunpack.c.l.b16 %v3330
      %v3539 = vunpack.c.l.b16 %v3344
      %v3540 = vunpack.c.l.b16 %v3354
      %v3541 = vunpack.c.l.b16 %v3368
      %v3542 = vunpack.c.l.b16 %v3378
      %v3543 = vunpack.c.l.b16 %v3392
      %v3544 = vunpack.c.l.b16 %v3402
      %v3545 = vunpack.c.l.b16 %v3416
      %v3546 = vunpack.c.l.b16 %v3426
      %v3547 = vunpack.c.l.b16 %v3440
      %v3548 = vunpack.c.l.b16 %v3450
      %v3549 = vunpack.c.l.b16 %v3464
      %v3550 = vunpack.c.l.b16 %v3474
      %v3551 = vunpack.c.l.b16 %v3488
      %v3552 = vunpack.c.l.b16 %v3498
      %v3553 = vunpack.c.l.b16 %v3512
      %v3554 = vunpack.c.l.b16 %v3522
      %v3555 = vpack.c.b16 %v3524, %v3523
      %v3556 = vpack.c.b16 %v3526, %v3525
      %v3557 = vpack.c.b16 %v3528, %v3527
      %v3558 = vpack.c.b16 %v3530, %v3529
      %v3559 = vpack.c.b16 %v3532, %v3531
      %v3560 = vpack.c.b16 %v3534, %v3533
      %v3561 = vpack.c.b16 %v3536, %v3535
      %v3562 = vpack.c.b16 %v3538, %v3537
      %v3563 = vpack.c.b16 %v3540, %v3539
      %v3564 = vpack.c.b16 %v3542, %v3541
      %v3565 = vpack.c.b16 %v3544, %v3543
      %v3566 = vpack.c.b16 %v3546, %v3545
      %v3567 = vpack.c.b16 %v3548, %v3547
      %v3568 = vpack.c.b16 %v3550, %v3549
      %v3569 = vpack.c.b16 %v3552, %v3551
      %v3570 = vpack.c.b16 %v3554, %v3553
      %3587 = vst [vmem:[#allocation3 + $0x38] sm:$0xff] %v3555
      %3588 = vst [vmem:[#allocation3 + $0x80] sm:$0xff] %v3556
      %3589 = vst [vmem:[#allocation3 + $0xc8] sm:$0xff] %v3557
      %3590 = vst [vmem:[#allocation3 + $0x110] sm:$0xff] %v3558
      %3591 = vst [vmem:[#allocation3 + $0x158] sm:$0xff] %v3559
      %3592 = vst [vmem:[#allocation3 + $0x1a0] sm:$0xff] %v3560
      %3593 = vst [vmem:[#allocation3 + $0x1e8] sm:$0xff] %v3561
      %3594 = vst [vmem:[#allocation3 + $0x230] sm:$0xff] %v3562
      %3595 = vst [vmem:[#allocation3 + $0x278] sm:$0xff] %v3563
      %3596 = vst [vmem:[#allocation3 + $0x2c0] sm:$0xff] %v3564
      %3597 = vst [vmem:[#allocation3 + $0x308] sm:$0xff] %v3565
      %3598 = vst [vmem:[#allocation3 + $0x350] sm:$0xff] %v3566
      %3599 = vst [vmem:[#allocation3 + $0x398] sm:$0xff] %v3567
      %3600 = vst [vmem:[#allocation3 + $0x3e0] sm:$0xff] %v3568
      %3601 = vst [vmem:[#allocation3 + $0x428] sm:$0xff] %v3569
      %3602 = vst [vmem:[#allocation3 + $0x470] sm:$0xff] %v3570
      %v3603 = vld [vmem:[%s2946] sm:$0xe]
      %v3604 = vld [vmem:[%s2946 + $0x4] sm:$0xf]
      %v3605 = vld [vmem:[%s2946 + $0x8] sm:$0x1]
      %v3606 = vld [vmem:[%s2946 + $0xc] sm:$0xe]
      %v3607 = vld [vmem:[%s2946 + $0x10] sm:$0xf]
      %v3608 = vld [vmem:[%s2946 + $0x14] sm:$0x1]
      %v3609 = vld [vmem:[%s2946 + $0x18] sm:$0xe]
      %v3610 = vld [vmem:[%s2946 + $0x1c] sm:$0xf]
      %v3611 = vld [vmem:[%s2946 + $0x20] sm:$0x1]
      %v3612 = vld [vmem:[%s2946 + $0x24] sm:$0xe]
      %v3613 = vld [vmem:[%s2946 + $0x28] sm:$0xf]
      %v3614 = vld [vmem:[%s2946 + $0x2c] sm:$0x1]
      %v3615 = vld [vmem:[%s2946 + $0x30] sm:$0xe]
      %v3616 = vld [vmem:[%s2946 + $0x34] sm:$0xf]
      %v3617 = vld [vmem:[%s2946 + $0x38] sm:$0x1]
      %v3618 = vld [vmem:[%s2946 + $0x3c] sm:$0xe]
      %v3619 = vld [vmem:[%s2946 + $0x40] sm:$0xf]
      %v3620 = vld [vmem:[%s2946 + $0x44] sm:$0x1]
      %v3621 = vld [vmem:[%s2946 + $0x48] sm:$0xe]
      %v3622 = vld [vmem:[%s2946 + $0x4c] sm:$0xf]
      %v3623 = vld [vmem:[%s2946 + $0x50] sm:$0x1]
      %v3624 = vld [vmem:[%s2946 + $0x54] sm:$0xe]
      %v3625 = vld [vmem:[%s2946 + $0x58] sm:$0xf]
      %v3626 = vld [vmem:[%s2946 + $0x5c] sm:$0x1]
      %v3627 = vld [vmem:[%s2946 + $0x60] sm:$0xe]
      %v3628 = vld [vmem:[%s2946 + $0x64] sm:$0xf]
      %v3629 = vld [vmem:[%s2946 + $0x68] sm:$0x1]
      %v3630 = vld [vmem:[%s2946 + $0x6c] sm:$0xe]
      %v3631 = vld [vmem:[%s2946 + $0x70] sm:$0xf]
      %v3632 = vld [vmem:[%s2946 + $0x74] sm:$0x1]
      %v3633 = vld [vmem:[%s2946 + $0x78] sm:$0xe]
      %v3634 = vld [vmem:[%s2946 + $0x7c] sm:$0xf]
      %v3635 = vld [vmem:[%s2946 + $0x80] sm:$0x1]
      %v3636 = vld [vmem:[%s2946 + $0x84] sm:$0xe]
      %v3637 = vld [vmem:[%s2946 + $0x88] sm:$0xf]
      %v3638 = vld [vmem:[%s2946 + $0x8c] sm:$0x1]
      %v3639 = vld [vmem:[%s2946 + $0x90] sm:$0xe]
      %v3640 = vld [vmem:[%s2946 + $0x94] sm:$0xf]
      %v3641 = vld [vmem:[%s2946 + $0x98] sm:$0x1]
      %v3642 = vld [vmem:[%s2946 + $0x9c] sm:$0xe]
      %v3643 = vld [vmem:[%s2946 + $0xa0] sm:$0xf]
      %v3644 = vld [vmem:[%s2946 + $0xa4] sm:$0x1]
      %v3645 = vld [vmem:[%s2946 + $0xa8] sm:$0xe]
      %v3646 = vld [vmem:[%s2946 + $0xac] sm:$0xf]
      %v3647 = vld [vmem:[%s2946 + $0xb0] sm:$0x1]
      %v3648 = vld [vmem:[%s2946 + $0xb4] sm:$0xe]
      %v3649 = vld [vmem:[%s2946 + $0xb8] sm:$0xf]
      %v3650 = vld [vmem:[%s2946 + $0xbc] sm:$0x1]
      %v3699 = vrot.slane %v3603, 5
      %v3700 = vrot.slane %v3699, 4
      %v3701 = vrot.slane %v3604, 5
      %v3702 = vsel %vm1809, %v3700, %v3701
      %v3703 = vrot.slane %v3701, 4
      %v3704 = vrot.slane %v3605, 5
      %v3705 = vsel %vm1809, %v3703, %v3704
      %v3706 = vrot.slane %v3606, 5
      %v3707 = vrot.slane %v3706, 4
      %v3708 = vrot.slane %v3607, 5
      %v3709 = vsel %vm1809, %v3707, %v3708
      %v3710 = vrot.slane %v3708, 4
      %v3711 = vrot.slane %v3608, 5
      %v3712 = vsel %vm1809, %v3710, %v3711
      %v3713 = vrot.slane %v3609, 5
      %v3714 = vrot.slane %v3713, 4
      %v3715 = vrot.slane %v3610, 5
      %v3716 = vsel %vm1809, %v3714, %v3715
      %v3717 = vrot.slane %v3715, 4
      %v3718 = vrot.slane %v3611, 5
      %v3719 = vsel %vm1809, %v3717, %v3718
      %v3720 = vrot.slane %v3612, 5
      %v3721 = vrot.slane %v3720, 4
      %v3722 = vrot.slane %v3613, 5
      %v3723 = vsel %vm1809, %v3721, %v3722
      %v3724 = vrot.slane %v3722, 4
      %v3725 = vrot.slane %v3614, 5
      %v3726 = vsel %vm1809, %v3724, %v3725
      %v3727 = vrot.slane %v3615, 5
      %v3728 = vrot.slane %v3727, 4
      %v3729 = vrot.slane %v3616, 5
      %v3730 = vsel %vm1809, %v3728, %v3729
      %v3731 = vrot.slane %v3729, 4
      %v3732 = vrot.slane %v3617, 5
      %v3733 = vsel %vm1809, %v3731, %v3732
      %v3734 = vrot.slane %v3618, 5
      %v3735 = vrot.slane %v3734, 4
      %v3736 = vrot.slane %v3619, 5
      %v3737 = vsel %vm1809, %v3735, %v3736
      %v3738 = vrot.slane %v3736, 4
      %v3739 = vrot.slane %v3620, 5
      %v3740 = vsel %vm1809, %v3738, %v3739
      %v3741 = vrot.slane %v3621, 5
      %v3742 = vrot.slane %v3741, 4
      %v3743 = vrot.slane %v3622, 5
      %v3744 = vsel %vm1809, %v3742, %v3743
      %v3745 = vrot.slane %v3743, 4
      %v3746 = vrot.slane %v3623, 5
      %v3747 = vsel %vm1809, %v3745, %v3746
      %v3748 = vrot.slane %v3624, 5
      %v3749 = vrot.slane %v3748, 4
      %v3750 = vrot.slane %v3625, 5
      %v3751 = vsel %vm1809, %v3749, %v3750
      %v3752 = vrot.slane %v3750, 4
      %v3753 = vrot.slane %v3626, 5
      %v3754 = vsel %vm1809, %v3752, %v3753
      %v3755 = vrot.slane %v3627, 5
      %v3756 = vrot.slane %v3755, 4
      %v3757 = vrot.slane %v3628, 5
      %v3758 = vsel %vm1809, %v3756, %v3757
      %v3759 = vrot.slane %v3757, 4
      %v3760 = vrot.slane %v3629, 5
      %v3761 = vsel %vm1809, %v3759, %v3760
      %v3762 = vrot.slane %v3630, 5
      %v3763 = vrot.slane %v3762, 4
      %v3764 = vrot.slane %v3631, 5
      %v3765 = vsel %vm1809, %v3763, %v3764
      %v3766 = vrot.slane %v3764, 4
      %v3767 = vrot.slane %v3632, 5
      %v3768 = vsel %vm1809, %v3766, %v3767
      %v3769 = vrot.slane %v3633, 5
      %v3770 = vrot.slane %v3769, 4
      %v3771 = vrot.slane %v3634, 5
      %v3772 = vsel %vm1809, %v3770, %v3771
      %v3773 = vrot.slane %v3771, 4
      %v3774 = vrot.slane %v3635, 5
      %v3775 = vsel %vm1809, %v3773, %v3774
      %v3776 = vrot.slane %v3636, 5
      %v3777 = vrot.slane %v3776, 4
      %v3778 = vrot.slane %v3637, 5
      %v3779 = vsel %vm1809, %v3777, %v3778
      %v3780 = vrot.slane %v3778, 4
      %v3781 = vrot.slane %v3638, 5
      %v3782 = vsel %vm1809, %v3780, %v3781
      %v3783 = vrot.slane %v3639, 5
      %v3784 = vrot.slane %v3783, 4
      %v3785 = vrot.slane %v3640, 5
      %v3786 = vsel %vm1809, %v3784, %v3785
      %v3787 = vrot.slane %v3785, 4
      %v3788 = vrot.slane %v3641, 5
      %v3789 = vsel %vm1809, %v3787, %v3788
      %v3790 = vrot.slane %v3642, 5
      %v3791 = vrot.slane %v3790, 4
      %v3792 = vrot.slane %v3643, 5
      %v3793 = vsel %vm1809, %v3791, %v3792
      %v3794 = vrot.slane %v3792, 4
      %v3795 = vrot.slane %v3644, 5
      %v3796 = vsel %vm1809, %v3794, %v3795
      %v3797 = vrot.slane %v3645, 5
      %v3798 = vrot.slane %v3797, 4
      %v3799 = vrot.slane %v3646, 5
      %v3800 = vsel %vm1809, %v3798, %v3799
      %v3801 = vrot.slane %v3799, 4
      %v3802 = vrot.slane %v3647, 5
      %v3803 = vsel %vm1809, %v3801, %v3802
      %v3804 = vrot.slane %v3648, 5
      %v3805 = vrot.slane %v3804, 4
      %v3806 = vrot.slane %v3649, 5
      %v3807 = vsel %vm1809, %v3805, %v3806
      %v3808 = vrot.slane %v3806, 4
      %v3809 = vrot.slane %v3650, 5
      %v3810 = vsel %vm1809, %v3808, %v3809
      %v3811 = vunpack.c.l.b16 %v3702
      %v3812 = vunpack.c.l.b16 %v3705
      %v3813 = vunpack.c.l.b16 %v3709
      %v3814 = vunpack.c.l.b16 %v3712
      %v3815 = vunpack.c.l.b16 %v3716
      %v3816 = vunpack.c.l.b16 %v3719
      %v3817 = vunpack.c.l.b16 %v3723
      %v3818 = vunpack.c.l.b16 %v3726
      %v3819 = vunpack.c.l.b16 %v3730
      %v3820 = vunpack.c.l.b16 %v3733
      %v3821 = vunpack.c.l.b16 %v3737
      %v3822 = vunpack.c.l.b16 %v3740
      %v3823 = vunpack.c.l.b16 %v3744
      %v3824 = vunpack.c.l.b16 %v3747
      %v3825 = vunpack.c.l.b16 %v3751
      %v3826 = vunpack.c.l.b16 %v3754
      %v3827 = vunpack.c.l.b16 %v3758
      %v3828 = vunpack.c.l.b16 %v3761
      %v3829 = vunpack.c.l.b16 %v3765
      %v3830 = vunpack.c.l.b16 %v3768
      %v3831 = vunpack.c.l.b16 %v3772
      %v3832 = vunpack.c.l.b16 %v3775
      %v3833 = vunpack.c.l.b16 %v3779
      %v3834 = vunpack.c.l.b16 %v3782
      %v3835 = vunpack.c.l.b16 %v3786
      %v3836 = vunpack.c.l.b16 %v3789
      %v3837 = vunpack.c.l.b16 %v3793
      %v3838 = vunpack.c.l.b16 %v3796
      %v3839 = vunpack.c.l.b16 %v3800
      %v3840 = vunpack.c.l.b16 %v3803
      %v3841 = vunpack.c.l.b16 %v3807
      %v3842 = vunpack.c.l.b16 %v3810
      %v3843 = vpack.c.b16 %v3812, %v3811
      %v3844 = vpack.c.b16 %v3814, %v3813
      %v3845 = vpack.c.b16 %v3816, %v3815
      %v3846 = vpack.c.b16 %v3818, %v3817
      %v3847 = vpack.c.b16 %v3820, %v3819
      %v3848 = vpack.c.b16 %v3822, %v3821
      %v3849 = vpack.c.b16 %v3824, %v3823
      %v3850 = vpack.c.b16 %v3826, %v3825
      %v3851 = vpack.c.b16 %v3828, %v3827
      %v3852 = vpack.c.b16 %v3830, %v3829
      %v3853 = vpack.c.b16 %v3832, %v3831
      %v3854 = vpack.c.b16 %v3834, %v3833
      %v3855 = vpack.c.b16 %v3836, %v3835
      %v3856 = vpack.c.b16 %v3838, %v3837
      %v3857 = vpack.c.b16 %v3840, %v3839
      %v3858 = vpack.c.b16 %v3842, %v3841
      %3875 = vst [vmem:[#allocation3 + $0x40] sm:$0xff] %v3843
      %3876 = vst [vmem:[#allocation3 + $0x88] sm:$0xff] %v3844
      %3877 = vst [vmem:[#allocation3 + $0xd0] sm:$0xff] %v3845
      %3878 = vst [vmem:[#allocation3 + $0x118] sm:$0xff] %v3846
      %3879 = vst [vmem:[#allocation3 + $0x160] sm:$0xff] %v3847
      %3880 = vst [vmem:[#allocation3 + $0x1a8] sm:$0xff] %v3848
      %3881 = vst [vmem:[#allocation3 + $0x1f0] sm:$0xff] %v3849
      %3882 = vst [vmem:[#allocation3 + $0x238] sm:$0xff] %v3850
      %3883 = vst [vmem:[#allocation3 + $0x280] sm:$0xff] %v3851
      %3884 = vst [vmem:[#allocation3 + $0x2c8] sm:$0xff] %v3852
      %3885 = vst [vmem:[#allocation3 + $0x310] sm:$0xff] %v3853
      %3886 = vst [vmem:[#allocation3 + $0x358] sm:$0xff] %v3854
      %3887 = vst [vmem:[#allocation3 + $0x3a0] sm:$0xff] %v3855
      %3888 = vst [vmem:[#allocation3 + $0x3e8] sm:$0xff] %v3856
      %3889 = vst [vmem:[#allocation3 + $0x430] sm:$0xff] %v3857
      %3890 = vst [vmem:[#allocation3 + $0x478] sm:$0xff] %v3858
      %v3891 = vld [vmem:[#allocation3] sm:$0xff]
      %v3892 = vld [vmem:[#allocation3 + $0x8] sm:$0xff]
      %v3893 = vld [vmem:[#allocation3 + $0x10] sm:$0xff]
      %v3894 = vld [vmem:[#allocation3 + $0x18] sm:$0xff]
      %v3895 = vld [vmem:[#allocation3 + $0x20] sm:$0xff]
      %v3896 = vld [vmem:[#allocation3 + $0x28] sm:$0xff]
      %v3897 = vld [vmem:[#allocation3 + $0x30] sm:$0xff]
      %v3898 = vld [vmem:[#allocation3 + $0x38] sm:$0xff]
      %v3899 = vld [vmem:[#allocation3 + $0x40] sm:$0xff]
      %v3900 = vld [vmem:[#allocation3 + $0x48] sm:$0xff]
      %v3901 = vld [vmem:[#allocation3 + $0x50] sm:$0xff]
      %v3902 = vld [vmem:[#allocation3 + $0x58] sm:$0xff]
      %v3903 = vld [vmem:[#allocation3 + $0x60] sm:$0xff]
      %v3904 = vld [vmem:[#allocation3 + $0x68] sm:$0xff]
      %v3905 = vld [vmem:[#allocation3 + $0x70] sm:$0xff]
      %v3906 = vld [vmem:[#allocation3 + $0x78] sm:$0xff]
      %v3907 = vld [vmem:[#allocation3 + $0x80] sm:$0xff]
      %v3908 = vld [vmem:[#allocation3 + $0x88] sm:$0xff]
      %v3909 = vld [vmem:[#allocation3 + $0x90] sm:$0xff]
      %v3910 = vld [vmem:[#allocation3 + $0x98] sm:$0xff]
      %v3911 = vld [vmem:[#allocation3 + $0xa0] sm:$0xff]
      %v3912 = vld [vmem:[#allocation3 + $0xa8] sm:$0xff]
      %v3913 = vld [vmem:[#allocation3 + $0xb0] sm:$0xff]
      %v3914 = vld [vmem:[#allocation3 + $0xb8] sm:$0xff]
      %v3915 = vld [vmem:[#allocation3 + $0xc0] sm:$0xff]
      %v3916 = vld [vmem:[#allocation3 + $0xc8] sm:$0xff]
      %v3917 = vld [vmem:[#allocation3 + $0xd0] sm:$0xff]
      %v3918 = vld [vmem:[#allocation3 + $0xd8] sm:$0xff]
      %v3919 = vld [vmem:[#allocation3 + $0xe0] sm:$0xff]
      %v3920 = vld [vmem:[#allocation3 + $0xe8] sm:$0xff]
      %v3921 = vld [vmem:[#allocation3 + $0xf0] sm:$0xff]
      %v3922 = vld [vmem:[#allocation3 + $0xf8] sm:$0xff]
      %v3923 = vld [vmem:[#allocation3 + $0x100] sm:$0xff]
      %v3924 = vld [vmem:[#allocation3 + $0x108] sm:$0xff]
      %v3925 = vld [vmem:[#allocation3 + $0x110] sm:$0xff]
      %v3926 = vld [vmem:[#allocation3 + $0x118] sm:$0xff]
      %v3927 = vld [vmem:[#allocation3 + $0x120] sm:$0xff]
      %v3928 = vld [vmem:[#allocation3 + $0x128] sm:$0xff]
      %v3929 = vld [vmem:[#allocation3 + $0x130] sm:$0xff]
      %v3930 = vld [vmem:[#allocation3 + $0x138] sm:$0xff]
      %v3931 = vld [vmem:[#allocation3 + $0x140] sm:$0xff]
      %v3932 = vld [vmem:[#allocation3 + $0x148] sm:$0xff]
      %v3933 = vld [vmem:[#allocation3 + $0x150] sm:$0xff]
      %v3934 = vld [vmem:[#allocation3 + $0x158] sm:$0xff]
      %v3935 = vld [vmem:[#allocation3 + $0x160] sm:$0xff]
      %v3936 = vld [vmem:[#allocation3 + $0x168] sm:$0xff]
      %v3937 = vld [vmem:[#allocation3 + $0x170] sm:$0xff]
      %v3938 = vld [vmem:[#allocation3 + $0x178] sm:$0xff]
      %v3939 = vld [vmem:[#allocation3 + $0x180] sm:$0xff]
      %v3940 = vld [vmem:[#allocation3 + $0x188] sm:$0xff]
      %v3941 = vld [vmem:[#allocation3 + $0x190] sm:$0xff]
      %v3942 = vld [vmem:[#allocation3 + $0x198] sm:$0xff]
      %v3943 = vld [vmem:[#allocation3 + $0x1a0] sm:$0xff]
      %v3944 = vld [vmem:[#allocation3 + $0x1a8] sm:$0xff]
      %v3945 = vld [vmem:[#allocation3 + $0x1b0] sm:$0xff]
      %v3946 = vld [vmem:[#allocation3 + $0x1b8] sm:$0xff]
      %v3947 = vld [vmem:[#allocation3 + $0x1c0] sm:$0xff]
      %v3948 = vld [vmem:[#allocation3 + $0x1c8] sm:$0xff]
      %v3949 = vld [vmem:[#allocation3 + $0x1d0] sm:$0xff]
      %v3950 = vld [vmem:[#allocation3 + $0x1d8] sm:$0xff]
      %v3951 = vld [vmem:[#allocation3 + $0x1e0] sm:$0xff]
      %v3952 = vld [vmem:[#allocation3 + $0x1e8] sm:$0xff]
      %v3953 = vld [vmem:[#allocation3 + $0x1f0] sm:$0xff]
      %v3954 = vld [vmem:[#allocation3 + $0x1f8] sm:$0xff]
      %v3955 = vld [vmem:[#allocation3 + $0x200] sm:$0xff]
      %v3956 = vld [vmem:[#allocation3 + $0x208] sm:$0xff]
      %v3957 = vld [vmem:[#allocation3 + $0x210] sm:$0xff]
      %v3958 = vld [vmem:[#allocation3 + $0x218] sm:$0xff]
      %v3959 = vld [vmem:[#allocation3 + $0x220] sm:$0xff]
      %v3960 = vld [vmem:[#allocation3 + $0x228] sm:$0xff]
      %v3961 = vld [vmem:[#allocation3 + $0x230] sm:$0xff]
      %v3962 = vld [vmem:[#allocation3 + $0x238] sm:$0xff]
      %v3963 = vld [vmem:[#allocation3 + $0x240] sm:$0xff]
      %v3964 = vld [vmem:[#allocation3 + $0x248] sm:$0xff]
      %v3965 = vld [vmem:[#allocation3 + $0x250] sm:$0xff]
      %v3966 = vld [vmem:[#allocation3 + $0x258] sm:$0xff]
      %v3967 = vld [vmem:[#allocation3 + $0x260] sm:$0xff]
      %v3968 = vld [vmem:[#allocation3 + $0x268] sm:$0xff]
      %v3969 = vld [vmem:[#allocation3 + $0x270] sm:$0xff]
      %v3970 = vld [vmem:[#allocation3 + $0x278] sm:$0xff]
      %v3971 = vld [vmem:[#allocation3 + $0x280] sm:$0xff]
      %v3972 = vld [vmem:[#allocation3 + $0x288] sm:$0xff]
      %v3973 = vld [vmem:[#allocation3 + $0x290] sm:$0xff]
      %v3974 = vld [vmem:[#allocation3 + $0x298] sm:$0xff]
      %v3975 = vld [vmem:[#allocation3 + $0x2a0] sm:$0xff]
      %v3976 = vld [vmem:[#allocation3 + $0x2a8] sm:$0xff]
      %v3977 = vld [vmem:[#allocation3 + $0x2b0] sm:$0xff]
      %v3978 = vld [vmem:[#allocation3 + $0x2b8] sm:$0xff]
      %v3979 = vld [vmem:[#allocation3 + $0x2c0] sm:$0xff]
      %v3980 = vld [vmem:[#allocation3 + $0x2c8] sm:$0xff]
      %v3981 = vld [vmem:[#allocation3 + $0x2d0] sm:$0xff]
      %v3982 = vld [vmem:[#allocation3 + $0x2d8] sm:$0xff]
      %v3983 = vld [vmem:[#allocation3 + $0x2e0] sm:$0xff]
      %v3984 = vld [vmem:[#allocation3 + $0x2e8] sm:$0xff]
      %v3985 = vld [vmem:[#allocation3 + $0x2f0] sm:$0xff]
      %v3986 = vld [vmem:[#allocation3 + $0x2f8] sm:$0xff]
      %v3987 = vld [vmem:[#allocation3 + $0x300] sm:$0xff]
      %v3988 = vld [vmem:[#allocation3 + $0x308] sm:$0xff]
      %v3989 = vld [vmem:[#allocation3 + $0x310] sm:$0xff]
      %v3990 = vld [vmem:[#allocation3 + $0x318] sm:$0xff]
      %v3991 = vld [vmem:[#allocation3 + $0x320] sm:$0xff]
      %v3992 = vld [vmem:[#allocation3 + $0x328] sm:$0xff]
      %v3993 = vld [vmem:[#allocation3 + $0x330] sm:$0xff]
      %v3994 = vld [vmem:[#allocation3 + $0x338] sm:$0xff]
      %v3995 = vld [vmem:[#allocation3 + $0x340] sm:$0xff]
      %v3996 = vld [vmem:[#allocation3 + $0x348] sm:$0xff]
      %v3997 = vld [vmem:[#allocation3 + $0x350] sm:$0xff]
      %v3998 = vld [vmem:[#allocation3 + $0x358] sm:$0xff]
      %v3999 = vld [vmem:[#allocation3 + $0x360] sm:$0xff]
      %v4000 = vld [vmem:[#allocation3 + $0x368] sm:$0xff]
      %v4001 = vld [vmem:[#allocation3 + $0x370] sm:$0xff]
      %v4002 = vld [vmem:[#allocation3 + $0x378] sm:$0xff]
      %v4003 = vld [vmem:[#allocation3 + $0x380] sm:$0xff]
      %v4004 = vld [vmem:[#allocation3 + $0x388] sm:$0xff]
      %v4005 = vld [vmem:[#allocation3 + $0x390] sm:$0xff]
      %v4006 = vld [vmem:[#allocation3 + $0x398] sm:$0xff]
      %v4007 = vld [vmem:[#allocation3 + $0x3a0] sm:$0xff]
      %v4008 = vld [vmem:[#allocation3 + $0x3a8] sm:$0xff]
      %v4009 = vld [vmem:[#allocation3 + $0x3b0] sm:$0xff]
      %v4010 = vld [vmem:[#allocation3 + $0x3b8] sm:$0xff]
      %v4011 = vld [vmem:[#allocation3 + $0x3c0] sm:$0xff]
      %v4012 = vld [vmem:[#allocation3 + $0x3c8] sm:$0xff]
      %v4013 = vld [vmem:[#allocation3 + $0x3d0] sm:$0xff]
      %v4014 = vld [vmem:[#allocation3 + $0x3d8] sm:$0xff]
      %v4015 = vld [vmem:[#allocation3 + $0x3e0] sm:$0xff]
      %v4016 = vld [vmem:[#allocation3 + $0x3e8] sm:$0xff]
      %v4017 = vld [vmem:[#allocation3 + $0x3f0] sm:$0xff]
      %v4018 = vld [vmem:[#allocation3 + $0x3f8] sm:$0xff]
      %v4019 = vld [vmem:[#allocation3 + $0x400] sm:$0xff]
      %v4020 = vld [vmem:[#allocation3 + $0x408] sm:$0xff]
      %v4021 = vld [vmem:[#allocation3 + $0x410] sm:$0xff]
      %v4022 = vld [vmem:[#allocation3 + $0x418] sm:$0xff]
      %v4023 = vld [vmem:[#allocation3 + $0x420] sm:$0xff]
      %v4024 = vld [vmem:[#allocation3 + $0x428] sm:$0xff]
      %v4025 = vld [vmem:[#allocation3 + $0x430] sm:$0xff]
      %v4026 = vld [vmem:[#allocation3 + $0x438] sm:$0xff]
      %v4027 = vld [vmem:[#allocation3 + $0x440] sm:$0xff]
      %v4028 = vld [vmem:[#allocation3 + $0x448] sm:$0xff]
      %v4029 = vld [vmem:[#allocation3 + $0x450] sm:$0xff]
      %v4030 = vld [vmem:[#allocation3 + $0x458] sm:$0xff]
      %v4031 = vld [vmem:[#allocation3 + $0x460] sm:$0xff]
      %v4032 = vld [vmem:[#allocation3 + $0x468] sm:$0xff]
      %v4033 = vld [vmem:[#allocation3 + $0x470] sm:$0xff]
      %v4034 = vld [vmem:[#allocation3 + $0x478] sm:$0xff]
      %v4035 = vld [vmem:[%s3] sm:$0xf]
      %v4036 = vld [vmem:[%s3 + $0x4] sm:$0xf]
      %v4037 = vld [vmem:[%s3 + $0x8] sm:$0xf]
      %v4038 = vld [vmem:[%s3 + $0xc] sm:$0xf]
      %v4039 = vld [vmem:[%s3 + $0x10] sm:$0xf]
      %v4040 = vld [vmem:[%s3 + $0x14] sm:$0xf]
      %v4041 = vld [vmem:[%s3 + $0x18] sm:$0xf]
      %v4042 = vld [vmem:[%s3 + $0x1c] sm:$0xf]
      %v4043 = vld [vmem:[%s3 + $0x20] sm:$0xf]
      %v4044 = vld [vmem:[%s3 + $0x24] sm:$0xf]
      %v4045 = vld [vmem:[%s3 + $0x28] sm:$0xf]
      %v4046 = vld [vmem:[%s3 + $0x2c] sm:$0xf]
      %v4047 = vld [vmem:[%s3 + $0x30] sm:$0xf]
      %v4048 = vld [vmem:[%s3 + $0x34] sm:$0xf]
      %v4049 = vld [vmem:[%s3 + $0x38] sm:$0xf]
      %v4050 = vld [vmem:[%s3 + $0x3c] sm:$0xf]
      %v4051 = vld [vmem:[%s3 + $0x40] sm:$0xf]
      %v4052 = vld [vmem:[%s3 + $0x44] sm:$0xf]
      %v4053 = vld [vmem:[%s3 + $0x48] sm:$0xf]
      %v4054 = vld [vmem:[%s3 + $0x4c] sm:$0xf]
      %v4055 = vld [vmem:[%s3 + $0x50] sm:$0xf]
      %v4056 = vld [vmem:[%s3 + $0x54] sm:$0xf]
      %v4057 = vld [vmem:[%s3 + $0x58] sm:$0xf]
      %v4058 = vld [vmem:[%s3 + $0x5c] sm:$0xf]
      %v4059 = vld [vmem:[%s3 + $0x60] sm:$0xf]
      %v4060 = vld [vmem:[%s3 + $0x64] sm:$0xf]
      %v4061 = vld [vmem:[%s3 + $0x68] sm:$0xf]
      %v4062 = vld [vmem:[%s3 + $0x6c] sm:$0xf]
      %v4063 = vld [vmem:[%s3 + $0x70] sm:$0xf]
      %v4064 = vld [vmem:[%s3 + $0x74] sm:$0xf]
      %v4065 = vld [vmem:[%s3 + $0x78] sm:$0xf]
      %v4066 = vld [vmem:[%s3 + $0x7c] sm:$0xf]
      %v4067 = vld [vmem:[%s3 + $0x80] sm:$0xf]
      %v4068 = vld [vmem:[%s3 + $0x84] sm:$0xf]
      %v4069 = vld [vmem:[%s3 + $0x88] sm:$0xf]
      %v4070 = vld [vmem:[%s3 + $0x8c] sm:$0xf]
      %v4071 = vld [vmem:[%s3 + $0x90] sm:$0xf]
      %v4072 = vld [vmem:[%s3 + $0x94] sm:$0xf]
      %v4073 = vld [vmem:[%s3 + $0x98] sm:$0xf]
      %v4074 = vld [vmem:[%s3 + $0x9c] sm:$0xf]
      %v4075 = vld [vmem:[%s3 + $0xa0] sm:$0xf]
      %v4076 = vld [vmem:[%s3 + $0xa4] sm:$0xf]
      %v4077 = vld [vmem:[%s3 + $0xa8] sm:$0xf]
      %v4078 = vld [vmem:[%s3 + $0xac] sm:$0xf]
      %v4079 = vld [vmem:[%s3 + $0xb0] sm:$0xf]
      %v4080 = vld [vmem:[%s3 + $0xb4] sm:$0xf]
      %v4081 = vld [vmem:[%s3 + $0xb8] sm:$0xf]
      %v4082 = vld [vmem:[%s3 + $0xbc] sm:$0xf]
      %v4083 = vld [vmem:[%s3 + $0xc0] sm:$0xf]
      %v4084 = vld [vmem:[%s3 + $0xc4] sm:$0xf]
      %v4085 = vld [vmem:[%s3 + $0xc8] sm:$0xf]
      %v4086 = vld [vmem:[%s3 + $0xcc] sm:$0xf]
      %v4087 = vld [vmem:[%s3 + $0xd0] sm:$0xf]
      %v4088 = vld [vmem:[%s3 + $0xd4] sm:$0xf]
      %v4089 = vld [vmem:[%s3 + $0xd8] sm:$0xf]
      %v4090 = vld [vmem:[%s3 + $0xdc] sm:$0xf]
      %v4091 = vld [vmem:[%s3 + $0xe0] sm:$0xf]
      %v4092 = vld [vmem:[%s3 + $0xe4] sm:$0xf]
      %v4093 = vld [vmem:[%s3 + $0xe8] sm:$0xf]
      %v4094 = vld [vmem:[%s3 + $0xec] sm:$0xf]
      %v4095 = vld [vmem:[%s3 + $0xf0] sm:$0xf]
      %v4096 = vld [vmem:[%s3 + $0xf4] sm:$0xf]
      %v4097 = vld [vmem:[%s3 + $0xf8] sm:$0xf]
      %v4098 = vld [vmem:[%s3 + $0xfc] sm:$0xf]
      %v4099 = vld [vmem:[%s3 + $0x100] sm:$0xf]
      %v4100 = vld [vmem:[%s3 + $0x104] sm:$0xf]
      %v4101 = vld [vmem:[%s3 + $0x108] sm:$0xf]
      %v4102 = vld [vmem:[%s3 + $0x10c] sm:$0xf]
      %v4103 = vld [vmem:[%s3 + $0x110] sm:$0xf]
      %v4104 = vld [vmem:[%s3 + $0x114] sm:$0xf]
      %v4105 = vld [vmem:[%s3 + $0x118] sm:$0xf]
      %v4106 = vld [vmem:[%s3 + $0x11c] sm:$0xf]
      %v4107 = vld [vmem:[%s3 + $0x120] sm:$0xf]
      %v4108 = vld [vmem:[%s3 + $0x124] sm:$0xf]
      %v4109 = vld [vmem:[%s3 + $0x128] sm:$0xf]
      %v4110 = vld [vmem:[%s3 + $0x12c] sm:$0xf]
      %v4111 = vld [vmem:[%s3 + $0x130] sm:$0xf]
      %v4112 = vld [vmem:[%s3 + $0x134] sm:$0xf]
      %v4113 = vld [vmem:[%s3 + $0x138] sm:$0xf]
      %v4114 = vld [vmem:[%s3 + $0x13c] sm:$0xf]
      %v4115 = vld [vmem:[%s3 + $0x140] sm:$0xf]
      %v4116 = vld [vmem:[%s3 + $0x144] sm:$0xf]
      %v4117 = vld [vmem:[%s3 + $0x148] sm:$0xf]
      %v4118 = vld [vmem:[%s3 + $0x14c] sm:$0xf]
      %v4119 = vld [vmem:[%s3 + $0x150] sm:$0xf]
      %v4120 = vld [vmem:[%s3 + $0x154] sm:$0xf]
      %v4121 = vld [vmem:[%s3 + $0x158] sm:$0xf]
      %v4122 = vld [vmem:[%s3 + $0x15c] sm:$0xf]
      %v4123 = vld [vmem:[%s3 + $0x160] sm:$0xf]
      %v4124 = vld [vmem:[%s3 + $0x164] sm:$0xf]
      %v4125 = vld [vmem:[%s3 + $0x168] sm:$0xf]
      %v4126 = vld [vmem:[%s3 + $0x16c] sm:$0xf]
      %v4127 = vld [vmem:[%s3 + $0x170] sm:$0xf]
      %v4128 = vld [vmem:[%s3 + $0x174] sm:$0xf]
      %v4129 = vld [vmem:[%s3 + $0x178] sm:$0xf]
      %v4130 = vld [vmem:[%s3 + $0x17c] sm:$0xf]
      %v4131 = vld [vmem:[%s3 + $0x180] sm:$0xf]
      %v4132 = vld [vmem:[%s3 + $0x184] sm:$0xf]
      %v4133 = vld [vmem:[%s3 + $0x188] sm:$0xf]
      %v4134 = vld [vmem:[%s3 + $0x18c] sm:$0xf]
      %v4135 = vld [vmem:[%s3 + $0x190] sm:$0xf]
      %v4136 = vld [vmem:[%s3 + $0x194] sm:$0xf]
      %v4137 = vld [vmem:[%s3 + $0x198] sm:$0xf]
      %v4138 = vld [vmem:[%s3 + $0x19c] sm:$0xf]
      %v4139 = vld [vmem:[%s3 + $0x1a0] sm:$0xf]
      %v4140 = vld [vmem:[%s3 + $0x1a4] sm:$0xf]
      %v4141 = vld [vmem:[%s3 + $0x1a8] sm:$0xf]
      %v4142 = vld [vmem:[%s3 + $0x1ac] sm:$0xf]
      %v4143 = vld [vmem:[%s3 + $0x1b0] sm:$0xf]
      %v4144 = vld [vmem:[%s3 + $0x1b4] sm:$0xf]
      %v4145 = vld [vmem:[%s3 + $0x1b8] sm:$0xf]
      %v4146 = vld [vmem:[%s3 + $0x1bc] sm:$0xf]
      %v4147 = vld [vmem:[%s3 + $0x1c0] sm:$0xf]
      %v4148 = vld [vmem:[%s3 + $0x1c4] sm:$0xf]
      %v4149 = vld [vmem:[%s3 + $0x1c8] sm:$0xf]
      %v4150 = vld [vmem:[%s3 + $0x1cc] sm:$0xf]
      %v4151 = vld [vmem:[%s3 + $0x1d0] sm:$0xf]
      %v4152 = vld [vmem:[%s3 + $0x1d4] sm:$0xf]
      %v4153 = vld [vmem:[%s3 + $0x1d8] sm:$0xf]
      %v4154 = vld [vmem:[%s3 + $0x1dc] sm:$0xf]
      %v4155 = vld [vmem:[%s3 + $0x1e0] sm:$0xf]
      %v4156 = vld [vmem:[%s3 + $0x1e4] sm:$0xf]
      %v4157 = vld [vmem:[%s3 + $0x1e8] sm:$0xf]
      %v4158 = vld [vmem:[%s3 + $0x1ec] sm:$0xf]
      %v4159 = vld [vmem:[%s3 + $0x1f0] sm:$0xf]
      %v4160 = vld [vmem:[%s3 + $0x1f4] sm:$0xf]
      %v4161 = vld [vmem:[%s3 + $0x1f8] sm:$0xf]
      %v4162 = vld [vmem:[%s3 + $0x1fc] sm:$0xf]
      %v4163 = vld [vmem:[%s3 + $0x200] sm:$0xf]
      %v4164 = vld [vmem:[%s3 + $0x204] sm:$0xf]
      %v4165 = vld [vmem:[%s3 + $0x208] sm:$0xf]
      %v4166 = vld [vmem:[%s3 + $0x20c] sm:$0xf]
      %v4167 = vld [vmem:[%s3 + $0x210] sm:$0xf]
      %v4168 = vld [vmem:[%s3 + $0x214] sm:$0xf]
      %v4169 = vld [vmem:[%s3 + $0x218] sm:$0xf]
      %v4170 = vld [vmem:[%s3 + $0x21c] sm:$0xf]
      %v4171 = vld [vmem:[%s3 + $0x220] sm:$0xf]
      %v4172 = vld [vmem:[%s3 + $0x224] sm:$0xf]
      %v4173 = vld [vmem:[%s3 + $0x228] sm:$0xf]
      %v4174 = vld [vmem:[%s3 + $0x22c] sm:$0xf]
      %v4175 = vld [vmem:[%s3 + $0x230] sm:$0xf]
      %v4176 = vld [vmem:[%s3 + $0x234] sm:$0xf]
      %v4177 = vld [vmem:[%s3 + $0x238] sm:$0xf]
      %v4178 = vld [vmem:[%s3 + $0x23c] sm:$0xf]
      %v4323 = vunpack.c.l.b16 %v4035
      %v4324 = vunpack.c.l.b16 %v4036
      %v4325 = vunpack.c.l.b16 %v4037
      %v4326 = vunpack.c.l.b16 %v4038
      %v4327 = vunpack.c.l.b16 %v4039
      %v4328 = vunpack.c.l.b16 %v4040
      %v4329 = vunpack.c.l.b16 %v4041
      %v4330 = vunpack.c.l.b16 %v4042
      %v4331 = vunpack.c.l.b16 %v4043
      %v4332 = vunpack.c.l.b16 %v4044
      %v4333 = vunpack.c.l.b16 %v4045
      %v4334 = vunpack.c.l.b16 %v4046
      %v4335 = vunpack.c.l.b16 %v4047
      %v4336 = vunpack.c.l.b16 %v4048
      %v4337 = vunpack.c.l.b16 %v4049
      %v4338 = vunpack.c.l.b16 %v4050
      %v4339 = vunpack.c.l.b16 %v4051
      %v4340 = vunpack.c.l.b16 %v4052
      %v4341 = vunpack.c.l.b16 %v4053
      %v4342 = vunpack.c.l.b16 %v4054
      %v4343 = vunpack.c.l.b16 %v4055
      %v4344 = vunpack.c.l.b16 %v4056
      %v4345 = vunpack.c.l.b16 %v4057
      %v4346 = vunpack.c.l.b16 %v4058
      %v4347 = vunpack.c.l.b16 %v4059
      %v4348 = vunpack.c.l.b16 %v4060
      %v4349 = vunpack.c.l.b16 %v4061
      %v4350 = vunpack.c.l.b16 %v4062
      %v4351 = vunpack.c.l.b16 %v4063
      %v4352 = vunpack.c.l.b16 %v4064
      %v4353 = vunpack.c.l.b16 %v4065
      %v4354 = vunpack.c.l.b16 %v4066
      %v4355 = vunpack.c.l.b16 %v4067
      %v4356 = vunpack.c.l.b16 %v4068
      %v4357 = vunpack.c.l.b16 %v4069
      %v4358 = vunpack.c.l.b16 %v4070
      %v4359 = vunpack.c.l.b16 %v4071
      %v4360 = vunpack.c.l.b16 %v4072
      %v4361 = vunpack.c.l.b16 %v4073
      %v4362 = vunpack.c.l.b16 %v4074
      %v4363 = vunpack.c.l.b16 %v4075
      %v4364 = vunpack.c.l.b16 %v4076
      %v4365 = vunpack.c.l.b16 %v4077
      %v4366 = vunpack.c.l.b16 %v4078
      %v4367 = vunpack.c.l.b16 %v4079
      %v4368 = vunpack.c.l.b16 %v4080
      %v4369 = vunpack.c.l.b16 %v4081
      %v4370 = vunpack.c.l.b16 %v4082
      %v4371 = vunpack.c.l.b16 %v4083
      %v4372 = vunpack.c.l.b16 %v4084
      %v4373 = vunpack.c.l.b16 %v4085
      %v4374 = vunpack.c.l.b16 %v4086
      %v4375 = vunpack.c.l.b16 %v4087
      %v4376 = vunpack.c.l.b16 %v4088
      %v4377 = vunpack.c.l.b16 %v4089
      %v4378 = vunpack.c.l.b16 %v4090
      %v4379 = vunpack.c.l.b16 %v4091
      %v4380 = vunpack.c.l.b16 %v4092
      %v4381 = vunpack.c.l.b16 %v4093
      %v4382 = vunpack.c.l.b16 %v4094
      %v4383 = vunpack.c.l.b16 %v4095
      %v4384 = vunpack.c.l.b16 %v4096
      %v4385 = vunpack.c.l.b16 %v4097
      %v4386 = vunpack.c.l.b16 %v4098
      %v4387 = vunpack.c.l.b16 %v4099
      %v4388 = vunpack.c.l.b16 %v4100
      %v4389 = vunpack.c.l.b16 %v4101
      %v4390 = vunpack.c.l.b16 %v4102
      %v4391 = vunpack.c.l.b16 %v4103
      %v4392 = vunpack.c.l.b16 %v4104
      %v4393 = vunpack.c.l.b16 %v4105
      %v4394 = vunpack.c.l.b16 %v4106
      %v4395 = vunpack.c.l.b16 %v4107
      %v4396 = vunpack.c.l.b16 %v4108
      %v4397 = vunpack.c.l.b16 %v4109
      %v4398 = vunpack.c.l.b16 %v4110
      %v4399 = vunpack.c.l.b16 %v4111
      %v4400 = vunpack.c.l.b16 %v4112
      %v4401 = vunpack.c.l.b16 %v4113
      %v4402 = vunpack.c.l.b16 %v4114
      %v4403 = vunpack.c.l.b16 %v4115
      %v4404 = vunpack.c.l.b16 %v4116
      %v4405 = vunpack.c.l.b16 %v4117
      %v4406 = vunpack.c.l.b16 %v4118
      %v4407 = vunpack.c.l.b16 %v4119
      %v4408 = vunpack.c.l.b16 %v4120
      %v4409 = vunpack.c.l.b16 %v4121
      %v4410 = vunpack.c.l.b16 %v4122
      %v4411 = vunpack.c.l.b16 %v4123
      %v4412 = vunpack.c.l.b16 %v4124
      %v4413 = vunpack.c.l.b16 %v4125
      %v4414 = vunpack.c.l.b16 %v4126
      %v4415 = vunpack.c.l.b16 %v4127
      %v4416 = vunpack.c.l.b16 %v4128
      %v4417 = vunpack.c.l.b16 %v4129
      %v4418 = vunpack.c.l.b16 %v4130
      %v4419 = vunpack.c.l.b16 %v4131
      %v4420 = vunpack.c.l.b16 %v4132
      %v4421 = vunpack.c.l.b16 %v4133
      %v4422 = vunpack.c.l.b16 %v4134
      %v4423 = vunpack.c.l.b16 %v4135
      %v4424 = vunpack.c.l.b16 %v4136
      %v4425 = vunpack.c.l.b16 %v4137
      %v4426 = vunpack.c.l.b16 %v4138
      %v4427 = vunpack.c.l.b16 %v4139
      %v4428 = vunpack.c.l.b16 %v4140
      %v4429 = vunpack.c.l.b16 %v4141
      %v4430 = vunpack.c.l.b16 %v4142
      %v4431 = vunpack.c.l.b16 %v4143
      %v4432 = vunpack.c.l.b16 %v4144
      %v4433 = vunpack.c.l.b16 %v4145
      %v4434 = vunpack.c.l.b16 %v4146
      %v4435 = vunpack.c.l.b16 %v4147
      %v4436 = vunpack.c.l.b16 %v4148
      %v4437 = vunpack.c.l.b16 %v4149
      %v4438 = vunpack.c.l.b16 %v4150
      %v4439 = vunpack.c.l.b16 %v4151
      %v4440 = vunpack.c.l.b16 %v4152
      %v4441 = vunpack.c.l.b16 %v4153
      %v4442 = vunpack.c.l.b16 %v4154
      %v4443 = vunpack.c.l.b16 %v4155
      %v4444 = vunpack.c.l.b16 %v4156
      %v4445 = vunpack.c.l.b16 %v4157
      %v4446 = vunpack.c.l.b16 %v4158
      %v4447 = vunpack.c.l.b16 %v4159
      %v4448 = vunpack.c.l.b16 %v4160
      %v4449 = vunpack.c.l.b16 %v4161
      %v4450 = vunpack.c.l.b16 %v4162
      %v4451 = vunpack.c.l.b16 %v4163
      %v4452 = vunpack.c.l.b16 %v4164
      %v4453 = vunpack.c.l.b16 %v4165
      %v4454 = vunpack.c.l.b16 %v4166
      %v4455 = vunpack.c.l.b16 %v4167
      %v4456 = vunpack.c.l.b16 %v4168
      %v4457 = vunpack.c.l.b16 %v4169
      %v4458 = vunpack.c.l.b16 %v4170
      %v4459 = vunpack.c.l.b16 %v4171
      %v4460 = vunpack.c.l.b16 %v4172
      %v4461 = vunpack.c.l.b16 %v4173
      %v4462 = vunpack.c.l.b16 %v4174
      %v4463 = vunpack.c.l.b16 %v4175
      %v4464 = vunpack.c.l.b16 %v4176
      %v4465 = vunpack.c.l.b16 %v4177
      %v4466 = vunpack.c.l.b16 %v4178
      %v4467 = vpack.c.b16 %v4324, %v4323
      %v4468 = vpack.c.b16 %v4326, %v4325
      %v4469 = vpack.c.b16 %v4328, %v4327
      %v4470 = vpack.c.b16 %v4330, %v4329
      %v4471 = vpack.c.b16 %v4332, %v4331
      %v4472 = vpack.c.b16 %v4334, %v4333
      %v4473 = vpack.c.b16 %v4336, %v4335
      %v4474 = vpack.c.b16 %v4338, %v4337
      %v4475 = vpack.c.b16 %v4340, %v4339
      %v4476 = vpack.c.b16 %v4342, %v4341
      %v4477 = vpack.c.b16 %v4344, %v4343
      %v4478 = vpack.c.b16 %v4346, %v4345
      %v4479 = vpack.c.b16 %v4348, %v4347
      %v4480 = vpack.c.b16 %v4350, %v4349
      %v4481 = vpack.c.b16 %v4352, %v4351
      %v4482 = vpack.c.b16 %v4354, %v4353
      %v4483 = vpack.c.b16 %v4356, %v4355
      %v4484 = vpack.c.b16 %v4358, %v4357
      %v4485 = vpack.c.b16 %v4360, %v4359
      %v4486 = vpack.c.b16 %v4362, %v4361
      %v4487 = vpack.c.b16 %v4364, %v4363
      %v4488 = vpack.c.b16 %v4366, %v4365
      %v4489 = vpack.c.b16 %v4368, %v4367
      %v4490 = vpack.c.b16 %v4370, %v4369
      %v4491 = vpack.c.b16 %v4372, %v4371
      %v4492 = vpack.c.b16 %v4374, %v4373
      %v4493 = vpack.c.b16 %v4376, %v4375
      %v4494 = vpack.c.b16 %v4378, %v4377
      %v4495 = vpack.c.b16 %v4380, %v4379
      %v4496 = vpack.c.b16 %v4382, %v4381
      %v4497 = vpack.c.b16 %v4384, %v4383
      %v4498 = vpack.c.b16 %v4386, %v4385
      %v4499 = vpack.c.b16 %v4388, %v4387
      %v4500 = vpack.c.b16 %v4390, %v4389
      %v4501 = vpack.c.b16 %v4392, %v4391
      %v4502 = vpack.c.b16 %v4394, %v4393
      %v4503 = vpack.c.b16 %v4396, %v4395
      %v4504 = vpack.c.b16 %v4398, %v4397
      %v4505 = vpack.c.b16 %v4400, %v4399
      %v4506 = vpack.c.b16 %v4402, %v4401
      %v4507 = vpack.c.b16 %v4404, %v4403
      %v4508 = vpack.c.b16 %v4406, %v4405
      %v4509 = vpack.c.b16 %v4408, %v4407
      %v4510 = vpack.c.b16 %v4410, %v4409
      %v4511 = vpack.c.b16 %v4412, %v4411
      %v4512 = vpack.c.b16 %v4414, %v4413
      %v4513 = vpack.c.b16 %v4416, %v4415
      %v4514 = vpack.c.b16 %v4418, %v4417
      %v4515 = vpack.c.b16 %v4420, %v4419
      %v4516 = vpack.c.b16 %v4422, %v4421
      %v4517 = vpack.c.b16 %v4424, %v4423
      %v4518 = vpack.c.b16 %v4426, %v4425
      %v4519 = vpack.c.b16 %v4428, %v4427
      %v4520 = vpack.c.b16 %v4430, %v4429
      %v4521 = vpack.c.b16 %v4432, %v4431
      %v4522 = vpack.c.b16 %v4434, %v4433
      %v4523 = vpack.c.b16 %v4436, %v4435
      %v4524 = vpack.c.b16 %v4438, %v4437
      %v4525 = vpack.c.b16 %v4440, %v4439
      %v4526 = vpack.c.b16 %v4442, %v4441
      %v4527 = vpack.c.b16 %v4444, %v4443
      %v4528 = vpack.c.b16 %v4446, %v4445
      %v4529 = vpack.c.b16 %v4448, %v4447
      %v4530 = vpack.c.b16 %v4450, %v4449
      %v4531 = vpack.c.b16 %v4452, %v4451
      %v4532 = vpack.c.b16 %v4454, %v4453
      %v4533 = vpack.c.b16 %v4456, %v4455
      %v4534 = vpack.c.b16 %v4458, %v4457
      %v4535 = vpack.c.b16 %v4460, %v4459
      %v4536 = vpack.c.b16 %v4462, %v4461
      %v4537 = vpack.c.b16 %v4464, %v4463
      %v4538 = vpack.c.b16 %v4466, %v4465
      %4611 = vmatprep.subr.bf16.mxu0 0
      %4612 = vmatpush1.bf16.msra.mxu0 %v4467
      %4613 = vmatprep.subr.bf16.mxu0 0
      %4614 = vmatpush1.bf16.msra.mxu0 %v4468
      %4615 = vmatprep.subr.bf16.mxu0 0
      %4616 = vmatpush1.bf16.msra.mxu0 %v4469
      %4617 = vmatprep.subr.bf16.mxu0 0
      %4618 = vmatpush1.bf16.msra.mxu0 %v4470
      %4619 = vmatprep.subr.bf16.mxu0 0
      %4620 = vmatpush1.bf16.msra.mxu0 %v4471
      %4621 = vmatprep.subr.bf16.mxu0 0
      %4622 = vmatpush1.bf16.msra.mxu0 %v4472
      %4623 = vmatprep.subr.bf16.mxu0 0
      %4624 = vmatpush1.bf16.msra.mxu0 %v4473
      %4625 = vmatprep.subr.bf16.mxu0 0
      %4626 = vmatpush1.bf16.msra.mxu0 %v4474
      %4627 = vmatprep.subr.bf16.mxu0 0
      %4628 = vmatpush1.bf16.msra.mxu0 %v4475
      %4629 = vmatprep.subr.bf16.mxu0 0
      %4630 = vmatpush1.bf16.msra.mxu0 %v4476
      %4631 = vmatprep.subr.bf16.mxu0 0
      %4632 = vmatpush1.bf16.msra.mxu0 %v4477
      %4633 = vmatprep.subr.bf16.mxu0 0
      %4634 = vmatpush1.bf16.msra.mxu0 %v4478
      %4635 = vmatprep.subr.bf16.mxu0 0
      %4636 = vmatpush1.bf16.msra.mxu0 %v4479
      %4637 = vmatprep.subr.bf16.mxu0 0
      %4638 = vmatpush1.bf16.msra.mxu0 %v4480
      %4639 = vmatprep.subr.bf16.mxu0 0
      %4640 = vmatpush1.bf16.msra.mxu0 %v4481
      %4641 = vmatprep.subr.bf16.mxu0 0
      %4642 = vmatpush1.bf16.msra.mxu0 %v4482
      %4643 = vmatprep.mubr.bf16.mxu0 %v3892
      %4644 = vmatmul.mubr.bf16.gmra.mrb[0].mxu0 %v3891
      %v4645 = vpop.f32.mrb[0].mxu0
      %v4646 = vadd.f32 0.0, %v4645
      %v4647 = vpop.f32.mrb[0].mxu0
      %v4648 = vpop.f32.mrb[0].mxu0
      %v4649 = vadd.f32 0.0, %v4648
      %v4650 = vpop.f32.mrb[0].mxu0
      %4651 = vmatprep.mubr.bf16.mxu0 %v3901
      %4652 = vmatmul.mubr.bf16.gmra.mrb[0].mxu0 %v3900
      %v4653 = vpop.f32.mrb[0].mxu0
      %v4654 = vadd.f32 0.0, %v4653
      %v4655 = vpop.f32.mrb[0].mxu0
      %v4656 = vpop.f32.mrb[0].mxu0
      %v4657 = vadd.f32 0.0, %v4656
      %v4658 = vpop.f32.mrb[0].mxu0
      %4659 = vmatprep.mubr.bf16.mxu0 %v3910
      %4660 = vmatmul.mubr.bf16.gmra.mrb[0].mxu0 %v3909
      %v4661 = vpop.f32.mrb[0].mxu0
      %v4662 = vadd.f32 0.0, %v4661
      %v4663 = vpop.f32.mrb[0].mxu0
      %v4664 = vpop.f32.mrb[0].mxu0
      %v4665 = vadd.f32 0.0, %v4664
      %v4666 = vpop.f32.mrb[0].mxu0
      %4667 = vmatprep.mubr.bf16.mxu0 %v3919
      %4668 = vmatmul.mubr.bf16.gmra.mrb[0].mxu0 %v3918
      %v4669 = vpop.f32.mrb[0].mxu0
      %v4670 = vadd.f32 0.0, %v4669
      %v4671 = vpop.f32.mrb[0].mxu0
      %v4672 = vpop.f32.mrb[0].mxu0
      %v4673 = vadd.f32 0.0, %v4672
      %v4674 = vpop.f32.mrb[0].mxu0
      %4675 = vmatprep.mubr.bf16.mxu0 %v3928
      %4676 = vmatmul.mubr.bf16.gmra.mrb[0].mxu0 %v3927
      %v4677 = vpop.f32.mrb[0].mxu0
      %v4678 = vadd.f32 0.0, %v4677
      %v4679 = vpop.f32.mrb[0].mxu0
      %v4680 = vpop.f32.mrb[0].mxu0
      %v4681 = vadd.f32 0.0, %v4680
      %v4682 = vpop.f32.mrb[0].mxu0
      %4683 = vmatprep.mubr.bf16.mxu0 %v3937
      %4684 = vmatmul.mubr.bf16.gmra.mrb[0].mxu0 %v3936
      %v4685 = vpop.f32.mrb[0].mxu0
      %v4686 = vadd.f32 0.0, %v4685
      %v4687 = vpop.f32.mrb[0].mxu0
      %v4688 = vpop.f32.mrb[0].mxu0
      %v4689 = vadd.f32 0.0, %v4688
      %v4690 = vpop.f32.mrb[0].mxu0
      %4691 = vmatprep.mubr.bf16.mxu0 %v3946
      %4692 = vmatmul.mubr.bf16.gmra.mrb[0].mxu0 %v3945
      %v4693 = vpop.f32.mrb[0].mxu0
      %v4694 = vadd.f32 0.0, %v4693
      %v4695 = vpop.f32.mrb[0].mxu0
      %v4696 = vpop.f32.mrb[0].mxu0
      %v4697 = vadd.f32 0.0, %v4696
      %v4698 = vpop.f32.mrb[0].mxu0
      %4699 = vmatprep.mubr.bf16.mxu0 %v3955
      %4700 = vmatmul.mubr.bf16.gmra.mrb[0].mxu0 %v3954
      %v4701 = vpop.f32.mrb[0].mxu0
      %v4702 = vadd.f32 0.0, %v4701
      %v4703 = vpop.f32.mrb[0].mxu0
      %v4704 = vpop.f32.mrb[0].mxu0
      %v4705 = vadd.f32 0.0, %v4704
      %v4706 = vpop.f32.mrb[0].mxu0
      %4707 = vmatprep.mubr.bf16.mxu0 %v3964
      %4708 = vmatmul.mubr.bf16.gmra.mrb[0].mxu0 %v3963
      %v4709 = vpop.f32.mrb[0].mxu0
      %v4710 = vadd.f32 0.0, %v4709
      %v4711 = vpop.f32.mrb[0].mxu0
      %v4712 = vpop.f32.mrb[0].mxu0
      %v4713 = vadd.f32 0.0, %v4712
      %v4714 = vpop.f32.mrb[0].mxu0
      %4715 = vmatprep.mubr.bf16.mxu0 %v3973
      %4716 = vmatmul.mubr.bf16.gmra.mrb[0].mxu0 %v3972
      %v4717 = vpop.f32.mrb[0].mxu0
      %v4718 = vadd.f32 0.0, %v4717
      %v4719 = vpop.f32.mrb[0].mxu0
      %v4720 = vpop.f32.mrb[0].mxu0
      %v4721 = vadd.f32 0.0, %v4720
      %v4722 = vpop.f32.mrb[0].mxu0
      %4723 = vmatprep.mubr.bf16.mxu0 %v3982
      %4724 = vmatmul.mubr.bf16.gmra.mrb[0].mxu0 %v3981
      %v4725 = vpop.f32.mrb[0].mxu0
      %v4726 = vadd.f32 0.0, %v4725
      %v4727 = vpop.f32.mrb[0].mxu0
      %v4728 = vpop.f32.mrb[0].mxu0
      %v4729 = vadd.f32 0.0, %v4728
      %v4730 = vpop.f32.mrb[0].mxu0
      %4731 = vmatprep.mubr.bf16.mxu0 %v3991
      %4732 = vmatmul.mubr.bf16.gmra.mrb[0].mxu0 %v3990
      %v4733 = vpop.f32.mrb[0].mxu0
      %v4734 = vadd.f32 0.0, %v4733
      %v4735 = vpop.f32.mrb[0].mxu0
      %v4736 = vpop.f32.mrb[0].mxu0
      %v4737 = vadd.f32 0.0, %v4736
      %v4738 = vpop.f32.mrb[0].mxu0
      %4739 = vmatprep.mubr.bf16.mxu0 %v4000
      %4740 = vmatmul.mubr.bf16.gmra.mrb[0].mxu0 %v3999
      %v4741 = vpop.f32.mrb[0].mxu0
      %v4742 = vadd.f32 0.0, %v4741
      %v4743 = vpop.f32.mrb[0].mxu0
      %v4744 = vpop.f32.mrb[0].mxu0
      %v4745 = vadd.f32 0.0, %v4744
      %v4746 = vpop.f32.mrb[0].mxu0
      %4747 = vmatprep.mubr.bf16.mxu0 %v4009
      %4748 = vmatmul.mubr.bf16.gmra.mrb[0].mxu0 %v4008
      %v4749 = vpop.f32.mrb[0].mxu0
      %v4750 = vadd.f32 0.0, %v4749
      %v4751 = vpop.f32.mrb[0].mxu0
      %v4752 = vpop.f32.mrb[0].mxu0
      %v4753 = vadd.f32 0.0, %v4752
      %v4754 = vpop.f32.mrb[0].mxu0
      %4755 = vmatprep.mubr.bf16.mxu0 %v4018
      %4756 = vmatmul.mubr.bf16.gmra.mrb[0].mxu0 %v4017
      %v4757 = vpop.f32.mrb[0].mxu0
      %v4758 = vadd.f32 0.0, %v4757
      %v4759 = vpop.f32.mrb[0].mxu0
      %v4760 = vpop.f32.mrb[0].mxu0
      %v4761 = vadd.f32 0.0, %v4760
      %v4762 = vpop.f32.mrb[0].mxu0
      %4763 = vmatprep.mubr.bf16.mxu0 %v4027
      %4764 = vmatmul.mubr.bf16.gmra.mrb[0].mxu0 %v4026
      %v4765 = vpop.f32.mrb[0].mxu0
      %v4766 = vadd.f32 0.0, %v4765
      %v4767 = vpop.f32.mrb[0].mxu0
      %v4768 = vpop.f32.mrb[0].mxu0
      %v4769 = vadd.f32 0.0, %v4768
      %v4770 = vpop.f32.mrb[0].mxu0
      %4771 = vdwg.mxu0
      %4772 = vmatprep.subr.bf16.mxu0 0
      %4773 = vmatpush1.bf16.msra.mxu0 %v4483
      %4774 = vmatprep.subr.bf16.mxu0 0
      %4775 = vmatpush1.bf16.msra.mxu0 %v4484
      %4776 = vmatprep.subr.bf16.mxu0 0
      %4777 = vmatpush1.bf16.msra.mxu0 %v4485
      %4778 = vmatprep.subr.bf16.mxu0 0
      %4779 = vmatpush1.bf16.msra.mxu0 %v4486
      %4780 = vmatprep.subr.bf16.mxu0 0
      %4781 = vmatpush1.bf16.msra.mxu0 %v4487
      %4782 = vmatprep.subr.bf16.mxu0 0
      %4783 = vmatpush1.bf16.msra.mxu0 %v4488
      %4784 = vmatprep.subr.bf16.mxu0 0
      %4785 = vmatpush1.bf16.msra.mxu0 %v4489
      %4786 = vmatprep.subr.bf16.mxu0 0
      %4787 = vmatpush1.bf16.msra.mxu0 %v4490
      %4788 = vmatprep.subr.bf16.mxu0 0
      %4789 = vmatpush1.bf16.msra.mxu0 %v4491
      %4790 = vmatprep.subr.bf16.mxu0 0
      %4791 = vmatpush1.bf16.msra.mxu0 %v4492
      %4792 = vmatprep.subr.bf16.mxu0 0
      %4793 = vmatpush1.bf16.msra.mxu0 %v4493
      %4794 = vmatprep.subr.bf16.mxu0 0
      %4795 = vmatpush1.bf16.msra.mxu0 %v4494
      %4796 = vmatprep.subr.bf16.mxu0 0
      %4797 = vmatpush1.bf16.msra.mxu0 %v4495
      %4798 = vmatprep.subr.bf16.mxu0 0
      %4799 = vmatpush1.bf16.msra.mxu0 %v4496
      %4800 = vmatprep.subr.bf16.mxu0 0
      %4801 = vmatpush1.bf16.msra.mxu0 %v4497
      %4802 = vmatprep.subr.bf16.mxu0 0
      %4803 = vmatpush1.bf16.msra.mxu0 %v4498
      %4804 = vmatprep.mubr.bf16.mxu0 %v3894
      %4805 = vmatmul.mubr.bf16.gmra.mrb[0].mxu0 %v3893
      %v4806 = vpop.f32.mrb[0].mxu0
      %v4807 = vadd.f32 %v4646, %v4806
      %v4808 = vpop.f32.mrb[0].mxu0
      %v4809 = vpop.f32.mrb[0].mxu0
      %v4810 = vadd.f32 %v4649, %v4809
      %v4811 = vpop.f32.mrb[0].mxu0
      %4812 = vmatprep.mubr.bf16.mxu0 %v3903
      %4813 = vmatmul.mubr.bf16.gmra.mrb[0].mxu0 %v3902
      %v4814 = vpop.f32.mrb[0].mxu0
      %v4815 = vadd.f32 %v4654, %v4814
      %v4816 = vpop.f32.mrb[0].mxu0
      %v4817 = vpop.f32.mrb[0].mxu0
      %v4818 = vadd.f32 %v4657, %v4817
      %v4819 = vpop.f32.mrb[0].mxu0
      %4820 = vmatprep.mubr.bf16.mxu0 %v3912
      %4821 = vmatmul.mubr.bf16.gmra.mrb[0].mxu0 %v3911
      %v4822 = vpop.f32.mrb[0].mxu0
      %v4823 = vadd.f32 %v4662, %v4822
      %v4824 = vpop.f32.mrb[0].mxu0
      %v4825 = vpop.f32.mrb[0].mxu0
      %v4826 = vadd.f32 %v4665, %v4825
      %v4827 = vpop.f32.mrb[0].mxu0
      %4828 = vmatprep.mubr.bf16.mxu0 %v3921
      %4829 = vmatmul.mubr.bf16.gmra.mrb[0].mxu0 %v3920
      %v4830 = vpop.f32.mrb[0].mxu0
      %v4831 = vadd.f32 %v4670, %v4830
      %v4832 = vpop.f32.mrb[0].mxu0
      %v4833 = vpop.f32.mrb[0].mxu0
      %v4834 = vadd.f32 %v4673, %v4833
      %v4835 = vpop.f32.mrb[0].mxu0
      %4836 = vmatprep.mubr.bf16.mxu0 %v3930
      %4837 = vmatmul.mubr.bf16.gmra.mrb[0].mxu0 %v3929
      %v4838 = vpop.f32.mrb[0].mxu0
      %v4839 = vadd.f32 %v4678, %v4838
      %v4840 = vpop.f32.mrb[0].mxu0
      %v4841 = vpop.f32.mrb[0].mxu0
      %v4842 = vadd.f32 %v4681, %v4841
      %v4843 = vpop.f32.mrb[0].mxu0
      %4844 = vmatprep.mubr.bf16.mxu0 %v3939
      %4845 = vmatmul.mubr.bf16.gmra.mrb[0].mxu0 %v3938
      %v4846 = vpop.f32.mrb[0].mxu0
      %v4847 = vadd.f32 %v4686, %v4846
      %v4848 = vpop.f32.mrb[0].mxu0
      %v4849 = vpop.f32.mrb[0].mxu0
      %v4850 = vadd.f32 %v4689, %v4849
      %v4851 = vpop.f32.mrb[0].mxu0
      %4852 = vmatprep.mubr.bf16.mxu0 %v3948
      %4853 = vmatmul.mubr.bf16.gmra.mrb[0].mxu0 %v3947
      %v4854 = vpop.f32.mrb[0].mxu0
      %v4855 = vadd.f32 %v4694, %v4854
      %v4856 = vpop.f32.mrb[0].mxu0
      %v4857 = vpop.f32.mrb[0].mxu0
      %v4858 = vadd.f32 %v4697, %v4857
      %v4859 = vpop.f32.mrb[0].mxu0
      %4860 = vmatprep.mubr.bf16.mxu0 %v3957
      %4861 = vmatmul.mubr.bf16.gmra.mrb[0].mxu0 %v3956
      %v4862 = vpop.f32.mrb[0].mxu0
      %v4863 = vadd.f32 %v4702, %v4862
      %v4864 = vpop.f32.mrb[0].mxu0
      %v4865 = vpop.f32.mrb[0].mxu0
      %v4866 = vadd.f32 %v4705, %v4865
      %v4867 = vpop.f32.mrb[0].mxu0
      %4868 = vmatprep.mubr.bf16.mxu0 %v3966
      %4869 = vmatmul.mubr.bf16.gmra.mrb[0].mxu0 %v3965
      %v4870 = vpop.f32.mrb[0].mxu0
      %v4871 = vadd.f32 %v4710, %v4870
      %v4872 = vpop.f32.mrb[0].mxu0
      %v4873 = vpop.f32.mrb[0].mxu0
      %v4874 = vadd.f32 %v4713, %v4873
      %v4875 = vpop.f32.mrb[0].mxu0
      %4876 = vmatprep.mubr.bf16.mxu0 %v3975
      %4877 = vmatmul.mubr.bf16.gmra.mrb[0].mxu0 %v3974
      %v4878 = vpop.f32.mrb[0].mxu0
      %v4879 = vadd.f32 %v4718, %v4878
      %v4880 = vpop.f32.mrb[0].mxu0
      %v4881 = vpop.f32.mrb[0].mxu0
      %v4882 = vadd.f32 %v4721, %v4881
      %v4883 = vpop.f32.mrb[0].mxu0
      %4884 = vmatprep.mubr.bf16.mxu0 %v3984
      %4885 = vmatmul.mubr.bf16.gmra.mrb[0].mxu0 %v3983
      %v4886 = vpop.f32.mrb[0].mxu0
      %v4887 = vadd.f32 %v4726, %v4886
      %v4888 = vpop.f32.mrb[0].mxu0
      %v4889 = vpop.f32.mrb[0].mxu0
      %v4890 = vadd.f32 %v4729, %v4889
      %v4891 = vpop.f32.mrb[0].mxu0
      %4892 = vmatprep.mubr.bf16.mxu0 %v3993
      %4893 = vmatmul.mubr.bf16.gmra.mrb[0].mxu0 %v3992
      %v4894 = vpop.f32.mrb[0].mxu0
      %v4895 = vadd.f32 %v4734, %v4894
      %v4896 = vpop.f32.mrb[0].mxu0
      %v4897 = vpop.f32.mrb[0].mxu0
      %v4898 = vadd.f32 %v4737, %v4897
      %v4899 = vpop.f32.mrb[0].mxu0
      %4900 = vmatprep.mubr.bf16.mxu0 %v4002
      %4901 = vmatmul.mubr.bf16.gmra.mrb[0].mxu0 %v4001
      %v4902 = vpop.f32.mrb[0].mxu0
      %v4903 = vadd.f32 %v4742, %v4902
      %v4904 = vpop.f32.mrb[0].mxu0
      %v4905 = vpop.f32.mrb[0].mxu0
      %v4906 = vadd.f32 %v4745, %v4905
      %v4907 = vpop.f32.mrb[0].mxu0
      %4908 = vmatprep.mubr.bf16.mxu0 %v4011
      %4909 = vmatmul.mubr.bf16.gmra.mrb[0].mxu0 %v4010
      %v4910 = vpop.f32.mrb[0].mxu0
      %v4911 = vadd.f32 %v4750, %v4910
      %v4912 = vpop.f32.mrb[0].mxu0
      %v4913 = vpop.f32.mrb[0].mxu0
      %v4914 = vadd.f32 %v4753, %v4913
      %v4915 = vpop.f32.mrb[0].mxu0
      %4916 = vmatprep.mubr.bf16.mxu0 %v4020
      %4917 = vmatmul.mubr.bf16.gmra.mrb[0].mxu0 %v4019
      %v4918 = vpop.f32.mrb[0].mxu0
      %v4919 = vadd.f32 %v4758, %v4918
      %v4920 = vpop.f32.mrb[0].mxu0
      %v4921 = vpop.f32.mrb[0].mxu0
      %v4922 = vadd.f32 %v4761, %v4921
      %v4923 = vpop.f32.mrb[0].mxu0
      %4924 = vmatprep.mubr.bf16.mxu0 %v4029
      %4925 = vmatmul.mubr.bf16.gmra.mrb[0].mxu0 %v4028
      %v4926 = vpop.f32.mrb[0].mxu0
      %v4927 = vadd.f32 %v4766, %v4926
      %v4928 = vpop.f32.mrb[0].mxu0
      %v4929 = vpop.f32.mrb[0].mxu0
      %v4930 = vadd.f32 %v4769, %v4929
      %v4931 = vpop.f32.mrb[0].mxu0
      %4932 = vdwg.mxu0
      %4933 = vmatprep.subr.bf16.mxu0 0
      %4934 = vmatpush1.bf16.msra.mxu0 %v4499
      %4935 = vmatprep.subr.bf16.mxu0 0
      %4936 = vmatpush1.bf16.msra.mxu0 %v4500
      %4937 = vmatprep.subr.bf16.mxu0 0
      %4938 = vmatpush1.bf16.msra.mxu0 %v4501
      %4939 = vmatprep.subr.bf16.mxu0 0
      %4940 = vmatpush1.bf16.msra.mxu0 %v4502
      %4941 = vmatprep.subr.bf16.mxu0 0
      %4942 = vmatpush1.bf16.msra.mxu0 %v4503
      %4943 = vmatprep.subr.bf16.mxu0 0
      %4944 = vmatpush1.bf16.msra.mxu0 %v4504
      %4945 = vmatprep.subr.bf16.mxu0 0
      %4946 = vmatpush1.bf16.msra.mxu0 %v4505
      %4947 = vmatprep.subr.bf16.mxu0 0
      %4948 = vmatpush1.bf16.msra.mxu0 %v4506
      %4949 = vmatprep.subr.bf16.mxu0 0
      %4950 = vmatpush1.bf16.msra.mxu0 %v4507
      %4951 = vmatprep.subr.bf16.mxu0 0
      %4952 = vmatpush1.bf16.msra.mxu0 %v4508
      %4953 = vmatprep.subr.bf16.mxu0 0
      %4954 = vmatpush1.bf16.msra.mxu0 %v4509
      %4955 = vmatprep.subr.bf16.mxu0 0
      %4956 = vmatpush1.bf16.msra.mxu0 %v4510
      %4957 = vmatprep.subr.bf16.mxu0 0
      %4958 = vmatpush1.bf16.msra.mxu0 %v4511
      %4959 = vmatprep.subr.bf16.mxu0 0
      %4960 = vmatpush1.bf16.msra.mxu0 %v4512
      %4961 = vmatprep.subr.bf16.mxu0 0
      %4962 = vmatpush1.bf16.msra.mxu0 %v4513
      %4963 = vmatprep.subr.bf16.mxu0 0
      %4964 = vmatpush1.bf16.msra.mxu0 %v4514
      %4965 = vmatprep.mubr.bf16.mxu0 %v3896
      %4966 = vmatmul.mubr.bf16.gmra.mrb[0].mxu0 %v3895
      %v4967 = vpop.f32.mrb[0].mxu0
      %v4968 = vadd.f32 %v4807, %v4967
      %v4969 = vpop.f32.mrb[0].mxu0
      %v4970 = vpop.f32.mrb[0].mxu0
      %v4971 = vadd.f32 %v4810, %v4970
      %v4972 = vpop.f32.mrb[0].mxu0
      %4973 = vmatprep.mubr.bf16.mxu0 %v3905
      %4974 = vmatmul.mubr.bf16.gmra.mrb[0].mxu0 %v3904
      %v4975 = vpop.f32.mrb[0].mxu0
      %v4976 = vadd.f32 %v4815, %v4975
      %v4977 = vpop.f32.mrb[0].mxu0
      %v4978 = vpop.f32.mrb[0].mxu0
      %v4979 = vadd.f32 %v4818, %v4978
      %v4980 = vpop.f32.mrb[0].mxu0
      %4981 = vmatprep.mubr.bf16.mxu0 %v3914
      %4982 = vmatmul.mubr.bf16.gmra.mrb[0].mxu0 %v3913
      %v4983 = vpop.f32.mrb[0].mxu0
      %v4984 = vadd.f32 %v4823, %v4983
      %v4985 = vpop.f32.mrb[0].mxu0
      %v4986 = vpop.f32.mrb[0].mxu0
      %v4987 = vadd.f32 %v4826, %v4986
      %v4988 = vpop.f32.mrb[0].mxu0
      %4989 = vmatprep.mubr.bf16.mxu0 %v3923
      %4990 = vmatmul.mubr.bf16.gmra.mrb[0].mxu0 %v3922
      %v4991 = vpop.f32.mrb[0].mxu0
      %v4992 = vadd.f32 %v4831, %v4991
      %v4993 = vpop.f32.mrb[0].mxu0
      %v4994 = vpop.f32.mrb[0].mxu0
      %v4995 = vadd.f32 %v4834, %v4994
      %v4996 = vpop.f32.mrb[0].mxu0
      %4997 = vmatprep.mubr.bf16.mxu0 %v3932
      %4998 = vmatmul.mubr.bf16.gmra.mrb[0].mxu0 %v3931
      %v4999 = vpop.f32.mrb[0].mxu0
      %v5000 = vadd.f32 %v4839, %v4999
      %v5001 = vpop.f32.mrb[0].mxu0
      %v5002 = vpop.f32.mrb[0].mxu0
      %v5003 = vadd.f32 %v4842, %v5002
      %v5004 = vpop.f32.mrb[0].mxu0
      %5005 = vmatprep.mubr.bf16.mxu0 %v3941
      %5006 = vmatmul.mubr.bf16.gmra.mrb[0].mxu0 %v3940
      %v5007 = vpop.f32.mrb[0].mxu0
      %v5008 = vadd.f32 %v4847, %v5007
      %v5009 = vpop.f32.mrb[0].mxu0
      %v5010 = vpop.f32.mrb[0].mxu0
      %v5011 = vadd.f32 %v4850, %v5010
      %v5012 = vpop.f32.mrb[0].mxu0
      %5013 = vmatprep.mubr.bf16.mxu0 %v3950
      %5014 = vmatmul.mubr.bf16.gmra.mrb[0].mxu0 %v3949
      %v5015 = vpop.f32.mrb[0].mxu0
      %v5016 = vadd.f32 %v4855, %v5015
      %v5017 = vpop.f32.mrb[0].mxu0
      %v5018 = vpop.f32.mrb[0].mxu0
      %v5019 = vadd.f32 %v4858, %v5018
      %v5020 = vpop.f32.mrb[0].mxu0
      %5021 = vmatprep.mubr.bf16.mxu0 %v3959
      %5022 = vmatmul.mubr.bf16.gmra.mrb[0].mxu0 %v3958
      %v5023 = vpop.f32.mrb[0].mxu0
      %v5024 = vadd.f32 %v4863, %v5023
      %v5025 = vpop.f32.mrb[0].mxu0
      %v5026 = vpop.f32.mrb[0].mxu0
      %v5027 = vadd.f32 %v4866, %v5026
      %v5028 = vpop.f32.mrb[0].mxu0
      %5029 = vmatprep.mubr.bf16.mxu0 %v3968
      %5030 = vmatmul.mubr.bf16.gmra.mrb[0].mxu0 %v3967
      %v5031 = vpop.f32.mrb[0].mxu0
      %v5032 = vadd.f32 %v4871, %v5031
      %v5033 = vpop.f32.mrb[0].mxu0
      %v5034 = vpop.f32.mrb[0].mxu0
      %v5035 = vadd.f32 %v4874, %v5034
      %v5036 = vpop.f32.mrb[0].mxu0
      %5037 = vmatprep.mubr.bf16.mxu0 %v3977
      %5038 = vmatmul.mubr.bf16.gmra.mrb[0].mxu0 %v3976
      %v5039 = vpop.f32.mrb[0].mxu0
      %v5040 = vadd.f32 %v4879, %v5039
      %v5041 = vpop.f32.mrb[0].mxu0
      %v5042 = vpop.f32.mrb[0].mxu0
      %v5043 = vadd.f32 %v4882, %v5042
      %v5044 = vpop.f32.mrb[0].mxu0
      %5045 = vmatprep.mubr.bf16.mxu0 %v3986
      %5046 = vmatmul.mubr.bf16.gmra.mrb[0].mxu0 %v3985
      %v5047 = vpop.f32.mrb[0].mxu0
      %v5048 = vadd.f32 %v4887, %v5047
      %v5049 = vpop.f32.mrb[0].mxu0
      %v5050 = vpop.f32.mrb[0].mxu0
      %v5051 = vadd.f32 %v4890, %v5050
      %v5052 = vpop.f32.mrb[0].mxu0
      %5053 = vmatprep.mubr.bf16.mxu0 %v3995
      %5054 = vmatmul.mubr.bf16.gmra.mrb[0].mxu0 %v3994
      %v5055 = vpop.f32.mrb[0].mxu0
      %v5056 = vadd.f32 %v4895, %v5055
      %v5057 = vpop.f32.mrb[0].mxu0
      %v5058 = vpop.f32.mrb[0].mxu0
      %v5059 = vadd.f32 %v4898, %v5058
      %v5060 = vpop.f32.mrb[0].mxu0
      %5061 = vmatprep.mubr.bf16.mxu0 %v4004
      %5062 = vmatmul.mubr.bf16.gmra.mrb[0].mxu0 %v4003
      %v5063 = vpop.f32.mrb[0].mxu0
      %v5064 = vadd.f32 %v4903, %v5063
      %v5065 = vpop.f32.mrb[0].mxu0
      %v5066 = vpop.f32.mrb[0].mxu0
      %v5067 = vadd.f32 %v4906, %v5066
      %v5068 = vpop.f32.mrb[0].mxu0
      %5069 = vmatprep.mubr.bf16.mxu0 %v4013
      %5070 = vmatmul.mubr.bf16.gmra.mrb[0].mxu0 %v4012
      %v5071 = vpop.f32.mrb[0].mxu0
      %v5072 = vadd.f32 %v4911, %v5071
      %v5073 = vpop.f32.mrb[0].mxu0
      %v5074 = vpop.f32.mrb[0].mxu0
      %v5075 = vadd.f32 %v4914, %v5074
      %v5076 = vpop.f32.mrb[0].mxu0
      %5077 = vmatprep.mubr.bf16.mxu0 %v4022
      %5078 = vmatmul.mubr.bf16.gmra.mrb[0].mxu0 %v4021
      %v5079 = vpop.f32.mrb[0].mxu0
      %v5080 = vadd.f32 %v4919, %v5079
      %v5081 = vpop.f32.mrb[0].mxu0
      %v5082 = vpop.f32.mrb[0].mxu0
      %v5083 = vadd.f32 %v4922, %v5082
      %v5084 = vpop.f32.mrb[0].mxu0
      %5085 = vmatprep.mubr.bf16.mxu0 %v4031
      %5086 = vmatmul.mubr.bf16.gmra.mrb[0].mxu0 %v4030
      %v5087 = vpop.f32.mrb[0].mxu0
      %v5088 = vadd.f32 %v4927, %v5087
      %v5089 = vpop.f32.mrb[0].mxu0
      %v5090 = vpop.f32.mrb[0].mxu0
      %v5091 = vadd.f32 %v4930, %v5090
      %v5092 = vpop.f32.mrb[0].mxu0
      %5093 = vdwg.mxu0
      %5094 = vmatprep.subr.bf16.mxu0 0
      %5095 = vmatpush1.bf16.msra.mxu0 %v4515
      %5096 = vmatprep.subr.bf16.mxu0 0
      %5097 = vmatpush1.bf16.msra.mxu0 %v4516
      %5098 = vmatprep.subr.bf16.mxu0 0
      %5099 = vmatpush1.bf16.msra.mxu0 %v4517
      %5100 = vmatprep.subr.bf16.mxu0 0
      %5101 = vmatpush1.bf16.msra.mxu0 %v4518
      %5102 = vmatprep.subr.bf16.mxu0 0
      %5103 = vmatpush1.bf16.msra.mxu0 %v4519
      %5104 = vmatprep.subr.bf16.mxu0 0
      %5105 = vmatpush1.bf16.msra.mxu0 %v4520
      %5106 = vmatprep.subr.bf16.mxu0 0
      %5107 = vmatpush1.bf16.msra.mxu0 %v4521
      %5108 = vmatprep.subr.bf16.mxu0 0
      %5109 = vmatpush1.bf16.msra.mxu0 %v4522
      %5110 = vmatprep.subr.bf16.mxu0 0
      %5111 = vmatpush1.bf16.msra.mxu0 %v4523
      %5112 = vmatprep.subr.bf16.mxu0 0
      %5113 = vmatpush1.bf16.msra.mxu0 %v4524
      %5114 = vmatprep.subr.bf16.mxu0 0
      %5115 = vmatpush1.bf16.msra.mxu0 %v4525
      %5116 = vmatprep.subr.bf16.mxu0 0
      %5117 = vmatpush1.bf16.msra.mxu0 %v4526
      %5118 = vmatprep.subr.bf16.mxu0 0
      %5119 = vmatpush1.bf16.msra.mxu0 %v4527
      %5120 = vmatprep.subr.bf16.mxu0 0
      %5121 = vmatpush1.bf16.msra.mxu0 %v4528
      %5122 = vmatprep.subr.bf16.mxu0 0
      %5123 = vmatpush1.bf16.msra.mxu0 %v4529
      %5124 = vmatprep.subr.bf16.mxu0 0
      %5125 = vmatpush1.bf16.msra.mxu0 %v4530
      %5126 = vmatprep.mubr.bf16.mxu0 %v3898
      %5127 = vmatmul.mubr.bf16.gmra.mrb[0].mxu0 %v3897
      %v5128 = vpop.f32.mrb[0].mxu0
      %v5129 = vadd.f32 %v4968, %v5128
      %v5130 = vpop.f32.mrb[0].mxu0
      %v5131 = vpop.f32.mrb[0].mxu0
      %v5132 = vadd.f32 %v4971, %v5131
      %v5133 = vpop.f32.mrb[0].mxu0
      %5134 = vmatprep.mubr.bf16.mxu0 %v3907
      %5135 = vmatmul.mubr.bf16.gmra.mrb[0].mxu0 %v3906
      %v5136 = vpop.f32.mrb[0].mxu0
      %v5137 = vadd.f32 %v4976, %v5136
      %v5138 = vpop.f32.mrb[0].mxu0
      %v5139 = vpop.f32.mrb[0].mxu0
      %v5140 = vadd.f32 %v4979, %v5139
      %v5141 = vpop.f32.mrb[0].mxu0
      %5142 = vmatprep.mubr.bf16.mxu0 %v3916
      %5143 = vmatmul.mubr.bf16.gmra.mrb[0].mxu0 %v3915
      %v5144 = vpop.f32.mrb[0].mxu0
      %v5145 = vadd.f32 %v4984, %v5144
      %v5146 = vpop.f32.mrb[0].mxu0
      %v5147 = vpop.f32.mrb[0].mxu0
      %v5148 = vadd.f32 %v4987, %v5147
      %v5149 = vpop.f32.mrb[0].mxu0
      %5150 = vmatprep.mubr.bf16.mxu0 %v3925
      %5151 = vmatmul.mubr.bf16.gmra.mrb[0].mxu0 %v3924
      %v5152 = vpop.f32.mrb[0].mxu0
      %v5153 = vadd.f32 %v4992, %v5152
      %v5154 = vpop.f32.mrb[0].mxu0
      %v5155 = vpop.f32.mrb[0].mxu0
      %v5156 = vadd.f32 %v4995, %v5155
      %v5157 = vpop.f32.mrb[0].mxu0
      %5158 = vmatprep.mubr.bf16.mxu0 %v3934
      %5159 = vmatmul.mubr.bf16.gmra.mrb[0].mxu0 %v3933
      %v5160 = vpop.f32.mrb[0].mxu0
      %v5161 = vadd.f32 %v5000, %v5160
      %v5162 = vpop.f32.mrb[0].mxu0
      %v5163 = vpop.f32.mrb[0].mxu0
      %v5164 = vadd.f32 %v5003, %v5163
      %v5165 = vpop.f32.mrb[0].mxu0
      %5166 = vmatprep.mubr.bf16.mxu0 %v3943
      %5167 = vmatmul.mubr.bf16.gmra.mrb[0].mxu0 %v3942
      %v5168 = vpop.f32.mrb[0].mxu0
      %v5169 = vadd.f32 %v5008, %v5168
      %v5170 = vpop.f32.mrb[0].mxu0
      %v5171 = vpop.f32.mrb[0].mxu0
      %v5172 = vadd.f32 %v5011, %v5171
      %v5173 = vpop.f32.mrb[0].mxu0
      %5174 = vmatprep.mubr.bf16.mxu0 %v3952
      %5175 = vmatmul.mubr.bf16.gmra.mrb[0].mxu0 %v3951
      %v5176 = vpop.f32.mrb[0].mxu0
      %v5177 = vadd.f32 %v5016, %v5176
      %v5178 = vpop.f32.mrb[0].mxu0
      %v5179 = vpop.f32.mrb[0].mxu0
      %v5180 = vadd.f32 %v5019, %v5179
      %v5181 = vpop.f32.mrb[0].mxu0
      %5182 = vmatprep.mubr.bf16.mxu0 %v3961
      %5183 = vmatmul.mubr.bf16.gmra.mrb[0].mxu0 %v3960
      %v5184 = vpop.f32.mrb[0].mxu0
      %v5185 = vadd.f32 %v5024, %v5184
      %v5186 = vpop.f32.mrb[0].mxu0
      %v5187 = vpop.f32.mrb[0].mxu0
      %v5188 = vadd.f32 %v5027, %v5187
      %v5189 = vpop.f32.mrb[0].mxu0
      %5190 = vmatprep.mubr.bf16.mxu0 %v3970
      %5191 = vmatmul.mubr.bf16.gmra.mrb[0].mxu0 %v3969
      %v5192 = vpop.f32.mrb[0].mxu0
      %v5193 = vadd.f32 %v5032, %v5192
      %v5194 = vpop.f32.mrb[0].mxu0
      %v5195 = vpop.f32.mrb[0].mxu0
      %v5196 = vadd.f32 %v5035, %v5195
      %v5197 = vpop.f32.mrb[0].mxu0
      %5198 = vmatprep.mubr.bf16.mxu0 %v3979
      %5199 = vmatmul.mubr.bf16.gmra.mrb[0].mxu0 %v3978
      %v5200 = vpop.f32.mrb[0].mxu0
      %v5201 = vadd.f32 %v5040, %v5200
      %v5202 = vpop.f32.mrb[0].mxu0
      %v5203 = vpop.f32.mrb[0].mxu0
      %v5204 = vadd.f32 %v5043, %v5203
      %v5205 = vpop.f32.mrb[0].mxu0
      %5206 = vmatprep.mubr.bf16.mxu0 %v3988
      %5207 = vmatmul.mubr.bf16.gmra.mrb[0].mxu0 %v3987
      %v5208 = vpop.f32.mrb[0].mxu0
      %v5209 = vadd.f32 %v5048, %v5208
      %v5210 = vpop.f32.mrb[0].mxu0
      %v5211 = vpop.f32.mrb[0].mxu0
      %v5212 = vadd.f32 %v5051, %v5211
      %v5213 = vpop.f32.mrb[0].mxu0
      %5214 = vmatprep.mubr.bf16.mxu0 %v3997
      %5215 = vmatmul.mubr.bf16.gmra.mrb[0].mxu0 %v3996
      %v5216 = vpop.f32.mrb[0].mxu0
      %v5217 = vadd.f32 %v5056, %v5216
      %v5218 = vpop.f32.mrb[0].mxu0
      %v5219 = vpop.f32.mrb[0].mxu0
      %v5220 = vadd.f32 %v5059, %v5219
      %v5221 = vpop.f32.mrb[0].mxu0
      %5222 = vmatprep.mubr.bf16.mxu0 %v4006
      %5223 = vmatmul.mubr.bf16.gmra.mrb[0].mxu0 %v4005
      %v5224 = vpop.f32.mrb[0].mxu0
      %v5225 = vadd.f32 %v5064, %v5224
      %v5226 = vpop.f32.mrb[0].mxu0
      %v5227 = vpop.f32.mrb[0].mxu0
      %v5228 = vadd.f32 %v5067, %v5227
      %v5229 = vpop.f32.mrb[0].mxu0
      %5230 = vmatprep.mubr.bf16.mxu0 %v4015
      %5231 = vmatmul.mubr.bf16.gmra.mrb[0].mxu0 %v4014
      %v5232 = vpop.f32.mrb[0].mxu0
      %v5233 = vadd.f32 %v5072, %v5232
      %v5234 = vpop.f32.mrb[0].mxu0
      %v5235 = vpop.f32.mrb[0].mxu0
      %v5236 = vadd.f32 %v5075, %v5235
      %v5237 = vpop.f32.mrb[0].mxu0
      %5238 = vmatprep.mubr.bf16.mxu0 %v4024
      %5239 = vmatmul.mubr.bf16.gmra.mrb[0].mxu0 %v4023
      %v5240 = vpop.f32.mrb[0].mxu0
      %v5241 = vadd.f32 %v5080, %v5240
      %v5242 = vpop.f32.mrb[0].mxu0
      %v5243 = vpop.f32.mrb[0].mxu0
      %v5244 = vadd.f32 %v5083, %v5243
      %v5245 = vpop.f32.mrb[0].mxu0
      %5246 = vmatprep.mubr.bf16.mxu0 %v4033
      %5247 = vmatmul.mubr.bf16.gmra.mrb[0].mxu0 %v4032
      %v5248 = vpop.f32.mrb[0].mxu0
      %v5249 = vadd.f32 %v5088, %v5248
      %v5250 = vpop.f32.mrb[0].mxu0
      %v5251 = vpop.f32.mrb[0].mxu0
      %v5252 = vadd.f32 %v5091, %v5251
      %v5253 = vpop.f32.mrb[0].mxu0
      %5254 = vdwg.mxu0
      %5255 = vmatprep.subr.bf16.mxu0 0
      %5256 = vmatpush1.bf16.msra.mxu0 %v4531
      %5257 = vmatprep.subr.bf16.mxu0 0
      %5258 = vmatpush1.bf16.msra.mxu0 %v4532
      %5259 = vmatprep.subr.bf16.mxu0 0
      %5260 = vmatpush1.bf16.msra.mxu0 %v4533
      %5261 = vmatprep.subr.bf16.mxu0 0
      %5262 = vmatpush1.bf16.msra.mxu0 %v4534
      %5263 = vmatprep.subr.bf16.mxu0 0
      %5264 = vmatpush1.bf16.msra.mxu0 %v4535
      %5265 = vmatprep.subr.bf16.mxu0 0
      %5266 = vmatpush1.bf16.msra.mxu0 %v4536
      %5267 = vmatprep.subr.bf16.mxu0 0
      %5268 = vmatpush1.bf16.msra.mxu0 %v4537
      %5269 = vmatprep.subr.bf16.mxu0 0
      %5270 = vmatpush1.bf16.msra.mxu0 %v4538
      %5271 = vmatprep.subr.bf16.mxu0 0
      %5272 = vmatpush1.bf16.msra.mxu0 0
      %5273 = vmatprep.subr.bf16.mxu0 0
      %5274 = vmatpush1.bf16.msra.mxu0 0
      %5275 = vmatprep.subr.bf16.mxu0 0
      %5276 = vmatpush1.bf16.msra.mxu0 0
      %5277 = vmatprep.subr.bf16.mxu0 0
      %5278 = vmatpush1.bf16.msra.mxu0 0
      %5279 = vmatprep.subr.bf16.mxu0 0
      %5280 = vmatpush1.bf16.msra.mxu0 0
      %5281 = vmatprep.subr.bf16.mxu0 0
      %5282 = vmatpush1.bf16.msra.mxu0 0
      %5283 = vmatprep.subr.bf16.mxu0 0
      %5284 = vmatpush1.bf16.msra.mxu0 0
      %5285 = vmatprep.subr.bf16.mxu0 0
      %5286 = vmatpush1.bf16.msra.mxu0 0
      %5287 = vmatprep.mubr.bf16.mxu0 0
      %5288 = vmatmul.mubr.bf16.gmra.mrb[0].mxu0 %v3899
      %v5289 = vpop.f32.mrb[0].mxu0
      %v5290 = vadd.f32 %v5129, %v5289
      %v5291 = vpop.f32.mrb[0].mxu0
      %v5292 = vpop.f32.mrb[0].mxu0
      %v5293 = vadd.f32 %v5132, %v5292
      %v5294 = vpop.f32.mrb[0].mxu0
      %5295 = vmatprep.mubr.bf16.mxu0 0
      %5296 = vmatmul.mubr.bf16.gmra.mrb[0].mxu0 %v3908
      %v5297 = vpop.f32.mrb[0].mxu0
      %v5298 = vadd.f32 %v5137, %v5297
      %v5299 = vpop.f32.mrb[0].mxu0
      %v5300 = vpop.f32.mrb[0].mxu0
      %v5301 = vadd.f32 %v5140, %v5300
      %v5302 = vpop.f32.mrb[0].mxu0
      %5303 = vmatprep.mubr.bf16.mxu0 0
      %5304 = vmatmul.mubr.bf16.gmra.mrb[0].mxu0 %v3917
      %v5305 = vpop.f32.mrb[0].mxu0
      %v5306 = vadd.f32 %v5145, %v5305
      %v5307 = vpop.f32.mrb[0].mxu0
      %v5308 = vpop.f32.mrb[0].mxu0
      %v5309 = vadd.f32 %v5148, %v5308
      %v5310 = vpop.f32.mrb[0].mxu0
      %5311 = vmatprep.mubr.bf16.mxu0 0
      %5312 = vmatmul.mubr.bf16.gmra.mrb[0].mxu0 %v3926
      %v5313 = vpop.f32.mrb[0].mxu0
      %v5314 = vadd.f32 %v5153, %v5313
      %v5315 = vpop.f32.mrb[0].mxu0
      %v5316 = vpop.f32.mrb[0].mxu0
      %v5317 = vadd.f32 %v5156, %v5316
      %v5318 = vpop.f32.mrb[0].mxu0
      %5319 = vmatprep.mubr.bf16.mxu0 0
      %5320 = vmatmul.mubr.bf16.gmra.mrb[0].mxu0 %v3935
      %v5321 = vpop.f32.mrb[0].mxu0
      %v5322 = vadd.f32 %v5161, %v5321
      %v5323 = vpop.f32.mrb[0].mxu0
      %v5324 = vpop.f32.mrb[0].mxu0
      %v5325 = vadd.f32 %v5164, %v5324
      %v5326 = vpop.f32.mrb[0].mxu0
      %5327 = vmatprep.mubr.bf16.mxu0 0
      %5328 = vmatmul.mubr.bf16.gmra.mrb[0].mxu0 %v3944
      %v5329 = vpop.f32.mrb[0].mxu0
      %v5330 = vadd.f32 %v5169, %v5329
      %v5331 = vpop.f32.mrb[0].mxu0
      %v5332 = vpop.f32.mrb[0].mxu0
      %v5333 = vadd.f32 %v5172, %v5332
      %v5334 = vpop.f32.mrb[0].mxu0
      %5335 = vmatprep.mubr.bf16.mxu0 0
      %5336 = vmatmul.mubr.bf16.gmra.mrb[0].mxu0 %v3953
      %v5337 = vpop.f32.mrb[0].mxu0
      %v5338 = vadd.f32 %v5177, %v5337
      %v5339 = vpop.f32.mrb[0].mxu0
      %v5340 = vpop.f32.mrb[0].mxu0
      %v5341 = vadd.f32 %v5180, %v5340
      %v5342 = vpop.f32.mrb[0].mxu0
      %5343 = vmatprep.mubr.bf16.mxu0 0
      %5344 = vmatmul.mubr.bf16.gmra.mrb[0].mxu0 %v3962
      %v5345 = vpop.f32.mrb[0].mxu0
      %v5346 = vadd.f32 %v5185, %v5345
      %v5347 = vpop.f32.mrb[0].mxu0
      %v5348 = vpop.f32.mrb[0].mxu0
      %v5349 = vadd.f32 %v5188, %v5348
      %v5350 = vpop.f32.mrb[0].mxu0
      %5351 = vmatprep.mubr.bf16.mxu0 0
      %5352 = vmatmul.mubr.bf16.gmra.mrb[0].mxu0 %v3971
      %v5353 = vpop.f32.mrb[0].mxu0
      %v5354 = vadd.f32 %v5193, %v5353
      %v5355 = vpop.f32.mrb[0].mxu0
      %v5356 = vpop.f32.mrb[0].mxu0
      %v5357 = vadd.f32 %v5196, %v5356
      %v5358 = vpop.f32.mrb[0].mxu0
      %5359 = vmatprep.mubr.bf16.mxu0 0
      %5360 = vmatmul.mubr.bf16.gmra.mrb[0].mxu0 %v3980
      %v5361 = vpop.f32.mrb[0].mxu0
      %v5362 = vadd.f32 %v5201, %v5361
      %v5363 = vpop.f32.mrb[0].mxu0
      %v5364 = vpop.f32.mrb[0].mxu0
      %v5365 = vadd.f32 %v5204, %v5364
      %v5366 = vpop.f32.mrb[0].mxu0
      %5367 = vmatprep.mubr.bf16.mxu0 0
      %5368 = vmatmul.mubr.bf16.gmra.mrb[0].mxu0 %v3989
      %v5369 = vpop.f32.mrb[0].mxu0
      %v5370 = vadd.f32 %v5209, %v5369
      %v5371 = vpop.f32.mrb[0].mxu0
      %v5372 = vpop.f32.mrb[0].mxu0
      %v5373 = vadd.f32 %v5212, %v5372
      %v5374 = vpop.f32.mrb[0].mxu0
      %5375 = vmatprep.mubr.bf16.mxu0 0
      %5376 = vmatmul.mubr.bf16.gmra.mrb[0].mxu0 %v3998
      %v5377 = vpop.f32.mrb[0].mxu0
      %v5378 = vadd.f32 %v5217, %v5377
      %v5379 = vpop.f32.mrb[0].mxu0
      %v5380 = vpop.f32.mrb[0].mxu0
      %v5381 = vadd.f32 %v5220, %v5380
      %v5382 = vpop.f32.mrb[0].mxu0
      %5383 = vmatprep.mubr.bf16.mxu0 0
      %5384 = vmatmul.mubr.bf16.gmra.mrb[0].mxu0 %v4007
      %v5385 = vpop.f32.mrb[0].mxu0
      %v5386 = vadd.f32 %v5225, %v5385
      %v5387 = vpop.f32.mrb[0].mxu0
      %v5388 = vpop.f32.mrb[0].mxu0
      %v5389 = vadd.f32 %v5228, %v5388
      %v5390 = vpop.f32.mrb[0].mxu0
      %5391 = vmatprep.mubr.bf16.mxu0 0
      %5392 = vmatmul.mubr.bf16.gmra.mrb[0].mxu0 %v4016
      %v5393 = vpop.f32.mrb[0].mxu0
      %v5394 = vadd.f32 %v5233, %v5393
      %v5395 = vpop.f32.mrb[0].mxu0
      %v5396 = vpop.f32.mrb[0].mxu0
      %v5397 = vadd.f32 %v5236, %v5396
      %v5398 = vpop.f32.mrb[0].mxu0
      %5399 = vmatprep.mubr.bf16.mxu0 0
      %5400 = vmatmul.mubr.bf16.gmra.mrb[0].mxu0 %v4025
      %v5401 = vpop.f32.mrb[0].mxu0
      %v5402 = vadd.f32 %v5241, %v5401
      %v5403 = vpop.f32.mrb[0].mxu0
      %v5404 = vpop.f32.mrb[0].mxu0
      %v5405 = vadd.f32 %v5244, %v5404
      %v5406 = vpop.f32.mrb[0].mxu0
      %5407 = vmatprep.mubr.bf16.mxu0 0
      %5408 = vmatmul.mubr.bf16.gmra.mrb[0].mxu0 %v4034
      %v5409 = vpop.f32.mrb[0].mxu0
      %v5410 = vadd.f32 %v5249, %v5409
      %v5411 = vpop.f32.mrb[0].mxu0
      %v5412 = vpop.f32.mrb[0].mxu0
      %v5413 = vadd.f32 %v5252, %v5412
      %v5414 = vpop.f32.mrb[0].mxu0
      %5415 = vdwg.mxu0
      %v5416 = vpack.c.bf16 %v5293, %v5290
      %v5417 = vpack.c.bf16 %v5301, %v5298
      %v5418 = vpack.c.bf16 %v5309, %v5306
      %v5419 = vpack.c.bf16 %v5317, %v5314
      %v5420 = vpack.c.bf16 %v5325, %v5322
      %v5421 = vpack.c.bf16 %v5333, %v5330
      %v5422 = vpack.c.bf16 %v5341, %v5338
      %v5423 = vpack.c.bf16 %v5349, %v5346
      %v5424 = vpack.c.bf16 %v5357, %v5354
      %v5425 = vpack.c.bf16 %v5365, %v5362
      %v5426 = vpack.c.bf16 %v5373, %v5370
      %v5427 = vpack.c.bf16 %v5381, %v5378
      %v5428 = vpack.c.bf16 %v5389, %v5386
      %v5429 = vpack.c.bf16 %v5397, %v5394
      %v5430 = vpack.c.bf16 %v5405, %v5402
      %v5431 = vpack.c.bf16 %v5413, %v5410
      %v5448 = vunpack.c.l.b16 %v5416
      %v5449 = vunpack.c.h.b16 %v5416
      %v5450 = vunpack.c.l.b16 %v5417
      %v5451 = vunpack.c.h.b16 %v5417
      %v5452 = vunpack.c.l.b16 %v5418
      %v5453 = vunpack.c.h.b16 %v5418
      %v5454 = vunpack.c.l.b16 %v5419
      %v5455 = vunpack.c.h.b16 %v5419
      %v5456 = vunpack.c.l.b16 %v5420
      %v5457 = vunpack.c.h.b16 %v5420
      %v5458 = vunpack.c.l.b16 %v5421
      %v5459 = vunpack.c.h.b16 %v5421
      %v5460 = vunpack.c.l.b16 %v5422
      %v5461 = vunpack.c.h.b16 %v5422
      %v5462 = vunpack.c.l.b16 %v5423
      %v5463 = vunpack.c.h.b16 %v5423
      %v5464 = vunpack.c.l.b16 %v5424
      %v5465 = vunpack.c.h.b16 %v5424
      %v5466 = vunpack.c.l.b16 %v5425
      %v5467 = vunpack.c.h.b16 %v5425
      %v5468 = vunpack.c.l.b16 %v5426
      %v5469 = vunpack.c.h.b16 %v5426
      %v5470 = vunpack.c.l.b16 %v5427
      %v5471 = vunpack.c.h.b16 %v5427
      %v5472 = vunpack.c.l.b16 %v5428
      %v5473 = vunpack.c.h.b16 %v5428
      %v5474 = vunpack.c.l.b16 %v5429
      %v5475 = vunpack.c.h.b16 %v5429
      %v5476 = vunpack.c.l.b16 %v5430
      %v5477 = vunpack.c.h.b16 %v5430
      %v5478 = vunpack.c.l.b16 %v5431
      %v5479 = vunpack.c.h.b16 %v5431
      %v5480 = vpack.c.b16 %v5448, %v5448
      %v5481 = vpack.c.b16 %v5449, %v5449
      %v5482 = vpack.c.b16 %v5450, %v5450
      %v5483 = vpack.c.b16 %v5451, %v5451
      %v5484 = vpack.c.b16 %v5452, %v5452
      %v5485 = vpack.c.b16 %v5453, %v5453
      %v5486 = vpack.c.b16 %v5454, %v5454
      %v5487 = vpack.c.b16 %v5455, %v5455
      %v5488 = vpack.c.b16 %v5456, %v5456
      %v5489 = vpack.c.b16 %v5457, %v5457
      %v5490 = vpack.c.b16 %v5458, %v5458
      %v5491 = vpack.c.b16 %v5459, %v5459
      %v5492 = vpack.c.b16 %v5460, %v5460
      %v5493 = vpack.c.b16 %v5461, %v5461
      %v5494 = vpack.c.b16 %v5462, %v5462
      %v5495 = vpack.c.b16 %v5463, %v5463
      %v5496 = vpack.c.b16 %v5464, %v5464
      %v5497 = vpack.c.b16 %v5465, %v5465
      %v5498 = vpack.c.b16 %v5466, %v5466
      %v5499 = vpack.c.b16 %v5467, %v5467
      %v5500 = vpack.c.b16 %v5468, %v5468
      %v5501 = vpack.c.b16 %v5469, %v5469
      %v5502 = vpack.c.b16 %v5470, %v5470
      %v5503 = vpack.c.b16 %v5471, %v5471
      %v5504 = vpack.c.b16 %v5472, %v5472
      %v5505 = vpack.c.b16 %v5473, %v5473
      %v5506 = vpack.c.b16 %v5474, %v5474
      %v5507 = vpack.c.b16 %v5475, %v5475
      %v5508 = vpack.c.b16 %v5476, %v5476
      %v5509 = vpack.c.b16 %v5477, %v5477
      %v5510 = vpack.c.b16 %v5478, %v5478
      %v5511 = vpack.c.b16 %v5479, %v5479
      %5544 = vst [vmem:[%s231] sm:$0xf] %v5480
      %5545 = vst [vmem:[%s231 + $0x4] sm:$0xf] %v5481
      %5546 = vst [vmem:[%s231 + $0x8] sm:$0xf] %v5482
      %5547 = vst [vmem:[%s231 + $0xc] sm:$0xf] %v5483
      %5548 = vst [vmem:[%s231 + $0x10] sm:$0xf] %v5484
      %5549 = vst [vmem:[%s231 + $0x14] sm:$0xf] %v5485
      %5550 = vst [vmem:[%s231 + $0x18] sm:$0xf] %v5486
      %5551 = vst [vmem:[%s231 + $0x1c] sm:$0xf] %v5487
      %5552 = vst [vmem:[%s231 + $0x20] sm:$0xf] %v5488
      %5553 = vst [vmem:[%s231 + $0x24] sm:$0xf] %v5489
      %5554 = vst [vmem:[%s231 + $0x28] sm:$0xf] %v5490
      %5555 = vst [vmem:[%s231 + $0x2c] sm:$0xf] %v5491
      %5556 = vst [vmem:[%s231 + $0x30] sm:$0xf] %v5492
      %5557 = vst [vmem:[%s231 + $0x34] sm:$0xf] %v5493
      %5558 = vst [vmem:[%s231 + $0x38] sm:$0xf] %v5494
      %5559 = vst [vmem:[%s231 + $0x3c] sm:$0xf] %v5495
      %5560 = vst [vmem:[%s231 + $0x40] sm:$0xf] %v5496
      %5561 = vst [vmem:[%s231 + $0x44] sm:$0xf] %v5497
      %5562 = vst [vmem:[%s231 + $0x48] sm:$0xf] %v5498
      %5563 = vst [vmem:[%s231 + $0x4c] sm:$0xf] %v5499
      %5564 = vst [vmem:[%s231 + $0x50] sm:$0xf] %v5500
      %5565 = vst [vmem:[%s231 + $0x54] sm:$0xf] %v5501
      %5566 = vst [vmem:[%s231 + $0x58] sm:$0xf] %v5502
      %5567 = vst [vmem:[%s231 + $0x5c] sm:$0xf] %v5503
      %5568 = vst [vmem:[%s231 + $0x60] sm:$0xf] %v5504
      %5569 = vst [vmem:[%s231 + $0x64] sm:$0xf] %v5505
      %5570 = vst [vmem:[%s231 + $0x68] sm:$0xf] %v5506
      %5571 = vst [vmem:[%s231 + $0x6c] sm:$0xf] %v5507
      %5572 = vst [vmem:[%s231 + $0x70] sm:$0xf] %v5508
      %5573 = vst [vmem:[%s231 + $0x74] sm:$0xf] %v5509
      %5574 = vst [vmem:[%s231 + $0x78] sm:$0xf] %v5510
      %5575 = vst [vmem:[%s231 + $0x7c] sm:$0xf] %v5511
      %v5576 = vadd.f32 %v5290, %v5293
      %v5577 = vadd.f32 %v5576, %v5298
      %v5578 = vadd.f32 %v5577, %v5301
      %v5579 = vadd.f32 %v5578, %v5306
      %v5580 = vadd.f32 %v5579, %v5309
      %v5581 = vadd.f32 %v5580, %v5314
      %v5582 = vadd.f32 %v5581, %v5317
      %v5583 = vadd.f32 %v5582, %v5322
      %v5584 = vadd.f32 %v5583, %v5325
      %v5585 = vadd.f32 %v5584, %v5330
      %v5586 = vadd.f32 %v5585, %v5333
      %v5587 = vadd.f32 %v5586, %v5338
      %v5588 = vadd.f32 %v5587, %v5341
      %v5589 = vadd.f32 %v5588, %v5346
      %v5590 = vadd.f32 %v5589, %v5349
      %v5591 = vadd.f32 %v5590, %v5354
      %v5592 = vadd.f32 %v5591, %v5357
      %v5593 = vadd.f32 %v5592, %v5362
      %v5594 = vadd.f32 %v5593, %v5365
      %v5595 = vadd.f32 %v5594, %v5370
      %v5596 = vadd.f32 %v5595, %v5373
      %v5597 = vadd.f32 %v5596, %v5378
      %v5598 = vadd.f32 %v5597, %v5381
      %v5599 = vadd.f32 %v5598, %v5386
      %v5600 = vadd.f32 %v5599, %v5389
      %v5601 = vadd.f32 %v5600, %v5394
      %v5602 = vadd.f32 %v5601, %v5397
      %v5603 = vadd.f32 %v5602, %v5402
      %v5604 = vadd.f32 %v5603, %v5405
      %v5605 = vadd.f32 %v5604, %v5410
      %v5606 = vadd.f32 %v5605, %v5413
      %v5607 = vrot.slane %v5606, 4
      %v5608 = vadd.f32 %v5606, %v5607
      %v5609 = vrot.slane %v5608, 2
      %v5610 = vadd.f32 %v5608, %v5609
      %v5611 = vrot.slane %v5610, 1
      %v5612 = vadd.f32 %v5610, %v5611
      %v5613 = vmul.f32 %v5290, %v5290
      %v5614 = vmul.f32 %v5293, %v5293
      %v5615 = vmul.f32 %v5298, %v5298
      %v5616 = vmul.f32 %v5301, %v5301
      %v5617 = vmul.f32 %v5306, %v5306
      %v5618 = vmul.f32 %v5309, %v5309
      %v5619 = vmul.f32 %v5314, %v5314
      %v5620 = vmul.f32 %v5317, %v5317
      %v5621 = vmul.f32 %v5322, %v5322
      %v5622 = vmul.f32 %v5325, %v5325
      %v5623 = vmul.f32 %v5330, %v5330
      %v5624 = vmul.f32 %v5333, %v5333
      %v5625 = vmul.f32 %v5338, %v5338
      %v5626 = vmul.f32 %v5341, %v5341
      %v5627 = vmul.f32 %v5346, %v5346
      %v5628 = vmul.f32 %v5349, %v5349
      %v5629 = vmul.f32 %v5354, %v5354
      %v5630 = vmul.f32 %v5357, %v5357
      %v5631 = vmul.f32 %v5362, %v5362
      %v5632 = vmul.f32 %v5365, %v5365
      %v5633 = vmul.f32 %v5370, %v5370
      %v5634 = vmul.f32 %v5373, %v5373
      %v5635 = vmul.f32 %v5378, %v5378
      %v5636 = vmul.f32 %v5381, %v5381
      %v5637 = vmul.f32 %v5386, %v5386
      %v5638 = vmul.f32 %v5389, %v5389
      %v5639 = vmul.f32 %v5394, %v5394
      %v5640 = vmul.f32 %v5397, %v5397
      %v5641 = vmul.f32 %v5402, %v5402
      %v5642 = vmul.f32 %v5405, %v5405
      %v5643 = vmul.f32 %v5410, %v5410
      %v5644 = vmul.f32 %v5413, %v5413
      %v5645 = vadd.f32 %v5613, %v5614
      %v5646 = vadd.f32 %v5645, %v5615
      %v5647 = vadd.f32 %v5646, %v5616
      %v5648 = vadd.f32 %v5647, %v5617
      %v5649 = vadd.f32 %v5648, %v5618
      %v5650 = vadd.f32 %v5649, %v5619
      %v5651 = vadd.f32 %v5650, %v5620
      %v5652 = vadd.f32 %v5651, %v5621
      %v5653 = vadd.f32 %v5652, %v5622
      %v5654 = vadd.f32 %v5653, %v5623
      %v5655 = vadd.f32 %v5654, %v5624
      %v5656 = vadd.f32 %v5655, %v5625
      %v5657 = vadd.f32 %v5656, %v5626
      %v5658 = vadd.f32 %v5657, %v5627
      %v5659 = vadd.f32 %v5658, %v5628
      %v5660 = vadd.f32 %v5659, %v5629
      %v5661 = vadd.f32 %v5660, %v5630
      %v5662 = vadd.f32 %v5661, %v5631
      %v5663 = vadd.f32 %v5662, %v5632
      %v5664 = vadd.f32 %v5663, %v5633
      %v5665 = vadd.f32 %v5664, %v5634
      %v5666 = vadd.f32 %v5665, %v5635
      %v5667 = vadd.f32 %v5666, %v5636
      %v5668 = vadd.f32 %v5667, %v5637
      %v5669 = vadd.f32 %v5668, %v5638
      %v5670 = vadd.f32 %v5669, %v5639
      %v5671 = vadd.f32 %v5670, %v5640
      %v5672 = vadd.f32 %v5671, %v5641
      %v5673 = vadd.f32 %v5672, %v5642
      %v5674 = vadd.f32 %v5673, %v5643
      %v5675 = vadd.f32 %v5674, %v5644
      %v5676 = vrot.slane %v5675, 4
      %v5677 = vadd.f32 %v5675, %v5676
      %v5678 = vrot.slane %v5677, 2
      %v5679 = vadd.f32 %v5677, %v5678
      %v5680 = vrot.slane %v5679, 1
      %v5681 = vadd.f32 %v5679, %v5680
      %vm5682 = vcmask 1040384
      %v5683 = vsel %vm5682, %v5612, %v5681
      %5684 = vst [vmem:[%s235] sm:$0x3] %v5683
      %p5685 = scmp.lt.s32.totalorder %s17, 1
      %s5686 = scalar_select %p5685, %s17, 1
      %s5687 = smul.addr %s5686, 32
      %s5688 = smul.addr %s5687, 4
      %s5689 = scalar_lea.vmem %s4, %s5688
      %p5690 = scmp.lt.s32.totalorder %s17, 1
      %s5691 = scalar_select %p5690, %s17, 1
      %s5692 = smul.addr %s5691, 2
      %s5693 = scalar_lea.vmem %s5, %s5692
      // Predicated region
      $region37: #{residual_block_forward.4} parent=35 // pred_check
        %p5694 = pneg %p124
      $region38: #{residual_block_forward.4} parent=35 // pred_check_branch
        %5696 = sbr.rel (%p5694) target = $region40
      $region39: #{residual_block_forward.4} parent=35 // pred_region
        _
      $region40: #{residual_block_forward.4} parent=35 // pred_fallthru
        _
      // Predicated region
      $region41: #{residual_block_forward.4} parent=35 // pred_check
        %p5697 = pneg %p150
      $region42: #{residual_block_forward.4} parent=35 // pred_check_branch
        %5699 = sbr.rel (%p5697) target = $region44
      $region43: #{residual_block_forward.4} parent=35 // pred_region
        _
      $region44: #{residual_block_forward.4} parent=35 // pred_fallthru
        _
    $region36: #{residual_block_forward.4} parent=5 // pred_fallthru
      _
    %p5700 = scmp.le.s32.totalorder 2, %s12
    // Predicated region
    $region45: #{residual_block_forward.4} parent=5 // pred_check
      %p5701 = pneg %p5700
    $region46: #{residual_block_forward.4} parent=5 // pred_check_branch
      %5703 = sbr.rel (%p5701) target = $region48
    $region47: #{residual_block_forward.4} parent=5 // pred_region
      %s5704 = ssub.s32 %s12, 2
      // Predicated region
      $region49: #{residual_block_forward.4} parent=47 // pred_check
        %p5705 = pneg %p130
      $region50: #{residual_block_forward.4} parent=47 // pred_check_branch
        %5707 = sbr.rel (%p5705) target = $region52
      $region51: #{residual_block_forward.4} parent=47 // pred_region
        %p5708 = scmp.lt.s32.totalorder %s18, 1
        %s5709 = scalar_select %p5708, %s18, 1
        %s5710 = smul.addr %s5709, 32
        %s5711 = smul.addr %s5710, 4
        %s5712 = scalar_lea.vmem %s4, %s5711
      $region52: #{residual_block_forward.4} parent=47 // pred_fallthru
        _
      // Predicated region
      $region53: #{residual_block_forward.4} parent=47 // pred_check
        %p5713 = pneg %p156
      $region54: #{residual_block_forward.4} parent=47 // pred_check_branch
        %5715 = sbr.rel (%p5713) target = $region56
      $region55: #{residual_block_forward.4} parent=47 // pred_region
        %p5716 = scmp.lt.s32.totalorder %s18, 1
        %s5717 = scalar_select %p5716, %s18, 1
        %s5718 = smul.addr %s5717, 2
        %s5719 = scalar_lea.vmem %s5, %s5718
      $region56: #{residual_block_forward.4} parent=47 // pred_fallthru
        _
    $region48: #{residual_block_forward.4} parent=5 // pred_fallthru
      _
  $region6: #{residual_block_forward.4} parent=0 // loop_footer
    %s16 = sadd.s32 1, %s12
  $region7: #{residual_block_forward.4} parent=0 // loop_footer_branch
    %11 = sbr.rel target = $region3
  $region8: #{residual_block_forward.4} parent=0 // loop_exit
    _

</llo_original>
